<compile_context>
chip_gen: v7x
topology: tpu7x:2x2x1
jax: 0.10.0
libtpu: 0.0.40
codegen_flags: <defaults>
</compile_context>

<pallas_src>
import functools

import jax
import jax.numpy as jnp
import numpy as np
from jax.experimental import pallas as pl
from jax.experimental.pallas import tpu as pltpu

PREC = jax.lax.Precision.HIGHEST


def _layer_norm(x, w, b, eps=1e-5):
    mu = jnp.mean(x, axis=-1, keepdims=True)
    var = jnp.mean((x - mu) ** 2, axis=-1, keepdims=True)
    return (x - mu) * jax.lax.rsqrt(var + eps) * w + b


# ----------------------------------------------------------------------------
# Fused Pallas kernel: all encoder layers (grid axis) + final fc (last step)
# ----------------------------------------------------------------------------
def fused_transformer_kernel(
        x_ref, wqkv_ref, bqkv_ref, wo_ref, bo_ref, ln1w_ref, ln1b_ref,
        w1_ref, b1_ref, w2_ref, b2_ref, ln2w_ref, ln2b_ref,
        fcw_ref, fcb_ref, o_ref, x_sc, *, num_heads):
    layer = pl.program_id(0)
    num_layers = pl.num_programs(0)
    B, S, D = x_sc.shape
    H = num_heads
    Dh = D // H
    scale = 1.0 / float(np.sqrt(Dh))

    # Load input activations into the resident VMEM scratch once (layer 0).
    @pl.when(layer == 0)
    def _():
        x_sc[...] = x_ref[...]

    x = x_sc[...].reshape(B * S, D)                      # f32 residual stream
    xb = x.astype(jnp.bfloat16)

    # --- multi-head self attention ------------------------------------------
    qkv = jnp.dot(xb, wqkv_ref[...],
                  preferred_element_type=jnp.float32) + bqkv_ref[...]
    q = qkv[:, 0 * D:1 * D].reshape(B, S, D)
    k = qkv[:, 1 * D:2 * D].reshape(B, S, D)
    v = qkv[:, 2 * D:3 * D].reshape(B, S, D)

    # Fold heads into a single leading batch dim -> (H*B, S, Dh): one batched
    # QK^T / PV pair instead of H tiny per-head matmuls.
    qh = jnp.concatenate([q[:, :, h * Dh:(h + 1) * Dh] for h in range(H)], axis=0)
    kh = jnp.concatenate([k[:, :, h * Dh:(h + 1) * Dh] for h in range(H)], axis=0)
    vh = jnp.concatenate([v[:, :, h * Dh:(h + 1) * Dh] for h in range(H)], axis=0)

    s = jnp.einsum('zqd,zkd->zqk', qh * scale, kh, precision=PREC,
                   preferred_element_type=jnp.float32)   # (H*B, S, S)
    s = s - jnp.max(s, axis=-1, keepdims=True)
    p = jnp.exp(s)
    p = p * pl.reciprocal(jnp.sum(p, axis=-1, keepdims=True), approx=True)
    ctx = jnp.einsum('zqk,zkd->zqd', p, vh, precision=PREC,
                     preferred_element_type=jnp.float32)  # (H*B, S, Dh)
    ctx = jnp.concatenate([ctx[h * B:(h + 1) * B] for h in range(H)], axis=-1)
    ctx = ctx.reshape(B * S, D)

    attn = jnp.dot(ctx.astype(jnp.bfloat16), wo_ref[...],
                   preferred_element_type=jnp.float32) + bo_ref[...]

    # residual + LayerNorm 1 (post-norm, eps=1e-5)
    y = _layer_norm(x + attn, ln1w_ref[...], ln1b_ref[...])

    # --- feed forward: Linear -> ReLU -> Linear -------------------------------
    h1 = jnp.dot(y.astype(jnp.bfloat16), w1_ref[...],
                 preferred_element_type=jnp.float32) + b1_ref[...]
    h1 = jnp.maximum(h1, 0.0)
    ff = jnp.dot(h1.astype(jnp.bfloat16), w2_ref[...],
                 preferred_element_type=jnp.float32) + b2_ref[...]

    z = _layer_norm(y + ff, ln2w_ref[...], ln2b_ref[...])
    z_bsd = z.reshape(B, S, D)
    x_sc[...] = z_bsd                                    # carry to next layer

    # Fused final fc on the last sequence position, only at the last layer.
    @pl.when(layer == num_layers - 1)
    def _():
        x_last = z_bsd[:, S - 1, :]                      # == PyTorch out[-1], (B, D)
        o_ref[...] = jnp.dot(x_last.astype(jnp.bfloat16), fcw_ref[...],
                             preferred_element_type=jnp.float32) + fcb_ref[...]


# ----------------------------------------------------------------------------
# Wrapper: one pallas_call, grid over layers, weights streamed per layer
# ----------------------------------------------------------------------------
def transformer_model(x_sbd, params, *, num_heads):
    """Matches TransformerModel.forward; x is (S, B, D) (PyTorch batch_first=False)."""
    S, B, D = x_sbd.shape
    L, _, F = params['w1'].shape
    O = params['fc_w'].shape[1]

    x = jnp.swapaxes(x_sbd, 0, 1)                        # (B, S, D) -- glue

    bf16 = jnp.bfloat16
    args = (
        x,
        params['wqkv'].astype(bf16), params['bqkv'],
        params['wo'].astype(bf16), params['bo'],
        params['ln1w'], params['ln1b'],
        params['w1'].astype(bf16), params['b1'],
        params['w2'].astype(bf16), params['b2'],
        params['ln2w'], params['ln2b'],
        params['fc_w'].astype(bf16), params['fc_b'],
    )

    def per_layer(*shape):
        n = len(shape)
        return pl.BlockSpec((None,) + shape, lambda l: (l,) + (0,) * n)

    in_specs = [
        pl.BlockSpec((B, S, D), lambda l: (0, 0, 0)),    # x (read once at l == 0)
        per_layer(D, 3 * D), per_layer(1, 3 * D),        # wqkv, bqkv
        per_layer(D, D), per_layer(1, D),                # wo, bo
        per_layer(1, D), per_layer(1, D),                # ln1w, ln1b
        per_layer(D, F), per_layer(1, F),                # w1, b1
        per_layer(F, D), per_layer(1, D),                # w2, b2
        per_layer(1, D), per_layer(1, D),                # ln2w, ln2b
        pl.BlockSpec((D, O), lambda l: (0, 0)),          # fc_w
        pl.BlockSpec((1, O), lambda l: (0, 0)),          # fc_b
    ]

    grid_spec = pltpu.PrefetchScalarGridSpec(
        num_scalar_prefetch=0,
        grid=(L,),
        in_specs=in_specs,
        out_specs=pl.BlockSpec((B, O), lambda l: (0, 0)),
        scratch_shapes=[pltpu.VMEM((B, S, D), jnp.float32)],   # resident activations
    )

    return pl.pallas_call(
        functools.partial(fused_transformer_kernel, num_heads=num_heads),
        out_shape=jax.ShapeDtypeStruct((B, O), jnp.float32),
        grid_spec=grid_spec,
        compiler_params=pltpu.CompilerParams(
            dimension_semantics=("arbitrary",),          # layer axis is sequential
            vmem_limit_bytes=32 * 1024 * 1024,
        ),
    )(*args)


# ----------------------------------------------------------------------------
# Pure-JAX reference with the same numerics (bf16 MXU operands, f32 accumulate)
# ----------------------------------------------------------------------------
def ref_transformer_model(x_sbd, params, *, num_heads):
    x = jnp.swapaxes(x_sbd, 0, 1)
    B, S, D = x.shape
    L = params['wqkv'].shape[0]
    H = num_heads
    Dh = D // H
    scale = 1.0 / float(np.sqrt(Dh))

    def mm(a, w):
        return jnp.dot(a.astype(jnp.bfloat16), w.astype(jnp.bfloat16),
                       preferred_element_type=jnp.float32)

    for l in range(L):
        xf = x.reshape(B * S, D)
        qkv = mm(xf, params['wqkv'][l]) + params['bqkv'][l]
        q = qkv[:, 0 * D:1 * D].reshape(B, S, H, Dh)
        k = qkv[:, 1 * D:2 * D].reshape(B, S, H, Dh)
        v = qkv[:, 2 * D:3 * D].reshape(B, S, H, Dh)
        s = jnp.einsum('bqhd,bkhd->bhqk', q * scale, k, precision=PREC)
        p = jax.nn.softmax(s, axis=-1)
        ctx = jnp.einsum('bhqk,bkhd->bqhd', p, v, precision=PREC).reshape(B * S, D)
        attn = mm(ctx, params['wo'][l]) + params['bo'][l]
        y = _layer_norm(xf + attn, params['ln1w'][l], params['ln1b'][l])
        h1 = jnp.maximum(mm(y, params['w1'][l]) + params['b1'][l], 0.0)
        ff = mm(h1, params['w2'][l]) + params['b2'][l]
        x = _layer_norm(y + ff, params['ln2w'][l], params['ln2b'][l]).reshape(B, S, D)
    return mm(x[:, S - 1, :], params['fc_w']) + params['fc_b']


# ----------------------------------------------------------------------------
# Deterministic parameters (per-layer tensors stacked along leading L axis;
# weights stored (in, out), i.e. transposed vs nn.Linear). f32 master copies.
# ----------------------------------------------------------------------------
def make_params(key, d_model, dim_ff, num_layers, output_size):
    L, D, F, O = num_layers, d_model, dim_ff, output_size
    ks = jax.random.split(key, 8)

    def rnd(k, shape, s):
        return s * jax.random.normal(k, shape, jnp.float32)

    return {
        'wqkv': rnd(ks[0], (L, D, 3 * D), 0.05),   # in_proj_weight^T
        'bqkv': rnd(ks[1], (L, 1, 3 * D), 0.01),
        'wo':   rnd(ks[2], (L, D, D), 0.05),       # out_proj.weight^T
        'bo':   rnd(ks[3], (L, 1, D), 0.01),
        'ln1w': jnp.ones((L, 1, D), jnp.float32),
        'ln1b': jnp.zeros((L, 1, D), jnp.float32),
        'w1':   rnd(ks[4], (L, D, F), 0.05),       # linear1.weight^T
        'b1':   rnd(ks[5], (L, 1, F), 0.01),
        'w2':   rnd(ks[6], (L, F, D), 0.05),       # linear2.weight^T
        'b2':   rnd(ks[7], (L, 1, D), 0.01),
        'ln2w': jnp.ones((L, 1, D), jnp.float32),
        'ln2b': jnp.zeros((L, 1, D), jnp.float32),
        'fc_w': rnd(jax.random.fold_in(key, 100), (D, O), 0.05),  # fc.weight^T
        'fc_b': rnd(jax.random.fold_in(key, 101), (1, O), 0.01),
    }


if __name__ == "__main__":
    # Hyper-params implied by TransformerModel(__init__):
    d_model = 32            # input_size
    num_heads = 4
    num_layers = 2
    output_size = 16
    dim_feedforward = 2048  # nn.TransformerEncoderLayer default

    seq_len, batch = 8, 2

    key = jax.random.PRNGKey(0)
    kx, kp = jax.random.split(key)
    # PyTorch seq-first input: (S, B, D)
    x = jax.random.normal(kx, (seq_len, batch, d_model), jnp.float32)

    params = make_params(kp, d_model, dim_feedforward, num_layers, output_size)

    fwd = jax.jit(functools.partial(transformer_model, num_heads=num_heads))
    out = jax.block_until_ready(fwd(x, params))

    ref = jax.block_until_ready(
        ref_transformer_model(x, params, num_heads=num_heads))

    np.testing.assert_allclose(np.asarray(out), np.asarray(ref),
                               rtol=2e-3, atol=2e-3)
    assert out.shape == (batch, output_size)
    print("KERNEL_OK")
</pallas_src>

<mosaic_0001>
module attributes {stable_mosaic.version = 11 : i64} {
  func.func @fused_transformer_kernel(%arg0: i32, %arg1: memref<2x8x32xf32, #tpu.memory_space<vmem>>, %arg2: memref<1x32x96xbf16, #tpu.memory_space<vmem>>, %arg3: memref<1x1x96xf32, #tpu.memory_space<vmem>>, %arg4: memref<1x32x32xbf16, #tpu.memory_space<vmem>>, %arg5: memref<1x1x32xf32, #tpu.memory_space<vmem>>, %arg6: memref<1x1x32xf32, #tpu.memory_space<vmem>>, %arg7: memref<1x1x32xf32, #tpu.memory_space<vmem>>, %arg8: memref<1x32x2048xbf16, #tpu.memory_space<vmem>>, %arg9: memref<1x1x2048xf32, #tpu.memory_space<vmem>>, %arg10: memref<1x2048x32xbf16, #tpu.memory_space<vmem>>, %arg11: memref<1x1x32xf32, #tpu.memory_space<vmem>>, %arg12: memref<1x1x32xf32, #tpu.memory_space<vmem>>, %arg13: memref<1x1x32xf32, #tpu.memory_space<vmem>>, %arg14: memref<32x16xbf16, #tpu.memory_space<vmem>>, %arg15: memref<1x16xf32, #tpu.memory_space<vmem>>, %arg16: memref<2x16xf32, #tpu.memory_space<vmem>>, %arg17: memref<2x8x32xf32, #tpu.memory_space<vmem>>) attributes {dimension_semantics = [#tpu.dimension_semantics<arbitrary>], iteration_bounds = array<i64: 2>, scalar_prefetch = 0 : i64, scratch_operands = 1 : i64, tpu.core_type = #tpu.core_type<tc>, window_params = [{pipeline_mode = #tpu.pipeline_mode<synchronous>, transform_indices = @transform_0, window_bounds = array<i64: 2, 8, 32>}, {transform_indices = @transform_1, window_bounds = array<i64: 1, 32, 96>}, {transform_indices = @transform_2, window_bounds = array<i64: 1, 1, 96>}, {transform_indices = @transform_3, window_bounds = array<i64: 1, 32, 32>}, {transform_indices = @transform_4, window_bounds = array<i64: 1, 1, 32>}, {transform_indices = @transform_5, window_bounds = array<i64: 1, 1, 32>}, {transform_indices = @transform_6, window_bounds = array<i64: 1, 1, 32>}, {transform_indices = @transform_7, window_bounds = array<i64: 1, 32, 2048>}, {transform_indices = @transform_8, window_bounds = array<i64: 1, 1, 2048>}, {transform_indices = @transform_9, window_bounds = array<i64: 1, 2048, 32>}, {transform_indices = @transform_10, window_bounds = array<i64: 1, 1, 32>}, {transform_indices = @transform_11, window_bounds = array<i64: 1, 1, 32>}, {transform_indices = @transform_12, window_bounds = array<i64: 1, 1, 32>}, {pipeline_mode = #tpu.pipeline_mode<synchronous>, transform_indices = @transform_13, window_bounds = array<i64: 32, 16>}, {pipeline_mode = #tpu.pipeline_mode<synchronous>, transform_indices = @transform_14, window_bounds = array<i64: 1, 16>}, {pipeline_mode = #tpu.pipeline_mode<synchronous>, transform_indices = @transform_15, window_bounds = array<i64: 2, 16>}]} {
    %c0_i32 = arith.constant 0 : i32
    %0 = arith.cmpi eq, %arg0, %c0_i32 : i32
    %1 = arith.extui %0 : i1 to i32
    %c0_i32_0 = arith.constant 0 : i32
    %2 = arith.cmpi ne, %1, %c0_i32_0 : i32
    scf.if %2 {
      %c0_62 = arith.constant 0 : index
      %c0_63 = arith.constant 0 : index
      %c0_64 = arith.constant 0 : index
      %139 = vector.load %arg1[%c0_62, %c0_63, %c0_64] : memref<2x8x32xf32, #tpu.memory_space<vmem>>, vector<2x8x32xf32>
      %c0_65 = arith.constant 0 : index
      %c0_66 = arith.constant 0 : index
      %c0_67 = arith.constant 0 : index
      %140 = vector.load %arg17[%c0_65, %c0_66, %c0_67] : memref<2x8x32xf32, #tpu.memory_space<vmem>>, vector<2x8x32xf32>
      tpu.vector_store %arg17[%c0_65, %c0_66, %c0_67], %139 {strides = array<i32>} : memref<2x8x32xf32, #tpu.memory_space<vmem>>, vector<2x8x32xf32>,
    } else {
    }
    %c0 = arith.constant 0 : index
    %c0_1 = arith.constant 0 : index
    %c0_2 = arith.constant 0 : index
    %3 = vector.load %arg17[%c0, %c0_1, %c0_2] : memref<2x8x32xf32, #tpu.memory_space<vmem>>, vector<2x8x32xf32>
    %4 = vector.shape_cast %3 : vector<2x8x32xf32> to vector<16x32xf32>
    %5 = arith.truncf %4 : vector<16x32xf32> to vector<16x32xbf16>
    %c0_3 = arith.constant 0 : index
    %c0_4 = arith.constant 0 : index
    %c0_5 = arith.constant 0 : index
    %6 = vector.load %arg2[%c0_3, %c0_4, %c0_5] : memref<1x32x96xbf16, #tpu.memory_space<vmem>>, vector<1x32x96xbf16>
    %7 = vector.shape_cast %6 : vector<1x32x96xbf16> to vector<32x96xbf16>
    %cst = arith.constant dense<0.000000e+00> : vector<16x96xf32>
    %8 = tpu.matmul %5, %7, %cst {dimension_numbers = #tpu.dot_dimension_numbers<[1], [0], [0], [1], [0, 0, 1, 1], [], []>} : vector<16x32xbf16>, vector<32x96xbf16>, vector<16x96xf32> -> vector<16x96xf32>
    %c0_6 = arith.constant 0 : index
    %c0_7 = arith.constant 0 : index
    %c0_8 = arith.constant 0 : index
    %9 = vector.load %arg3[%c0_6, %c0_7, %c0_8] : memref<1x1x96xf32, #tpu.memory_space<vmem>>, vector<1x1x96xf32>
    %10 = vector.shape_cast %9 : vector<1x1x96xf32> to vector<1x96xf32>
    %11 = vector.broadcast %10 : vector<1x96xf32> to vector<16x96xf32>
    %12 = arith.addf %8, %11 : vector<16x96xf32>
    %13 = vector.extract_strided_slice %12 {offsets = [0, 0], sizes = [16, 32], strides = [1, 1]} : vector<16x96xf32> to vector<16x32xf32>
    %14 = vector.shape_cast %13 : vector<16x32xf32> to vector<2x8x32xf32>
    %15 = vector.extract_strided_slice %12 {offsets = [0, 32], sizes = [16, 32], strides = [1, 1]} : vector<16x96xf32> to vector<16x32xf32>
    %16 = vector.shape_cast %15 : vector<16x32xf32> to vector<2x8x32xf32>
    %17 = vector.extract_strided_slice %12 {offsets = [0, 64], sizes = [16, 32], strides = [1, 1]} : vector<16x96xf32> to vector<16x32xf32>
    %18 = vector.shape_cast %17 : vector<16x32xf32> to vector<2x8x32xf32>
    %19 = vector.extract_strided_slice %14 {offsets = [0, 0, 0], sizes = [2, 8, 8], strides = [1, 1, 1]} : vector<2x8x32xf32> to vector<2x8x8xf32>
    %20 = vector.extract_strided_slice %14 {offsets = [0, 0, 8], sizes = [2, 8, 8], strides = [1, 1, 1]} : vector<2x8x32xf32> to vector<2x8x8xf32>
    %21 = vector.extract_strided_slice %14 {offsets = [0, 0, 16], sizes = [2, 8, 8], strides = [1, 1, 1]} : vector<2x8x32xf32> to vector<2x8x8xf32>
    %22 = vector.extract_strided_slice %14 {offsets = [0, 0, 24], sizes = [2, 8, 8], strides = [1, 1, 1]} : vector<2x8x32xf32> to vector<2x8x8xf32>
    %23 = tpu.concatenate %19, %20, %21, %22 in 0 : vector<2x8x8xf32>, vector<2x8x8xf32>, vector<2x8x8xf32>, vector<2x8x8xf32> -> vector<8x8x8xf32>
    %24 = vector.extract_strided_slice %16 {offsets = [0, 0, 0], sizes = [2, 8, 8], strides = [1, 1, 1]} : vector<2x8x32xf32> to vector<2x8x8xf32>
    %25 = vector.extract_strided_slice %16 {offsets = [0, 0, 8], sizes = [2, 8, 8], strides = [1, 1, 1]} : vector<2x8x32xf32> to vector<2x8x8xf32>
    %26 = vector.extract_strided_slice %16 {offsets = [0, 0, 16], sizes = [2, 8, 8], strides = [1, 1, 1]} : vector<2x8x32xf32> to vector<2x8x8xf32>
    %27 = vector.extract_strided_slice %16 {offsets = [0, 0, 24], sizes = [2, 8, 8], strides = [1, 1, 1]} : vector<2x8x32xf32> to vector<2x8x8xf32>
    %28 = tpu.concatenate %24, %25, %26, %27 in 0 : vector<2x8x8xf32>, vector<2x8x8xf32>, vector<2x8x8xf32>, vector<2x8x8xf32> -> vector<8x8x8xf32>
    %29 = vector.extract_strided_slice %18 {offsets = [0, 0, 0], sizes = [2, 8, 8], strides = [1, 1, 1]} : vector<2x8x32xf32> to vector<2x8x8xf32>
    %30 = vector.extract_strided_slice %18 {offsets = [0, 0, 8], sizes = [2, 8, 8], strides = [1, 1, 1]} : vector<2x8x32xf32> to vector<2x8x8xf32>
    %31 = vector.extract_strided_slice %18 {offsets = [0, 0, 16], sizes = [2, 8, 8], strides = [1, 1, 1]} : vector<2x8x32xf32> to vector<2x8x8xf32>
    %32 = vector.extract_strided_slice %18 {offsets = [0, 0, 24], sizes = [2, 8, 8], strides = [1, 1, 1]} : vector<2x8x32xf32> to vector<2x8x8xf32>
    %33 = tpu.concatenate %29, %30, %31, %32 in 0 : vector<2x8x8xf32>, vector<2x8x8xf32>, vector<2x8x8xf32>, vector<2x8x8xf32> -> vector<8x8x8xf32>
    %cst_9 = arith.constant 0.353553385 : f32
    %34 = vector.broadcast %cst_9 : f32 to vector<8x8x8xf32>
    %35 = arith.mulf %23, %34 : vector<8x8x8xf32>
    "tpu.trace_start"() <{level = 10 : i32, message = "zqd,zkd->zqk"}> : () -> ()
    %cst_10 = arith.constant dense<0.000000e+00> : vector<8x8x8xf32>
    %36 = tpu.matmul %35, %28, %cst_10 {dimension_numbers = #tpu.dot_dimension_numbers<[2], [2], [1], [1], [0, 0, 0, 1, 1, 1], [0], [0]>, precision = #tpu.contract_precision<fp32>} : vector<8x8x8xf32>, vector<8x8x8xf32>, vector<8x8x8xf32> -> vector<8x8x8xf32>
    "tpu.trace_stop"() : () -> ()
    %cst_11 = arith.constant dense<0xFF800000> : vector<8x8xf32>
    %37 = vector.multi_reduction <maximumf>, %36, %cst_11 [2] : vector<8x8x8xf32> to vector<8x8xf32>
    %38 = vector.shape_cast %37 : vector<8x8xf32> to vector<8x8x1xf32>
    %39 = vector.broadcast %38 : vector<8x8x1xf32> to vector<8x8x8xf32>
    %40 = arith.subf %36, %39 : vector<8x8x8xf32>
    %41 = math.exp %40 : vector<8x8x8xf32>
    %cst_12 = arith.constant dense<0.000000e+00> : vector<8x8xf32>
    %42 = vector.multi_reduction <add>, %41, %cst_12 [2] : vector<8x8x8xf32> to vector<8x8xf32>
    %43 = vector.shape_cast %42 : vector<8x8xf32> to vector<8x8x1xf32>
    %44 = tpu.reciprocal %43 {approx = true} : vector<8x8x1xf32> -> vector<8x8x1xf32>
    %45 = vector.broadcast %44 : vector<8x8x1xf32> to vector<8x8x8xf32>
    %46 = arith.mulf %41, %45 : vector<8x8x8xf32>
    "tpu.trace_start"() <{level = 10 : i32, message = "zqk,zkd->zqd"}> : () -> ()
    %cst_13 = arith.constant dense<0.000000e+00> : vector<8x8x8xf32>
    %47 = tpu.matmul %46, %33, %cst_13 {dimension_numbers = #tpu.dot_dimension_numbers<[2], [1], [1], [2], [0, 0, 0, 1, 1, 2], [0], [0]>, precision = #tpu.contract_precision<fp32>} : vector<8x8x8xf32>, vector<8x8x8xf32>, vector<8x8x8xf32> -> vector<8x8x8xf32>
    "tpu.trace_stop"() : () -> ()
    %48 = vector.extract_strided_slice %47 {offsets = [0, 0, 0], sizes = [2, 8, 8], strides = [1, 1, 1]} : vector<8x8x8xf32> to vector<2x8x8xf32>
    %49 = vector.extract_strided_slice %47 {offsets = [2, 0, 0], sizes = [2, 8, 8], strides = [1, 1, 1]} : vector<8x8x8xf32> to vector<2x8x8xf32>
    %50 = vector.extract_strided_slice %47 {offsets = [4, 0, 0], sizes = [2, 8, 8], strides = [1, 1, 1]} : vector<8x8x8xf32> to vector<2x8x8xf32>
    %51 = vector.extract_strided_slice %47 {offsets = [6, 0, 0], sizes = [2, 8, 8], strides = [1, 1, 1]} : vector<8x8x8xf32> to vector<2x8x8xf32>
    %52 = tpu.concatenate %48, %49, %50, %51 in 2 : vector<2x8x8xf32>, vector<2x8x8xf32>, vector<2x8x8xf32>, vector<2x8x8xf32> -> vector<2x8x32xf32>
    %53 = vector.shape_cast %52 : vector<2x8x32xf32> to vector<16x32xf32>
    %54 = arith.truncf %53 : vector<16x32xf32> to vector<16x32xbf16>
    %c0_14 = arith.constant 0 : index
    %c0_15 = arith.constant 0 : index
    %c0_16 = arith.constant 0 : index
    %55 = vector.load %arg4[%c0_14, %c0_15, %c0_16] : memref<1x32x32xbf16, #tpu.memory_space<vmem>>, vector<1x32x32xbf16>
    %56 = vector.shape_cast %55 : vector<1x32x32xbf16> to vector<32x32xbf16>
    %cst_17 = arith.constant dense<0.000000e+00> : vector<16x32xf32>
    %57 = tpu.matmul %54, %56, %cst_17 {dimension_numbers = #tpu.dot_dimension_numbers<[1], [0], [0], [1], [0, 0, 1, 1], [], []>} : vector<16x32xbf16>, vector<32x32xbf16>, vector<16x32xf32> -> vector<16x32xf32>
    %c0_18 = arith.constant 0 : index
    %c0_19 = arith.constant 0 : index
    %c0_20 = arith.constant 0 : index
    %58 = vector.load %arg5[%c0_18, %c0_19, %c0_20] : memref<1x1x32xf32, #tpu.memory_space<vmem>>, vector<1x1x32xf32>
    %59 = vector.shape_cast %58 : vector<1x1x32xf32> to vector<1x32xf32>
    %60 = vector.broadcast %59 : vector<1x32xf32> to vector<16x32xf32>
    %61 = arith.addf %57, %60 : vector<16x32xf32>
    %62 = arith.addf %4, %61 : vector<16x32xf32>
    %c0_21 = arith.constant 0 : index
    %c0_22 = arith.constant 0 : index
    %c0_23 = arith.constant 0 : index
    %63 = vector.load %arg6[%c0_21, %c0_22, %c0_23] : memref<1x1x32xf32, #tpu.memory_space<vmem>>, vector<1x1x32xf32>
    %64 = vector.shape_cast %63 : vector<1x1x32xf32> to vector<1x32xf32>
    %c0_24 = arith.constant 0 : index
    %c0_25 = arith.constant 0 : index
    %c0_26 = arith.constant 0 : index
    %65 = vector.load %arg7[%c0_24, %c0_25, %c0_26] : memref<1x1x32xf32, #tpu.memory_space<vmem>>, vector<1x1x32xf32>
    %66 = vector.shape_cast %65 : vector<1x1x32xf32> to vector<1x32xf32>
    %cst_27 = arith.constant dense<0.000000e+00> : vector<16xf32>
    %67 = vector.multi_reduction <add>, %62, %cst_27 [1] : vector<16x32xf32> to vector<16xf32>
    %68 = vector.shape_cast %67 : vector<16xf32> to vector<16x1xf32>
    %cst_28 = arith.constant 3.200000e+01 : f32
    %69 = vector.broadcast %cst_28 : f32 to vector<16x1xf32>
    %70 = arith.divf %68, %69 : vector<16x1xf32>
    %71 = vector.broadcast %70 : vector<16x1xf32> to vector<16x32xf32>
    %72 = arith.subf %62, %71 : vector<16x32xf32>
    %73 = arith.mulf %72, %72 : vector<16x32xf32>
    %cst_29 = arith.constant dense<0.000000e+00> : vector<16xf32>
    %74 = vector.multi_reduction <add>, %73, %cst_29 [1] : vector<16x32xf32> to vector<16xf32>
    %75 = vector.shape_cast %74 : vector<16xf32> to vector<16x1xf32>
    %cst_30 = arith.constant 3.200000e+01 : f32
    %76 = vector.broadcast %cst_30 : f32 to vector<16x1xf32>
    %77 = arith.divf %75, %76 : vector<16x1xf32>
    %78 = vector.broadcast %70 : vector<16x1xf32> to vector<16x32xf32>
    %79 = arith.subf %62, %78 : vector<16x32xf32>
    %cst_31 = arith.constant 9.99999974E-6 : f32
    %80 = vector.broadcast %cst_31 : f32 to vector<16x1xf32>
    %81 = arith.addf %77, %80 : vector<16x1xf32>
    %82 = math.rsqrt %81 : vector<16x1xf32>
    %83 = vector.broadcast %82 : vector<16x1xf32> to vector<16x32xf32>
    %84 = arith.mulf %79, %83 : vector<16x32xf32>
    %85 = vector.broadcast %64 : vector<1x32xf32> to vector<16x32xf32>
    %86 = arith.mulf %84, %85 : vector<16x32xf32>
    %87 = vector.broadcast %66 : vector<1x32xf32> to vector<16x32xf32>
    %88 = arith.addf %86, %87 : vector<16x32xf32>
    %89 = arith.truncf %88 : vector<16x32xf32> to vector<16x32xbf16>
    %c0_32 = arith.constant 0 : index
    %c0_33 = arith.constant 0 : index
    %c0_34 = arith.constant 0 : index
    %90 = vector.load %arg8[%c0_32, %c0_33, %c0_34] : memref<1x32x2048xbf16, #tpu.memory_space<vmem>>, vector<1x32x2048xbf16>
    %91 = vector.shape_cast %90 : vector<1x32x2048xbf16> to vector<32x2048xbf16>
    %cst_35 = arith.constant dense<0.000000e+00> : vector<16x2048xf32>
    %92 = tpu.matmul %89, %91, %cst_35 {dimension_numbers = #tpu.dot_dimension_numbers<[1], [0], [0], [1], [0, 0, 1, 1], [], []>} : vector<16x32xbf16>, vector<32x2048xbf16>, vector<16x2048xf32> -> vector<16x2048xf32>
    %c0_36 = arith.constant 0 : index
    %c0_37 = arith.constant 0 : index
    %c0_38 = arith.constant 0 : index
    %93 = vector.load %arg9[%c0_36, %c0_37, %c0_38] : memref<1x1x2048xf32, #tpu.memory_space<vmem>>, vector<1x1x2048xf32>
    %94 = vector.shape_cast %93 : vector<1x1x2048xf32> to vector<1x2048xf32>
    %95 = vector.broadcast %94 : vector<1x2048xf32> to vector<16x2048xf32>
    %96 = arith.addf %92, %95 : vector<16x2048xf32>
    %cst_39 = arith.constant 0.000000e+00 : f32
    %97 = vector.broadcast %cst_39 : f32 to vector<16x2048xf32>
    %98 = arith.maximumf %96, %97 : vector<16x2048xf32>
    %99 = arith.truncf %98 : vector<16x2048xf32> to vector<16x2048xbf16>
    %c0_40 = arith.constant 0 : index
    %c0_41 = arith.constant 0 : index
    %c0_42 = arith.constant 0 : index
    %100 = vector.load %arg10[%c0_40, %c0_41, %c0_42] : memref<1x2048x32xbf16, #tpu.memory_space<vmem>>, vector<1x2048x32xbf16>
    %101 = vector.shape_cast %100 : vector<1x2048x32xbf16> to vector<2048x32xbf16>
    %cst_43 = arith.constant dense<0.000000e+00> : vector<16x32xf32>
    %102 = tpu.matmul %99, %101, %cst_43 {dimension_numbers = #tpu.dot_dimension_numbers<[1], [0], [0], [1], [0, 0, 1, 1], [], []>} : vector<16x2048xbf16>, vector<2048x32xbf16>, vector<16x32xf32> -> vector<16x32xf32>
    %c0_44 = arith.constant 0 : index
    %c0_45 = arith.constant 0 : index
    %c0_46 = arith.constant 0 : index
    %103 = vector.load %arg11[%c0_44, %c0_45, %c0_46] : memref<1x1x32xf32, #tpu.memory_space<vmem>>, vector<1x1x32xf32>
    %104 = vector.shape_cast %103 : vector<1x1x32xf32> to vector<1x32xf32>
    %105 = vector.broadcast %104 : vector<1x32xf32> to vector<16x32xf32>
    %106 = arith.addf %102, %105 : vector<16x32xf32>
    %107 = arith.addf %88, %106 : vector<16x32xf32>
    %c0_47 = arith.constant 0 : index
    %c0_48 = arith.constant 0 : index
    %c0_49 = arith.constant 0 : index
    %108 = vector.load %arg12[%c0_47, %c0_48, %c0_49] : memref<1x1x32xf32, #tpu.memory_space<vmem>>, vector<1x1x32xf32>
    %109 = vector.shape_cast %108 : vector<1x1x32xf32> to vector<1x32xf32>
    %c0_50 = arith.constant 0 : index
    %c0_51 = arith.constant 0 : index
    %c0_52 = arith.constant 0 : index
    %110 = vector.load %arg13[%c0_50, %c0_51, %c0_52] : memref<1x1x32xf32, #tpu.memory_space<vmem>>, vector<1x1x32xf32>
    %111 = vector.shape_cast %110 : vector<1x1x32xf32> to vector<1x32xf32>
    %cst_53 = arith.constant dense<0.000000e+00> : vector<16xf32>
    %112 = vector.multi_reduction <add>, %107, %cst_53 [1] : vector<16x32xf32> to vector<16xf32>
    %113 = vector.shape_cast %112 : vector<16xf32> to vector<16x1xf32>
    %cst_54 = arith.constant 3.200000e+01 : f32
    %114 = vector.broadcast %cst_54 : f32 to vector<16x1xf32>
    %115 = arith.divf %113, %114 : vector<16x1xf32>
    %116 = vector.broadcast %115 : vector<16x1xf32> to vector<16x32xf32>
    %117 = arith.subf %107, %116 : vector<16x32xf32>
    %118 = arith.mulf %117, %117 : vector<16x32xf32>
    %cst_55 = arith.constant dense<0.000000e+00> : vector<16xf32>
    %119 = vector.multi_reduction <add>, %118, %cst_55 [1] : vector<16x32xf32> to vector<16xf32>
    %120 = vector.shape_cast %119 : vector<16xf32> to vector<16x1xf32>
    %cst_56 = arith.constant 3.200000e+01 : f32
    %121 = vector.broadcast %cst_56 : f32 to vector<16x1xf32>
    %122 = arith.divf %120, %121 : vector<16x1xf32>
    %123 = vector.broadcast %115 : vector<16x1xf32> to vector<16x32xf32>
    %124 = arith.subf %107, %123 : vector<16x32xf32>
    %cst_57 = arith.constant 9.99999974E-6 : f32
    %125 = vector.broadcast %cst_57 : f32 to vector<16x1xf32>
    %126 = arith.addf %122, %125 : vector<16x1xf32>
    %127 = math.rsqrt %126 : vector<16x1xf32>
    %128 = vector.broadcast %127 : vector<16x1xf32> to vector<16x32xf32>
    %129 = arith.mulf %124, %128 : vector<16x32xf32>
    %130 = vector.broadcast %109 : vector<1x32xf32> to vector<16x32xf32>
    %131 = arith.mulf %129, %130 : vector<16x32xf32>
    %132 = vector.broadcast %111 : vector<1x32xf32> to vector<16x32xf32>
    %133 = arith.addf %131, %132 : vector<16x32xf32>
    %134 = vector.shape_cast %133 : vector<16x32xf32> to vector<2x8x32xf32>
    %c0_58 = arith.constant 0 : index
    %c0_59 = arith.constant 0 : index
    %c0_60 = arith.constant 0 : index
    %135 = vector.load %arg17[%c0_58, %c0_59, %c0_60] : memref<2x8x32xf32, #tpu.memory_space<vmem>>, vector<2x8x32xf32>
    tpu.vector_store %arg17[%c0_58, %c0_59, %c0_60], %134 {strides = array<i32>} : memref<2x8x32xf32, #tpu.memory_space<vmem>>, vector<2x8x32xf32>,
    %c1_i32 = arith.constant 1 : i32
    %136 = arith.cmpi eq, %arg0, %c1_i32 : i32
    %137 = arith.extui %136 : i1 to i32
    %c0_i32_61 = arith.constant 0 : i32
    %138 = arith.cmpi ne, %137, %c0_i32_61 : i32
    scf.if %138 {
      %139 = vector.extract_strided_slice %134 {offsets = [0, 7, 0], sizes = [2, 1, 32], strides = [1, 1, 1]} : vector<2x8x32xf32> to vector<2x1x32xf32>
      %140 = vector.shape_cast %139 : vector<2x1x32xf32> to vector<2x32xf32>
      %141 = arith.truncf %140 : vector<2x32xf32> to vector<2x32xbf16>
      %c0_62 = arith.constant 0 : index
      %c0_63 = arith.constant 0 : index
      %142 = vector.load %arg14[%c0_62, %c0_63] : memref<32x16xbf16, #tpu.memory_space<vmem>>, vector<32x16xbf16>
      %cst_64 = arith.constant dense<0.000000e+00> : vector<2x16xf32>
      %143 = tpu.matmul %141, %142, %cst_64 {dimension_numbers = #tpu.dot_dimension_numbers<[1], [0], [0], [1], [0, 0, 1, 1], [], []>} : vector<2x32xbf16>, vector<32x16xbf16>, vector<2x16xf32> -> vector<2x16xf32>
      %c0_65 = arith.constant 0 : index
      %c0_66 = arith.constant 0 : index
      %144 = vector.load %arg15[%c0_65, %c0_66] : memref<1x16xf32, #tpu.memory_space<vmem>>, vector<1x16xf32>
      %145 = vector.broadcast %144 : vector<1x16xf32> to vector<2x16xf32>
      %146 = arith.addf %143, %145 : vector<2x16xf32>
      %c0_67 = arith.constant 0 : index
      %c0_68 = arith.constant 0 : index
      %147 = vector.load %arg16[%c0_67, %c0_68] : memref<2x16xf32, #tpu.memory_space<vmem>>, vector<2x16xf32>
      tpu.vector_store %arg16[%c0_67, %c0_68], %146 {strides = array<i32>} : memref<2x16xf32, #tpu.memory_space<vmem>>, vector<2x16xf32>,
    } else {
    }
    return
  }
  func.func @transform_0(%arg0: i32) -> (i32, i32, i32) {
    %c0_i32 = arith.constant 0 : i32
    %c0_i32_0 = arith.constant 0 : i32
    %c0_i32_1 = arith.constant 0 : i32
    %c0_i32_2 = arith.constant 0 : i32
    return %c0_i32, %c0_i32_0, %c0_i32_1 : i32, i32, i32
  }
  func.func @transform_1(%arg0: i32) -> (i32, i32, i32) {
    %c0_i32 = arith.constant 0 : i32
    %c0_i32_0 = arith.constant 0 : i32
    %c0_i32_1 = arith.constant 0 : i32
    return %arg0, %c0_i32, %c0_i32_0 : i32, i32, i32
  }
  func.func @transform_2(%arg0: i32) -> (i32, i32, i32) {
    %c0_i32 = arith.constant 0 : i32
    %c0_i32_0 = arith.constant 0 : i32
    %c0_i32_1 = arith.constant 0 : i32
    return %arg0, %c0_i32, %c0_i32_0 : i32, i32, i32
  }
  func.func @transform_3(%arg0: i32) -> (i32, i32, i32) {
    %c0_i32 = arith.constant 0 : i32
    %c0_i32_0 = arith.constant 0 : i32
    %c0_i32_1 = arith.constant 0 : i32
    return %arg0, %c0_i32, %c0_i32_0 : i32, i32, i32
  }
  func.func @transform_4(%arg0: i32) -> (i32, i32, i32) {
    %c0_i32 = arith.constant 0 : i32
    %c0_i32_0 = arith.constant 0 : i32
    %c0_i32_1 = arith.constant 0 : i32
    return %arg0, %c0_i32, %c0_i32_0 : i32, i32, i32
  }
  func.func @transform_5(%arg0: i32) -> (i32, i32, i32) {
    %c0_i32 = arith.constant 0 : i32
    %c0_i32_0 = arith.constant 0 : i32
    %c0_i32_1 = arith.constant 0 : i32
    return %arg0, %c0_i32, %c0_i32_0 : i32, i32, i32
  }
  func.func @transform_6(%arg0: i32) -> (i32, i32, i32) {
    %c0_i32 = arith.constant 0 : i32
    %c0_i32_0 = arith.constant 0 : i32
    %c0_i32_1 = arith.constant 0 : i32
    return %arg0, %c0_i32, %c0_i32_0 : i32, i32, i32
  }
  func.func @transform_7(%arg0: i32) -> (i32, i32, i32) {
    %c0_i32 = arith.constant 0 : i32
    %c0_i32_0 = arith.constant 0 : i32
    %c0_i32_1 = arith.constant 0 : i32
    return %arg0, %c0_i32, %c0_i32_0 : i32, i32, i32
  }
  func.func @transform_8(%arg0: i32) -> (i32, i32, i32) {
    %c0_i32 = arith.constant 0 : i32
    %c0_i32_0 = arith.constant 0 : i32
    %c0_i32_1 = arith.constant 0 : i32
    return %arg0, %c0_i32, %c0_i32_0 : i32, i32, i32
  }
  func.func @transform_9(%arg0: i32) -> (i32, i32, i32) {
    %c0_i32 = arith.constant 0 : i32
    %c0_i32_0 = arith.constant 0 : i32
    %c0_i32_1 = arith.constant 0 : i32
    return %arg0, %c0_i32, %c0_i32_0 : i32, i32, i32
  }
  func.func @transform_10(%arg0: i32) -> (i32, i32, i32) {
    %c0_i32 = arith.constant 0 : i32
    %c0_i32_0 = arith.constant 0 : i32
    %c0_i32_1 = arith.constant 0 : i32
    return %arg0, %c0_i32, %c0_i32_0 : i32, i32, i32
  }
  func.func @transform_11(%arg0: i32) -> (i32, i32, i32) {
    %c0_i32 = arith.constant 0 : i32
    %c0_i32_0 = arith.constant 0 : i32
    %c0_i32_1 = arith.constant 0 : i32
    return %arg0, %c0_i32, %c0_i32_0 : i32, i32, i32
  }
  func.func @transform_12(%arg0: i32) -> (i32, i32, i32) {
    %c0_i32 = arith.constant 0 : i32
    %c0_i32_0 = arith.constant 0 : i32
    %c0_i32_1 = arith.constant 0 : i32
    return %arg0, %c0_i32, %c0_i32_0 : i32, i32, i32
  }
  func.func @transform_13(%arg0: i32) -> (i32, i32) {
    %c0_i32 = arith.constant 0 : i32
    %c0_i32_0 = arith.constant 0 : i32
    %c0_i32_1 = arith.constant 0 : i32
    return %c0_i32, %c0_i32_0 : i32, i32
  }
  func.func @transform_14(%arg0: i32) -> (i32, i32) {
    %c0_i32 = arith.constant 0 : i32
    %c0_i32_0 = arith.constant 0 : i32
    %c0_i32_1 = arith.constant 0 : i32
    return %c0_i32, %c0_i32_0 : i32, i32
  }
  func.func @transform_15(%arg0: i32) -> (i32, i32) {
    %c0_i32 = arith.constant 0 : i32
    %c0_i32_0 = arith.constant 0 : i32
    %c0_i32_1 = arith.constant 0 : i32
    return %c0_i32, %c0_i32_0 : i32, i32
  }
}

</mosaic_0001>

<llo_original>
// kernel: transformer_model.1
$region0: #{transformer_model.1}
  #allocation0 [shape = 'u32[]', space=smem, size = 0x4, offset = 0x4, fixed_abs, tag = 'smem constant byte address 0x4 - core index']
  #allocation1 [shape = 'u32[144,128]{1,0:T(1,128)}', space=vmem, size = 0x12000, scoped, tag = 'internal scratch']
  #allocation2 [shape = 'f32[2,8,32]{2,1,0:T(8,128)}', space=vmem, size = 0x2000, scoped, tag = 'scratch operand']
  %s0 = inlined_call_operand.vmem [shape: f32[2,8,32], index: 0, kind: input, shape index: {}]
  %s1 = inlined_call_operand.vmem [shape: bf16[2,32,96], index: 1, kind: input, shape index: {}]
  %s2 = inlined_call_operand.vmem [shape: f32[2,1,96], index: 2, kind: input, shape index: {}]
  %s3 = inlined_call_operand.vmem [shape: bf16[2,32,32], index: 3, kind: input, shape index: {}]
  %s4 = inlined_call_operand.vmem [shape: f32[2,1,32], index: 4, kind: input, shape index: {}]
  %s5 = inlined_call_operand.vmem [shape: f32[2,1,32], index: 5, kind: input, shape index: {}]
  %s6 = inlined_call_operand.vmem [shape: f32[2,1,32], index: 6, kind: input, shape index: {}]
  %s7 = inlined_call_operand.vmem [shape: bf16[2,32,2048], index: 7, kind: input, shape index: {}]
  %s8 = inlined_call_operand.vmem [shape: f32[2,1,2048], index: 8, kind: input, shape index: {}]
  %s9 = inlined_call_operand.vmem [shape: bf16[2,2048,32], index: 9, kind: input, shape index: {}]
  %s10 = inlined_call_operand.vmem [shape: f32[2,1,32], index: 10, kind: input, shape index: {}]
  %s11 = inlined_call_operand.vmem [shape: f32[2,1,32], index: 11, kind: input, shape index: {}]
  %s12 = inlined_call_operand.vmem [shape: f32[2,1,32], index: 12, kind: input, shape index: {}]
  %s13 = inlined_call_operand.vmem [shape: bf16[32,16], index: 13, kind: input, shape index: {}]
  %s14 = inlined_call_operand.vmem [shape: f32[1,16], index: 14, kind: input, shape index: {}]
  %s15 = inlined_call_operand.hbm [shape: f32[2,16], index: 15, kind: output, shape index: {}]
  %s16 = sld [smem:[#allocation0]]
  $region101: #{transformer_model.1} parent=0
    _
  %s18 = ssub.s32 1, %s16
  %s19 = scalar_select 0, %s18, %s16
  $region1: #{transformer_model.1} parent=0
    #allocation3 [shape = 'u8[1024]{0}', space=vmem, size = 0x400, scoped, tag = 'output window, operand 0, single buffered']
    #allocation4 [shape = 's32[2]{0}', space=sflag, size = 0x8, scoped, tag = 'scoped memory for transformer_model.1']
    %20 = vsyncpa [#allocation4], 0
    loop: start=0, step=1, limit=4
    $region2: #{transformer_model.1} parent=1 // loop_pre_header
      _
    $region3: #{transformer_model.1} parent=1 // loop_header
      %s22 = sphi 0, %s26
      %p23 = scmp.ge.s32.totalorder %s22, 4
      %s30 = sphi 0, %s30
      %s32 = sphi 0, %s30
      %s33 = sphi 0, %s32
      %s47 = sphi 0, %s33
      %s53 = sphi 0, %s55
      %s56 = sphi 0, %s53
      %s57 = sphi 0, %s56
      %s73 = sphi 0, %s57
      %s79 = sphi 0, %s81
      %s82 = sphi 0, %s79
      %s83 = sphi 0, %s82
      %s99 = sphi 0, %s83
      %s105 = sphi 0, %s107
      %s108 = sphi 0, %s105
      %s109 = sphi 0, %s108
      %s125 = sphi 0, %s109
      %s131 = sphi 0, %s133
      %s134 = sphi 0, %s131
      %s135 = sphi 0, %s134
      %s151 = sphi 0, %s135
      %s157 = sphi 0, %s159
      %s160 = sphi 0, %s157
      %s161 = sphi 0, %s160
      %s177 = sphi 0, %s161
      %s183 = sphi 0, %s185
      %s186 = sphi 0, %s183
      %s187 = sphi 0, %s186
      %s203 = sphi 0, %s187
      %s209 = sphi 0, %s211
      %s212 = sphi 0, %s209
      %s213 = sphi 0, %s212
      %s229 = sphi 0, %s213
      %s235 = sphi 0, %s237
      %s238 = sphi 0, %s235
      %s239 = sphi 0, %s238
      %s255 = sphi 0, %s239
      %s261 = sphi 0, %s263
      %s264 = sphi 0, %s261
      %s265 = sphi 0, %s264
      %s281 = sphi 0, %s265
      %s287 = sphi 0, %s289
      %s290 = sphi 0, %s287
      %s291 = sphi 0, %s290
      %s307 = sphi 0, %s291
      %s313 = sphi 0, %s315
      %s316 = sphi 0, %s313
      %s317 = sphi 0, %s316
      %s333 = sphi 0, %s317
      %s339 = sphi 0, %s341
      %s342 = sphi 0, %s339
      %s343 = sphi 0, %s342
      %s359 = sphi 0, %s343
      %s363 = sphi 0, %s363
      %s365 = sphi 0, %s363
      %s366 = sphi 0, %s365
      %s380 = sphi 0, %s366
      %s384 = sphi 0, %s384
      %s386 = sphi 0, %s384
      %s387 = sphi 0, %s386
      %s401 = sphi 0, %s387
      %s405 = sphi 0, %s405
      %s407 = sphi 0, %s405
      %s408 = sphi 0, %s407
      %s422 = sphi 0, %s408
    $region4: #{transformer_model.1} parent=1 // loop_header_branch
      %25 = sbr.rel (%p23) target = $region8
    $region5: #{transformer_model.1} parent=1 // loop_body
      %s27 = ssub.s32 %s22, 1
      %s28 = ssub.s32 %s22, 2
      %s29 = sadd.s32 %s22, 1
      %s31 = sadd.s32 %s30, 1
      %p34 = scmp.eq.s32.totalorder %s22, 1
      %p35 = scmp.ne.s32.totalorder %s30, %s32
      %p36 = scmp.eq.s32.totalorder %s22, 0
      %p37 = por %p35, %p36
      %p38 = scmp.ne.s32.totalorder %s30, %s32
      %p39 = scmp.eq.s32.totalorder %s27, 1
      %p40 = por %p38, %p39
      %p41 = scmp.ne.s32.totalorder %s32, %s33
      %p42 = scmp.eq.s32.totalorder %s27, 0
      %p43 = por %p41, %p42
      %p44 = scmp.ne.s32.totalorder %s32, %s33
      %p45 = scmp.eq.s32.totalorder %s28, 1
      %p46 = por %p44, %p45
      %p48 = scmp.ne.s32.totalorder %s33, %s47
      %p49 = scmp.eq.s32.totalorder %s28, 0
      %p50 = por %p48, %p49
      %s51 = ssub.s32 %s22, %s29
      %p52 = scmp.eq.s32.totalorder %s51, 0
      %s54 = sadd.s32 %s53, 1
      %s55 = scalar_select %p52, %s53, %s54
      %p58 = pneg %p52
      %p59 = scmp.eq.s32.totalorder %s22, 1
      %p60 = por %p58, %p59
      %p61 = scmp.ne.s32.totalorder %s53, %s56
      %p62 = scmp.eq.s32.totalorder %s22, 0
      %p63 = por %p61, %p62
      %p64 = scmp.ne.s32.totalorder %s53, %s56
      %p65 = scmp.eq.s32.totalorder %s27, 1
      %p66 = por %p64, %p65
      %p67 = scmp.ne.s32.totalorder %s56, %s57
      %p68 = scmp.eq.s32.totalorder %s27, 0
      %p69 = por %p67, %p68
      %p70 = scmp.ne.s32.totalorder %s56, %s57
      %p71 = scmp.eq.s32.totalorder %s28, 1
      %p72 = por %p70, %p71
      %p74 = scmp.ne.s32.totalorder %s57, %s73
      %p75 = scmp.eq.s32.totalorder %s28, 0
      %p76 = por %p74, %p75
      %s77 = ssub.s32 %s22, %s29
      %p78 = scmp.eq.s32.totalorder %s77, 0
      %s80 = sadd.s32 %s79, 1
      %s81 = scalar_select %p78, %s79, %s80
      %p84 = pneg %p78
      %p85 = scmp.eq.s32.totalorder %s22, 1
      %p86 = por %p84, %p85
      %p87 = scmp.ne.s32.totalorder %s79, %s82
      %p88 = scmp.eq.s32.totalorder %s22, 0
      %p89 = por %p87, %p88
      %p90 = scmp.ne.s32.totalorder %s79, %s82
      %p91 = scmp.eq.s32.totalorder %s27, 1
      %p92 = por %p90, %p91
      %p93 = scmp.ne.s32.totalorder %s82, %s83
      %p94 = scmp.eq.s32.totalorder %s27, 0
      %p95 = por %p93, %p94
      %p96 = scmp.ne.s32.totalorder %s82, %s83
      %p97 = scmp.eq.s32.totalorder %s28, 1
      %p98 = por %p96, %p97
      %p100 = scmp.ne.s32.totalorder %s83, %s99
      %p101 = scmp.eq.s32.totalorder %s28, 0
      %p102 = por %p100, %p101
      %s103 = ssub.s32 %s22, %s29
      %p104 = scmp.eq.s32.totalorder %s103, 0
      %s106 = sadd.s32 %s105, 1
      %s107 = scalar_select %p104, %s105, %s106
      %p110 = pneg %p104
      %p111 = scmp.eq.s32.totalorder %s22, 1
      %p112 = por %p110, %p111
      %p113 = scmp.ne.s32.totalorder %s105, %s108
      %p114 = scmp.eq.s32.totalorder %s22, 0
      %p115 = por %p113, %p114
      %p116 = scmp.ne.s32.totalorder %s105, %s108
      %p117 = scmp.eq.s32.totalorder %s27, 1
      %p118 = por %p116, %p117
      %p119 = scmp.ne.s32.totalorder %s108, %s109
      %p120 = scmp.eq.s32.totalorder %s27, 0
      %p121 = por %p119, %p120
      %p122 = scmp.ne.s32.totalorder %s108, %s109
      %p123 = scmp.eq.s32.totalorder %s28, 1
      %p124 = por %p122, %p123
      %p126 = scmp.ne.s32.totalorder %s109, %s125
      %p127 = scmp.eq.s32.totalorder %s28, 0
      %p128 = por %p126, %p127
      %s129 = ssub.s32 %s22, %s29
      %p130 = scmp.eq.s32.totalorder %s129, 0
      %s132 = sadd.s32 %s131, 1
      %s133 = scalar_select %p130, %s131, %s132
      %p136 = pneg %p130
      %p137 = scmp.eq.s32.totalorder %s22, 1
      %p138 = por %p136, %p137
      %p139 = scmp.ne.s32.totalorder %s131, %s134
      %p140 = scmp.eq.s32.totalorder %s22, 0
      %p141 = por %p139, %p140
      %p142 = scmp.ne.s32.totalorder %s131, %s134
      %p143 = scmp.eq.s32.totalorder %s27, 1
      %p144 = por %p142, %p143
      %p145 = scmp.ne.s32.totalorder %s134, %s135
      %p146 = scmp.eq.s32.totalorder %s27, 0
      %p147 = por %p145, %p146
      %p148 = scmp.ne.s32.totalorder %s134, %s135
      %p149 = scmp.eq.s32.totalorder %s28, 1
      %p150 = por %p148, %p149
      %p152 = scmp.ne.s32.totalorder %s135, %s151
      %p153 = scmp.eq.s32.totalorder %s28, 0
      %p154 = por %p152, %p153
      %s155 = ssub.s32 %s22, %s29
      %p156 = scmp.eq.s32.totalorder %s155, 0
      %s158 = sadd.s32 %s157, 1
      %s159 = scalar_select %p156, %s157, %s158
      %p162 = pneg %p156
      %p163 = scmp.eq.s32.totalorder %s22, 1
      %p164 = por %p162, %p163
      %p165 = scmp.ne.s32.totalorder %s157, %s160
      %p166 = scmp.eq.s32.totalorder %s22, 0
      %p167 = por %p165, %p166
      %p168 = scmp.ne.s32.totalorder %s157, %s160
      %p169 = scmp.eq.s32.totalorder %s27, 1
      %p170 = por %p168, %p169
      %p171 = scmp.ne.s32.totalorder %s160, %s161
      %p172 = scmp.eq.s32.totalorder %s27, 0
      %p173 = por %p171, %p172
      %p174 = scmp.ne.s32.totalorder %s160, %s161
      %p175 = scmp.eq.s32.totalorder %s28, 1
      %p176 = por %p174, %p175
      %p178 = scmp.ne.s32.totalorder %s161, %s177
      %p179 = scmp.eq.s32.totalorder %s28, 0
      %p180 = por %p178, %p179
      %s181 = ssub.s32 %s22, %s29
      %p182 = scmp.eq.s32.totalorder %s181, 0
      %s184 = sadd.s32 %s183, 1
      %s185 = scalar_select %p182, %s183, %s184
      %p188 = pneg %p182
      %p189 = scmp.eq.s32.totalorder %s22, 1
      %p190 = por %p188, %p189
      %p191 = scmp.ne.s32.totalorder %s183, %s186
      %p192 = scmp.eq.s32.totalorder %s22, 0
      %p193 = por %p191, %p192
      %p194 = scmp.ne.s32.totalorder %s183, %s186
      %p195 = scmp.eq.s32.totalorder %s27, 1
      %p196 = por %p194, %p195
      %p197 = scmp.ne.s32.totalorder %s186, %s187
      %p198 = scmp.eq.s32.totalorder %s27, 0
      %p199 = por %p197, %p198
      %p200 = scmp.ne.s32.totalorder %s186, %s187
      %p201 = scmp.eq.s32.totalorder %s28, 1
      %p202 = por %p200, %p201
      %p204 = scmp.ne.s32.totalorder %s187, %s203
      %p205 = scmp.eq.s32.totalorder %s28, 0
      %p206 = por %p204, %p205
      %s207 = ssub.s32 %s22, %s29
      %p208 = scmp.eq.s32.totalorder %s207, 0
      %s210 = sadd.s32 %s209, 1
      %s211 = scalar_select %p208, %s209, %s210
      %p214 = pneg %p208
      %p215 = scmp.eq.s32.totalorder %s22, 1
      %p216 = por %p214, %p215
      %p217 = scmp.ne.s32.totalorder %s209, %s212
      %p218 = scmp.eq.s32.totalorder %s22, 0
      %p219 = por %p217, %p218
      %p220 = scmp.ne.s32.totalorder %s209, %s212
      %p221 = scmp.eq.s32.totalorder %s27, 1
      %p222 = por %p220, %p221
      %p223 = scmp.ne.s32.totalorder %s212, %s213
      %p224 = scmp.eq.s32.totalorder %s27, 0
      %p225 = por %p223, %p224
      %p226 = scmp.ne.s32.totalorder %s212, %s213
      %p227 = scmp.eq.s32.totalorder %s28, 1
      %p228 = por %p226, %p227
      %p230 = scmp.ne.s32.totalorder %s213, %s229
      %p231 = scmp.eq.s32.totalorder %s28, 0
      %p232 = por %p230, %p231
      %s233 = ssub.s32 %s22, %s29
      %p234 = scmp.eq.s32.totalorder %s233, 0
      %s236 = sadd.s32 %s235, 1
      %s237 = scalar_select %p234, %s235, %s236
      %p240 = pneg %p234
      %p241 = scmp.eq.s32.totalorder %s22, 1
      %p242 = por %p240, %p241
      %p243 = scmp.ne.s32.totalorder %s235, %s238
      %p244 = scmp.eq.s32.totalorder %s22, 0
      %p245 = por %p243, %p244
      %p246 = scmp.ne.s32.totalorder %s235, %s238
      %p247 = scmp.eq.s32.totalorder %s27, 1
      %p248 = por %p246, %p247
      %p249 = scmp.ne.s32.totalorder %s238, %s239
      %p250 = scmp.eq.s32.totalorder %s27, 0
      %p251 = por %p249, %p250
      %p252 = scmp.ne.s32.totalorder %s238, %s239
      %p253 = scmp.eq.s32.totalorder %s28, 1
      %p254 = por %p252, %p253
      %p256 = scmp.ne.s32.totalorder %s239, %s255
      %p257 = scmp.eq.s32.totalorder %s28, 0
      %p258 = por %p256, %p257
      %s259 = ssub.s32 %s22, %s29
      %p260 = scmp.eq.s32.totalorder %s259, 0
      %s262 = sadd.s32 %s261, 1
      %s263 = scalar_select %p260, %s261, %s262
      %p266 = pneg %p260
      %p267 = scmp.eq.s32.totalorder %s22, 1
      %p268 = por %p266, %p267
      %p269 = scmp.ne.s32.totalorder %s261, %s264
      %p270 = scmp.eq.s32.totalorder %s22, 0
      %p271 = por %p269, %p270
      %p272 = scmp.ne.s32.totalorder %s261, %s264
      %p273 = scmp.eq.s32.totalorder %s27, 1
      %p274 = por %p272, %p273
      %p275 = scmp.ne.s32.totalorder %s264, %s265
      %p276 = scmp.eq.s32.totalorder %s27, 0
      %p277 = por %p275, %p276
      %p278 = scmp.ne.s32.totalorder %s264, %s265
      %p279 = scmp.eq.s32.totalorder %s28, 1
      %p280 = por %p278, %p279
      %p282 = scmp.ne.s32.totalorder %s265, %s281
      %p283 = scmp.eq.s32.totalorder %s28, 0
      %p284 = por %p282, %p283
      %s285 = ssub.s32 %s22, %s29
      %p286 = scmp.eq.s32.totalorder %s285, 0
      %s288 = sadd.s32 %s287, 1
      %s289 = scalar_select %p286, %s287, %s288
      %p292 = pneg %p286
      %p293 = scmp.eq.s32.totalorder %s22, 1
      %p294 = por %p292, %p293
      %p295 = scmp.ne.s32.totalorder %s287, %s290
      %p296 = scmp.eq.s32.totalorder %s22, 0
      %p297 = por %p295, %p296
      %p298 = scmp.ne.s32.totalorder %s287, %s290
      %p299 = scmp.eq.s32.totalorder %s27, 1
      %p300 = por %p298, %p299
      %p301 = scmp.ne.s32.totalorder %s290, %s291
      %p302 = scmp.eq.s32.totalorder %s27, 0
      %p303 = por %p301, %p302
      %p304 = scmp.ne.s32.totalorder %s290, %s291
      %p305 = scmp.eq.s32.totalorder %s28, 1
      %p306 = por %p304, %p305
      %p308 = scmp.ne.s32.totalorder %s291, %s307
      %p309 = scmp.eq.s32.totalorder %s28, 0
      %p310 = por %p308, %p309
      %s311 = ssub.s32 %s22, %s29
      %p312 = scmp.eq.s32.totalorder %s311, 0
      %s314 = sadd.s32 %s313, 1
      %s315 = scalar_select %p312, %s313, %s314
      %p318 = pneg %p312
      %p319 = scmp.eq.s32.totalorder %s22, 1
      %p320 = por %p318, %p319
      %p321 = scmp.ne.s32.totalorder %s313, %s316
      %p322 = scmp.eq.s32.totalorder %s22, 0
      %p323 = por %p321, %p322
      %p324 = scmp.ne.s32.totalorder %s313, %s316
      %p325 = scmp.eq.s32.totalorder %s27, 1
      %p326 = por %p324, %p325
      %p327 = scmp.ne.s32.totalorder %s316, %s317
      %p328 = scmp.eq.s32.totalorder %s27, 0
      %p329 = por %p327, %p328
      %p330 = scmp.ne.s32.totalorder %s316, %s317
      %p331 = scmp.eq.s32.totalorder %s28, 1
      %p332 = por %p330, %p331
      %p334 = scmp.ne.s32.totalorder %s317, %s333
      %p335 = scmp.eq.s32.totalorder %s28, 0
      %p336 = por %p334, %p335
      %s337 = ssub.s32 %s22, %s29
      %p338 = scmp.eq.s32.totalorder %s337, 0
      %s340 = sadd.s32 %s339, 1
      %s341 = scalar_select %p338, %s339, %s340
      %p344 = pneg %p338
      %p345 = scmp.eq.s32.totalorder %s22, 1
      %p346 = por %p344, %p345
      %p347 = scmp.ne.s32.totalorder %s339, %s342
      %p348 = scmp.eq.s32.totalorder %s22, 0
      %p349 = por %p347, %p348
      %p350 = scmp.ne.s32.totalorder %s339, %s342
      %p351 = scmp.eq.s32.totalorder %s27, 1
      %p352 = por %p350, %p351
      %p353 = scmp.ne.s32.totalorder %s342, %s343
      %p354 = scmp.eq.s32.totalorder %s27, 0
      %p355 = por %p353, %p354
      %p356 = scmp.ne.s32.totalorder %s342, %s343
      %p357 = scmp.eq.s32.totalorder %s28, 1
      %p358 = por %p356, %p357
      %p360 = scmp.ne.s32.totalorder %s343, %s359
      %p361 = scmp.eq.s32.totalorder %s28, 0
      %p362 = por %p360, %p361
      %s364 = sadd.s32 %s363, 1
      %p367 = scmp.eq.s32.totalorder %s22, 1
      %p368 = scmp.ne.s32.totalorder %s363, %s365
      %p369 = scmp.eq.s32.totalorder %s22, 0
      %p370 = por %p368, %p369
      %p371 = scmp.ne.s32.totalorder %s363, %s365
      %p372 = scmp.eq.s32.totalorder %s27, 1
      %p373 = por %p371, %p372
      %p374 = scmp.ne.s32.totalorder %s365, %s366
      %p375 = scmp.eq.s32.totalorder %s27, 0
      %p376 = por %p374, %p375
      %p377 = scmp.ne.s32.totalorder %s365, %s366
      %p378 = scmp.eq.s32.totalorder %s28, 1
      %p379 = por %p377, %p378
      %p381 = scmp.ne.s32.totalorder %s366, %s380
      %p382 = scmp.eq.s32.totalorder %s28, 0
      %p383 = por %p381, %p382
      %s385 = sadd.s32 %s384, 1
      %p388 = scmp.eq.s32.totalorder %s22, 1
      %p389 = scmp.ne.s32.totalorder %s384, %s386
      %p390 = scmp.eq.s32.totalorder %s22, 0
      %p391 = por %p389, %p390
      %p392 = scmp.ne.s32.totalorder %s384, %s386
      %p393 = scmp.eq.s32.totalorder %s27, 1
      %p394 = por %p392, %p393
      %p395 = scmp.ne.s32.totalorder %s386, %s387
      %p396 = scmp.eq.s32.totalorder %s27, 0
      %p397 = por %p395, %p396
      %p398 = scmp.ne.s32.totalorder %s386, %s387
      %p399 = scmp.eq.s32.totalorder %s28, 1
      %p400 = por %p398, %p399
      %p402 = scmp.ne.s32.totalorder %s387, %s401
      %p403 = scmp.eq.s32.totalorder %s28, 0
      %p404 = por %p402, %p403
      %s406 = sadd.s32 %s405, 1
      %p409 = scmp.eq.s32.totalorder %s22, 1
      %p410 = scmp.ne.s32.totalorder %s405, %s407
      %p411 = scmp.eq.s32.totalorder %s22, 0
      %p412 = por %p410, %p411
      %p413 = scmp.ne.s32.totalorder %s405, %s407
      %p414 = scmp.eq.s32.totalorder %s27, 1
      %p415 = por %p413, %p414
      %p416 = scmp.ne.s32.totalorder %s407, %s408
      %p417 = scmp.eq.s32.totalorder %s27, 0
      %p418 = por %p416, %p417
      %p419 = scmp.ne.s32.totalorder %s407, %s408
      %p420 = scmp.eq.s32.totalorder %s28, 1
      %p421 = por %p419, %p420
      %p423 = scmp.ne.s32.totalorder %s408, %s422
      %p424 = scmp.eq.s32.totalorder %s28, 0
      %p425 = por %p423, %p424
      %p426 = scmp.le.s32.totalorder 1, %s22
      %p427 = scmp.lt.s32.totalorder %s22, 3
      %p428 = pnand %p426, %p427
      %p429 = pneg %p428
      // Predicated region
      $region9: #{transformer_model.1} parent=5 // pred_check
        _
      $region10: #{transformer_model.1} parent=5 // pred_check_branch
        %431 = sbr.rel (%p428) target = $region12
      $region11: #{transformer_model.1} parent=5 // pred_region
        %s432 = ssub.s32 %s22, 1
        // Predicated region
        $region13: #{transformer_model.1} parent=11 // pred_check
          %p433 = pneg %p43
        $region14: #{transformer_model.1} parent=11 // pred_check_branch
          %435 = sbr.rel (%p433) target = $region16
        $region15: #{transformer_model.1} parent=11 // pred_region
          _
        $region16: #{transformer_model.1} parent=11 // pred_fallthru
          _
        // Predicated region
        $region17: #{transformer_model.1} parent=11 // pred_check
          %p436 = pneg %p376
        $region18: #{transformer_model.1} parent=11 // pred_check_branch
          %438 = sbr.rel (%p436) target = $region20
        $region19: #{transformer_model.1} parent=11 // pred_region
          _
        $region20: #{transformer_model.1} parent=11 // pred_fallthru
          _
        // Predicated region
        $region21: #{transformer_model.1} parent=11 // pred_check
          %p439 = pneg %p397
        $region22: #{transformer_model.1} parent=11 // pred_check_branch
          %441 = sbr.rel (%p439) target = $region24
        $region23: #{transformer_model.1} parent=11 // pred_region
          _
        $region24: #{transformer_model.1} parent=11 // pred_fallthru
          _
      $region12: #{transformer_model.1} parent=5 // pred_fallthru
        _
      %p442 = scmp.lt.s32.totalorder %s22, 2
      // Predicated region
      $region25: #{transformer_model.1} parent=5 // pred_check
        %p443 = pneg %p442
      $region26: #{transformer_model.1} parent=5 // pred_check_branch
        %445 = sbr.rel (%p443) target = $region28
      $region27: #{transformer_model.1} parent=5 // pred_region
        // Predicated region
        $region29: #{transformer_model.1} parent=27 // pred_check
          %p446 = pneg %p63
        $region30: #{transformer_model.1} parent=27 // pred_check_branch
          %448 = sbr.rel (%p446) target = $region32
        $region31: #{transformer_model.1} parent=27 // pred_region
          %p449 = scmp.lt.s32.totalorder %s22, 1
          %s450 = scalar_select %p449, %s22, 1
          %s451 = smul.addr %s450, 4
          %s452 = smul.addr %s451, 4
          %s453 = scalar_lea.vmem %s1, %s452
        $region32: #{transformer_model.1} parent=27 // pred_fallthru
          _
        // Predicated region
        $region33: #{transformer_model.1} parent=27 // pred_check
          %p454 = pneg %p89
        $region34: #{transformer_model.1} parent=27 // pred_check_branch
          %456 = sbr.rel (%p454) target = $region36
        $region35: #{transformer_model.1} parent=27 // pred_region
          %p457 = scmp.lt.s32.totalorder %s22, 1
          %s458 = scalar_select %p457, %s22, 1
          %s459 = scalar_lea.vmem %s2, %s458
        $region36: #{transformer_model.1} parent=27 // pred_fallthru
          _
        // Predicated region
        $region37: #{transformer_model.1} parent=27 // pred_check
          %p460 = pneg %p115
        $region38: #{transformer_model.1} parent=27 // pred_check_branch
          %462 = sbr.rel (%p460) target = $region40
        $region39: #{transformer_model.1} parent=27 // pred_region
          %p463 = scmp.lt.s32.totalorder %s22, 1
          %s464 = scalar_select %p463, %s22, 1
          %s465 = smul.addr %s464, 4
          %s466 = smul.addr %s465, 4
          %s467 = scalar_lea.vmem %s3, %s466
        $region40: #{transformer_model.1} parent=27 // pred_fallthru
          _
        // Predicated region
        $region41: #{transformer_model.1} parent=27 // pred_check
          %p468 = pneg %p141
        $region42: #{transformer_model.1} parent=27 // pred_check_branch
          %470 = sbr.rel (%p468) target = $region44
        $region43: #{transformer_model.1} parent=27 // pred_region
          %p471 = scmp.lt.s32.totalorder %s22, 1
          %s472 = scalar_select %p471, %s22, 1
          %s473 = scalar_lea.vmem %s4, %s472
        $region44: #{transformer_model.1} parent=27 // pred_fallthru
          _
        // Predicated region
        $region45: #{transformer_model.1} parent=27 // pred_check
          %p474 = pneg %p167
        $region46: #{transformer_model.1} parent=27 // pred_check_branch
          %476 = sbr.rel (%p474) target = $region48
        $region47: #{transformer_model.1} parent=27 // pred_region
          %p477 = scmp.lt.s32.totalorder %s22, 1
          %s478 = scalar_select %p477, %s22, 1
          %s479 = scalar_lea.vmem %s5, %s478
        $region48: #{transformer_model.1} parent=27 // pred_fallthru
          _
        // Predicated region
        $region49: #{transformer_model.1} parent=27 // pred_check
          %p480 = pneg %p193
        $region50: #{transformer_model.1} parent=27 // pred_check_branch
          %482 = sbr.rel (%p480) target = $region52
        $region51: #{transformer_model.1} parent=27 // pred_region
          %p483 = scmp.lt.s32.totalorder %s22, 1
          %s484 = scalar_select %p483, %s22, 1
          %s485 = scalar_lea.vmem %s6, %s484
        $region52: #{transformer_model.1} parent=27 // pred_fallthru
          _
        // Predicated region
        $region53: #{transformer_model.1} parent=27 // pred_check
          %p486 = pneg %p219
        $region54: #{transformer_model.1} parent=27 // pred_check_branch
          %488 = sbr.rel (%p486) target = $region56
        $region55: #{transformer_model.1} parent=27 // pred_region
          %p489 = scmp.lt.s32.totalorder %s22, 1
          %s490 = scalar_select %p489, %s22, 1
          %s491 = smul.addr %s490, 64
          %s492 = smul.addr %s491, 4
          %s493 = scalar_lea.vmem %s7, %s492
        $region56: #{transformer_model.1} parent=27 // pred_fallthru
          _
        // Predicated region
        $region57: #{transformer_model.1} parent=27 // pred_check
          %p494 = pneg %p245
        $region58: #{transformer_model.1} parent=27 // pred_check_branch
          %496 = sbr.rel (%p494) target = $region60
        $region59: #{transformer_model.1} parent=27 // pred_region
          %p497 = scmp.lt.s32.totalorder %s22, 1
          %s498 = scalar_select %p497, %s22, 1
          %s499 = smul.addr %s498, 16
          %s500 = scalar_lea.vmem %s8, %s499
        $region60: #{transformer_model.1} parent=27 // pred_fallthru
          _
        // Predicated region
        $region61: #{transformer_model.1} parent=27 // pred_check
          %p501 = pneg %p271
        $region62: #{transformer_model.1} parent=27 // pred_check_branch
          %503 = sbr.rel (%p501) target = $region64
        $region63: #{transformer_model.1} parent=27 // pred_region
          %p504 = scmp.lt.s32.totalorder %s22, 1
          %s505 = scalar_select %p504, %s22, 1
          %s506 = smul.addr %s505, 256
          %s507 = smul.addr %s506, 4
          %s508 = scalar_lea.vmem %s9, %s507
        $region64: #{transformer_model.1} parent=27 // pred_fallthru
          _
        // Predicated region
        $region65: #{transformer_model.1} parent=27 // pred_check
          %p509 = pneg %p297
        $region66: #{transformer_model.1} parent=27 // pred_check_branch
          %511 = sbr.rel (%p509) target = $region68
        $region67: #{transformer_model.1} parent=27 // pred_region
          %p512 = scmp.lt.s32.totalorder %s22, 1
          %s513 = scalar_select %p512, %s22, 1
          %s514 = scalar_lea.vmem %s10, %s513
        $region68: #{transformer_model.1} parent=27 // pred_fallthru
          _
        // Predicated region
        $region69: #{transformer_model.1} parent=27 // pred_check
          %p515 = pneg %p323
        $region70: #{transformer_model.1} parent=27 // pred_check_branch
          %517 = sbr.rel (%p515) target = $region72
        $region71: #{transformer_model.1} parent=27 // pred_region
          %p518 = scmp.lt.s32.totalorder %s22, 1
          %s519 = scalar_select %p518, %s22, 1
          %s520 = scalar_lea.vmem %s11, %s519
        $region72: #{transformer_model.1} parent=27 // pred_fallthru
          _
        // Predicated region
        $region73: #{transformer_model.1} parent=27 // pred_check
          %p521 = pneg %p349
        $region74: #{transformer_model.1} parent=27 // pred_check_branch
          %523 = sbr.rel (%p521) target = $region76
        $region75: #{transformer_model.1} parent=27 // pred_region
          %p524 = scmp.lt.s32.totalorder %s22, 1
          %s525 = scalar_select %p524, %s22, 1
          %s526 = scalar_lea.vmem %s12, %s525
        $region76: #{transformer_model.1} parent=27 // pred_fallthru
          _
      $region28: #{transformer_model.1} parent=5 // pred_fallthru
        _
      %p527 = scmp.le.s32.totalorder 1, %s22
      %p528 = scmp.lt.s32.totalorder %s22, 3
      %p529 = pnand %p527, %p528
      %p530 = pneg %p529
      // Predicated region
      $region77: #{transformer_model.1} parent=5 // pred_check
        _
      $region78: #{transformer_model.1} parent=5 // pred_check_branch
        %532 = sbr.rel (%p529) target = $region80
      $region79: #{transformer_model.1} parent=5 // pred_region
        %s533 = ssub.s32 %s22, 1
        %p534 = pneg %p43
        %p535 = pneg %p40
        %p536 = scmp.lt.s32.totalorder %s27, 1
        %s537 = scalar_select %p536, %s27, 1
        %s538 = smul.addr %s537, 4
        %s539 = smul.addr %s538, 4
        %s540 = scalar_lea.vmem %s1, %s539
        %p541 = pneg %p69
        %p542 = pneg %p66
        %p543 = scmp.lt.s32.totalorder %s27, 1
        %s544 = scalar_select %p543, %s27, 1
        %s545 = scalar_lea.vmem %s2, %s544
        %p546 = pneg %p95
        %p547 = pneg %p92
        %p548 = scmp.lt.s32.totalorder %s27, 1
        %s549 = scalar_select %p548, %s27, 1
        %s550 = smul.addr %s549, 4
        %s551 = smul.addr %s550, 4
        %s552 = scalar_lea.vmem %s3, %s551
        %p553 = pneg %p121
        %p554 = pneg %p118
        %p555 = scmp.lt.s32.totalorder %s27, 1
        %s556 = scalar_select %p555, %s27, 1
        %s557 = scalar_lea.vmem %s4, %s556
        %p558 = pneg %p147
        %p559 = pneg %p144
        %p560 = scmp.lt.s32.totalorder %s27, 1
        %s561 = scalar_select %p560, %s27, 1
        %s562 = scalar_lea.vmem %s5, %s561
        %p563 = pneg %p173
        %p564 = pneg %p170
        %p565 = scmp.lt.s32.totalorder %s27, 1
        %s566 = scalar_select %p565, %s27, 1
        %s567 = scalar_lea.vmem %s6, %s566
        %p568 = pneg %p199
        %p569 = pneg %p196
        %p570 = scmp.lt.s32.totalorder %s27, 1
        %s571 = scalar_select %p570, %s27, 1
        %s572 = smul.addr %s571, 64
        %s573 = smul.addr %s572, 4
        %s574 = scalar_lea.vmem %s7, %s573
        %p575 = pneg %p225
        %p576 = pneg %p222
        %p577 = scmp.lt.s32.totalorder %s27, 1
        %s578 = scalar_select %p577, %s27, 1
        %s579 = smul.addr %s578, 16
        %s580 = scalar_lea.vmem %s8, %s579
        %p581 = pneg %p251
        %p582 = pneg %p248
        %p583 = scmp.lt.s32.totalorder %s27, 1
        %s584 = scalar_select %p583, %s27, 1
        %s585 = smul.addr %s584, 256
        %s586 = smul.addr %s585, 4
        %s587 = scalar_lea.vmem %s9, %s586
        %p588 = pneg %p277
        %p589 = pneg %p274
        %p590 = scmp.lt.s32.totalorder %s27, 1
        %s591 = scalar_select %p590, %s27, 1
        %s592 = scalar_lea.vmem %s10, %s591
        %p593 = pneg %p303
        %p594 = pneg %p300
        %p595 = scmp.lt.s32.totalorder %s27, 1
        %s596 = scalar_select %p595, %s27, 1
        %s597 = scalar_lea.vmem %s11, %s596
        %p598 = pneg %p329
        %p599 = pneg %p326
        %p600 = scmp.lt.s32.totalorder %s27, 1
        %s601 = scalar_select %p600, %s27, 1
        %s602 = scalar_lea.vmem %s12, %s601
        %p603 = pneg %p355
        %p604 = pneg %p352
        %p605 = pneg %p376
        %p606 = pneg %p373
        %p607 = pneg %p397
        %p608 = pneg %p394
        %p609 = pneg %p418
        %p610 = pneg %p415
        %p611 = scmp.lt.s32.totalorder %s27, 1
        %s612 = scalar_select %p611, %s27, 1
        %s613 = smul.addr %s612, 4
        %s614 = smul.addr %s613, 4
        %s615 = scalar_lea.vmem %s1, %s614
        %p616 = scmp.lt.s32.totalorder %s27, 1
        %s617 = scalar_select %p616, %s27, 1
        %s618 = scalar_lea.vmem %s2, %s617
        %p619 = scmp.lt.s32.totalorder %s27, 1
        %s620 = scalar_select %p619, %s27, 1
        %s621 = smul.addr %s620, 4
        %s622 = smul.addr %s621, 4
        %s623 = scalar_lea.vmem %s3, %s622
        %p624 = scmp.lt.s32.totalorder %s27, 1
        %s625 = scalar_select %p624, %s27, 1
        %s626 = scalar_lea.vmem %s4, %s625
        %p627 = scmp.lt.s32.totalorder %s27, 1
        %s628 = scalar_select %p627, %s27, 1
        %s629 = scalar_lea.vmem %s5, %s628
        %p630 = scmp.lt.s32.totalorder %s27, 1
        %s631 = scalar_select %p630, %s27, 1
        %s632 = scalar_lea.vmem %s6, %s631
        %p633 = scmp.lt.s32.totalorder %s27, 1
        %s634 = scalar_select %p633, %s27, 1
        %s635 = smul.addr %s634, 64
        %s636 = smul.addr %s635, 4
        %s637 = scalar_lea.vmem %s7, %s636
        %p638 = scmp.lt.s32.totalorder %s27, 1
        %s639 = scalar_select %p638, %s27, 1
        %s640 = smul.addr %s639, 16
        %s641 = scalar_lea.vmem %s8, %s640
        %p642 = scmp.lt.s32.totalorder %s27, 1
        %s643 = scalar_select %p642, %s27, 1
        %s644 = smul.addr %s643, 256
        %s645 = smul.addr %s644, 4
        %s646 = scalar_lea.vmem %s9, %s645
        %p647 = scmp.lt.s32.totalorder %s27, 1
        %s648 = scalar_select %p647, %s27, 1
        %s649 = scalar_lea.vmem %s10, %s648
        %p650 = scmp.lt.s32.totalorder %s27, 1
        %s651 = scalar_select %p650, %s27, 1
        %s652 = scalar_lea.vmem %s11, %s651
        %p653 = scmp.lt.s32.totalorder %s27, 1
        %s654 = scalar_select %p653, %s27, 1
        %s655 = scalar_lea.vmem %s12, %s654
        %p657 = scmp.eq.s32.totalorder %s27, 0
        // Predicated region
        $region81: #{transformer_model.1} parent=79 // pred_check
          %p658 = pneg %p657
        $region82: #{transformer_model.1} parent=79 // pred_check_branch
          %660 = sbr.rel (%p658) target = $region84
        $region83: #{transformer_model.1} parent=79 // pred_region
          %v661 = vld [vmem:[%s0] sm:$0xff]
          %v662 = vld [vmem:[%s0 + $0x8] sm:$0xff]
          %vm663 = vcmask 261120
          %664 = vst.msk [vmem:[#allocation2] sm:$0xff] %vm663, %v661
          %665 = vst.msk [vmem:[#allocation2 + $0x8] sm:$0xff] %vm663, %v662
        $region84: #{transformer_model.1} parent=79 // pred_fallthru
          _
        %v666 = vld [vmem:[#allocation2] sm:$0xff]
        %v667 = vld [vmem:[#allocation2 + $0x8] sm:$0xff]
        %v668 = vpack.c.bf16 %v667, %v666
        %v669 = vld [vmem:[%s615] sm:$0xf]
        %v670 = vld [vmem:[%s615 + $0x4] sm:$0xf]
        %v671 = vld [vmem:[%s615 + $0x8] sm:$0xf]
        %v672 = vld [vmem:[%s615 + $0xc] sm:$0xf]
        %v673 = vld [vmem:[%s618] sm:$0x1]
        %v675 = vlaneseq
        %v676 = vshrl.u32 %v675, 7
        %v677 = vsub.s32 0, %v676
        %v678 = vrot.slane %v673, %v677
        %v684 = vunpack.c.l.b16 %v669
        %v685 = vunpack.c.l.b16 %v670
        %v686 = vunpack.c.l.b16 %v671
        %v687 = vunpack.c.l.b16 %v672
        %v688 = vpack.c.b16 %v685, %v684
        %v689 = vpack.c.b16 %v687, %v686
        %vm692 = vcmask 261120
        %v694 = vsel %vm692, %v668, 0
        %696 = vmatprep.subr.bf16.mxu0 0
        %697 = vmatpush1.bf16.msra.mxu0 %v688
        %698 = vmatprep.subr.bf16.mxu0 0
        %699 = vmatpush1.bf16.msra.mxu0 %v689
        %700 = vmatprep.subr.bf16.mxu0 0
        %701 = vmatpush1.bf16.msra.mxu0 0
        %702 = vmatprep.subr.bf16.mxu0 0
        %703 = vmatpush1.bf16.msra.mxu0 0
        %704 = vmatprep.subr.bf16.mxu0 0
        %705 = vmatpush1.bf16.msra.mxu0 0
        %706 = vmatprep.subr.bf16.mxu0 0
        %707 = vmatpush1.bf16.msra.mxu0 0
        %708 = vmatprep.subr.bf16.mxu0 0
        %709 = vmatpush1.bf16.msra.mxu0 0
        %710 = vmatprep.subr.bf16.mxu0 0
        %711 = vmatpush1.bf16.msra.mxu0 0
        %712 = vmatprep.subr.bf16.mxu0 0
        %713 = vmatpush1.bf16.msra.mxu0 0
        %714 = vmatprep.subr.bf16.mxu0 0
        %715 = vmatpush1.bf16.msra.mxu0 0
        %716 = vmatprep.subr.bf16.mxu0 0
        %717 = vmatpush1.bf16.msra.mxu0 0
        %718 = vmatprep.subr.bf16.mxu0 0
        %719 = vmatpush1.bf16.msra.mxu0 0
        %720 = vmatprep.subr.bf16.mxu0 0
        %721 = vmatpush1.bf16.msra.mxu0 0
        %722 = vmatprep.subr.bf16.mxu0 0
        %723 = vmatpush1.bf16.msra.mxu0 0
        %724 = vmatprep.subr.bf16.mxu0 0
        %725 = vmatpush1.bf16.msra.mxu0 0
        %726 = vmatprep.subr.bf16.mxu0 0
        %727 = vmatpush1.bf16.msra.mxu0 0
        %728 = vmatprep.mubr.bf16.mxu0 0
        %729 = vmatmul.mubr.bf16.gmra.mrb[0].mxu0 %v694
        %v730 = vpop.f32.mrb[0].mxu0
        %v731 = vadd.f32 %v678, %v730
        %v732 = vpop.f32.mrb[0].mxu0
        %v733 = vpop.f32.mrb[0].mxu0
        %v734 = vadd.f32 %v678, %v733
        %v735 = vpop.f32.mrb[0].mxu0
        %736 = vdwg.mxu0
        %739 = vrot.lane.b32.xlu0 %v731, 120
        %v740 = vpop.permute.xlu0 %739
        %741 = vrot.lane.b32.xlu0 %v734, 120
        %v742 = vpop.permute.xlu0 %741
        %745 = vrot.lane.b32.xlu0 %v731, 112
        %v746 = vpop.permute.xlu0 %745
        %747 = vrot.lane.b32.xlu0 %v734, 112
        %v748 = vpop.permute.xlu0 %747
        %751 = vrot.lane.b32.xlu0 %v731, 104
        %v752 = vpop.permute.xlu0 %751
        %753 = vrot.lane.b32.xlu0 %v734, 104
        %v754 = vpop.permute.xlu0 %753
        %v757 = vmul.f32 %v731, 0.35355338
        %v758 = vmul.f32 %v734, 0.35355338
        %v759 = vmul.f32 %v740, 0.35355338
        %v760 = vmul.f32 %v742, 0.35355338
        %v761 = vmul.f32 %v746, 0.35355338
        %v762 = vmul.f32 %v748, 0.35355338
        %v763 = vmul.f32 %v752, 0.35355338
        %v764 = vmul.f32 %v754, 0.35355338
        %765 = vrot.lane.b32.xlu0 %v731, 96
        %v766 = vpop.permute.xlu0 %765
        %vm767 = vcmask 64512
        %v769 = vsel %vm767, %v757, 0
        %v771 = vsel %vm767, %v766, 0
        %773 = vmatprep.subr.mxu0 0.0
        %v774 = vand.u32 %v771, 4294901760
        %775 = vmatpush1.xpose.msra.mxu0 %v774
        %776 = vmatprep.subr.mxu0 0.0
        %777 = vmatpush1.xpose.msra.mxu0 0.0
        %778 = vmatprep.subr.mxu0 0.0
        %779 = vmatpush1.xpose.msra.mxu0 0.0
        %780 = vmatprep.subr.mxu0 0.0
        %781 = vmatpush1.xpose.msra.mxu0 0.0
        %782 = vmatprep.subr.mxu0 0.0
        %783 = vmatpush1.xpose.msra.mxu0 0.0
        %784 = vmatprep.subr.mxu0 0.0
        %785 = vmatpush1.xpose.msra.mxu0 0.0
        %786 = vmatprep.subr.mxu0 0.0
        %787 = vmatpush1.xpose.msra.mxu0 0.0
        %788 = vmatprep.subr.mxu0 0.0
        %789 = vmatpush1.xpose.msra.mxu0 0.0
        %790 = vmatprep.subr.mxu0 0.0
        %791 = vmatpush1.xpose.msra.mxu0 0.0
        %792 = vmatprep.subr.mxu0 0.0
        %793 = vmatpush1.xpose.msra.mxu0 0.0
        %794 = vmatprep.subr.mxu0 0.0
        %795 = vmatpush1.xpose.msra.mxu0 0.0
        %796 = vmatprep.subr.mxu0 0.0
        %797 = vmatpush1.xpose.msra.mxu0 0.0
        %798 = vmatprep.subr.mxu0 0.0
        %799 = vmatpush1.xpose.msra.mxu0 0.0
        %800 = vmatprep.subr.mxu0 0.0
        %801 = vmatpush1.xpose.msra.mxu0 0.0
        %802 = vmatprep.subr.mxu0 0.0
        %803 = vmatpush1.xpose.msra.mxu0 0.0
        %804 = vmatprep.subr.mxu0 0.0
        %805 = vmatpush1.xpose.msra.mxu0 0.0
        %806 = vmatprep.subr.mxu0 0.0
        %807 = vmatpush1.xpose.msra.mxu0 0.0
        %808 = vmatprep.subr.mxu0 0.0
        %809 = vmatpush1.xpose.msra.mxu0 0.0
        %810 = vmatprep.subr.mxu0 0.0
        %811 = vmatpush1.xpose.msra.mxu0 0.0
        %812 = vmatprep.subr.mxu0 0.0
        %813 = vmatpush1.xpose.msra.mxu0 0.0
        %814 = vmatprep.subr.mxu0 0.0
        %815 = vmatpush1.xpose.msra.mxu0 0.0
        %816 = vmatprep.subr.mxu0 0.0
        %817 = vmatpush1.xpose.msra.mxu0 0.0
        %818 = vmatprep.subr.mxu0 0.0
        %819 = vmatpush1.xpose.msra.mxu0 0.0
        %820 = vmatprep.subr.mxu0 0.0
        %821 = vmatpush1.xpose.msra.mxu0 0.0
        %822 = vmatprep.subr.mxu0 0.0
        %823 = vmatpush1.xpose.msra.mxu0 0.0
        %824 = vmatprep.subr.mxu0 0.0
        %825 = vmatpush1.xpose.msra.mxu0 0.0
        %826 = vmatprep.subr.mxu0 0.0
        %827 = vmatpush1.xpose.msra.mxu0 0.0
        %828 = vmatprep.subr.mxu0 0.0
        %829 = vmatpush1.xpose.msra.mxu0 0.0
        %830 = vmatprep.subr.mxu0 0.0
        %831 = vmatpush1.xpose.msra.mxu0 0.0
        %832 = vmatprep.subr.mxu0 0.0
        %833 = vmatpush1.xpose.msra.mxu0 0.0
        %834 = vmatprep.subr.mxu0 0.0
        %835 = vmatpush1.xpose.msra.mxu0 0.0
        %836 = vmatprep.subr.mxu0 0.0
        %837 = vmatpush1.xpose.msra.mxu0 0.0
        %838 = vmatprep.mubr.f32.mxu0 0.0
        %v839 = vand.u32 %v769, 4294901760
        %v840 = vsub.f32 %v769, %v839
        %v841 = vand.u32 %v840, 4294901760
        %v842 = vsub.f32 %v840, %v841
        %v843 = vand.u32 %v842, 4294901760
        %844 = vmatmul.mubr.f32.gmra.mrb[0].mxu0 %v843
        %v845 = vpop.f32.mrb[0].mxu0
        %v846 = vadd.f32 0.0, %v845
        %v847 = vpop.f32.mrb[0].mxu0
        %848 = vdwg.mxu0
        %849 = vmatprep.subr.mxu0 0.0
        %v850 = vand.u32 %v771, 4294901760
        %v851 = vsub.f32 %v771, %v850
        %v852 = vand.u32 %v851, 4294901760
        %v853 = vsub.f32 %v851, %v852
        %v854 = vand.u32 %v853, 4294901760
        %855 = vmatpush1.xpose.msra.mxu0 %v854
        %856 = vmatprep.subr.mxu0 0.0
        %857 = vmatpush1.xpose.msra.mxu0 0.0
        %858 = vmatprep.subr.mxu0 0.0
        %859 = vmatpush1.xpose.msra.mxu0 0.0
        %860 = vmatprep.subr.mxu0 0.0
        %861 = vmatpush1.xpose.msra.mxu0 0.0
        %862 = vmatprep.subr.mxu0 0.0
        %863 = vmatpush1.xpose.msra.mxu0 0.0
        %864 = vmatprep.subr.mxu0 0.0
        %865 = vmatpush1.xpose.msra.mxu0 0.0
        %866 = vmatprep.subr.mxu0 0.0
        %867 = vmatpush1.xpose.msra.mxu0 0.0
        %868 = vmatprep.subr.mxu0 0.0
        %869 = vmatpush1.xpose.msra.mxu0 0.0
        %870 = vmatprep.subr.mxu0 0.0
        %871 = vmatpush1.xpose.msra.mxu0 0.0
        %872 = vmatprep.subr.mxu0 0.0
        %873 = vmatpush1.xpose.msra.mxu0 0.0
        %874 = vmatprep.subr.mxu0 0.0
        %875 = vmatpush1.xpose.msra.mxu0 0.0
        %876 = vmatprep.subr.mxu0 0.0
        %877 = vmatpush1.xpose.msra.mxu0 0.0
        %878 = vmatprep.subr.mxu0 0.0
        %879 = vmatpush1.xpose.msra.mxu0 0.0
        %880 = vmatprep.subr.mxu0 0.0
        %881 = vmatpush1.xpose.msra.mxu0 0.0
        %882 = vmatprep.subr.mxu0 0.0
        %883 = vmatpush1.xpose.msra.mxu0 0.0
        %884 = vmatprep.subr.mxu0 0.0
        %885 = vmatpush1.xpose.msra.mxu0 0.0
        %886 = vmatprep.subr.mxu0 0.0
        %887 = vmatpush1.xpose.msra.mxu0 0.0
        %888 = vmatprep.subr.mxu0 0.0
        %889 = vmatpush1.xpose.msra.mxu0 0.0
        %890 = vmatprep.subr.mxu0 0.0
        %891 = vmatpush1.xpose.msra.mxu0 0.0
        %892 = vmatprep.subr.mxu0 0.0
        %893 = vmatpush1.xpose.msra.mxu0 0.0
        %894 = vmatprep.subr.mxu0 0.0
        %895 = vmatpush1.xpose.msra.mxu0 0.0
        %896 = vmatprep.subr.mxu0 0.0
        %897 = vmatpush1.xpose.msra.mxu0 0.0
        %898 = vmatprep.subr.mxu0 0.0
        %899 = vmatpush1.xpose.msra.mxu0 0.0
        %900 = vmatprep.subr.mxu0 0.0
        %901 = vmatpush1.xpose.msra.mxu0 0.0
        %902 = vmatprep.subr.mxu0 0.0
        %903 = vmatpush1.xpose.msra.mxu0 0.0
        %904 = vmatprep.subr.mxu0 0.0
        %905 = vmatpush1.xpose.msra.mxu0 0.0
        %906 = vmatprep.subr.mxu0 0.0
        %907 = vmatpush1.xpose.msra.mxu0 0.0
        %908 = vmatprep.subr.mxu0 0.0
        %909 = vmatpush1.xpose.msra.mxu0 0.0
        %910 = vmatprep.subr.mxu0 0.0
        %911 = vmatpush1.xpose.msra.mxu0 0.0
        %912 = vmatprep.subr.mxu0 0.0
        %913 = vmatpush1.xpose.msra.mxu0 0.0
        %914 = vmatprep.subr.mxu0 0.0
        %915 = vmatpush1.xpose.msra.mxu0 0.0
        %916 = vmatprep.subr.mxu0 0.0
        %917 = vmatpush1.xpose.msra.mxu0 0.0
        %918 = vmatprep.mubr.f32.mxu0 0.0
        %v919 = vand.u32 %v769, 4294901760
        %920 = vmatmul.mubr.f32.gmra.mrb[0].mxu0 %v919
        %v921 = vpop.f32.mrb[0].mxu0
        %v922 = vadd.f32 %v846, %v921
        %v923 = vpop.f32.mrb[0].mxu0
        %924 = vdwg.mxu0
        %925 = vmatprep.subr.mxu0 0.0
        %v926 = vand.u32 %v771, 4294901760
        %v927 = vsub.f32 %v771, %v926
        %928 = vmatpush1.xpose.msra.mxu0 %v927
        %929 = vmatprep.subr.mxu0 0.0
        %930 = vmatpush1.xpose.msra.mxu0 0.0
        %931 = vmatprep.subr.mxu0 0.0
        %932 = vmatpush1.xpose.msra.mxu0 0.0
        %933 = vmatprep.subr.mxu0 0.0
        %934 = vmatpush1.xpose.msra.mxu0 0.0
        %935 = vmatprep.subr.mxu0 0.0
        %936 = vmatpush1.xpose.msra.mxu0 0.0
        %937 = vmatprep.subr.mxu0 0.0
        %938 = vmatpush1.xpose.msra.mxu0 0.0
        %939 = vmatprep.subr.mxu0 0.0
        %940 = vmatpush1.xpose.msra.mxu0 0.0
        %941 = vmatprep.subr.mxu0 0.0
        %942 = vmatpush1.xpose.msra.mxu0 0.0
        %943 = vmatprep.subr.mxu0 0.0
        %944 = vmatpush1.xpose.msra.mxu0 0.0
        %945 = vmatprep.subr.mxu0 0.0
        %946 = vmatpush1.xpose.msra.mxu0 0.0
        %947 = vmatprep.subr.mxu0 0.0
        %948 = vmatpush1.xpose.msra.mxu0 0.0
        %949 = vmatprep.subr.mxu0 0.0
        %950 = vmatpush1.xpose.msra.mxu0 0.0
        %951 = vmatprep.subr.mxu0 0.0
        %952 = vmatpush1.xpose.msra.mxu0 0.0
        %953 = vmatprep.subr.mxu0 0.0
        %954 = vmatpush1.xpose.msra.mxu0 0.0
        %955 = vmatprep.subr.mxu0 0.0
        %956 = vmatpush1.xpose.msra.mxu0 0.0
        %957 = vmatprep.subr.mxu0 0.0
        %958 = vmatpush1.xpose.msra.mxu0 0.0
        %959 = vmatprep.subr.mxu0 0.0
        %960 = vmatpush1.xpose.msra.mxu0 0.0
        %961 = vmatprep.subr.mxu0 0.0
        %962 = vmatpush1.xpose.msra.mxu0 0.0
        %963 = vmatprep.subr.mxu0 0.0
        %964 = vmatpush1.xpose.msra.mxu0 0.0
        %965 = vmatprep.subr.mxu0 0.0
        %966 = vmatpush1.xpose.msra.mxu0 0.0
        %967 = vmatprep.subr.mxu0 0.0
        %968 = vmatpush1.xpose.msra.mxu0 0.0
        %969 = vmatprep.subr.mxu0 0.0
        %970 = vmatpush1.xpose.msra.mxu0 0.0
        %971 = vmatprep.subr.mxu0 0.0
        %972 = vmatpush1.xpose.msra.mxu0 0.0
        %973 = vmatprep.subr.mxu0 0.0
        %974 = vmatpush1.xpose.msra.mxu0 0.0
        %975 = vmatprep.subr.mxu0 0.0
        %976 = vmatpush1.xpose.msra.mxu0 0.0
        %977 = vmatprep.subr.mxu0 0.0
        %978 = vmatpush1.xpose.msra.mxu0 0.0
        %979 = vmatprep.subr.mxu0 0.0
        %980 = vmatpush1.xpose.msra.mxu0 0.0
        %981 = vmatprep.subr.mxu0 0.0
        %982 = vmatpush1.xpose.msra.mxu0 0.0
        %983 = vmatprep.subr.mxu0 0.0
        %984 = vmatpush1.xpose.msra.mxu0 0.0
        %985 = vmatprep.subr.mxu0 0.0
        %986 = vmatpush1.xpose.msra.mxu0 0.0
        %987 = vmatprep.subr.mxu0 0.0
        %988 = vmatpush1.xpose.msra.mxu0 0.0
        %989 = vmatprep.subr.mxu0 0.0
        %990 = vmatpush1.xpose.msra.mxu0 0.0
        %991 = vmatprep.mubr.f32.mxu0 0.0
        %v992 = vand.u32 %v769, 4294901760
        %v993 = vsub.f32 %v769, %v992
        %994 = vmatmul.mubr.f32.gmra.mrb[0].mxu0 %v993
        %v995 = vpop.f32.mrb[0].mxu0
        %v996 = vadd.f32 %v922, %v995
        %v997 = vpop.f32.mrb[0].mxu0
        %998 = vdwg.mxu0
        %999 = vmatprep.subr.mxu0 0.0
        %v1000 = vand.u32 %v771, 4294901760
        %1001 = vmatpush1.xpose.msra.mxu0 %v1000
        %1002 = vmatprep.subr.mxu0 0.0
        %1003 = vmatpush1.xpose.msra.mxu0 0.0
        %1004 = vmatprep.subr.mxu0 0.0
        %1005 = vmatpush1.xpose.msra.mxu0 0.0
        %1006 = vmatprep.subr.mxu0 0.0
        %1007 = vmatpush1.xpose.msra.mxu0 0.0
        %1008 = vmatprep.subr.mxu0 0.0
        %1009 = vmatpush1.xpose.msra.mxu0 0.0
        %1010 = vmatprep.subr.mxu0 0.0
        %1011 = vmatpush1.xpose.msra.mxu0 0.0
        %1012 = vmatprep.subr.mxu0 0.0
        %1013 = vmatpush1.xpose.msra.mxu0 0.0
        %1014 = vmatprep.subr.mxu0 0.0
        %1015 = vmatpush1.xpose.msra.mxu0 0.0
        %1016 = vmatprep.subr.mxu0 0.0
        %1017 = vmatpush1.xpose.msra.mxu0 0.0
        %1018 = vmatprep.subr.mxu0 0.0
        %1019 = vmatpush1.xpose.msra.mxu0 0.0
        %1020 = vmatprep.subr.mxu0 0.0
        %1021 = vmatpush1.xpose.msra.mxu0 0.0
        %1022 = vmatprep.subr.mxu0 0.0
        %1023 = vmatpush1.xpose.msra.mxu0 0.0
        %1024 = vmatprep.subr.mxu0 0.0
        %1025 = vmatpush1.xpose.msra.mxu0 0.0
        %1026 = vmatprep.subr.mxu0 0.0
        %1027 = vmatpush1.xpose.msra.mxu0 0.0
        %1028 = vmatprep.subr.mxu0 0.0
        %1029 = vmatpush1.xpose.msra.mxu0 0.0
        %1030 = vmatprep.subr.mxu0 0.0
        %1031 = vmatpush1.xpose.msra.mxu0 0.0
        %1032 = vmatprep.subr.mxu0 0.0
        %1033 = vmatpush1.xpose.msra.mxu0 0.0
        %1034 = vmatprep.subr.mxu0 0.0
        %1035 = vmatpush1.xpose.msra.mxu0 0.0
        %1036 = vmatprep.subr.mxu0 0.0
        %1037 = vmatpush1.xpose.msra.mxu0 0.0
        %1038 = vmatprep.subr.mxu0 0.0
        %1039 = vmatpush1.xpose.msra.mxu0 0.0
        %1040 = vmatprep.subr.mxu0 0.0
        %1041 = vmatpush1.xpose.msra.mxu0 0.0
        %1042 = vmatprep.subr.mxu0 0.0
        %1043 = vmatpush1.xpose.msra.mxu0 0.0
        %1044 = vmatprep.subr.mxu0 0.0
        %1045 = vmatpush1.xpose.msra.mxu0 0.0
        %1046 = vmatprep.subr.mxu0 0.0
        %1047 = vmatpush1.xpose.msra.mxu0 0.0
        %1048 = vmatprep.subr.mxu0 0.0
        %1049 = vmatpush1.xpose.msra.mxu0 0.0
        %1050 = vmatprep.subr.mxu0 0.0
        %1051 = vmatpush1.xpose.msra.mxu0 0.0
        %1052 = vmatprep.subr.mxu0 0.0
        %1053 = vmatpush1.xpose.msra.mxu0 0.0
        %1054 = vmatprep.subr.mxu0 0.0
        %1055 = vmatpush1.xpose.msra.mxu0 0.0
        %1056 = vmatprep.subr.mxu0 0.0
        %1057 = vmatpush1.xpose.msra.mxu0 0.0
        %1058 = vmatprep.subr.mxu0 0.0
        %1059 = vmatpush1.xpose.msra.mxu0 0.0
        %1060 = vmatprep.subr.mxu0 0.0
        %1061 = vmatpush1.xpose.msra.mxu0 0.0
        %1062 = vmatprep.subr.mxu0 0.0
        %1063 = vmatpush1.xpose.msra.mxu0 0.0
        %1064 = vmatprep.mubr.f32.mxu0 0.0
        %v1065 = vand.u32 %v769, 4294901760
        %v1066 = vsub.f32 %v769, %v1065
        %v1067 = vand.u32 %v1066, 4294901760
        %1068 = vmatmul.mubr.f32.gmra.mrb[0].mxu0 %v1067
        %v1069 = vpop.f32.mrb[0].mxu0
        %v1070 = vadd.f32 %v996, %v1069
        %v1071 = vpop.f32.mrb[0].mxu0
        %1072 = vdwg.mxu0
        %1073 = vmatprep.subr.mxu0 0.0
        %v1074 = vand.u32 %v771, 4294901760
        %v1075 = vsub.f32 %v771, %v1074
        %v1076 = vand.u32 %v1075, 4294901760
        %1077 = vmatpush1.xpose.msra.mxu0 %v1076
        %1078 = vmatprep.subr.mxu0 0.0
        %1079 = vmatpush1.xpose.msra.mxu0 0.0
        %1080 = vmatprep.subr.mxu0 0.0
        %1081 = vmatpush1.xpose.msra.mxu0 0.0
        %1082 = vmatprep.subr.mxu0 0.0
        %1083 = vmatpush1.xpose.msra.mxu0 0.0
        %1084 = vmatprep.subr.mxu0 0.0
        %1085 = vmatpush1.xpose.msra.mxu0 0.0
        %1086 = vmatprep.subr.mxu0 0.0
        %1087 = vmatpush1.xpose.msra.mxu0 0.0
        %1088 = vmatprep.subr.mxu0 0.0
        %1089 = vmatpush1.xpose.msra.mxu0 0.0
        %1090 = vmatprep.subr.mxu0 0.0
        %1091 = vmatpush1.xpose.msra.mxu0 0.0
        %1092 = vmatprep.subr.mxu0 0.0
        %1093 = vmatpush1.xpose.msra.mxu0 0.0
        %1094 = vmatprep.subr.mxu0 0.0
        %1095 = vmatpush1.xpose.msra.mxu0 0.0
        %1096 = vmatprep.subr.mxu0 0.0
        %1097 = vmatpush1.xpose.msra.mxu0 0.0
        %1098 = vmatprep.subr.mxu0 0.0
        %1099 = vmatpush1.xpose.msra.mxu0 0.0
        %1100 = vmatprep.subr.mxu0 0.0
        %1101 = vmatpush1.xpose.msra.mxu0 0.0
        %1102 = vmatprep.subr.mxu0 0.0
        %1103 = vmatpush1.xpose.msra.mxu0 0.0
        %1104 = vmatprep.subr.mxu0 0.0
        %1105 = vmatpush1.xpose.msra.mxu0 0.0
        %1106 = vmatprep.subr.mxu0 0.0
        %1107 = vmatpush1.xpose.msra.mxu0 0.0
        %1108 = vmatprep.subr.mxu0 0.0
        %1109 = vmatpush1.xpose.msra.mxu0 0.0
        %1110 = vmatprep.subr.mxu0 0.0
        %1111 = vmatpush1.xpose.msra.mxu0 0.0
        %1112 = vmatprep.subr.mxu0 0.0
        %1113 = vmatpush1.xpose.msra.mxu0 0.0
        %1114 = vmatprep.subr.mxu0 0.0
        %1115 = vmatpush1.xpose.msra.mxu0 0.0
        %1116 = vmatprep.subr.mxu0 0.0
        %1117 = vmatpush1.xpose.msra.mxu0 0.0
        %1118 = vmatprep.subr.mxu0 0.0
        %1119 = vmatpush1.xpose.msra.mxu0 0.0
        %1120 = vmatprep.subr.mxu0 0.0
        %1121 = vmatpush1.xpose.msra.mxu0 0.0
        %1122 = vmatprep.subr.mxu0 0.0
        %1123 = vmatpush1.xpose.msra.mxu0 0.0
        %1124 = vmatprep.subr.mxu0 0.0
        %1125 = vmatpush1.xpose.msra.mxu0 0.0
        %1126 = vmatprep.subr.mxu0 0.0
        %1127 = vmatpush1.xpose.msra.mxu0 0.0
        %1128 = vmatprep.subr.mxu0 0.0
        %1129 = vmatpush1.xpose.msra.mxu0 0.0
        %1130 = vmatprep.subr.mxu0 0.0
        %1131 = vmatpush1.xpose.msra.mxu0 0.0
        %1132 = vmatprep.subr.mxu0 0.0
        %1133 = vmatpush1.xpose.msra.mxu0 0.0
        %1134 = vmatprep.subr.mxu0 0.0
        %1135 = vmatpush1.xpose.msra.mxu0 0.0
        %1136 = vmatprep.subr.mxu0 0.0
        %1137 = vmatpush1.xpose.msra.mxu0 0.0
        %1138 = vmatprep.subr.mxu0 0.0
        %1139 = vmatpush1.xpose.msra.mxu0 0.0
        %1140 = vmatprep.mubr.f32.mxu0 0.0
        %v1141 = vand.u32 %v769, 4294901760
        %1142 = vmatmul.mubr.f32.gmra.mrb[0].mxu0 %v1141
        %v1143 = vpop.f32.mrb[0].mxu0
        %v1144 = vadd.f32 %v1070, %v1143
        %v1145 = vpop.f32.mrb[0].mxu0
        %1146 = vdwg.mxu0
        %1147 = vmatprep.subr.mxu0 0.0
        %v1148 = vand.u32 %v771, 4294901760
        %1149 = vmatpush1.xpose.msra.mxu0 %v1148
        %1150 = vmatprep.subr.mxu0 0.0
        %1151 = vmatpush1.xpose.msra.mxu0 0.0
        %1152 = vmatprep.subr.mxu0 0.0
        %1153 = vmatpush1.xpose.msra.mxu0 0.0
        %1154 = vmatprep.subr.mxu0 0.0
        %1155 = vmatpush1.xpose.msra.mxu0 0.0
        %1156 = vmatprep.subr.mxu0 0.0
        %1157 = vmatpush1.xpose.msra.mxu0 0.0
        %1158 = vmatprep.subr.mxu0 0.0
        %1159 = vmatpush1.xpose.msra.mxu0 0.0
        %1160 = vmatprep.subr.mxu0 0.0
        %1161 = vmatpush1.xpose.msra.mxu0 0.0
        %1162 = vmatprep.subr.mxu0 0.0
        %1163 = vmatpush1.xpose.msra.mxu0 0.0
        %1164 = vmatprep.subr.mxu0 0.0
        %1165 = vmatpush1.xpose.msra.mxu0 0.0
        %1166 = vmatprep.subr.mxu0 0.0
        %1167 = vmatpush1.xpose.msra.mxu0 0.0
        %1168 = vmatprep.subr.mxu0 0.0
        %1169 = vmatpush1.xpose.msra.mxu0 0.0
        %1170 = vmatprep.subr.mxu0 0.0
        %1171 = vmatpush1.xpose.msra.mxu0 0.0
        %1172 = vmatprep.subr.mxu0 0.0
        %1173 = vmatpush1.xpose.msra.mxu0 0.0
        %1174 = vmatprep.subr.mxu0 0.0
        %1175 = vmatpush1.xpose.msra.mxu0 0.0
        %1176 = vmatprep.subr.mxu0 0.0
        %1177 = vmatpush1.xpose.msra.mxu0 0.0
        %1178 = vmatprep.subr.mxu0 0.0
        %1179 = vmatpush1.xpose.msra.mxu0 0.0
        %1180 = vmatprep.subr.mxu0 0.0
        %1181 = vmatpush1.xpose.msra.mxu0 0.0
        %1182 = vmatprep.subr.mxu0 0.0
        %1183 = vmatpush1.xpose.msra.mxu0 0.0
        %1184 = vmatprep.subr.mxu0 0.0
        %1185 = vmatpush1.xpose.msra.mxu0 0.0
        %1186 = vmatprep.subr.mxu0 0.0
        %1187 = vmatpush1.xpose.msra.mxu0 0.0
        %1188 = vmatprep.subr.mxu0 0.0
        %1189 = vmatpush1.xpose.msra.mxu0 0.0
        %1190 = vmatprep.subr.mxu0 0.0
        %1191 = vmatpush1.xpose.msra.mxu0 0.0
        %1192 = vmatprep.subr.mxu0 0.0
        %1193 = vmatpush1.xpose.msra.mxu0 0.0
        %1194 = vmatprep.subr.mxu0 0.0
        %1195 = vmatpush1.xpose.msra.mxu0 0.0
        %1196 = vmatprep.subr.mxu0 0.0
        %1197 = vmatpush1.xpose.msra.mxu0 0.0
        %1198 = vmatprep.subr.mxu0 0.0
        %1199 = vmatpush1.xpose.msra.mxu0 0.0
        %1200 = vmatprep.subr.mxu0 0.0
        %1201 = vmatpush1.xpose.msra.mxu0 0.0
        %1202 = vmatprep.subr.mxu0 0.0
        %1203 = vmatpush1.xpose.msra.mxu0 0.0
        %1204 = vmatprep.subr.mxu0 0.0
        %1205 = vmatpush1.xpose.msra.mxu0 0.0
        %1206 = vmatprep.subr.mxu0 0.0
        %1207 = vmatpush1.xpose.msra.mxu0 0.0
        %1208 = vmatprep.subr.mxu0 0.0
        %1209 = vmatpush1.xpose.msra.mxu0 0.0
        %1210 = vmatprep.subr.mxu0 0.0
        %1211 = vmatpush1.xpose.msra.mxu0 0.0
        %1212 = vmatprep.mubr.f32.mxu0 0.0
        %v1213 = vand.u32 %v769, 4294901760
        %1214 = vmatmul.mubr.f32.gmra.mrb[0].mxu0 %v1213
        %v1215 = vpop.f32.mrb[0].mxu0
        %v1216 = vadd.f32 %v1144, %v1215
        %v1217 = vpop.f32.mrb[0].mxu0
        %1218 = vdwg.mxu0
        %1219 = vrot.lane.b32.xlu0 %v734, 96
        %v1220 = vpop.permute.xlu0 %1219
        %v1222 = vsel %vm767, %v758, 0
        %v1224 = vsel %vm767, %v1220, 0
        %1226 = vmatprep.subr.mxu0 0.0
        %v1227 = vand.u32 %v1224, 4294901760
        %1228 = vmatpush1.xpose.msra.mxu0 %v1227
        %1229 = vmatprep.subr.mxu0 0.0
        %1230 = vmatpush1.xpose.msra.mxu0 0.0
        %1231 = vmatprep.subr.mxu0 0.0
        %1232 = vmatpush1.xpose.msra.mxu0 0.0
        %1233 = vmatprep.subr.mxu0 0.0
        %1234 = vmatpush1.xpose.msra.mxu0 0.0
        %1235 = vmatprep.subr.mxu0 0.0
        %1236 = vmatpush1.xpose.msra.mxu0 0.0
        %1237 = vmatprep.subr.mxu0 0.0
        %1238 = vmatpush1.xpose.msra.mxu0 0.0
        %1239 = vmatprep.subr.mxu0 0.0
        %1240 = vmatpush1.xpose.msra.mxu0 0.0
        %1241 = vmatprep.subr.mxu0 0.0
        %1242 = vmatpush1.xpose.msra.mxu0 0.0
        %1243 = vmatprep.subr.mxu0 0.0
        %1244 = vmatpush1.xpose.msra.mxu0 0.0
        %1245 = vmatprep.subr.mxu0 0.0
        %1246 = vmatpush1.xpose.msra.mxu0 0.0
        %1247 = vmatprep.subr.mxu0 0.0
        %1248 = vmatpush1.xpose.msra.mxu0 0.0
        %1249 = vmatprep.subr.mxu0 0.0
        %1250 = vmatpush1.xpose.msra.mxu0 0.0
        %1251 = vmatprep.subr.mxu0 0.0
        %1252 = vmatpush1.xpose.msra.mxu0 0.0
        %1253 = vmatprep.subr.mxu0 0.0
        %1254 = vmatpush1.xpose.msra.mxu0 0.0
        %1255 = vmatprep.subr.mxu0 0.0
        %1256 = vmatpush1.xpose.msra.mxu0 0.0
        %1257 = vmatprep.subr.mxu0 0.0
        %1258 = vmatpush1.xpose.msra.mxu0 0.0
        %1259 = vmatprep.subr.mxu0 0.0
        %1260 = vmatpush1.xpose.msra.mxu0 0.0
        %1261 = vmatprep.subr.mxu0 0.0
        %1262 = vmatpush1.xpose.msra.mxu0 0.0
        %1263 = vmatprep.subr.mxu0 0.0
        %1264 = vmatpush1.xpose.msra.mxu0 0.0
        %1265 = vmatprep.subr.mxu0 0.0
        %1266 = vmatpush1.xpose.msra.mxu0 0.0
        %1267 = vmatprep.subr.mxu0 0.0
        %1268 = vmatpush1.xpose.msra.mxu0 0.0
        %1269 = vmatprep.subr.mxu0 0.0
        %1270 = vmatpush1.xpose.msra.mxu0 0.0
        %1271 = vmatprep.subr.mxu0 0.0
        %1272 = vmatpush1.xpose.msra.mxu0 0.0
        %1273 = vmatprep.subr.mxu0 0.0
        %1274 = vmatpush1.xpose.msra.mxu0 0.0
        %1275 = vmatprep.subr.mxu0 0.0
        %1276 = vmatpush1.xpose.msra.mxu0 0.0
        %1277 = vmatprep.subr.mxu0 0.0
        %1278 = vmatpush1.xpose.msra.mxu0 0.0
        %1279 = vmatprep.subr.mxu0 0.0
        %1280 = vmatpush1.xpose.msra.mxu0 0.0
        %1281 = vmatprep.subr.mxu0 0.0
        %1282 = vmatpush1.xpose.msra.mxu0 0.0
        %1283 = vmatprep.subr.mxu0 0.0
        %1284 = vmatpush1.xpose.msra.mxu0 0.0
        %1285 = vmatprep.subr.mxu0 0.0
        %1286 = vmatpush1.xpose.msra.mxu0 0.0
        %1287 = vmatprep.subr.mxu0 0.0
        %1288 = vmatpush1.xpose.msra.mxu0 0.0
        %1289 = vmatprep.subr.mxu0 0.0
        %1290 = vmatpush1.xpose.msra.mxu0 0.0
        %1291 = vmatprep.mubr.f32.mxu0 0.0
        %v1292 = vand.u32 %v1222, 4294901760
        %v1293 = vsub.f32 %v1222, %v1292
        %v1294 = vand.u32 %v1293, 4294901760
        %v1295 = vsub.f32 %v1293, %v1294
        %v1296 = vand.u32 %v1295, 4294901760
        %1297 = vmatmul.mubr.f32.gmra.mrb[0].mxu0 %v1296
        %v1298 = vpop.f32.mrb[0].mxu0
        %v1299 = vadd.f32 0.0, %v1298
        %v1300 = vpop.f32.mrb[0].mxu0
        %1301 = vdwg.mxu0
        %1302 = vmatprep.subr.mxu0 0.0
        %v1303 = vand.u32 %v1224, 4294901760
        %v1304 = vsub.f32 %v1224, %v1303
        %v1305 = vand.u32 %v1304, 4294901760
        %v1306 = vsub.f32 %v1304, %v1305
        %v1307 = vand.u32 %v1306, 4294901760
        %1308 = vmatpush1.xpose.msra.mxu0 %v1307
        %1309 = vmatprep.subr.mxu0 0.0
        %1310 = vmatpush1.xpose.msra.mxu0 0.0
        %1311 = vmatprep.subr.mxu0 0.0
        %1312 = vmatpush1.xpose.msra.mxu0 0.0
        %1313 = vmatprep.subr.mxu0 0.0
        %1314 = vmatpush1.xpose.msra.mxu0 0.0
        %1315 = vmatprep.subr.mxu0 0.0
        %1316 = vmatpush1.xpose.msra.mxu0 0.0
        %1317 = vmatprep.subr.mxu0 0.0
        %1318 = vmatpush1.xpose.msra.mxu0 0.0
        %1319 = vmatprep.subr.mxu0 0.0
        %1320 = vmatpush1.xpose.msra.mxu0 0.0
        %1321 = vmatprep.subr.mxu0 0.0
        %1322 = vmatpush1.xpose.msra.mxu0 0.0
        %1323 = vmatprep.subr.mxu0 0.0
        %1324 = vmatpush1.xpose.msra.mxu0 0.0
        %1325 = vmatprep.subr.mxu0 0.0
        %1326 = vmatpush1.xpose.msra.mxu0 0.0
        %1327 = vmatprep.subr.mxu0 0.0
        %1328 = vmatpush1.xpose.msra.mxu0 0.0
        %1329 = vmatprep.subr.mxu0 0.0
        %1330 = vmatpush1.xpose.msra.mxu0 0.0
        %1331 = vmatprep.subr.mxu0 0.0
        %1332 = vmatpush1.xpose.msra.mxu0 0.0
        %1333 = vmatprep.subr.mxu0 0.0
        %1334 = vmatpush1.xpose.msra.mxu0 0.0
        %1335 = vmatprep.subr.mxu0 0.0
        %1336 = vmatpush1.xpose.msra.mxu0 0.0
        %1337 = vmatprep.subr.mxu0 0.0
        %1338 = vmatpush1.xpose.msra.mxu0 0.0
        %1339 = vmatprep.subr.mxu0 0.0
        %1340 = vmatpush1.xpose.msra.mxu0 0.0
        %1341 = vmatprep.subr.mxu0 0.0
        %1342 = vmatpush1.xpose.msra.mxu0 0.0
        %1343 = vmatprep.subr.mxu0 0.0
        %1344 = vmatpush1.xpose.msra.mxu0 0.0
        %1345 = vmatprep.subr.mxu0 0.0
        %1346 = vmatpush1.xpose.msra.mxu0 0.0
        %1347 = vmatprep.subr.mxu0 0.0
        %1348 = vmatpush1.xpose.msra.mxu0 0.0
        %1349 = vmatprep.subr.mxu0 0.0
        %1350 = vmatpush1.xpose.msra.mxu0 0.0
        %1351 = vmatprep.subr.mxu0 0.0
        %1352 = vmatpush1.xpose.msra.mxu0 0.0
        %1353 = vmatprep.subr.mxu0 0.0
        %1354 = vmatpush1.xpose.msra.mxu0 0.0
        %1355 = vmatprep.subr.mxu0 0.0
        %1356 = vmatpush1.xpose.msra.mxu0 0.0
        %1357 = vmatprep.subr.mxu0 0.0
        %1358 = vmatpush1.xpose.msra.mxu0 0.0
        %1359 = vmatprep.subr.mxu0 0.0
        %1360 = vmatpush1.xpose.msra.mxu0 0.0
        %1361 = vmatprep.subr.mxu0 0.0
        %1362 = vmatpush1.xpose.msra.mxu0 0.0
        %1363 = vmatprep.subr.mxu0 0.0
        %1364 = vmatpush1.xpose.msra.mxu0 0.0
        %1365 = vmatprep.subr.mxu0 0.0
        %1366 = vmatpush1.xpose.msra.mxu0 0.0
        %1367 = vmatprep.subr.mxu0 0.0
        %1368 = vmatpush1.xpose.msra.mxu0 0.0
        %1369 = vmatprep.subr.mxu0 0.0
        %1370 = vmatpush1.xpose.msra.mxu0 0.0
        %1371 = vmatprep.mubr.f32.mxu0 0.0
        %v1372 = vand.u32 %v1222, 4294901760
        %1373 = vmatmul.mubr.f32.gmra.mrb[0].mxu0 %v1372
        %v1374 = vpop.f32.mrb[0].mxu0
        %v1375 = vadd.f32 %v1299, %v1374
        %v1376 = vpop.f32.mrb[0].mxu0
        %1377 = vdwg.mxu0
        %1378 = vmatprep.subr.mxu0 0.0
        %v1379 = vand.u32 %v1224, 4294901760
        %v1380 = vsub.f32 %v1224, %v1379
        %1381 = vmatpush1.xpose.msra.mxu0 %v1380
        %1382 = vmatprep.subr.mxu0 0.0
        %1383 = vmatpush1.xpose.msra.mxu0 0.0
        %1384 = vmatprep.subr.mxu0 0.0
        %1385 = vmatpush1.xpose.msra.mxu0 0.0
        %1386 = vmatprep.subr.mxu0 0.0
        %1387 = vmatpush1.xpose.msra.mxu0 0.0
        %1388 = vmatprep.subr.mxu0 0.0
        %1389 = vmatpush1.xpose.msra.mxu0 0.0
        %1390 = vmatprep.subr.mxu0 0.0
        %1391 = vmatpush1.xpose.msra.mxu0 0.0
        %1392 = vmatprep.subr.mxu0 0.0
        %1393 = vmatpush1.xpose.msra.mxu0 0.0
        %1394 = vmatprep.subr.mxu0 0.0
        %1395 = vmatpush1.xpose.msra.mxu0 0.0
        %1396 = vmatprep.subr.mxu0 0.0
        %1397 = vmatpush1.xpose.msra.mxu0 0.0
        %1398 = vmatprep.subr.mxu0 0.0
        %1399 = vmatpush1.xpose.msra.mxu0 0.0
        %1400 = vmatprep.subr.mxu0 0.0
        %1401 = vmatpush1.xpose.msra.mxu0 0.0
        %1402 = vmatprep.subr.mxu0 0.0
        %1403 = vmatpush1.xpose.msra.mxu0 0.0
        %1404 = vmatprep.subr.mxu0 0.0
        %1405 = vmatpush1.xpose.msra.mxu0 0.0
        %1406 = vmatprep.subr.mxu0 0.0
        %1407 = vmatpush1.xpose.msra.mxu0 0.0
        %1408 = vmatprep.subr.mxu0 0.0
        %1409 = vmatpush1.xpose.msra.mxu0 0.0
        %1410 = vmatprep.subr.mxu0 0.0
        %1411 = vmatpush1.xpose.msra.mxu0 0.0
        %1412 = vmatprep.subr.mxu0 0.0
        %1413 = vmatpush1.xpose.msra.mxu0 0.0
        %1414 = vmatprep.subr.mxu0 0.0
        %1415 = vmatpush1.xpose.msra.mxu0 0.0
        %1416 = vmatprep.subr.mxu0 0.0
        %1417 = vmatpush1.xpose.msra.mxu0 0.0
        %1418 = vmatprep.subr.mxu0 0.0
        %1419 = vmatpush1.xpose.msra.mxu0 0.0
        %1420 = vmatprep.subr.mxu0 0.0
        %1421 = vmatpush1.xpose.msra.mxu0 0.0
        %1422 = vmatprep.subr.mxu0 0.0
        %1423 = vmatpush1.xpose.msra.mxu0 0.0
        %1424 = vmatprep.subr.mxu0 0.0
        %1425 = vmatpush1.xpose.msra.mxu0 0.0
        %1426 = vmatprep.subr.mxu0 0.0
        %1427 = vmatpush1.xpose.msra.mxu0 0.0
        %1428 = vmatprep.subr.mxu0 0.0
        %1429 = vmatpush1.xpose.msra.mxu0 0.0
        %1430 = vmatprep.subr.mxu0 0.0
        %1431 = vmatpush1.xpose.msra.mxu0 0.0
        %1432 = vmatprep.subr.mxu0 0.0
        %1433 = vmatpush1.xpose.msra.mxu0 0.0
        %1434 = vmatprep.subr.mxu0 0.0
        %1435 = vmatpush1.xpose.msra.mxu0 0.0
        %1436 = vmatprep.subr.mxu0 0.0
        %1437 = vmatpush1.xpose.msra.mxu0 0.0
        %1438 = vmatprep.subr.mxu0 0.0
        %1439 = vmatpush1.xpose.msra.mxu0 0.0
        %1440 = vmatprep.subr.mxu0 0.0
        %1441 = vmatpush1.xpose.msra.mxu0 0.0
        %1442 = vmatprep.subr.mxu0 0.0
        %1443 = vmatpush1.xpose.msra.mxu0 0.0
        %1444 = vmatprep.mubr.f32.mxu0 0.0
        %v1445 = vand.u32 %v1222, 4294901760
        %v1446 = vsub.f32 %v1222, %v1445
        %1447 = vmatmul.mubr.f32.gmra.mrb[0].mxu0 %v1446
        %v1448 = vpop.f32.mrb[0].mxu0
        %v1449 = vadd.f32 %v1375, %v1448
        %v1450 = vpop.f32.mrb[0].mxu0
        %1451 = vdwg.mxu0
        %1452 = vmatprep.subr.mxu0 0.0
        %v1453 = vand.u32 %v1224, 4294901760
        %1454 = vmatpush1.xpose.msra.mxu0 %v1453
        %1455 = vmatprep.subr.mxu0 0.0
        %1456 = vmatpush1.xpose.msra.mxu0 0.0
        %1457 = vmatprep.subr.mxu0 0.0
        %1458 = vmatpush1.xpose.msra.mxu0 0.0
        %1459 = vmatprep.subr.mxu0 0.0
        %1460 = vmatpush1.xpose.msra.mxu0 0.0
        %1461 = vmatprep.subr.mxu0 0.0
        %1462 = vmatpush1.xpose.msra.mxu0 0.0
        %1463 = vmatprep.subr.mxu0 0.0
        %1464 = vmatpush1.xpose.msra.mxu0 0.0
        %1465 = vmatprep.subr.mxu0 0.0
        %1466 = vmatpush1.xpose.msra.mxu0 0.0
        %1467 = vmatprep.subr.mxu0 0.0
        %1468 = vmatpush1.xpose.msra.mxu0 0.0
        %1469 = vmatprep.subr.mxu0 0.0
        %1470 = vmatpush1.xpose.msra.mxu0 0.0
        %1471 = vmatprep.subr.mxu0 0.0
        %1472 = vmatpush1.xpose.msra.mxu0 0.0
        %1473 = vmatprep.subr.mxu0 0.0
        %1474 = vmatpush1.xpose.msra.mxu0 0.0
        %1475 = vmatprep.subr.mxu0 0.0
        %1476 = vmatpush1.xpose.msra.mxu0 0.0
        %1477 = vmatprep.subr.mxu0 0.0
        %1478 = vmatpush1.xpose.msra.mxu0 0.0
        %1479 = vmatprep.subr.mxu0 0.0
        %1480 = vmatpush1.xpose.msra.mxu0 0.0
        %1481 = vmatprep.subr.mxu0 0.0
        %1482 = vmatpush1.xpose.msra.mxu0 0.0
        %1483 = vmatprep.subr.mxu0 0.0
        %1484 = vmatpush1.xpose.msra.mxu0 0.0
        %1485 = vmatprep.subr.mxu0 0.0
        %1486 = vmatpush1.xpose.msra.mxu0 0.0
        %1487 = vmatprep.subr.mxu0 0.0
        %1488 = vmatpush1.xpose.msra.mxu0 0.0
        %1489 = vmatprep.subr.mxu0 0.0
        %1490 = vmatpush1.xpose.msra.mxu0 0.0
        %1491 = vmatprep.subr.mxu0 0.0
        %1492 = vmatpush1.xpose.msra.mxu0 0.0
        %1493 = vmatprep.subr.mxu0 0.0
        %1494 = vmatpush1.xpose.msra.mxu0 0.0
        %1495 = vmatprep.subr.mxu0 0.0
        %1496 = vmatpush1.xpose.msra.mxu0 0.0
        %1497 = vmatprep.subr.mxu0 0.0
        %1498 = vmatpush1.xpose.msra.mxu0 0.0
        %1499 = vmatprep.subr.mxu0 0.0
        %1500 = vmatpush1.xpose.msra.mxu0 0.0
        %1501 = vmatprep.subr.mxu0 0.0
        %1502 = vmatpush1.xpose.msra.mxu0 0.0
        %1503 = vmatprep.subr.mxu0 0.0
        %1504 = vmatpush1.xpose.msra.mxu0 0.0
        %1505 = vmatprep.subr.mxu0 0.0
        %1506 = vmatpush1.xpose.msra.mxu0 0.0
        %1507 = vmatprep.subr.mxu0 0.0
        %1508 = vmatpush1.xpose.msra.mxu0 0.0
        %1509 = vmatprep.subr.mxu0 0.0
        %1510 = vmatpush1.xpose.msra.mxu0 0.0
        %1511 = vmatprep.subr.mxu0 0.0
        %1512 = vmatpush1.xpose.msra.mxu0 0.0
        %1513 = vmatprep.subr.mxu0 0.0
        %1514 = vmatpush1.xpose.msra.mxu0 0.0
        %1515 = vmatprep.subr.mxu0 0.0
        %1516 = vmatpush1.xpose.msra.mxu0 0.0
        %1517 = vmatprep.mubr.f32.mxu0 0.0
        %v1518 = vand.u32 %v1222, 4294901760
        %v1519 = vsub.f32 %v1222, %v1518
        %v1520 = vand.u32 %v1519, 4294901760
        %1521 = vmatmul.mubr.f32.gmra.mrb[0].mxu0 %v1520
        %v1522 = vpop.f32.mrb[0].mxu0
        %v1523 = vadd.f32 %v1449, %v1522
        %v1524 = vpop.f32.mrb[0].mxu0
        %1525 = vdwg.mxu0
        %1526 = vmatprep.subr.mxu0 0.0
        %v1527 = vand.u32 %v1224, 4294901760
        %v1528 = vsub.f32 %v1224, %v1527
        %v1529 = vand.u32 %v1528, 4294901760
        %1530 = vmatpush1.xpose.msra.mxu0 %v1529
        %1531 = vmatprep.subr.mxu0 0.0
        %1532 = vmatpush1.xpose.msra.mxu0 0.0
        %1533 = vmatprep.subr.mxu0 0.0
        %1534 = vmatpush1.xpose.msra.mxu0 0.0
        %1535 = vmatprep.subr.mxu0 0.0
        %1536 = vmatpush1.xpose.msra.mxu0 0.0
        %1537 = vmatprep.subr.mxu0 0.0
        %1538 = vmatpush1.xpose.msra.mxu0 0.0
        %1539 = vmatprep.subr.mxu0 0.0
        %1540 = vmatpush1.xpose.msra.mxu0 0.0
        %1541 = vmatprep.subr.mxu0 0.0
        %1542 = vmatpush1.xpose.msra.mxu0 0.0
        %1543 = vmatprep.subr.mxu0 0.0
        %1544 = vmatpush1.xpose.msra.mxu0 0.0
        %1545 = vmatprep.subr.mxu0 0.0
        %1546 = vmatpush1.xpose.msra.mxu0 0.0
        %1547 = vmatprep.subr.mxu0 0.0
        %1548 = vmatpush1.xpose.msra.mxu0 0.0
        %1549 = vmatprep.subr.mxu0 0.0
        %1550 = vmatpush1.xpose.msra.mxu0 0.0
        %1551 = vmatprep.subr.mxu0 0.0
        %1552 = vmatpush1.xpose.msra.mxu0 0.0
        %1553 = vmatprep.subr.mxu0 0.0
        %1554 = vmatpush1.xpose.msra.mxu0 0.0
        %1555 = vmatprep.subr.mxu0 0.0
        %1556 = vmatpush1.xpose.msra.mxu0 0.0
        %1557 = vmatprep.subr.mxu0 0.0
        %1558 = vmatpush1.xpose.msra.mxu0 0.0
        %1559 = vmatprep.subr.mxu0 0.0
        %1560 = vmatpush1.xpose.msra.mxu0 0.0
        %1561 = vmatprep.subr.mxu0 0.0
        %1562 = vmatpush1.xpose.msra.mxu0 0.0
        %1563 = vmatprep.subr.mxu0 0.0
        %1564 = vmatpush1.xpose.msra.mxu0 0.0
        %1565 = vmatprep.subr.mxu0 0.0
        %1566 = vmatpush1.xpose.msra.mxu0 0.0
        %1567 = vmatprep.subr.mxu0 0.0
        %1568 = vmatpush1.xpose.msra.mxu0 0.0
        %1569 = vmatprep.subr.mxu0 0.0
        %1570 = vmatpush1.xpose.msra.mxu0 0.0
        %1571 = vmatprep.subr.mxu0 0.0
        %1572 = vmatpush1.xpose.msra.mxu0 0.0
        %1573 = vmatprep.subr.mxu0 0.0
        %1574 = vmatpush1.xpose.msra.mxu0 0.0
        %1575 = vmatprep.subr.mxu0 0.0
        %1576 = vmatpush1.xpose.msra.mxu0 0.0
        %1577 = vmatprep.subr.mxu0 0.0
        %1578 = vmatpush1.xpose.msra.mxu0 0.0
        %1579 = vmatprep.subr.mxu0 0.0
        %1580 = vmatpush1.xpose.msra.mxu0 0.0
        %1581 = vmatprep.subr.mxu0 0.0
        %1582 = vmatpush1.xpose.msra.mxu0 0.0
        %1583 = vmatprep.subr.mxu0 0.0
        %1584 = vmatpush1.xpose.msra.mxu0 0.0
        %1585 = vmatprep.subr.mxu0 0.0
        %1586 = vmatpush1.xpose.msra.mxu0 0.0
        %1587 = vmatprep.subr.mxu0 0.0
        %1588 = vmatpush1.xpose.msra.mxu0 0.0
        %1589 = vmatprep.subr.mxu0 0.0
        %1590 = vmatpush1.xpose.msra.mxu0 0.0
        %1591 = vmatprep.subr.mxu0 0.0
        %1592 = vmatpush1.xpose.msra.mxu0 0.0
        %1593 = vmatprep.mubr.f32.mxu0 0.0
        %v1594 = vand.u32 %v1222, 4294901760
        %1595 = vmatmul.mubr.f32.gmra.mrb[0].mxu0 %v1594
        %v1596 = vpop.f32.mrb[0].mxu0
        %v1597 = vadd.f32 %v1523, %v1596
        %v1598 = vpop.f32.mrb[0].mxu0
        %1599 = vdwg.mxu0
        %1600 = vmatprep.subr.mxu0 0.0
        %v1601 = vand.u32 %v1224, 4294901760
        %1602 = vmatpush1.xpose.msra.mxu0 %v1601
        %1603 = vmatprep.subr.mxu0 0.0
        %1604 = vmatpush1.xpose.msra.mxu0 0.0
        %1605 = vmatprep.subr.mxu0 0.0
        %1606 = vmatpush1.xpose.msra.mxu0 0.0
        %1607 = vmatprep.subr.mxu0 0.0
        %1608 = vmatpush1.xpose.msra.mxu0 0.0
        %1609 = vmatprep.subr.mxu0 0.0
        %1610 = vmatpush1.xpose.msra.mxu0 0.0
        %1611 = vmatprep.subr.mxu0 0.0
        %1612 = vmatpush1.xpose.msra.mxu0 0.0
        %1613 = vmatprep.subr.mxu0 0.0
        %1614 = vmatpush1.xpose.msra.mxu0 0.0
        %1615 = vmatprep.subr.mxu0 0.0
        %1616 = vmatpush1.xpose.msra.mxu0 0.0
        %1617 = vmatprep.subr.mxu0 0.0
        %1618 = vmatpush1.xpose.msra.mxu0 0.0
        %1619 = vmatprep.subr.mxu0 0.0
        %1620 = vmatpush1.xpose.msra.mxu0 0.0
        %1621 = vmatprep.subr.mxu0 0.0
        %1622 = vmatpush1.xpose.msra.mxu0 0.0
        %1623 = vmatprep.subr.mxu0 0.0
        %1624 = vmatpush1.xpose.msra.mxu0 0.0
        %1625 = vmatprep.subr.mxu0 0.0
        %1626 = vmatpush1.xpose.msra.mxu0 0.0
        %1627 = vmatprep.subr.mxu0 0.0
        %1628 = vmatpush1.xpose.msra.mxu0 0.0
        %1629 = vmatprep.subr.mxu0 0.0
        %1630 = vmatpush1.xpose.msra.mxu0 0.0
        %1631 = vmatprep.subr.mxu0 0.0
        %1632 = vmatpush1.xpose.msra.mxu0 0.0
        %1633 = vmatprep.subr.mxu0 0.0
        %1634 = vmatpush1.xpose.msra.mxu0 0.0
        %1635 = vmatprep.subr.mxu0 0.0
        %1636 = vmatpush1.xpose.msra.mxu0 0.0
        %1637 = vmatprep.subr.mxu0 0.0
        %1638 = vmatpush1.xpose.msra.mxu0 0.0
        %1639 = vmatprep.subr.mxu0 0.0
        %1640 = vmatpush1.xpose.msra.mxu0 0.0
        %1641 = vmatprep.subr.mxu0 0.0
        %1642 = vmatpush1.xpose.msra.mxu0 0.0
        %1643 = vmatprep.subr.mxu0 0.0
        %1644 = vmatpush1.xpose.msra.mxu0 0.0
        %1645 = vmatprep.subr.mxu0 0.0
        %1646 = vmatpush1.xpose.msra.mxu0 0.0
        %1647 = vmatprep.subr.mxu0 0.0
        %1648 = vmatpush1.xpose.msra.mxu0 0.0
        %1649 = vmatprep.subr.mxu0 0.0
        %1650 = vmatpush1.xpose.msra.mxu0 0.0
        %1651 = vmatprep.subr.mxu0 0.0
        %1652 = vmatpush1.xpose.msra.mxu0 0.0
        %1653 = vmatprep.subr.mxu0 0.0
        %1654 = vmatpush1.xpose.msra.mxu0 0.0
        %1655 = vmatprep.subr.mxu0 0.0
        %1656 = vmatpush1.xpose.msra.mxu0 0.0
        %1657 = vmatprep.subr.mxu0 0.0
        %1658 = vmatpush1.xpose.msra.mxu0 0.0
        %1659 = vmatprep.subr.mxu0 0.0
        %1660 = vmatpush1.xpose.msra.mxu0 0.0
        %1661 = vmatprep.subr.mxu0 0.0
        %1662 = vmatpush1.xpose.msra.mxu0 0.0
        %1663 = vmatprep.subr.mxu0 0.0
        %1664 = vmatpush1.xpose.msra.mxu0 0.0
        %1665 = vmatprep.mubr.f32.mxu0 0.0
        %v1666 = vand.u32 %v1222, 4294901760
        %1667 = vmatmul.mubr.f32.gmra.mrb[0].mxu0 %v1666
        %v1668 = vpop.f32.mrb[0].mxu0
        %v1669 = vadd.f32 %v1597, %v1668
        %v1670 = vpop.f32.mrb[0].mxu0
        %1671 = vdwg.mxu0
        %1672 = vrot.lane.b32.xlu0 %v740, 96
        %v1673 = vpop.permute.xlu0 %1672
        %v1675 = vsel %vm767, %v759, 0
        %v1677 = vsel %vm767, %v1673, 0
        %1679 = vmatprep.subr.mxu0 0.0
        %v1680 = vand.u32 %v1677, 4294901760
        %1681 = vmatpush1.xpose.msra.mxu0 %v1680
        %1682 = vmatprep.subr.mxu0 0.0
        %1683 = vmatpush1.xpose.msra.mxu0 0.0
        %1684 = vmatprep.subr.mxu0 0.0
        %1685 = vmatpush1.xpose.msra.mxu0 0.0
        %1686 = vmatprep.subr.mxu0 0.0
        %1687 = vmatpush1.xpose.msra.mxu0 0.0
        %1688 = vmatprep.subr.mxu0 0.0
        %1689 = vmatpush1.xpose.msra.mxu0 0.0
        %1690 = vmatprep.subr.mxu0 0.0
        %1691 = vmatpush1.xpose.msra.mxu0 0.0
        %1692 = vmatprep.subr.mxu0 0.0
        %1693 = vmatpush1.xpose.msra.mxu0 0.0
        %1694 = vmatprep.subr.mxu0 0.0
        %1695 = vmatpush1.xpose.msra.mxu0 0.0
        %1696 = vmatprep.subr.mxu0 0.0
        %1697 = vmatpush1.xpose.msra.mxu0 0.0
        %1698 = vmatprep.subr.mxu0 0.0
        %1699 = vmatpush1.xpose.msra.mxu0 0.0
        %1700 = vmatprep.subr.mxu0 0.0
        %1701 = vmatpush1.xpose.msra.mxu0 0.0
        %1702 = vmatprep.subr.mxu0 0.0
        %1703 = vmatpush1.xpose.msra.mxu0 0.0
        %1704 = vmatprep.subr.mxu0 0.0
        %1705 = vmatpush1.xpose.msra.mxu0 0.0
        %1706 = vmatprep.subr.mxu0 0.0
        %1707 = vmatpush1.xpose.msra.mxu0 0.0
        %1708 = vmatprep.subr.mxu0 0.0
        %1709 = vmatpush1.xpose.msra.mxu0 0.0
        %1710 = vmatprep.subr.mxu0 0.0
        %1711 = vmatpush1.xpose.msra.mxu0 0.0
        %1712 = vmatprep.subr.mxu0 0.0
        %1713 = vmatpush1.xpose.msra.mxu0 0.0
        %1714 = vmatprep.subr.mxu0 0.0
        %1715 = vmatpush1.xpose.msra.mxu0 0.0
        %1716 = vmatprep.subr.mxu0 0.0
        %1717 = vmatpush1.xpose.msra.mxu0 0.0
        %1718 = vmatprep.subr.mxu0 0.0
        %1719 = vmatpush1.xpose.msra.mxu0 0.0
        %1720 = vmatprep.subr.mxu0 0.0
        %1721 = vmatpush1.xpose.msra.mxu0 0.0
        %1722 = vmatprep.subr.mxu0 0.0
        %1723 = vmatpush1.xpose.msra.mxu0 0.0
        %1724 = vmatprep.subr.mxu0 0.0
        %1725 = vmatpush1.xpose.msra.mxu0 0.0
        %1726 = vmatprep.subr.mxu0 0.0
        %1727 = vmatpush1.xpose.msra.mxu0 0.0
        %1728 = vmatprep.subr.mxu0 0.0
        %1729 = vmatpush1.xpose.msra.mxu0 0.0
        %1730 = vmatprep.subr.mxu0 0.0
        %1731 = vmatpush1.xpose.msra.mxu0 0.0
        %1732 = vmatprep.subr.mxu0 0.0
        %1733 = vmatpush1.xpose.msra.mxu0 0.0
        %1734 = vmatprep.subr.mxu0 0.0
        %1735 = vmatpush1.xpose.msra.mxu0 0.0
        %1736 = vmatprep.subr.mxu0 0.0
        %1737 = vmatpush1.xpose.msra.mxu0 0.0
        %1738 = vmatprep.subr.mxu0 0.0
        %1739 = vmatpush1.xpose.msra.mxu0 0.0
        %1740 = vmatprep.subr.mxu0 0.0
        %1741 = vmatpush1.xpose.msra.mxu0 0.0
        %1742 = vmatprep.subr.mxu0 0.0
        %1743 = vmatpush1.xpose.msra.mxu0 0.0
        %1744 = vmatprep.mubr.f32.mxu0 0.0
        %v1745 = vand.u32 %v1675, 4294901760
        %v1746 = vsub.f32 %v1675, %v1745
        %v1747 = vand.u32 %v1746, 4294901760
        %v1748 = vsub.f32 %v1746, %v1747
        %v1749 = vand.u32 %v1748, 4294901760
        %1750 = vmatmul.mubr.f32.gmra.mrb[0].mxu0 %v1749
        %v1751 = vpop.f32.mrb[0].mxu0
        %v1752 = vadd.f32 0.0, %v1751
        %v1753 = vpop.f32.mrb[0].mxu0
        %1754 = vdwg.mxu0
        %1755 = vmatprep.subr.mxu0 0.0
        %v1756 = vand.u32 %v1677, 4294901760
        %v1757 = vsub.f32 %v1677, %v1756
        %v1758 = vand.u32 %v1757, 4294901760
        %v1759 = vsub.f32 %v1757, %v1758
        %v1760 = vand.u32 %v1759, 4294901760
        %1761 = vmatpush1.xpose.msra.mxu0 %v1760
        %1762 = vmatprep.subr.mxu0 0.0
        %1763 = vmatpush1.xpose.msra.mxu0 0.0
        %1764 = vmatprep.subr.mxu0 0.0
        %1765 = vmatpush1.xpose.msra.mxu0 0.0
        %1766 = vmatprep.subr.mxu0 0.0
        %1767 = vmatpush1.xpose.msra.mxu0 0.0
        %1768 = vmatprep.subr.mxu0 0.0
        %1769 = vmatpush1.xpose.msra.mxu0 0.0
        %1770 = vmatprep.subr.mxu0 0.0
        %1771 = vmatpush1.xpose.msra.mxu0 0.0
        %1772 = vmatprep.subr.mxu0 0.0
        %1773 = vmatpush1.xpose.msra.mxu0 0.0
        %1774 = vmatprep.subr.mxu0 0.0
        %1775 = vmatpush1.xpose.msra.mxu0 0.0
        %1776 = vmatprep.subr.mxu0 0.0
        %1777 = vmatpush1.xpose.msra.mxu0 0.0
        %1778 = vmatprep.subr.mxu0 0.0
        %1779 = vmatpush1.xpose.msra.mxu0 0.0
        %1780 = vmatprep.subr.mxu0 0.0
        %1781 = vmatpush1.xpose.msra.mxu0 0.0
        %1782 = vmatprep.subr.mxu0 0.0
        %1783 = vmatpush1.xpose.msra.mxu0 0.0
        %1784 = vmatprep.subr.mxu0 0.0
        %1785 = vmatpush1.xpose.msra.mxu0 0.0
        %1786 = vmatprep.subr.mxu0 0.0
        %1787 = vmatpush1.xpose.msra.mxu0 0.0
        %1788 = vmatprep.subr.mxu0 0.0
        %1789 = vmatpush1.xpose.msra.mxu0 0.0
        %1790 = vmatprep.subr.mxu0 0.0
        %1791 = vmatpush1.xpose.msra.mxu0 0.0
        %1792 = vmatprep.subr.mxu0 0.0
        %1793 = vmatpush1.xpose.msra.mxu0 0.0
        %1794 = vmatprep.subr.mxu0 0.0
        %1795 = vmatpush1.xpose.msra.mxu0 0.0
        %1796 = vmatprep.subr.mxu0 0.0
        %1797 = vmatpush1.xpose.msra.mxu0 0.0
        %1798 = vmatprep.subr.mxu0 0.0
        %1799 = vmatpush1.xpose.msra.mxu0 0.0
        %1800 = vmatprep.subr.mxu0 0.0
        %1801 = vmatpush1.xpose.msra.mxu0 0.0
        %1802 = vmatprep.subr.mxu0 0.0
        %1803 = vmatpush1.xpose.msra.mxu0 0.0
        %1804 = vmatprep.subr.mxu0 0.0
        %1805 = vmatpush1.xpose.msra.mxu0 0.0
        %1806 = vmatprep.subr.mxu0 0.0
        %1807 = vmatpush1.xpose.msra.mxu0 0.0
        %1808 = vmatprep.subr.mxu0 0.0
        %1809 = vmatpush1.xpose.msra.mxu0 0.0
        %1810 = vmatprep.subr.mxu0 0.0
        %1811 = vmatpush1.xpose.msra.mxu0 0.0
        %1812 = vmatprep.subr.mxu0 0.0
        %1813 = vmatpush1.xpose.msra.mxu0 0.0
        %1814 = vmatprep.subr.mxu0 0.0
        %1815 = vmatpush1.xpose.msra.mxu0 0.0
        %1816 = vmatprep.subr.mxu0 0.0
        %1817 = vmatpush1.xpose.msra.mxu0 0.0
        %1818 = vmatprep.subr.mxu0 0.0
        %1819 = vmatpush1.xpose.msra.mxu0 0.0
        %1820 = vmatprep.subr.mxu0 0.0
        %1821 = vmatpush1.xpose.msra.mxu0 0.0
        %1822 = vmatprep.subr.mxu0 0.0
        %1823 = vmatpush1.xpose.msra.mxu0 0.0
        %1824 = vmatprep.mubr.f32.mxu0 0.0
        %v1825 = vand.u32 %v1675, 4294901760
        %1826 = vmatmul.mubr.f32.gmra.mrb[0].mxu0 %v1825
        %v1827 = vpop.f32.mrb[0].mxu0
        %v1828 = vadd.f32 %v1752, %v1827
        %v1829 = vpop.f32.mrb[0].mxu0
        %1830 = vdwg.mxu0
        %1831 = vmatprep.subr.mxu0 0.0
        %v1832 = vand.u32 %v1677, 4294901760
        %v1833 = vsub.f32 %v1677, %v1832
        %1834 = vmatpush1.xpose.msra.mxu0 %v1833
        %1835 = vmatprep.subr.mxu0 0.0
        %1836 = vmatpush1.xpose.msra.mxu0 0.0
        %1837 = vmatprep.subr.mxu0 0.0
        %1838 = vmatpush1.xpose.msra.mxu0 0.0
        %1839 = vmatprep.subr.mxu0 0.0
        %1840 = vmatpush1.xpose.msra.mxu0 0.0
        %1841 = vmatprep.subr.mxu0 0.0
        %1842 = vmatpush1.xpose.msra.mxu0 0.0
        %1843 = vmatprep.subr.mxu0 0.0
        %1844 = vmatpush1.xpose.msra.mxu0 0.0
        %1845 = vmatprep.subr.mxu0 0.0
        %1846 = vmatpush1.xpose.msra.mxu0 0.0
        %1847 = vmatprep.subr.mxu0 0.0
        %1848 = vmatpush1.xpose.msra.mxu0 0.0
        %1849 = vmatprep.subr.mxu0 0.0
        %1850 = vmatpush1.xpose.msra.mxu0 0.0
        %1851 = vmatprep.subr.mxu0 0.0
        %1852 = vmatpush1.xpose.msra.mxu0 0.0
        %1853 = vmatprep.subr.mxu0 0.0
        %1854 = vmatpush1.xpose.msra.mxu0 0.0
        %1855 = vmatprep.subr.mxu0 0.0
        %1856 = vmatpush1.xpose.msra.mxu0 0.0
        %1857 = vmatprep.subr.mxu0 0.0
        %1858 = vmatpush1.xpose.msra.mxu0 0.0
        %1859 = vmatprep.subr.mxu0 0.0
        %1860 = vmatpush1.xpose.msra.mxu0 0.0
        %1861 = vmatprep.subr.mxu0 0.0
        %1862 = vmatpush1.xpose.msra.mxu0 0.0
        %1863 = vmatprep.subr.mxu0 0.0
        %1864 = vmatpush1.xpose.msra.mxu0 0.0
        %1865 = vmatprep.subr.mxu0 0.0
        %1866 = vmatpush1.xpose.msra.mxu0 0.0
        %1867 = vmatprep.subr.mxu0 0.0
        %1868 = vmatpush1.xpose.msra.mxu0 0.0
        %1869 = vmatprep.subr.mxu0 0.0
        %1870 = vmatpush1.xpose.msra.mxu0 0.0
        %1871 = vmatprep.subr.mxu0 0.0
        %1872 = vmatpush1.xpose.msra.mxu0 0.0
        %1873 = vmatprep.subr.mxu0 0.0
        %1874 = vmatpush1.xpose.msra.mxu0 0.0
        %1875 = vmatprep.subr.mxu0 0.0
        %1876 = vmatpush1.xpose.msra.mxu0 0.0
        %1877 = vmatprep.subr.mxu0 0.0
        %1878 = vmatpush1.xpose.msra.mxu0 0.0
        %1879 = vmatprep.subr.mxu0 0.0
        %1880 = vmatpush1.xpose.msra.mxu0 0.0
        %1881 = vmatprep.subr.mxu0 0.0
        %1882 = vmatpush1.xpose.msra.mxu0 0.0
        %1883 = vmatprep.subr.mxu0 0.0
        %1884 = vmatpush1.xpose.msra.mxu0 0.0
        %1885 = vmatprep.subr.mxu0 0.0
        %1886 = vmatpush1.xpose.msra.mxu0 0.0
        %1887 = vmatprep.subr.mxu0 0.0
        %1888 = vmatpush1.xpose.msra.mxu0 0.0
        %1889 = vmatprep.subr.mxu0 0.0
        %1890 = vmatpush1.xpose.msra.mxu0 0.0
        %1891 = vmatprep.subr.mxu0 0.0
        %1892 = vmatpush1.xpose.msra.mxu0 0.0
        %1893 = vmatprep.subr.mxu0 0.0
        %1894 = vmatpush1.xpose.msra.mxu0 0.0
        %1895 = vmatprep.subr.mxu0 0.0
        %1896 = vmatpush1.xpose.msra.mxu0 0.0
        %1897 = vmatprep.mubr.f32.mxu0 0.0
        %v1898 = vand.u32 %v1675, 4294901760
        %v1899 = vsub.f32 %v1675, %v1898
        %1900 = vmatmul.mubr.f32.gmra.mrb[0].mxu0 %v1899
        %v1901 = vpop.f32.mrb[0].mxu0
        %v1902 = vadd.f32 %v1828, %v1901
        %v1903 = vpop.f32.mrb[0].mxu0
        %1904 = vdwg.mxu0
        %1905 = vmatprep.subr.mxu0 0.0
        %v1906 = vand.u32 %v1677, 4294901760
        %1907 = vmatpush1.xpose.msra.mxu0 %v1906
        %1908 = vmatprep.subr.mxu0 0.0
        %1909 = vmatpush1.xpose.msra.mxu0 0.0
        %1910 = vmatprep.subr.mxu0 0.0
        %1911 = vmatpush1.xpose.msra.mxu0 0.0
        %1912 = vmatprep.subr.mxu0 0.0
        %1913 = vmatpush1.xpose.msra.mxu0 0.0
        %1914 = vmatprep.subr.mxu0 0.0
        %1915 = vmatpush1.xpose.msra.mxu0 0.0
        %1916 = vmatprep.subr.mxu0 0.0
        %1917 = vmatpush1.xpose.msra.mxu0 0.0
        %1918 = vmatprep.subr.mxu0 0.0
        %1919 = vmatpush1.xpose.msra.mxu0 0.0
        %1920 = vmatprep.subr.mxu0 0.0
        %1921 = vmatpush1.xpose.msra.mxu0 0.0
        %1922 = vmatprep.subr.mxu0 0.0
        %1923 = vmatpush1.xpose.msra.mxu0 0.0
        %1924 = vmatprep.subr.mxu0 0.0
        %1925 = vmatpush1.xpose.msra.mxu0 0.0
        %1926 = vmatprep.subr.mxu0 0.0
        %1927 = vmatpush1.xpose.msra.mxu0 0.0
        %1928 = vmatprep.subr.mxu0 0.0
        %1929 = vmatpush1.xpose.msra.mxu0 0.0
        %1930 = vmatprep.subr.mxu0 0.0
        %1931 = vmatpush1.xpose.msra.mxu0 0.0
        %1932 = vmatprep.subr.mxu0 0.0
        %1933 = vmatpush1.xpose.msra.mxu0 0.0
        %1934 = vmatprep.subr.mxu0 0.0
        %1935 = vmatpush1.xpose.msra.mxu0 0.0
        %1936 = vmatprep.subr.mxu0 0.0
        %1937 = vmatpush1.xpose.msra.mxu0 0.0
        %1938 = vmatprep.subr.mxu0 0.0
        %1939 = vmatpush1.xpose.msra.mxu0 0.0
        %1940 = vmatprep.subr.mxu0 0.0
        %1941 = vmatpush1.xpose.msra.mxu0 0.0
        %1942 = vmatprep.subr.mxu0 0.0
        %1943 = vmatpush1.xpose.msra.mxu0 0.0
        %1944 = vmatprep.subr.mxu0 0.0
        %1945 = vmatpush1.xpose.msra.mxu0 0.0
        %1946 = vmatprep.subr.mxu0 0.0
        %1947 = vmatpush1.xpose.msra.mxu0 0.0
        %1948 = vmatprep.subr.mxu0 0.0
        %1949 = vmatpush1.xpose.msra.mxu0 0.0
        %1950 = vmatprep.subr.mxu0 0.0
        %1951 = vmatpush1.xpose.msra.mxu0 0.0
        %1952 = vmatprep.subr.mxu0 0.0
        %1953 = vmatpush1.xpose.msra.mxu0 0.0
        %1954 = vmatprep.subr.mxu0 0.0
        %1955 = vmatpush1.xpose.msra.mxu0 0.0
        %1956 = vmatprep.subr.mxu0 0.0
        %1957 = vmatpush1.xpose.msra.mxu0 0.0
        %1958 = vmatprep.subr.mxu0 0.0
        %1959 = vmatpush1.xpose.msra.mxu0 0.0
        %1960 = vmatprep.subr.mxu0 0.0
        %1961 = vmatpush1.xpose.msra.mxu0 0.0
        %1962 = vmatprep.subr.mxu0 0.0
        %1963 = vmatpush1.xpose.msra.mxu0 0.0
        %1964 = vmatprep.subr.mxu0 0.0
        %1965 = vmatpush1.xpose.msra.mxu0 0.0
        %1966 = vmatprep.subr.mxu0 0.0
        %1967 = vmatpush1.xpose.msra.mxu0 0.0
        %1968 = vmatprep.subr.mxu0 0.0
        %1969 = vmatpush1.xpose.msra.mxu0 0.0
        %1970 = vmatprep.mubr.f32.mxu0 0.0
        %v1971 = vand.u32 %v1675, 4294901760
        %v1972 = vsub.f32 %v1675, %v1971
        %v1973 = vand.u32 %v1972, 4294901760
        %1974 = vmatmul.mubr.f32.gmra.mrb[0].mxu0 %v1973
        %v1975 = vpop.f32.mrb[0].mxu0
        %v1976 = vadd.f32 %v1902, %v1975
        %v1977 = vpop.f32.mrb[0].mxu0
        %1978 = vdwg.mxu0
        %1979 = vmatprep.subr.mxu0 0.0
        %v1980 = vand.u32 %v1677, 4294901760
        %v1981 = vsub.f32 %v1677, %v1980
        %v1982 = vand.u32 %v1981, 4294901760
        %1983 = vmatpush1.xpose.msra.mxu0 %v1982
        %1984 = vmatprep.subr.mxu0 0.0
        %1985 = vmatpush1.xpose.msra.mxu0 0.0
        %1986 = vmatprep.subr.mxu0 0.0
        %1987 = vmatpush1.xpose.msra.mxu0 0.0
        %1988 = vmatprep.subr.mxu0 0.0
        %1989 = vmatpush1.xpose.msra.mxu0 0.0
        %1990 = vmatprep.subr.mxu0 0.0
        %1991 = vmatpush1.xpose.msra.mxu0 0.0
        %1992 = vmatprep.subr.mxu0 0.0
        %1993 = vmatpush1.xpose.msra.mxu0 0.0
        %1994 = vmatprep.subr.mxu0 0.0
        %1995 = vmatpush1.xpose.msra.mxu0 0.0
        %1996 = vmatprep.subr.mxu0 0.0
        %1997 = vmatpush1.xpose.msra.mxu0 0.0
        %1998 = vmatprep.subr.mxu0 0.0
        %1999 = vmatpush1.xpose.msra.mxu0 0.0
        %2000 = vmatprep.subr.mxu0 0.0
        %2001 = vmatpush1.xpose.msra.mxu0 0.0
        %2002 = vmatprep.subr.mxu0 0.0
        %2003 = vmatpush1.xpose.msra.mxu0 0.0
        %2004 = vmatprep.subr.mxu0 0.0
        %2005 = vmatpush1.xpose.msra.mxu0 0.0
        %2006 = vmatprep.subr.mxu0 0.0
        %2007 = vmatpush1.xpose.msra.mxu0 0.0
        %2008 = vmatprep.subr.mxu0 0.0
        %2009 = vmatpush1.xpose.msra.mxu0 0.0
        %2010 = vmatprep.subr.mxu0 0.0
        %2011 = vmatpush1.xpose.msra.mxu0 0.0
        %2012 = vmatprep.subr.mxu0 0.0
        %2013 = vmatpush1.xpose.msra.mxu0 0.0
        %2014 = vmatprep.subr.mxu0 0.0
        %2015 = vmatpush1.xpose.msra.mxu0 0.0
        %2016 = vmatprep.subr.mxu0 0.0
        %2017 = vmatpush1.xpose.msra.mxu0 0.0
        %2018 = vmatprep.subr.mxu0 0.0
        %2019 = vmatpush1.xpose.msra.mxu0 0.0
        %2020 = vmatprep.subr.mxu0 0.0
        %2021 = vmatpush1.xpose.msra.mxu0 0.0
        %2022 = vmatprep.subr.mxu0 0.0
        %2023 = vmatpush1.xpose.msra.mxu0 0.0
        %2024 = vmatprep.subr.mxu0 0.0
        %2025 = vmatpush1.xpose.msra.mxu0 0.0
        %2026 = vmatprep.subr.mxu0 0.0
        %2027 = vmatpush1.xpose.msra.mxu0 0.0
        %2028 = vmatprep.subr.mxu0 0.0
        %2029 = vmatpush1.xpose.msra.mxu0 0.0
        %2030 = vmatprep.subr.mxu0 0.0
        %2031 = vmatpush1.xpose.msra.mxu0 0.0
        %2032 = vmatprep.subr.mxu0 0.0
        %2033 = vmatpush1.xpose.msra.mxu0 0.0
        %2034 = vmatprep.subr.mxu0 0.0
        %2035 = vmatpush1.xpose.msra.mxu0 0.0
        %2036 = vmatprep.subr.mxu0 0.0
        %2037 = vmatpush1.xpose.msra.mxu0 0.0
        %2038 = vmatprep.subr.mxu0 0.0
        %2039 = vmatpush1.xpose.msra.mxu0 0.0
        %2040 = vmatprep.subr.mxu0 0.0
        %2041 = vmatpush1.xpose.msra.mxu0 0.0
        %2042 = vmatprep.subr.mxu0 0.0
        %2043 = vmatpush1.xpose.msra.mxu0 0.0
        %2044 = vmatprep.subr.mxu0 0.0
        %2045 = vmatpush1.xpose.msra.mxu0 0.0
        %2046 = vmatprep.mubr.f32.mxu0 0.0
        %v2047 = vand.u32 %v1675, 4294901760
        %2048 = vmatmul.mubr.f32.gmra.mrb[0].mxu0 %v2047
        %v2049 = vpop.f32.mrb[0].mxu0
        %v2050 = vadd.f32 %v1976, %v2049
        %v2051 = vpop.f32.mrb[0].mxu0
        %2052 = vdwg.mxu0
        %2053 = vmatprep.subr.mxu0 0.0
        %v2054 = vand.u32 %v1677, 4294901760
        %2055 = vmatpush1.xpose.msra.mxu0 %v2054
        %2056 = vmatprep.subr.mxu0 0.0
        %2057 = vmatpush1.xpose.msra.mxu0 0.0
        %2058 = vmatprep.subr.mxu0 0.0
        %2059 = vmatpush1.xpose.msra.mxu0 0.0
        %2060 = vmatprep.subr.mxu0 0.0
        %2061 = vmatpush1.xpose.msra.mxu0 0.0
        %2062 = vmatprep.subr.mxu0 0.0
        %2063 = vmatpush1.xpose.msra.mxu0 0.0
        %2064 = vmatprep.subr.mxu0 0.0
        %2065 = vmatpush1.xpose.msra.mxu0 0.0
        %2066 = vmatprep.subr.mxu0 0.0
        %2067 = vmatpush1.xpose.msra.mxu0 0.0
        %2068 = vmatprep.subr.mxu0 0.0
        %2069 = vmatpush1.xpose.msra.mxu0 0.0
        %2070 = vmatprep.subr.mxu0 0.0
        %2071 = vmatpush1.xpose.msra.mxu0 0.0
        %2072 = vmatprep.subr.mxu0 0.0
        %2073 = vmatpush1.xpose.msra.mxu0 0.0
        %2074 = vmatprep.subr.mxu0 0.0
        %2075 = vmatpush1.xpose.msra.mxu0 0.0
        %2076 = vmatprep.subr.mxu0 0.0
        %2077 = vmatpush1.xpose.msra.mxu0 0.0
        %2078 = vmatprep.subr.mxu0 0.0
        %2079 = vmatpush1.xpose.msra.mxu0 0.0
        %2080 = vmatprep.subr.mxu0 0.0
        %2081 = vmatpush1.xpose.msra.mxu0 0.0
        %2082 = vmatprep.subr.mxu0 0.0
        %2083 = vmatpush1.xpose.msra.mxu0 0.0
        %2084 = vmatprep.subr.mxu0 0.0
        %2085 = vmatpush1.xpose.msra.mxu0 0.0
        %2086 = vmatprep.subr.mxu0 0.0
        %2087 = vmatpush1.xpose.msra.mxu0 0.0
        %2088 = vmatprep.subr.mxu0 0.0
        %2089 = vmatpush1.xpose.msra.mxu0 0.0
        %2090 = vmatprep.subr.mxu0 0.0
        %2091 = vmatpush1.xpose.msra.mxu0 0.0
        %2092 = vmatprep.subr.mxu0 0.0
        %2093 = vmatpush1.xpose.msra.mxu0 0.0
        %2094 = vmatprep.subr.mxu0 0.0
        %2095 = vmatpush1.xpose.msra.mxu0 0.0
        %2096 = vmatprep.subr.mxu0 0.0
        %2097 = vmatpush1.xpose.msra.mxu0 0.0
        %2098 = vmatprep.subr.mxu0 0.0
        %2099 = vmatpush1.xpose.msra.mxu0 0.0
        %2100 = vmatprep.subr.mxu0 0.0
        %2101 = vmatpush1.xpose.msra.mxu0 0.0
        %2102 = vmatprep.subr.mxu0 0.0
        %2103 = vmatpush1.xpose.msra.mxu0 0.0
        %2104 = vmatprep.subr.mxu0 0.0
        %2105 = vmatpush1.xpose.msra.mxu0 0.0
        %2106 = vmatprep.subr.mxu0 0.0
        %2107 = vmatpush1.xpose.msra.mxu0 0.0
        %2108 = vmatprep.subr.mxu0 0.0
        %2109 = vmatpush1.xpose.msra.mxu0 0.0
        %2110 = vmatprep.subr.mxu0 0.0
        %2111 = vmatpush1.xpose.msra.mxu0 0.0
        %2112 = vmatprep.subr.mxu0 0.0
        %2113 = vmatpush1.xpose.msra.mxu0 0.0
        %2114 = vmatprep.subr.mxu0 0.0
        %2115 = vmatpush1.xpose.msra.mxu0 0.0
        %2116 = vmatprep.subr.mxu0 0.0
        %2117 = vmatpush1.xpose.msra.mxu0 0.0
        %2118 = vmatprep.mubr.f32.mxu0 0.0
        %v2119 = vand.u32 %v1675, 4294901760
        %2120 = vmatmul.mubr.f32.gmra.mrb[0].mxu0 %v2119
        %v2121 = vpop.f32.mrb[0].mxu0
        %v2122 = vadd.f32 %v2050, %v2121
        %v2123 = vpop.f32.mrb[0].mxu0
        %2124 = vdwg.mxu0
        %2125 = vrot.lane.b32.xlu0 %v742, 96
        %v2126 = vpop.permute.xlu0 %2125
        %v2128 = vsel %vm767, %v760, 0
        %v2130 = vsel %vm767, %v2126, 0
        %2132 = vmatprep.subr.mxu0 0.0
        %v2133 = vand.u32 %v2130, 4294901760
        %2134 = vmatpush1.xpose.msra.mxu0 %v2133
        %2135 = vmatprep.subr.mxu0 0.0
        %2136 = vmatpush1.xpose.msra.mxu0 0.0
        %2137 = vmatprep.subr.mxu0 0.0
        %2138 = vmatpush1.xpose.msra.mxu0 0.0
        %2139 = vmatprep.subr.mxu0 0.0
        %2140 = vmatpush1.xpose.msra.mxu0 0.0
        %2141 = vmatprep.subr.mxu0 0.0
        %2142 = vmatpush1.xpose.msra.mxu0 0.0
        %2143 = vmatprep.subr.mxu0 0.0
        %2144 = vmatpush1.xpose.msra.mxu0 0.0
        %2145 = vmatprep.subr.mxu0 0.0
        %2146 = vmatpush1.xpose.msra.mxu0 0.0
        %2147 = vmatprep.subr.mxu0 0.0
        %2148 = vmatpush1.xpose.msra.mxu0 0.0
        %2149 = vmatprep.subr.mxu0 0.0
        %2150 = vmatpush1.xpose.msra.mxu0 0.0
        %2151 = vmatprep.subr.mxu0 0.0
        %2152 = vmatpush1.xpose.msra.mxu0 0.0
        %2153 = vmatprep.subr.mxu0 0.0
        %2154 = vmatpush1.xpose.msra.mxu0 0.0
        %2155 = vmatprep.subr.mxu0 0.0
        %2156 = vmatpush1.xpose.msra.mxu0 0.0
        %2157 = vmatprep.subr.mxu0 0.0
        %2158 = vmatpush1.xpose.msra.mxu0 0.0
        %2159 = vmatprep.subr.mxu0 0.0
        %2160 = vmatpush1.xpose.msra.mxu0 0.0
        %2161 = vmatprep.subr.mxu0 0.0
        %2162 = vmatpush1.xpose.msra.mxu0 0.0
        %2163 = vmatprep.subr.mxu0 0.0
        %2164 = vmatpush1.xpose.msra.mxu0 0.0
        %2165 = vmatprep.subr.mxu0 0.0
        %2166 = vmatpush1.xpose.msra.mxu0 0.0
        %2167 = vmatprep.subr.mxu0 0.0
        %2168 = vmatpush1.xpose.msra.mxu0 0.0
        %2169 = vmatprep.subr.mxu0 0.0
        %2170 = vmatpush1.xpose.msra.mxu0 0.0
        %2171 = vmatprep.subr.mxu0 0.0
        %2172 = vmatpush1.xpose.msra.mxu0 0.0
        %2173 = vmatprep.subr.mxu0 0.0
        %2174 = vmatpush1.xpose.msra.mxu0 0.0
        %2175 = vmatprep.subr.mxu0 0.0
        %2176 = vmatpush1.xpose.msra.mxu0 0.0
        %2177 = vmatprep.subr.mxu0 0.0
        %2178 = vmatpush1.xpose.msra.mxu0 0.0
        %2179 = vmatprep.subr.mxu0 0.0
        %2180 = vmatpush1.xpose.msra.mxu0 0.0
        %2181 = vmatprep.subr.mxu0 0.0
        %2182 = vmatpush1.xpose.msra.mxu0 0.0
        %2183 = vmatprep.subr.mxu0 0.0
        %2184 = vmatpush1.xpose.msra.mxu0 0.0
        %2185 = vmatprep.subr.mxu0 0.0
        %2186 = vmatpush1.xpose.msra.mxu0 0.0
        %2187 = vmatprep.subr.mxu0 0.0
        %2188 = vmatpush1.xpose.msra.mxu0 0.0
        %2189 = vmatprep.subr.mxu0 0.0
        %2190 = vmatpush1.xpose.msra.mxu0 0.0
        %2191 = vmatprep.subr.mxu0 0.0
        %2192 = vmatpush1.xpose.msra.mxu0 0.0
        %2193 = vmatprep.subr.mxu0 0.0
        %2194 = vmatpush1.xpose.msra.mxu0 0.0
        %2195 = vmatprep.subr.mxu0 0.0
        %2196 = vmatpush1.xpose.msra.mxu0 0.0
        %2197 = vmatprep.mubr.f32.mxu0 0.0
        %v2198 = vand.u32 %v2128, 4294901760
        %v2199 = vsub.f32 %v2128, %v2198
        %v2200 = vand.u32 %v2199, 4294901760
        %v2201 = vsub.f32 %v2199, %v2200
        %v2202 = vand.u32 %v2201, 4294901760
        %2203 = vmatmul.mubr.f32.gmra.mrb[0].mxu0 %v2202
        %v2204 = vpop.f32.mrb[0].mxu0
        %v2205 = vadd.f32 0.0, %v2204
        %v2206 = vpop.f32.mrb[0].mxu0
        %2207 = vdwg.mxu0
        %2208 = vmatprep.subr.mxu0 0.0
        %v2209 = vand.u32 %v2130, 4294901760
        %v2210 = vsub.f32 %v2130, %v2209
        %v2211 = vand.u32 %v2210, 4294901760
        %v2212 = vsub.f32 %v2210, %v2211
        %v2213 = vand.u32 %v2212, 4294901760
        %2214 = vmatpush1.xpose.msra.mxu0 %v2213
        %2215 = vmatprep.subr.mxu0 0.0
        %2216 = vmatpush1.xpose.msra.mxu0 0.0
        %2217 = vmatprep.subr.mxu0 0.0
        %2218 = vmatpush1.xpose.msra.mxu0 0.0
        %2219 = vmatprep.subr.mxu0 0.0
        %2220 = vmatpush1.xpose.msra.mxu0 0.0
        %2221 = vmatprep.subr.mxu0 0.0
        %2222 = vmatpush1.xpose.msra.mxu0 0.0
        %2223 = vmatprep.subr.mxu0 0.0
        %2224 = vmatpush1.xpose.msra.mxu0 0.0
        %2225 = vmatprep.subr.mxu0 0.0
        %2226 = vmatpush1.xpose.msra.mxu0 0.0
        %2227 = vmatprep.subr.mxu0 0.0
        %2228 = vmatpush1.xpose.msra.mxu0 0.0
        %2229 = vmatprep.subr.mxu0 0.0
        %2230 = vmatpush1.xpose.msra.mxu0 0.0
        %2231 = vmatprep.subr.mxu0 0.0
        %2232 = vmatpush1.xpose.msra.mxu0 0.0
        %2233 = vmatprep.subr.mxu0 0.0
        %2234 = vmatpush1.xpose.msra.mxu0 0.0
        %2235 = vmatprep.subr.mxu0 0.0
        %2236 = vmatpush1.xpose.msra.mxu0 0.0
        %2237 = vmatprep.subr.mxu0 0.0
        %2238 = vmatpush1.xpose.msra.mxu0 0.0
        %2239 = vmatprep.subr.mxu0 0.0
        %2240 = vmatpush1.xpose.msra.mxu0 0.0
        %2241 = vmatprep.subr.mxu0 0.0
        %2242 = vmatpush1.xpose.msra.mxu0 0.0
        %2243 = vmatprep.subr.mxu0 0.0
        %2244 = vmatpush1.xpose.msra.mxu0 0.0
        %2245 = vmatprep.subr.mxu0 0.0
        %2246 = vmatpush1.xpose.msra.mxu0 0.0
        %2247 = vmatprep.subr.mxu0 0.0
        %2248 = vmatpush1.xpose.msra.mxu0 0.0
        %2249 = vmatprep.subr.mxu0 0.0
        %2250 = vmatpush1.xpose.msra.mxu0 0.0
        %2251 = vmatprep.subr.mxu0 0.0
        %2252 = vmatpush1.xpose.msra.mxu0 0.0
        %2253 = vmatprep.subr.mxu0 0.0
        %2254 = vmatpush1.xpose.msra.mxu0 0.0
        %2255 = vmatprep.subr.mxu0 0.0
        %2256 = vmatpush1.xpose.msra.mxu0 0.0
        %2257 = vmatprep.subr.mxu0 0.0
        %2258 = vmatpush1.xpose.msra.mxu0 0.0
        %2259 = vmatprep.subr.mxu0 0.0
        %2260 = vmatpush1.xpose.msra.mxu0 0.0
        %2261 = vmatprep.subr.mxu0 0.0
        %2262 = vmatpush1.xpose.msra.mxu0 0.0
        %2263 = vmatprep.subr.mxu0 0.0
        %2264 = vmatpush1.xpose.msra.mxu0 0.0
        %2265 = vmatprep.subr.mxu0 0.0
        %2266 = vmatpush1.xpose.msra.mxu0 0.0
        %2267 = vmatprep.subr.mxu0 0.0
        %2268 = vmatpush1.xpose.msra.mxu0 0.0
        %2269 = vmatprep.subr.mxu0 0.0
        %2270 = vmatpush1.xpose.msra.mxu0 0.0
        %2271 = vmatprep.subr.mxu0 0.0
        %2272 = vmatpush1.xpose.msra.mxu0 0.0
        %2273 = vmatprep.subr.mxu0 0.0
        %2274 = vmatpush1.xpose.msra.mxu0 0.0
        %2275 = vmatprep.subr.mxu0 0.0
        %2276 = vmatpush1.xpose.msra.mxu0 0.0
        %2277 = vmatprep.mubr.f32.mxu0 0.0
        %v2278 = vand.u32 %v2128, 4294901760
        %2279 = vmatmul.mubr.f32.gmra.mrb[0].mxu0 %v2278
        %v2280 = vpop.f32.mrb[0].mxu0
        %v2281 = vadd.f32 %v2205, %v2280
        %v2282 = vpop.f32.mrb[0].mxu0
        %2283 = vdwg.mxu0
        %2284 = vmatprep.subr.mxu0 0.0
        %v2285 = vand.u32 %v2130, 4294901760
        %v2286 = vsub.f32 %v2130, %v2285
        %2287 = vmatpush1.xpose.msra.mxu0 %v2286
        %2288 = vmatprep.subr.mxu0 0.0
        %2289 = vmatpush1.xpose.msra.mxu0 0.0
        %2290 = vmatprep.subr.mxu0 0.0
        %2291 = vmatpush1.xpose.msra.mxu0 0.0
        %2292 = vmatprep.subr.mxu0 0.0
        %2293 = vmatpush1.xpose.msra.mxu0 0.0
        %2294 = vmatprep.subr.mxu0 0.0
        %2295 = vmatpush1.xpose.msra.mxu0 0.0
        %2296 = vmatprep.subr.mxu0 0.0
        %2297 = vmatpush1.xpose.msra.mxu0 0.0
        %2298 = vmatprep.subr.mxu0 0.0
        %2299 = vmatpush1.xpose.msra.mxu0 0.0
        %2300 = vmatprep.subr.mxu0 0.0
        %2301 = vmatpush1.xpose.msra.mxu0 0.0
        %2302 = vmatprep.subr.mxu0 0.0
        %2303 = vmatpush1.xpose.msra.mxu0 0.0
        %2304 = vmatprep.subr.mxu0 0.0
        %2305 = vmatpush1.xpose.msra.mxu0 0.0
        %2306 = vmatprep.subr.mxu0 0.0
        %2307 = vmatpush1.xpose.msra.mxu0 0.0
        %2308 = vmatprep.subr.mxu0 0.0
        %2309 = vmatpush1.xpose.msra.mxu0 0.0
        %2310 = vmatprep.subr.mxu0 0.0
        %2311 = vmatpush1.xpose.msra.mxu0 0.0
        %2312 = vmatprep.subr.mxu0 0.0
        %2313 = vmatpush1.xpose.msra.mxu0 0.0
        %2314 = vmatprep.subr.mxu0 0.0
        %2315 = vmatpush1.xpose.msra.mxu0 0.0
        %2316 = vmatprep.subr.mxu0 0.0
        %2317 = vmatpush1.xpose.msra.mxu0 0.0
        %2318 = vmatprep.subr.mxu0 0.0
        %2319 = vmatpush1.xpose.msra.mxu0 0.0
        %2320 = vmatprep.subr.mxu0 0.0
        %2321 = vmatpush1.xpose.msra.mxu0 0.0
        %2322 = vmatprep.subr.mxu0 0.0
        %2323 = vmatpush1.xpose.msra.mxu0 0.0
        %2324 = vmatprep.subr.mxu0 0.0
        %2325 = vmatpush1.xpose.msra.mxu0 0.0
        %2326 = vmatprep.subr.mxu0 0.0
        %2327 = vmatpush1.xpose.msra.mxu0 0.0
        %2328 = vmatprep.subr.mxu0 0.0
        %2329 = vmatpush1.xpose.msra.mxu0 0.0
        %2330 = vmatprep.subr.mxu0 0.0
        %2331 = vmatpush1.xpose.msra.mxu0 0.0
        %2332 = vmatprep.subr.mxu0 0.0
        %2333 = vmatpush1.xpose.msra.mxu0 0.0
        %2334 = vmatprep.subr.mxu0 0.0
        %2335 = vmatpush1.xpose.msra.mxu0 0.0
        %2336 = vmatprep.subr.mxu0 0.0
        %2337 = vmatpush1.xpose.msra.mxu0 0.0
        %2338 = vmatprep.subr.mxu0 0.0
        %2339 = vmatpush1.xpose.msra.mxu0 0.0
        %2340 = vmatprep.subr.mxu0 0.0
        %2341 = vmatpush1.xpose.msra.mxu0 0.0
        %2342 = vmatprep.subr.mxu0 0.0
        %2343 = vmatpush1.xpose.msra.mxu0 0.0
        %2344 = vmatprep.subr.mxu0 0.0
        %2345 = vmatpush1.xpose.msra.mxu0 0.0
        %2346 = vmatprep.subr.mxu0 0.0
        %2347 = vmatpush1.xpose.msra.mxu0 0.0
        %2348 = vmatprep.subr.mxu0 0.0
        %2349 = vmatpush1.xpose.msra.mxu0 0.0
        %2350 = vmatprep.mubr.f32.mxu0 0.0
        %v2351 = vand.u32 %v2128, 4294901760
        %v2352 = vsub.f32 %v2128, %v2351
        %2353 = vmatmul.mubr.f32.gmra.mrb[0].mxu0 %v2352
        %v2354 = vpop.f32.mrb[0].mxu0
        %v2355 = vadd.f32 %v2281, %v2354
        %v2356 = vpop.f32.mrb[0].mxu0
        %2357 = vdwg.mxu0
        %2358 = vmatprep.subr.mxu0 0.0
        %v2359 = vand.u32 %v2130, 4294901760
        %2360 = vmatpush1.xpose.msra.mxu0 %v2359
        %2361 = vmatprep.subr.mxu0 0.0
        %2362 = vmatpush1.xpose.msra.mxu0 0.0
        %2363 = vmatprep.subr.mxu0 0.0
        %2364 = vmatpush1.xpose.msra.mxu0 0.0
        %2365 = vmatprep.subr.mxu0 0.0
        %2366 = vmatpush1.xpose.msra.mxu0 0.0
        %2367 = vmatprep.subr.mxu0 0.0
        %2368 = vmatpush1.xpose.msra.mxu0 0.0
        %2369 = vmatprep.subr.mxu0 0.0
        %2370 = vmatpush1.xpose.msra.mxu0 0.0
        %2371 = vmatprep.subr.mxu0 0.0
        %2372 = vmatpush1.xpose.msra.mxu0 0.0
        %2373 = vmatprep.subr.mxu0 0.0
        %2374 = vmatpush1.xpose.msra.mxu0 0.0
        %2375 = vmatprep.subr.mxu0 0.0
        %2376 = vmatpush1.xpose.msra.mxu0 0.0
        %2377 = vmatprep.subr.mxu0 0.0
        %2378 = vmatpush1.xpose.msra.mxu0 0.0
        %2379 = vmatprep.subr.mxu0 0.0
        %2380 = vmatpush1.xpose.msra.mxu0 0.0
        %2381 = vmatprep.subr.mxu0 0.0
        %2382 = vmatpush1.xpose.msra.mxu0 0.0
        %2383 = vmatprep.subr.mxu0 0.0
        %2384 = vmatpush1.xpose.msra.mxu0 0.0
        %2385 = vmatprep.subr.mxu0 0.0
        %2386 = vmatpush1.xpose.msra.mxu0 0.0
        %2387 = vmatprep.subr.mxu0 0.0
        %2388 = vmatpush1.xpose.msra.mxu0 0.0
        %2389 = vmatprep.subr.mxu0 0.0
        %2390 = vmatpush1.xpose.msra.mxu0 0.0
        %2391 = vmatprep.subr.mxu0 0.0
        %2392 = vmatpush1.xpose.msra.mxu0 0.0
        %2393 = vmatprep.subr.mxu0 0.0
        %2394 = vmatpush1.xpose.msra.mxu0 0.0
        %2395 = vmatprep.subr.mxu0 0.0
        %2396 = vmatpush1.xpose.msra.mxu0 0.0
        %2397 = vmatprep.subr.mxu0 0.0
        %2398 = vmatpush1.xpose.msra.mxu0 0.0
        %2399 = vmatprep.subr.mxu0 0.0
        %2400 = vmatpush1.xpose.msra.mxu0 0.0
        %2401 = vmatprep.subr.mxu0 0.0
        %2402 = vmatpush1.xpose.msra.mxu0 0.0
        %2403 = vmatprep.subr.mxu0 0.0
        %2404 = vmatpush1.xpose.msra.mxu0 0.0
        %2405 = vmatprep.subr.mxu0 0.0
        %2406 = vmatpush1.xpose.msra.mxu0 0.0
        %2407 = vmatprep.subr.mxu0 0.0
        %2408 = vmatpush1.xpose.msra.mxu0 0.0
        %2409 = vmatprep.subr.mxu0 0.0
        %2410 = vmatpush1.xpose.msra.mxu0 0.0
        %2411 = vmatprep.subr.mxu0 0.0
        %2412 = vmatpush1.xpose.msra.mxu0 0.0
        %2413 = vmatprep.subr.mxu0 0.0
        %2414 = vmatpush1.xpose.msra.mxu0 0.0
        %2415 = vmatprep.subr.mxu0 0.0
        %2416 = vmatpush1.xpose.msra.mxu0 0.0
        %2417 = vmatprep.subr.mxu0 0.0
        %2418 = vmatpush1.xpose.msra.mxu0 0.0
        %2419 = vmatprep.subr.mxu0 0.0
        %2420 = vmatpush1.xpose.msra.mxu0 0.0
        %2421 = vmatprep.subr.mxu0 0.0
        %2422 = vmatpush1.xpose.msra.mxu0 0.0
        %2423 = vmatprep.mubr.f32.mxu0 0.0
        %v2424 = vand.u32 %v2128, 4294901760
        %v2425 = vsub.f32 %v2128, %v2424
        %v2426 = vand.u32 %v2425, 4294901760
        %2427 = vmatmul.mubr.f32.gmra.mrb[0].mxu0 %v2426
        %v2428 = vpop.f32.mrb[0].mxu0
        %v2429 = vadd.f32 %v2355, %v2428
        %v2430 = vpop.f32.mrb[0].mxu0
        %2431 = vdwg.mxu0
        %2432 = vmatprep.subr.mxu0 0.0
        %v2433 = vand.u32 %v2130, 4294901760
        %v2434 = vsub.f32 %v2130, %v2433
        %v2435 = vand.u32 %v2434, 4294901760
        %2436 = vmatpush1.xpose.msra.mxu0 %v2435
        %2437 = vmatprep.subr.mxu0 0.0
        %2438 = vmatpush1.xpose.msra.mxu0 0.0
        %2439 = vmatprep.subr.mxu0 0.0
        %2440 = vmatpush1.xpose.msra.mxu0 0.0
        %2441 = vmatprep.subr.mxu0 0.0
        %2442 = vmatpush1.xpose.msra.mxu0 0.0
        %2443 = vmatprep.subr.mxu0 0.0
        %2444 = vmatpush1.xpose.msra.mxu0 0.0
        %2445 = vmatprep.subr.mxu0 0.0
        %2446 = vmatpush1.xpose.msra.mxu0 0.0
        %2447 = vmatprep.subr.mxu0 0.0
        %2448 = vmatpush1.xpose.msra.mxu0 0.0
        %2449 = vmatprep.subr.mxu0 0.0
        %2450 = vmatpush1.xpose.msra.mxu0 0.0
        %2451 = vmatprep.subr.mxu0 0.0
        %2452 = vmatpush1.xpose.msra.mxu0 0.0
        %2453 = vmatprep.subr.mxu0 0.0
        %2454 = vmatpush1.xpose.msra.mxu0 0.0
        %2455 = vmatprep.subr.mxu0 0.0
        %2456 = vmatpush1.xpose.msra.mxu0 0.0
        %2457 = vmatprep.subr.mxu0 0.0
        %2458 = vmatpush1.xpose.msra.mxu0 0.0
        %2459 = vmatprep.subr.mxu0 0.0
        %2460 = vmatpush1.xpose.msra.mxu0 0.0
        %2461 = vmatprep.subr.mxu0 0.0
        %2462 = vmatpush1.xpose.msra.mxu0 0.0
        %2463 = vmatprep.subr.mxu0 0.0
        %2464 = vmatpush1.xpose.msra.mxu0 0.0
        %2465 = vmatprep.subr.mxu0 0.0
        %2466 = vmatpush1.xpose.msra.mxu0 0.0
        %2467 = vmatprep.subr.mxu0 0.0
        %2468 = vmatpush1.xpose.msra.mxu0 0.0
        %2469 = vmatprep.subr.mxu0 0.0
        %2470 = vmatpush1.xpose.msra.mxu0 0.0
        %2471 = vmatprep.subr.mxu0 0.0
        %2472 = vmatpush1.xpose.msra.mxu0 0.0
        %2473 = vmatprep.subr.mxu0 0.0
        %2474 = vmatpush1.xpose.msra.mxu0 0.0
        %2475 = vmatprep.subr.mxu0 0.0
        %2476 = vmatpush1.xpose.msra.mxu0 0.0
        %2477 = vmatprep.subr.mxu0 0.0
        %2478 = vmatpush1.xpose.msra.mxu0 0.0
        %2479 = vmatprep.subr.mxu0 0.0
        %2480 = vmatpush1.xpose.msra.mxu0 0.0
        %2481 = vmatprep.subr.mxu0 0.0
        %2482 = vmatpush1.xpose.msra.mxu0 0.0
        %2483 = vmatprep.subr.mxu0 0.0
        %2484 = vmatpush1.xpose.msra.mxu0 0.0
        %2485 = vmatprep.subr.mxu0 0.0
        %2486 = vmatpush1.xpose.msra.mxu0 0.0
        %2487 = vmatprep.subr.mxu0 0.0
        %2488 = vmatpush1.xpose.msra.mxu0 0.0
        %2489 = vmatprep.subr.mxu0 0.0
        %2490 = vmatpush1.xpose.msra.mxu0 0.0
        %2491 = vmatprep.subr.mxu0 0.0
        %2492 = vmatpush1.xpose.msra.mxu0 0.0
        %2493 = vmatprep.subr.mxu0 0.0
        %2494 = vmatpush1.xpose.msra.mxu0 0.0
        %2495 = vmatprep.subr.mxu0 0.0
        %2496 = vmatpush1.xpose.msra.mxu0 0.0
        %2497 = vmatprep.subr.mxu0 0.0
        %2498 = vmatpush1.xpose.msra.mxu0 0.0
        %2499 = vmatprep.mubr.f32.mxu0 0.0
        %v2500 = vand.u32 %v2128, 4294901760
        %2501 = vmatmul.mubr.f32.gmra.mrb[0].mxu0 %v2500
        %v2502 = vpop.f32.mrb[0].mxu0
        %v2503 = vadd.f32 %v2429, %v2502
        %v2504 = vpop.f32.mrb[0].mxu0
        %2505 = vdwg.mxu0
        %2506 = vmatprep.subr.mxu0 0.0
        %v2507 = vand.u32 %v2130, 4294901760
        %2508 = vmatpush1.xpose.msra.mxu0 %v2507
        %2509 = vmatprep.subr.mxu0 0.0
        %2510 = vmatpush1.xpose.msra.mxu0 0.0
        %2511 = vmatprep.subr.mxu0 0.0
        %2512 = vmatpush1.xpose.msra.mxu0 0.0
        %2513 = vmatprep.subr.mxu0 0.0
        %2514 = vmatpush1.xpose.msra.mxu0 0.0
        %2515 = vmatprep.subr.mxu0 0.0
        %2516 = vmatpush1.xpose.msra.mxu0 0.0
        %2517 = vmatprep.subr.mxu0 0.0
        %2518 = vmatpush1.xpose.msra.mxu0 0.0
        %2519 = vmatprep.subr.mxu0 0.0
        %2520 = vmatpush1.xpose.msra.mxu0 0.0
        %2521 = vmatprep.subr.mxu0 0.0
        %2522 = vmatpush1.xpose.msra.mxu0 0.0
        %2523 = vmatprep.subr.mxu0 0.0
        %2524 = vmatpush1.xpose.msra.mxu0 0.0
        %2525 = vmatprep.subr.mxu0 0.0
        %2526 = vmatpush1.xpose.msra.mxu0 0.0
        %2527 = vmatprep.subr.mxu0 0.0
        %2528 = vmatpush1.xpose.msra.mxu0 0.0
        %2529 = vmatprep.subr.mxu0 0.0
        %2530 = vmatpush1.xpose.msra.mxu0 0.0
        %2531 = vmatprep.subr.mxu0 0.0
        %2532 = vmatpush1.xpose.msra.mxu0 0.0
        %2533 = vmatprep.subr.mxu0 0.0
        %2534 = vmatpush1.xpose.msra.mxu0 0.0
        %2535 = vmatprep.subr.mxu0 0.0
        %2536 = vmatpush1.xpose.msra.mxu0 0.0
        %2537 = vmatprep.subr.mxu0 0.0
        %2538 = vmatpush1.xpose.msra.mxu0 0.0
        %2539 = vmatprep.subr.mxu0 0.0
        %2540 = vmatpush1.xpose.msra.mxu0 0.0
        %2541 = vmatprep.subr.mxu0 0.0
        %2542 = vmatpush1.xpose.msra.mxu0 0.0
        %2543 = vmatprep.subr.mxu0 0.0
        %2544 = vmatpush1.xpose.msra.mxu0 0.0
        %2545 = vmatprep.subr.mxu0 0.0
        %2546 = vmatpush1.xpose.msra.mxu0 0.0
        %2547 = vmatprep.subr.mxu0 0.0
        %2548 = vmatpush1.xpose.msra.mxu0 0.0
        %2549 = vmatprep.subr.mxu0 0.0
        %2550 = vmatpush1.xpose.msra.mxu0 0.0
        %2551 = vmatprep.subr.mxu0 0.0
        %2552 = vmatpush1.xpose.msra.mxu0 0.0
        %2553 = vmatprep.subr.mxu0 0.0
        %2554 = vmatpush1.xpose.msra.mxu0 0.0
        %2555 = vmatprep.subr.mxu0 0.0
        %2556 = vmatpush1.xpose.msra.mxu0 0.0
        %2557 = vmatprep.subr.mxu0 0.0
        %2558 = vmatpush1.xpose.msra.mxu0 0.0
        %2559 = vmatprep.subr.mxu0 0.0
        %2560 = vmatpush1.xpose.msra.mxu0 0.0
        %2561 = vmatprep.subr.mxu0 0.0
        %2562 = vmatpush1.xpose.msra.mxu0 0.0
        %2563 = vmatprep.subr.mxu0 0.0
        %2564 = vmatpush1.xpose.msra.mxu0 0.0
        %2565 = vmatprep.subr.mxu0 0.0
        %2566 = vmatpush1.xpose.msra.mxu0 0.0
        %2567 = vmatprep.subr.mxu0 0.0
        %2568 = vmatpush1.xpose.msra.mxu0 0.0
        %2569 = vmatprep.subr.mxu0 0.0
        %2570 = vmatpush1.xpose.msra.mxu0 0.0
        %2571 = vmatprep.mubr.f32.mxu0 0.0
        %v2572 = vand.u32 %v2128, 4294901760
        %2573 = vmatmul.mubr.f32.gmra.mrb[0].mxu0 %v2572
        %v2574 = vpop.f32.mrb[0].mxu0
        %v2575 = vadd.f32 %v2503, %v2574
        %v2576 = vpop.f32.mrb[0].mxu0
        %2577 = vdwg.mxu0
        %2578 = vrot.lane.b32.xlu0 %v746, 96
        %v2579 = vpop.permute.xlu0 %2578
        %v2581 = vsel %vm767, %v761, 0
        %v2583 = vsel %vm767, %v2579, 0
        %2585 = vmatprep.subr.mxu0 0.0
        %v2586 = vand.u32 %v2583, 4294901760
        %2587 = vmatpush1.xpose.msra.mxu0 %v2586
        %2588 = vmatprep.subr.mxu0 0.0
        %2589 = vmatpush1.xpose.msra.mxu0 0.0
        %2590 = vmatprep.subr.mxu0 0.0
        %2591 = vmatpush1.xpose.msra.mxu0 0.0
        %2592 = vmatprep.subr.mxu0 0.0
        %2593 = vmatpush1.xpose.msra.mxu0 0.0
        %2594 = vmatprep.subr.mxu0 0.0
        %2595 = vmatpush1.xpose.msra.mxu0 0.0
        %2596 = vmatprep.subr.mxu0 0.0
        %2597 = vmatpush1.xpose.msra.mxu0 0.0
        %2598 = vmatprep.subr.mxu0 0.0
        %2599 = vmatpush1.xpose.msra.mxu0 0.0
        %2600 = vmatprep.subr.mxu0 0.0
        %2601 = vmatpush1.xpose.msra.mxu0 0.0
        %2602 = vmatprep.subr.mxu0 0.0
        %2603 = vmatpush1.xpose.msra.mxu0 0.0
        %2604 = vmatprep.subr.mxu0 0.0
        %2605 = vmatpush1.xpose.msra.mxu0 0.0
        %2606 = vmatprep.subr.mxu0 0.0
        %2607 = vmatpush1.xpose.msra.mxu0 0.0
        %2608 = vmatprep.subr.mxu0 0.0
        %2609 = vmatpush1.xpose.msra.mxu0 0.0
        %2610 = vmatprep.subr.mxu0 0.0
        %2611 = vmatpush1.xpose.msra.mxu0 0.0
        %2612 = vmatprep.subr.mxu0 0.0
        %2613 = vmatpush1.xpose.msra.mxu0 0.0
        %2614 = vmatprep.subr.mxu0 0.0
        %2615 = vmatpush1.xpose.msra.mxu0 0.0
        %2616 = vmatprep.subr.mxu0 0.0
        %2617 = vmatpush1.xpose.msra.mxu0 0.0
        %2618 = vmatprep.subr.mxu0 0.0
        %2619 = vmatpush1.xpose.msra.mxu0 0.0
        %2620 = vmatprep.subr.mxu0 0.0
        %2621 = vmatpush1.xpose.msra.mxu0 0.0
        %2622 = vmatprep.subr.mxu0 0.0
        %2623 = vmatpush1.xpose.msra.mxu0 0.0
        %2624 = vmatprep.subr.mxu0 0.0
        %2625 = vmatpush1.xpose.msra.mxu0 0.0
        %2626 = vmatprep.subr.mxu0 0.0
        %2627 = vmatpush1.xpose.msra.mxu0 0.0
        %2628 = vmatprep.subr.mxu0 0.0
        %2629 = vmatpush1.xpose.msra.mxu0 0.0
        %2630 = vmatprep.subr.mxu0 0.0
        %2631 = vmatpush1.xpose.msra.mxu0 0.0
        %2632 = vmatprep.subr.mxu0 0.0
        %2633 = vmatpush1.xpose.msra.mxu0 0.0
        %2634 = vmatprep.subr.mxu0 0.0
        %2635 = vmatpush1.xpose.msra.mxu0 0.0
        %2636 = vmatprep.subr.mxu0 0.0
        %2637 = vmatpush1.xpose.msra.mxu0 0.0
        %2638 = vmatprep.subr.mxu0 0.0
        %2639 = vmatpush1.xpose.msra.mxu0 0.0
        %2640 = vmatprep.subr.mxu0 0.0
        %2641 = vmatpush1.xpose.msra.mxu0 0.0
        %2642 = vmatprep.subr.mxu0 0.0
        %2643 = vmatpush1.xpose.msra.mxu0 0.0
        %2644 = vmatprep.subr.mxu0 0.0
        %2645 = vmatpush1.xpose.msra.mxu0 0.0
        %2646 = vmatprep.subr.mxu0 0.0
        %2647 = vmatpush1.xpose.msra.mxu0 0.0
        %2648 = vmatprep.subr.mxu0 0.0
        %2649 = vmatpush1.xpose.msra.mxu0 0.0
        %2650 = vmatprep.mubr.f32.mxu0 0.0
        %v2651 = vand.u32 %v2581, 4294901760
        %v2652 = vsub.f32 %v2581, %v2651
        %v2653 = vand.u32 %v2652, 4294901760
        %v2654 = vsub.f32 %v2652, %v2653
        %v2655 = vand.u32 %v2654, 4294901760
        %2656 = vmatmul.mubr.f32.gmra.mrb[0].mxu0 %v2655
        %v2657 = vpop.f32.mrb[0].mxu0
        %v2658 = vadd.f32 0.0, %v2657
        %v2659 = vpop.f32.mrb[0].mxu0
        %2660 = vdwg.mxu0
        %2661 = vmatprep.subr.mxu0 0.0
        %v2662 = vand.u32 %v2583, 4294901760
        %v2663 = vsub.f32 %v2583, %v2662
        %v2664 = vand.u32 %v2663, 4294901760
        %v2665 = vsub.f32 %v2663, %v2664
        %v2666 = vand.u32 %v2665, 4294901760
        %2667 = vmatpush1.xpose.msra.mxu0 %v2666
        %2668 = vmatprep.subr.mxu0 0.0
        %2669 = vmatpush1.xpose.msra.mxu0 0.0
        %2670 = vmatprep.subr.mxu0 0.0
        %2671 = vmatpush1.xpose.msra.mxu0 0.0
        %2672 = vmatprep.subr.mxu0 0.0
        %2673 = vmatpush1.xpose.msra.mxu0 0.0
        %2674 = vmatprep.subr.mxu0 0.0
        %2675 = vmatpush1.xpose.msra.mxu0 0.0
        %2676 = vmatprep.subr.mxu0 0.0
        %2677 = vmatpush1.xpose.msra.mxu0 0.0
        %2678 = vmatprep.subr.mxu0 0.0
        %2679 = vmatpush1.xpose.msra.mxu0 0.0
        %2680 = vmatprep.subr.mxu0 0.0
        %2681 = vmatpush1.xpose.msra.mxu0 0.0
        %2682 = vmatprep.subr.mxu0 0.0
        %2683 = vmatpush1.xpose.msra.mxu0 0.0
        %2684 = vmatprep.subr.mxu0 0.0
        %2685 = vmatpush1.xpose.msra.mxu0 0.0
        %2686 = vmatprep.subr.mxu0 0.0
        %2687 = vmatpush1.xpose.msra.mxu0 0.0
        %2688 = vmatprep.subr.mxu0 0.0
        %2689 = vmatpush1.xpose.msra.mxu0 0.0
        %2690 = vmatprep.subr.mxu0 0.0
        %2691 = vmatpush1.xpose.msra.mxu0 0.0
        %2692 = vmatprep.subr.mxu0 0.0
        %2693 = vmatpush1.xpose.msra.mxu0 0.0
        %2694 = vmatprep.subr.mxu0 0.0
        %2695 = vmatpush1.xpose.msra.mxu0 0.0
        %2696 = vmatprep.subr.mxu0 0.0
        %2697 = vmatpush1.xpose.msra.mxu0 0.0
        %2698 = vmatprep.subr.mxu0 0.0
        %2699 = vmatpush1.xpose.msra.mxu0 0.0
        %2700 = vmatprep.subr.mxu0 0.0
        %2701 = vmatpush1.xpose.msra.mxu0 0.0
        %2702 = vmatprep.subr.mxu0 0.0
        %2703 = vmatpush1.xpose.msra.mxu0 0.0
        %2704 = vmatprep.subr.mxu0 0.0
        %2705 = vmatpush1.xpose.msra.mxu0 0.0
        %2706 = vmatprep.subr.mxu0 0.0
        %2707 = vmatpush1.xpose.msra.mxu0 0.0
        %2708 = vmatprep.subr.mxu0 0.0
        %2709 = vmatpush1.xpose.msra.mxu0 0.0
        %2710 = vmatprep.subr.mxu0 0.0
        %2711 = vmatpush1.xpose.msra.mxu0 0.0
        %2712 = vmatprep.subr.mxu0 0.0
        %2713 = vmatpush1.xpose.msra.mxu0 0.0
        %2714 = vmatprep.subr.mxu0 0.0
        %2715 = vmatpush1.xpose.msra.mxu0 0.0
        %2716 = vmatprep.subr.mxu0 0.0
        %2717 = vmatpush1.xpose.msra.mxu0 0.0
        %2718 = vmatprep.subr.mxu0 0.0
        %2719 = vmatpush1.xpose.msra.mxu0 0.0
        %2720 = vmatprep.subr.mxu0 0.0
        %2721 = vmatpush1.xpose.msra.mxu0 0.0
        %2722 = vmatprep.subr.mxu0 0.0
        %2723 = vmatpush1.xpose.msra.mxu0 0.0
        %2724 = vmatprep.subr.mxu0 0.0
        %2725 = vmatpush1.xpose.msra.mxu0 0.0
        %2726 = vmatprep.subr.mxu0 0.0
        %2727 = vmatpush1.xpose.msra.mxu0 0.0
        %2728 = vmatprep.subr.mxu0 0.0
        %2729 = vmatpush1.xpose.msra.mxu0 0.0
        %2730 = vmatprep.mubr.f32.mxu0 0.0
        %v2731 = vand.u32 %v2581, 4294901760
        %2732 = vmatmul.mubr.f32.gmra.mrb[0].mxu0 %v2731
        %v2733 = vpop.f32.mrb[0].mxu0
        %v2734 = vadd.f32 %v2658, %v2733
        %v2735 = vpop.f32.mrb[0].mxu0
        %2736 = vdwg.mxu0
        %2737 = vmatprep.subr.mxu0 0.0
        %v2738 = vand.u32 %v2583, 4294901760
        %v2739 = vsub.f32 %v2583, %v2738
        %2740 = vmatpush1.xpose.msra.mxu0 %v2739
        %2741 = vmatprep.subr.mxu0 0.0
        %2742 = vmatpush1.xpose.msra.mxu0 0.0
        %2743 = vmatprep.subr.mxu0 0.0
        %2744 = vmatpush1.xpose.msra.mxu0 0.0
        %2745 = vmatprep.subr.mxu0 0.0
        %2746 = vmatpush1.xpose.msra.mxu0 0.0
        %2747 = vmatprep.subr.mxu0 0.0
        %2748 = vmatpush1.xpose.msra.mxu0 0.0
        %2749 = vmatprep.subr.mxu0 0.0
        %2750 = vmatpush1.xpose.msra.mxu0 0.0
        %2751 = vmatprep.subr.mxu0 0.0
        %2752 = vmatpush1.xpose.msra.mxu0 0.0
        %2753 = vmatprep.subr.mxu0 0.0
        %2754 = vmatpush1.xpose.msra.mxu0 0.0
        %2755 = vmatprep.subr.mxu0 0.0
        %2756 = vmatpush1.xpose.msra.mxu0 0.0
        %2757 = vmatprep.subr.mxu0 0.0
        %2758 = vmatpush1.xpose.msra.mxu0 0.0
        %2759 = vmatprep.subr.mxu0 0.0
        %2760 = vmatpush1.xpose.msra.mxu0 0.0
        %2761 = vmatprep.subr.mxu0 0.0
        %2762 = vmatpush1.xpose.msra.mxu0 0.0
        %2763 = vmatprep.subr.mxu0 0.0
        %2764 = vmatpush1.xpose.msra.mxu0 0.0
        %2765 = vmatprep.subr.mxu0 0.0
        %2766 = vmatpush1.xpose.msra.mxu0 0.0
        %2767 = vmatprep.subr.mxu0 0.0
        %2768 = vmatpush1.xpose.msra.mxu0 0.0
        %2769 = vmatprep.subr.mxu0 0.0
        %2770 = vmatpush1.xpose.msra.mxu0 0.0
        %2771 = vmatprep.subr.mxu0 0.0
        %2772 = vmatpush1.xpose.msra.mxu0 0.0
        %2773 = vmatprep.subr.mxu0 0.0
        %2774 = vmatpush1.xpose.msra.mxu0 0.0
        %2775 = vmatprep.subr.mxu0 0.0
        %2776 = vmatpush1.xpose.msra.mxu0 0.0
        %2777 = vmatprep.subr.mxu0 0.0
        %2778 = vmatpush1.xpose.msra.mxu0 0.0
        %2779 = vmatprep.subr.mxu0 0.0
        %2780 = vmatpush1.xpose.msra.mxu0 0.0
        %2781 = vmatprep.subr.mxu0 0.0
        %2782 = vmatpush1.xpose.msra.mxu0 0.0
        %2783 = vmatprep.subr.mxu0 0.0
        %2784 = vmatpush1.xpose.msra.mxu0 0.0
        %2785 = vmatprep.subr.mxu0 0.0
        %2786 = vmatpush1.xpose.msra.mxu0 0.0
        %2787 = vmatprep.subr.mxu0 0.0
        %2788 = vmatpush1.xpose.msra.mxu0 0.0
        %2789 = vmatprep.subr.mxu0 0.0
        %2790 = vmatpush1.xpose.msra.mxu0 0.0
        %2791 = vmatprep.subr.mxu0 0.0
        %2792 = vmatpush1.xpose.msra.mxu0 0.0
        %2793 = vmatprep.subr.mxu0 0.0
        %2794 = vmatpush1.xpose.msra.mxu0 0.0
        %2795 = vmatprep.subr.mxu0 0.0
        %2796 = vmatpush1.xpose.msra.mxu0 0.0
        %2797 = vmatprep.subr.mxu0 0.0
        %2798 = vmatpush1.xpose.msra.mxu0 0.0
        %2799 = vmatprep.subr.mxu0 0.0
        %2800 = vmatpush1.xpose.msra.mxu0 0.0
        %2801 = vmatprep.subr.mxu0 0.0
        %2802 = vmatpush1.xpose.msra.mxu0 0.0
        %2803 = vmatprep.mubr.f32.mxu0 0.0
        %v2804 = vand.u32 %v2581, 4294901760
        %v2805 = vsub.f32 %v2581, %v2804
        %2806 = vmatmul.mubr.f32.gmra.mrb[0].mxu0 %v2805
        %v2807 = vpop.f32.mrb[0].mxu0
        %v2808 = vadd.f32 %v2734, %v2807
        %v2809 = vpop.f32.mrb[0].mxu0
        %2810 = vdwg.mxu0
        %2811 = vmatprep.subr.mxu0 0.0
        %v2812 = vand.u32 %v2583, 4294901760
        %2813 = vmatpush1.xpose.msra.mxu0 %v2812
        %2814 = vmatprep.subr.mxu0 0.0
        %2815 = vmatpush1.xpose.msra.mxu0 0.0
        %2816 = vmatprep.subr.mxu0 0.0
        %2817 = vmatpush1.xpose.msra.mxu0 0.0
        %2818 = vmatprep.subr.mxu0 0.0
        %2819 = vmatpush1.xpose.msra.mxu0 0.0
        %2820 = vmatprep.subr.mxu0 0.0
        %2821 = vmatpush1.xpose.msra.mxu0 0.0
        %2822 = vmatprep.subr.mxu0 0.0
        %2823 = vmatpush1.xpose.msra.mxu0 0.0
        %2824 = vmatprep.subr.mxu0 0.0
        %2825 = vmatpush1.xpose.msra.mxu0 0.0
        %2826 = vmatprep.subr.mxu0 0.0
        %2827 = vmatpush1.xpose.msra.mxu0 0.0
        %2828 = vmatprep.subr.mxu0 0.0
        %2829 = vmatpush1.xpose.msra.mxu0 0.0
        %2830 = vmatprep.subr.mxu0 0.0
        %2831 = vmatpush1.xpose.msra.mxu0 0.0
        %2832 = vmatprep.subr.mxu0 0.0
        %2833 = vmatpush1.xpose.msra.mxu0 0.0
        %2834 = vmatprep.subr.mxu0 0.0
        %2835 = vmatpush1.xpose.msra.mxu0 0.0
        %2836 = vmatprep.subr.mxu0 0.0
        %2837 = vmatpush1.xpose.msra.mxu0 0.0
        %2838 = vmatprep.subr.mxu0 0.0
        %2839 = vmatpush1.xpose.msra.mxu0 0.0
        %2840 = vmatprep.subr.mxu0 0.0
        %2841 = vmatpush1.xpose.msra.mxu0 0.0
        %2842 = vmatprep.subr.mxu0 0.0
        %2843 = vmatpush1.xpose.msra.mxu0 0.0
        %2844 = vmatprep.subr.mxu0 0.0
        %2845 = vmatpush1.xpose.msra.mxu0 0.0
        %2846 = vmatprep.subr.mxu0 0.0
        %2847 = vmatpush1.xpose.msra.mxu0 0.0
        %2848 = vmatprep.subr.mxu0 0.0
        %2849 = vmatpush1.xpose.msra.mxu0 0.0
        %2850 = vmatprep.subr.mxu0 0.0
        %2851 = vmatpush1.xpose.msra.mxu0 0.0
        %2852 = vmatprep.subr.mxu0 0.0
        %2853 = vmatpush1.xpose.msra.mxu0 0.0
        %2854 = vmatprep.subr.mxu0 0.0
        %2855 = vmatpush1.xpose.msra.mxu0 0.0
        %2856 = vmatprep.subr.mxu0 0.0
        %2857 = vmatpush1.xpose.msra.mxu0 0.0
        %2858 = vmatprep.subr.mxu0 0.0
        %2859 = vmatpush1.xpose.msra.mxu0 0.0
        %2860 = vmatprep.subr.mxu0 0.0
        %2861 = vmatpush1.xpose.msra.mxu0 0.0
        %2862 = vmatprep.subr.mxu0 0.0
        %2863 = vmatpush1.xpose.msra.mxu0 0.0
        %2864 = vmatprep.subr.mxu0 0.0
        %2865 = vmatpush1.xpose.msra.mxu0 0.0
        %2866 = vmatprep.subr.mxu0 0.0
        %2867 = vmatpush1.xpose.msra.mxu0 0.0
        %2868 = vmatprep.subr.mxu0 0.0
        %2869 = vmatpush1.xpose.msra.mxu0 0.0
        %2870 = vmatprep.subr.mxu0 0.0
        %2871 = vmatpush1.xpose.msra.mxu0 0.0
        %2872 = vmatprep.subr.mxu0 0.0
        %2873 = vmatpush1.xpose.msra.mxu0 0.0
        %2874 = vmatprep.subr.mxu0 0.0
        %2875 = vmatpush1.xpose.msra.mxu0 0.0
        %2876 = vmatprep.mubr.f32.mxu0 0.0
        %v2877 = vand.u32 %v2581, 4294901760
        %v2878 = vsub.f32 %v2581, %v2877
        %v2879 = vand.u32 %v2878, 4294901760
        %2880 = vmatmul.mubr.f32.gmra.mrb[0].mxu0 %v2879
        %v2881 = vpop.f32.mrb[0].mxu0
        %v2882 = vadd.f32 %v2808, %v2881
        %v2883 = vpop.f32.mrb[0].mxu0
        %2884 = vdwg.mxu0
        %2885 = vmatprep.subr.mxu0 0.0
        %v2886 = vand.u32 %v2583, 4294901760
        %v2887 = vsub.f32 %v2583, %v2886
        %v2888 = vand.u32 %v2887, 4294901760
        %2889 = vmatpush1.xpose.msra.mxu0 %v2888
        %2890 = vmatprep.subr.mxu0 0.0
        %2891 = vmatpush1.xpose.msra.mxu0 0.0
        %2892 = vmatprep.subr.mxu0 0.0
        %2893 = vmatpush1.xpose.msra.mxu0 0.0
        %2894 = vmatprep.subr.mxu0 0.0
        %2895 = vmatpush1.xpose.msra.mxu0 0.0
        %2896 = vmatprep.subr.mxu0 0.0
        %2897 = vmatpush1.xpose.msra.mxu0 0.0
        %2898 = vmatprep.subr.mxu0 0.0
        %2899 = vmatpush1.xpose.msra.mxu0 0.0
        %2900 = vmatprep.subr.mxu0 0.0
        %2901 = vmatpush1.xpose.msra.mxu0 0.0
        %2902 = vmatprep.subr.mxu0 0.0
        %2903 = vmatpush1.xpose.msra.mxu0 0.0
        %2904 = vmatprep.subr.mxu0 0.0
        %2905 = vmatpush1.xpose.msra.mxu0 0.0
        %2906 = vmatprep.subr.mxu0 0.0
        %2907 = vmatpush1.xpose.msra.mxu0 0.0
        %2908 = vmatprep.subr.mxu0 0.0
        %2909 = vmatpush1.xpose.msra.mxu0 0.0
        %2910 = vmatprep.subr.mxu0 0.0
        %2911 = vmatpush1.xpose.msra.mxu0 0.0
        %2912 = vmatprep.subr.mxu0 0.0
        %2913 = vmatpush1.xpose.msra.mxu0 0.0
        %2914 = vmatprep.subr.mxu0 0.0
        %2915 = vmatpush1.xpose.msra.mxu0 0.0
        %2916 = vmatprep.subr.mxu0 0.0
        %2917 = vmatpush1.xpose.msra.mxu0 0.0
        %2918 = vmatprep.subr.mxu0 0.0
        %2919 = vmatpush1.xpose.msra.mxu0 0.0
        %2920 = vmatprep.subr.mxu0 0.0
        %2921 = vmatpush1.xpose.msra.mxu0 0.0
        %2922 = vmatprep.subr.mxu0 0.0
        %2923 = vmatpush1.xpose.msra.mxu0 0.0
        %2924 = vmatprep.subr.mxu0 0.0
        %2925 = vmatpush1.xpose.msra.mxu0 0.0
        %2926 = vmatprep.subr.mxu0 0.0
        %2927 = vmatpush1.xpose.msra.mxu0 0.0
        %2928 = vmatprep.subr.mxu0 0.0
        %2929 = vmatpush1.xpose.msra.mxu0 0.0
        %2930 = vmatprep.subr.mxu0 0.0
        %2931 = vmatpush1.xpose.msra.mxu0 0.0
        %2932 = vmatprep.subr.mxu0 0.0
        %2933 = vmatpush1.xpose.msra.mxu0 0.0
        %2934 = vmatprep.subr.mxu0 0.0
        %2935 = vmatpush1.xpose.msra.mxu0 0.0
        %2936 = vmatprep.subr.mxu0 0.0
        %2937 = vmatpush1.xpose.msra.mxu0 0.0
        %2938 = vmatprep.subr.mxu0 0.0
        %2939 = vmatpush1.xpose.msra.mxu0 0.0
        %2940 = vmatprep.subr.mxu0 0.0
        %2941 = vmatpush1.xpose.msra.mxu0 0.0
        %2942 = vmatprep.subr.mxu0 0.0
        %2943 = vmatpush1.xpose.msra.mxu0 0.0
        %2944 = vmatprep.subr.mxu0 0.0
        %2945 = vmatpush1.xpose.msra.mxu0 0.0
        %2946 = vmatprep.subr.mxu0 0.0
        %2947 = vmatpush1.xpose.msra.mxu0 0.0
        %2948 = vmatprep.subr.mxu0 0.0
        %2949 = vmatpush1.xpose.msra.mxu0 0.0
        %2950 = vmatprep.subr.mxu0 0.0
        %2951 = vmatpush1.xpose.msra.mxu0 0.0
        %2952 = vmatprep.mubr.f32.mxu0 0.0
        %v2953 = vand.u32 %v2581, 4294901760
        %2954 = vmatmul.mubr.f32.gmra.mrb[0].mxu0 %v2953
        %v2955 = vpop.f32.mrb[0].mxu0
        %v2956 = vadd.f32 %v2882, %v2955
        %v2957 = vpop.f32.mrb[0].mxu0
        %2958 = vdwg.mxu0
        %2959 = vmatprep.subr.mxu0 0.0
        %v2960 = vand.u32 %v2583, 4294901760
        %2961 = vmatpush1.xpose.msra.mxu0 %v2960
        %2962 = vmatprep.subr.mxu0 0.0
        %2963 = vmatpush1.xpose.msra.mxu0 0.0
        %2964 = vmatprep.subr.mxu0 0.0
        %2965 = vmatpush1.xpose.msra.mxu0 0.0
        %2966 = vmatprep.subr.mxu0 0.0
        %2967 = vmatpush1.xpose.msra.mxu0 0.0
        %2968 = vmatprep.subr.mxu0 0.0
        %2969 = vmatpush1.xpose.msra.mxu0 0.0
        %2970 = vmatprep.subr.mxu0 0.0
        %2971 = vmatpush1.xpose.msra.mxu0 0.0
        %2972 = vmatprep.subr.mxu0 0.0
        %2973 = vmatpush1.xpose.msra.mxu0 0.0
        %2974 = vmatprep.subr.mxu0 0.0
        %2975 = vmatpush1.xpose.msra.mxu0 0.0
        %2976 = vmatprep.subr.mxu0 0.0
        %2977 = vmatpush1.xpose.msra.mxu0 0.0
        %2978 = vmatprep.subr.mxu0 0.0
        %2979 = vmatpush1.xpose.msra.mxu0 0.0
        %2980 = vmatprep.subr.mxu0 0.0
        %2981 = vmatpush1.xpose.msra.mxu0 0.0
        %2982 = vmatprep.subr.mxu0 0.0
        %2983 = vmatpush1.xpose.msra.mxu0 0.0
        %2984 = vmatprep.subr.mxu0 0.0
        %2985 = vmatpush1.xpose.msra.mxu0 0.0
        %2986 = vmatprep.subr.mxu0 0.0
        %2987 = vmatpush1.xpose.msra.mxu0 0.0
        %2988 = vmatprep.subr.mxu0 0.0
        %2989 = vmatpush1.xpose.msra.mxu0 0.0
        %2990 = vmatprep.subr.mxu0 0.0
        %2991 = vmatpush1.xpose.msra.mxu0 0.0
        %2992 = vmatprep.subr.mxu0 0.0
        %2993 = vmatpush1.xpose.msra.mxu0 0.0
        %2994 = vmatprep.subr.mxu0 0.0
        %2995 = vmatpush1.xpose.msra.mxu0 0.0
        %2996 = vmatprep.subr.mxu0 0.0
        %2997 = vmatpush1.xpose.msra.mxu0 0.0
        %2998 = vmatprep.subr.mxu0 0.0
        %2999 = vmatpush1.xpose.msra.mxu0 0.0
        %3000 = vmatprep.subr.mxu0 0.0
        %3001 = vmatpush1.xpose.msra.mxu0 0.0
        %3002 = vmatprep.subr.mxu0 0.0
        %3003 = vmatpush1.xpose.msra.mxu0 0.0
        %3004 = vmatprep.subr.mxu0 0.0
        %3005 = vmatpush1.xpose.msra.mxu0 0.0
        %3006 = vmatprep.subr.mxu0 0.0
        %3007 = vmatpush1.xpose.msra.mxu0 0.0
        %3008 = vmatprep.subr.mxu0 0.0
        %3009 = vmatpush1.xpose.msra.mxu0 0.0
        %3010 = vmatprep.subr.mxu0 0.0
        %3011 = vmatpush1.xpose.msra.mxu0 0.0
        %3012 = vmatprep.subr.mxu0 0.0
        %3013 = vmatpush1.xpose.msra.mxu0 0.0
        %3014 = vmatprep.subr.mxu0 0.0
        %3015 = vmatpush1.xpose.msra.mxu0 0.0
        %3016 = vmatprep.subr.mxu0 0.0
        %3017 = vmatpush1.xpose.msra.mxu0 0.0
        %3018 = vmatprep.subr.mxu0 0.0
        %3019 = vmatpush1.xpose.msra.mxu0 0.0
        %3020 = vmatprep.subr.mxu0 0.0
        %3021 = vmatpush1.xpose.msra.mxu0 0.0
        %3022 = vmatprep.subr.mxu0 0.0
        %3023 = vmatpush1.xpose.msra.mxu0 0.0
        %3024 = vmatprep.mubr.f32.mxu0 0.0
        %v3025 = vand.u32 %v2581, 4294901760
        %3026 = vmatmul.mubr.f32.gmra.mrb[0].mxu0 %v3025
        %v3027 = vpop.f32.mrb[0].mxu0
        %v3028 = vadd.f32 %v2956, %v3027
        %v3029 = vpop.f32.mrb[0].mxu0
        %3030 = vdwg.mxu0
        %3031 = vrot.lane.b32.xlu0 %v748, 96
        %v3032 = vpop.permute.xlu0 %3031
        %v3034 = vsel %vm767, %v762, 0
        %v3036 = vsel %vm767, %v3032, 0
        %3038 = vmatprep.subr.mxu0 0.0
        %v3039 = vand.u32 %v3036, 4294901760
        %3040 = vmatpush1.xpose.msra.mxu0 %v3039
        %3041 = vmatprep.subr.mxu0 0.0
        %3042 = vmatpush1.xpose.msra.mxu0 0.0
        %3043 = vmatprep.subr.mxu0 0.0
        %3044 = vmatpush1.xpose.msra.mxu0 0.0
        %3045 = vmatprep.subr.mxu0 0.0
        %3046 = vmatpush1.xpose.msra.mxu0 0.0
        %3047 = vmatprep.subr.mxu0 0.0
        %3048 = vmatpush1.xpose.msra.mxu0 0.0
        %3049 = vmatprep.subr.mxu0 0.0
        %3050 = vmatpush1.xpose.msra.mxu0 0.0
        %3051 = vmatprep.subr.mxu0 0.0
        %3052 = vmatpush1.xpose.msra.mxu0 0.0
        %3053 = vmatprep.subr.mxu0 0.0
        %3054 = vmatpush1.xpose.msra.mxu0 0.0
        %3055 = vmatprep.subr.mxu0 0.0
        %3056 = vmatpush1.xpose.msra.mxu0 0.0
        %3057 = vmatprep.subr.mxu0 0.0
        %3058 = vmatpush1.xpose.msra.mxu0 0.0
        %3059 = vmatprep.subr.mxu0 0.0
        %3060 = vmatpush1.xpose.msra.mxu0 0.0
        %3061 = vmatprep.subr.mxu0 0.0
        %3062 = vmatpush1.xpose.msra.mxu0 0.0
        %3063 = vmatprep.subr.mxu0 0.0
        %3064 = vmatpush1.xpose.msra.mxu0 0.0
        %3065 = vmatprep.subr.mxu0 0.0
        %3066 = vmatpush1.xpose.msra.mxu0 0.0
        %3067 = vmatprep.subr.mxu0 0.0
        %3068 = vmatpush1.xpose.msra.mxu0 0.0
        %3069 = vmatprep.subr.mxu0 0.0
        %3070 = vmatpush1.xpose.msra.mxu0 0.0
        %3071 = vmatprep.subr.mxu0 0.0
        %3072 = vmatpush1.xpose.msra.mxu0 0.0
        %3073 = vmatprep.subr.mxu0 0.0
        %3074 = vmatpush1.xpose.msra.mxu0 0.0
        %3075 = vmatprep.subr.mxu0 0.0
        %3076 = vmatpush1.xpose.msra.mxu0 0.0
        %3077 = vmatprep.subr.mxu0 0.0
        %3078 = vmatpush1.xpose.msra.mxu0 0.0
        %3079 = vmatprep.subr.mxu0 0.0
        %3080 = vmatpush1.xpose.msra.mxu0 0.0
        %3081 = vmatprep.subr.mxu0 0.0
        %3082 = vmatpush1.xpose.msra.mxu0 0.0
        %3083 = vmatprep.subr.mxu0 0.0
        %3084 = vmatpush1.xpose.msra.mxu0 0.0
        %3085 = vmatprep.subr.mxu0 0.0
        %3086 = vmatpush1.xpose.msra.mxu0 0.0
        %3087 = vmatprep.subr.mxu0 0.0
        %3088 = vmatpush1.xpose.msra.mxu0 0.0
        %3089 = vmatprep.subr.mxu0 0.0
        %3090 = vmatpush1.xpose.msra.mxu0 0.0
        %3091 = vmatprep.subr.mxu0 0.0
        %3092 = vmatpush1.xpose.msra.mxu0 0.0
        %3093 = vmatprep.subr.mxu0 0.0
        %3094 = vmatpush1.xpose.msra.mxu0 0.0
        %3095 = vmatprep.subr.mxu0 0.0
        %3096 = vmatpush1.xpose.msra.mxu0 0.0
        %3097 = vmatprep.subr.mxu0 0.0
        %3098 = vmatpush1.xpose.msra.mxu0 0.0
        %3099 = vmatprep.subr.mxu0 0.0
        %3100 = vmatpush1.xpose.msra.mxu0 0.0
        %3101 = vmatprep.subr.mxu0 0.0
        %3102 = vmatpush1.xpose.msra.mxu0 0.0
        %3103 = vmatprep.mubr.f32.mxu0 0.0
        %v3104 = vand.u32 %v3034, 4294901760
        %v3105 = vsub.f32 %v3034, %v3104
        %v3106 = vand.u32 %v3105, 4294901760
        %v3107 = vsub.f32 %v3105, %v3106
        %v3108 = vand.u32 %v3107, 4294901760
        %3109 = vmatmul.mubr.f32.gmra.mrb[0].mxu0 %v3108
        %v3110 = vpop.f32.mrb[0].mxu0
        %v3111 = vadd.f32 0.0, %v3110
        %v3112 = vpop.f32.mrb[0].mxu0
        %3113 = vdwg.mxu0
        %3114 = vmatprep.subr.mxu0 0.0
        %v3115 = vand.u32 %v3036, 4294901760
        %v3116 = vsub.f32 %v3036, %v3115
        %v3117 = vand.u32 %v3116, 4294901760
        %v3118 = vsub.f32 %v3116, %v3117
        %v3119 = vand.u32 %v3118, 4294901760
        %3120 = vmatpush1.xpose.msra.mxu0 %v3119
        %3121 = vmatprep.subr.mxu0 0.0
        %3122 = vmatpush1.xpose.msra.mxu0 0.0
        %3123 = vmatprep.subr.mxu0 0.0
        %3124 = vmatpush1.xpose.msra.mxu0 0.0
        %3125 = vmatprep.subr.mxu0 0.0
        %3126 = vmatpush1.xpose.msra.mxu0 0.0
        %3127 = vmatprep.subr.mxu0 0.0
        %3128 = vmatpush1.xpose.msra.mxu0 0.0
        %3129 = vmatprep.subr.mxu0 0.0
        %3130 = vmatpush1.xpose.msra.mxu0 0.0
        %3131 = vmatprep.subr.mxu0 0.0
        %3132 = vmatpush1.xpose.msra.mxu0 0.0
        %3133 = vmatprep.subr.mxu0 0.0
        %3134 = vmatpush1.xpose.msra.mxu0 0.0
        %3135 = vmatprep.subr.mxu0 0.0
        %3136 = vmatpush1.xpose.msra.mxu0 0.0
        %3137 = vmatprep.subr.mxu0 0.0
        %3138 = vmatpush1.xpose.msra.mxu0 0.0
        %3139 = vmatprep.subr.mxu0 0.0
        %3140 = vmatpush1.xpose.msra.mxu0 0.0
        %3141 = vmatprep.subr.mxu0 0.0
        %3142 = vmatpush1.xpose.msra.mxu0 0.0
        %3143 = vmatprep.subr.mxu0 0.0
        %3144 = vmatpush1.xpose.msra.mxu0 0.0
        %3145 = vmatprep.subr.mxu0 0.0
        %3146 = vmatpush1.xpose.msra.mxu0 0.0
        %3147 = vmatprep.subr.mxu0 0.0
        %3148 = vmatpush1.xpose.msra.mxu0 0.0
        %3149 = vmatprep.subr.mxu0 0.0
        %3150 = vmatpush1.xpose.msra.mxu0 0.0
        %3151 = vmatprep.subr.mxu0 0.0
        %3152 = vmatpush1.xpose.msra.mxu0 0.0
        %3153 = vmatprep.subr.mxu0 0.0
        %3154 = vmatpush1.xpose.msra.mxu0 0.0
        %3155 = vmatprep.subr.mxu0 0.0
        %3156 = vmatpush1.xpose.msra.mxu0 0.0
        %3157 = vmatprep.subr.mxu0 0.0
        %3158 = vmatpush1.xpose.msra.mxu0 0.0
        %3159 = vmatprep.subr.mxu0 0.0
        %3160 = vmatpush1.xpose.msra.mxu0 0.0
        %3161 = vmatprep.subr.mxu0 0.0
        %3162 = vmatpush1.xpose.msra.mxu0 0.0
        %3163 = vmatprep.subr.mxu0 0.0
        %3164 = vmatpush1.xpose.msra.mxu0 0.0
        %3165 = vmatprep.subr.mxu0 0.0
        %3166 = vmatpush1.xpose.msra.mxu0 0.0
        %3167 = vmatprep.subr.mxu0 0.0
        %3168 = vmatpush1.xpose.msra.mxu0 0.0
        %3169 = vmatprep.subr.mxu0 0.0
        %3170 = vmatpush1.xpose.msra.mxu0 0.0
        %3171 = vmatprep.subr.mxu0 0.0
        %3172 = vmatpush1.xpose.msra.mxu0 0.0
        %3173 = vmatprep.subr.mxu0 0.0
        %3174 = vmatpush1.xpose.msra.mxu0 0.0
        %3175 = vmatprep.subr.mxu0 0.0
        %3176 = vmatpush1.xpose.msra.mxu0 0.0
        %3177 = vmatprep.subr.mxu0 0.0
        %3178 = vmatpush1.xpose.msra.mxu0 0.0
        %3179 = vmatprep.subr.mxu0 0.0
        %3180 = vmatpush1.xpose.msra.mxu0 0.0
        %3181 = vmatprep.subr.mxu0 0.0
        %3182 = vmatpush1.xpose.msra.mxu0 0.0
        %3183 = vmatprep.mubr.f32.mxu0 0.0
        %v3184 = vand.u32 %v3034, 4294901760
        %3185 = vmatmul.mubr.f32.gmra.mrb[0].mxu0 %v3184
        %v3186 = vpop.f32.mrb[0].mxu0
        %v3187 = vadd.f32 %v3111, %v3186
        %v3188 = vpop.f32.mrb[0].mxu0
        %3189 = vdwg.mxu0
        %3190 = vmatprep.subr.mxu0 0.0
        %v3191 = vand.u32 %v3036, 4294901760
        %v3192 = vsub.f32 %v3036, %v3191
        %3193 = vmatpush1.xpose.msra.mxu0 %v3192
        %3194 = vmatprep.subr.mxu0 0.0
        %3195 = vmatpush1.xpose.msra.mxu0 0.0
        %3196 = vmatprep.subr.mxu0 0.0
        %3197 = vmatpush1.xpose.msra.mxu0 0.0
        %3198 = vmatprep.subr.mxu0 0.0
        %3199 = vmatpush1.xpose.msra.mxu0 0.0
        %3200 = vmatprep.subr.mxu0 0.0
        %3201 = vmatpush1.xpose.msra.mxu0 0.0
        %3202 = vmatprep.subr.mxu0 0.0
        %3203 = vmatpush1.xpose.msra.mxu0 0.0
        %3204 = vmatprep.subr.mxu0 0.0
        %3205 = vmatpush1.xpose.msra.mxu0 0.0
        %3206 = vmatprep.subr.mxu0 0.0
        %3207 = vmatpush1.xpose.msra.mxu0 0.0
        %3208 = vmatprep.subr.mxu0 0.0
        %3209 = vmatpush1.xpose.msra.mxu0 0.0
        %3210 = vmatprep.subr.mxu0 0.0
        %3211 = vmatpush1.xpose.msra.mxu0 0.0
        %3212 = vmatprep.subr.mxu0 0.0
        %3213 = vmatpush1.xpose.msra.mxu0 0.0
        %3214 = vmatprep.subr.mxu0 0.0
        %3215 = vmatpush1.xpose.msra.mxu0 0.0
        %3216 = vmatprep.subr.mxu0 0.0
        %3217 = vmatpush1.xpose.msra.mxu0 0.0
        %3218 = vmatprep.subr.mxu0 0.0
        %3219 = vmatpush1.xpose.msra.mxu0 0.0
        %3220 = vmatprep.subr.mxu0 0.0
        %3221 = vmatpush1.xpose.msra.mxu0 0.0
        %3222 = vmatprep.subr.mxu0 0.0
        %3223 = vmatpush1.xpose.msra.mxu0 0.0
        %3224 = vmatprep.subr.mxu0 0.0
        %3225 = vmatpush1.xpose.msra.mxu0 0.0
        %3226 = vmatprep.subr.mxu0 0.0
        %3227 = vmatpush1.xpose.msra.mxu0 0.0
        %3228 = vmatprep.subr.mxu0 0.0
        %3229 = vmatpush1.xpose.msra.mxu0 0.0
        %3230 = vmatprep.subr.mxu0 0.0
        %3231 = vmatpush1.xpose.msra.mxu0 0.0
        %3232 = vmatprep.subr.mxu0 0.0
        %3233 = vmatpush1.xpose.msra.mxu0 0.0
        %3234 = vmatprep.subr.mxu0 0.0
        %3235 = vmatpush1.xpose.msra.mxu0 0.0
        %3236 = vmatprep.subr.mxu0 0.0
        %3237 = vmatpush1.xpose.msra.mxu0 0.0
        %3238 = vmatprep.subr.mxu0 0.0
        %3239 = vmatpush1.xpose.msra.mxu0 0.0
        %3240 = vmatprep.subr.mxu0 0.0
        %3241 = vmatpush1.xpose.msra.mxu0 0.0
        %3242 = vmatprep.subr.mxu0 0.0
        %3243 = vmatpush1.xpose.msra.mxu0 0.0
        %3244 = vmatprep.subr.mxu0 0.0
        %3245 = vmatpush1.xpose.msra.mxu0 0.0
        %3246 = vmatprep.subr.mxu0 0.0
        %3247 = vmatpush1.xpose.msra.mxu0 0.0
        %3248 = vmatprep.subr.mxu0 0.0
        %3249 = vmatpush1.xpose.msra.mxu0 0.0
        %3250 = vmatprep.subr.mxu0 0.0
        %3251 = vmatpush1.xpose.msra.mxu0 0.0
        %3252 = vmatprep.subr.mxu0 0.0
        %3253 = vmatpush1.xpose.msra.mxu0 0.0
        %3254 = vmatprep.subr.mxu0 0.0
        %3255 = vmatpush1.xpose.msra.mxu0 0.0
        %3256 = vmatprep.mubr.f32.mxu0 0.0
        %v3257 = vand.u32 %v3034, 4294901760
        %v3258 = vsub.f32 %v3034, %v3257
        %3259 = vmatmul.mubr.f32.gmra.mrb[0].mxu0 %v3258
        %v3260 = vpop.f32.mrb[0].mxu0
        %v3261 = vadd.f32 %v3187, %v3260
        %v3262 = vpop.f32.mrb[0].mxu0
        %3263 = vdwg.mxu0
        %3264 = vmatprep.subr.mxu0 0.0
        %v3265 = vand.u32 %v3036, 4294901760
        %3266 = vmatpush1.xpose.msra.mxu0 %v3265
        %3267 = vmatprep.subr.mxu0 0.0
        %3268 = vmatpush1.xpose.msra.mxu0 0.0
        %3269 = vmatprep.subr.mxu0 0.0
        %3270 = vmatpush1.xpose.msra.mxu0 0.0
        %3271 = vmatprep.subr.mxu0 0.0
        %3272 = vmatpush1.xpose.msra.mxu0 0.0
        %3273 = vmatprep.subr.mxu0 0.0
        %3274 = vmatpush1.xpose.msra.mxu0 0.0
        %3275 = vmatprep.subr.mxu0 0.0
        %3276 = vmatpush1.xpose.msra.mxu0 0.0
        %3277 = vmatprep.subr.mxu0 0.0
        %3278 = vmatpush1.xpose.msra.mxu0 0.0
        %3279 = vmatprep.subr.mxu0 0.0
        %3280 = vmatpush1.xpose.msra.mxu0 0.0
        %3281 = vmatprep.subr.mxu0 0.0
        %3282 = vmatpush1.xpose.msra.mxu0 0.0
        %3283 = vmatprep.subr.mxu0 0.0
        %3284 = vmatpush1.xpose.msra.mxu0 0.0
        %3285 = vmatprep.subr.mxu0 0.0
        %3286 = vmatpush1.xpose.msra.mxu0 0.0
        %3287 = vmatprep.subr.mxu0 0.0
        %3288 = vmatpush1.xpose.msra.mxu0 0.0
        %3289 = vmatprep.subr.mxu0 0.0
        %3290 = vmatpush1.xpose.msra.mxu0 0.0
        %3291 = vmatprep.subr.mxu0 0.0
        %3292 = vmatpush1.xpose.msra.mxu0 0.0
        %3293 = vmatprep.subr.mxu0 0.0
        %3294 = vmatpush1.xpose.msra.mxu0 0.0
        %3295 = vmatprep.subr.mxu0 0.0
        %3296 = vmatpush1.xpose.msra.mxu0 0.0
        %3297 = vmatprep.subr.mxu0 0.0
        %3298 = vmatpush1.xpose.msra.mxu0 0.0
        %3299 = vmatprep.subr.mxu0 0.0
        %3300 = vmatpush1.xpose.msra.mxu0 0.0
        %3301 = vmatprep.subr.mxu0 0.0
        %3302 = vmatpush1.xpose.msra.mxu0 0.0
        %3303 = vmatprep.subr.mxu0 0.0
        %3304 = vmatpush1.xpose.msra.mxu0 0.0
        %3305 = vmatprep.subr.mxu0 0.0
        %3306 = vmatpush1.xpose.msra.mxu0 0.0
        %3307 = vmatprep.subr.mxu0 0.0
        %3308 = vmatpush1.xpose.msra.mxu0 0.0
        %3309 = vmatprep.subr.mxu0 0.0
        %3310 = vmatpush1.xpose.msra.mxu0 0.0
        %3311 = vmatprep.subr.mxu0 0.0
        %3312 = vmatpush1.xpose.msra.mxu0 0.0
        %3313 = vmatprep.subr.mxu0 0.0
        %3314 = vmatpush1.xpose.msra.mxu0 0.0
        %3315 = vmatprep.subr.mxu0 0.0
        %3316 = vmatpush1.xpose.msra.mxu0 0.0
        %3317 = vmatprep.subr.mxu0 0.0
        %3318 = vmatpush1.xpose.msra.mxu0 0.0
        %3319 = vmatprep.subr.mxu0 0.0
        %3320 = vmatpush1.xpose.msra.mxu0 0.0
        %3321 = vmatprep.subr.mxu0 0.0
        %3322 = vmatpush1.xpose.msra.mxu0 0.0
        %3323 = vmatprep.subr.mxu0 0.0
        %3324 = vmatpush1.xpose.msra.mxu0 0.0
        %3325 = vmatprep.subr.mxu0 0.0
        %3326 = vmatpush1.xpose.msra.mxu0 0.0
        %3327 = vmatprep.subr.mxu0 0.0
        %3328 = vmatpush1.xpose.msra.mxu0 0.0
        %3329 = vmatprep.mubr.f32.mxu0 0.0
        %v3330 = vand.u32 %v3034, 4294901760
        %v3331 = vsub.f32 %v3034, %v3330
        %v3332 = vand.u32 %v3331, 4294901760
        %3333 = vmatmul.mubr.f32.gmra.mrb[0].mxu0 %v3332
        %v3334 = vpop.f32.mrb[0].mxu0
        %v3335 = vadd.f32 %v3261, %v3334
        %v3336 = vpop.f32.mrb[0].mxu0
        %3337 = vdwg.mxu0
        %3338 = vmatprep.subr.mxu0 0.0
        %v3339 = vand.u32 %v3036, 4294901760
        %v3340 = vsub.f32 %v3036, %v3339
        %v3341 = vand.u32 %v3340, 4294901760
        %3342 = vmatpush1.xpose.msra.mxu0 %v3341
        %3343 = vmatprep.subr.mxu0 0.0
        %3344 = vmatpush1.xpose.msra.mxu0 0.0
        %3345 = vmatprep.subr.mxu0 0.0
        %3346 = vmatpush1.xpose.msra.mxu0 0.0
        %3347 = vmatprep.subr.mxu0 0.0
        %3348 = vmatpush1.xpose.msra.mxu0 0.0
        %3349 = vmatprep.subr.mxu0 0.0
        %3350 = vmatpush1.xpose.msra.mxu0 0.0
        %3351 = vmatprep.subr.mxu0 0.0
        %3352 = vmatpush1.xpose.msra.mxu0 0.0
        %3353 = vmatprep.subr.mxu0 0.0
        %3354 = vmatpush1.xpose.msra.mxu0 0.0
        %3355 = vmatprep.subr.mxu0 0.0
        %3356 = vmatpush1.xpose.msra.mxu0 0.0
        %3357 = vmatprep.subr.mxu0 0.0
        %3358 = vmatpush1.xpose.msra.mxu0 0.0
        %3359 = vmatprep.subr.mxu0 0.0
        %3360 = vmatpush1.xpose.msra.mxu0 0.0
        %3361 = vmatprep.subr.mxu0 0.0
        %3362 = vmatpush1.xpose.msra.mxu0 0.0
        %3363 = vmatprep.subr.mxu0 0.0
        %3364 = vmatpush1.xpose.msra.mxu0 0.0
        %3365 = vmatprep.subr.mxu0 0.0
        %3366 = vmatpush1.xpose.msra.mxu0 0.0
        %3367 = vmatprep.subr.mxu0 0.0
        %3368 = vmatpush1.xpose.msra.mxu0 0.0
        %3369 = vmatprep.subr.mxu0 0.0
        %3370 = vmatpush1.xpose.msra.mxu0 0.0
        %3371 = vmatprep.subr.mxu0 0.0
        %3372 = vmatpush1.xpose.msra.mxu0 0.0
        %3373 = vmatprep.subr.mxu0 0.0
        %3374 = vmatpush1.xpose.msra.mxu0 0.0
        %3375 = vmatprep.subr.mxu0 0.0
        %3376 = vmatpush1.xpose.msra.mxu0 0.0
        %3377 = vmatprep.subr.mxu0 0.0
        %3378 = vmatpush1.xpose.msra.mxu0 0.0
        %3379 = vmatprep.subr.mxu0 0.0
        %3380 = vmatpush1.xpose.msra.mxu0 0.0
        %3381 = vmatprep.subr.mxu0 0.0
        %3382 = vmatpush1.xpose.msra.mxu0 0.0
        %3383 = vmatprep.subr.mxu0 0.0
        %3384 = vmatpush1.xpose.msra.mxu0 0.0
        %3385 = vmatprep.subr.mxu0 0.0
        %3386 = vmatpush1.xpose.msra.mxu0 0.0
        %3387 = vmatprep.subr.mxu0 0.0
        %3388 = vmatpush1.xpose.msra.mxu0 0.0
        %3389 = vmatprep.subr.mxu0 0.0
        %3390 = vmatpush1.xpose.msra.mxu0 0.0
        %3391 = vmatprep.subr.mxu0 0.0
        %3392 = vmatpush1.xpose.msra.mxu0 0.0
        %3393 = vmatprep.subr.mxu0 0.0
        %3394 = vmatpush1.xpose.msra.mxu0 0.0
        %3395 = vmatprep.subr.mxu0 0.0
        %3396 = vmatpush1.xpose.msra.mxu0 0.0
        %3397 = vmatprep.subr.mxu0 0.0
        %3398 = vmatpush1.xpose.msra.mxu0 0.0
        %3399 = vmatprep.subr.mxu0 0.0
        %3400 = vmatpush1.xpose.msra.mxu0 0.0
        %3401 = vmatprep.subr.mxu0 0.0
        %3402 = vmatpush1.xpose.msra.mxu0 0.0
        %3403 = vmatprep.subr.mxu0 0.0
        %3404 = vmatpush1.xpose.msra.mxu0 0.0
        %3405 = vmatprep.mubr.f32.mxu0 0.0
        %v3406 = vand.u32 %v3034, 4294901760
        %3407 = vmatmul.mubr.f32.gmra.mrb[0].mxu0 %v3406
        %v3408 = vpop.f32.mrb[0].mxu0
        %v3409 = vadd.f32 %v3335, %v3408
        %v3410 = vpop.f32.mrb[0].mxu0
        %3411 = vdwg.mxu0
        %3412 = vmatprep.subr.mxu0 0.0
        %v3413 = vand.u32 %v3036, 4294901760
        %3414 = vmatpush1.xpose.msra.mxu0 %v3413
        %3415 = vmatprep.subr.mxu0 0.0
        %3416 = vmatpush1.xpose.msra.mxu0 0.0
        %3417 = vmatprep.subr.mxu0 0.0
        %3418 = vmatpush1.xpose.msra.mxu0 0.0
        %3419 = vmatprep.subr.mxu0 0.0
        %3420 = vmatpush1.xpose.msra.mxu0 0.0
        %3421 = vmatprep.subr.mxu0 0.0
        %3422 = vmatpush1.xpose.msra.mxu0 0.0
        %3423 = vmatprep.subr.mxu0 0.0
        %3424 = vmatpush1.xpose.msra.mxu0 0.0
        %3425 = vmatprep.subr.mxu0 0.0
        %3426 = vmatpush1.xpose.msra.mxu0 0.0
        %3427 = vmatprep.subr.mxu0 0.0
        %3428 = vmatpush1.xpose.msra.mxu0 0.0
        %3429 = vmatprep.subr.mxu0 0.0
        %3430 = vmatpush1.xpose.msra.mxu0 0.0
        %3431 = vmatprep.subr.mxu0 0.0
        %3432 = vmatpush1.xpose.msra.mxu0 0.0
        %3433 = vmatprep.subr.mxu0 0.0
        %3434 = vmatpush1.xpose.msra.mxu0 0.0
        %3435 = vmatprep.subr.mxu0 0.0
        %3436 = vmatpush1.xpose.msra.mxu0 0.0
        %3437 = vmatprep.subr.mxu0 0.0
        %3438 = vmatpush1.xpose.msra.mxu0 0.0
        %3439 = vmatprep.subr.mxu0 0.0
        %3440 = vmatpush1.xpose.msra.mxu0 0.0
        %3441 = vmatprep.subr.mxu0 0.0
        %3442 = vmatpush1.xpose.msra.mxu0 0.0
        %3443 = vmatprep.subr.mxu0 0.0
        %3444 = vmatpush1.xpose.msra.mxu0 0.0
        %3445 = vmatprep.subr.mxu0 0.0
        %3446 = vmatpush1.xpose.msra.mxu0 0.0
        %3447 = vmatprep.subr.mxu0 0.0
        %3448 = vmatpush1.xpose.msra.mxu0 0.0
        %3449 = vmatprep.subr.mxu0 0.0
        %3450 = vmatpush1.xpose.msra.mxu0 0.0
        %3451 = vmatprep.subr.mxu0 0.0
        %3452 = vmatpush1.xpose.msra.mxu0 0.0
        %3453 = vmatprep.subr.mxu0 0.0
        %3454 = vmatpush1.xpose.msra.mxu0 0.0
        %3455 = vmatprep.subr.mxu0 0.0
        %3456 = vmatpush1.xpose.msra.mxu0 0.0
        %3457 = vmatprep.subr.mxu0 0.0
        %3458 = vmatpush1.xpose.msra.mxu0 0.0
        %3459 = vmatprep.subr.mxu0 0.0
        %3460 = vmatpush1.xpose.msra.mxu0 0.0
        %3461 = vmatprep.subr.mxu0 0.0
        %3462 = vmatpush1.xpose.msra.mxu0 0.0
        %3463 = vmatprep.subr.mxu0 0.0
        %3464 = vmatpush1.xpose.msra.mxu0 0.0
        %3465 = vmatprep.subr.mxu0 0.0
        %3466 = vmatpush1.xpose.msra.mxu0 0.0
        %3467 = vmatprep.subr.mxu0 0.0
        %3468 = vmatpush1.xpose.msra.mxu0 0.0
        %3469 = vmatprep.subr.mxu0 0.0
        %3470 = vmatpush1.xpose.msra.mxu0 0.0
        %3471 = vmatprep.subr.mxu0 0.0
        %3472 = vmatpush1.xpose.msra.mxu0 0.0
        %3473 = vmatprep.subr.mxu0 0.0
        %3474 = vmatpush1.xpose.msra.mxu0 0.0
        %3475 = vmatprep.subr.mxu0 0.0
        %3476 = vmatpush1.xpose.msra.mxu0 0.0
        %3477 = vmatprep.mubr.f32.mxu0 0.0
        %v3478 = vand.u32 %v3034, 4294901760
        %3479 = vmatmul.mubr.f32.gmra.mrb[0].mxu0 %v3478
        %v3480 = vpop.f32.mrb[0].mxu0
        %v3481 = vadd.f32 %v3409, %v3480
        %v3482 = vpop.f32.mrb[0].mxu0
        %3483 = vdwg.mxu0
        %3484 = vrot.lane.b32.xlu0 %v752, 96
        %v3485 = vpop.permute.xlu0 %3484
        %v3487 = vsel %vm767, %v763, 0
        %v3489 = vsel %vm767, %v3485, 0
        %3491 = vmatprep.subr.mxu0 0.0
        %v3492 = vand.u32 %v3489, 4294901760
        %3493 = vmatpush1.xpose.msra.mxu0 %v3492
        %3494 = vmatprep.subr.mxu0 0.0
        %3495 = vmatpush1.xpose.msra.mxu0 0.0
        %3496 = vmatprep.subr.mxu0 0.0
        %3497 = vmatpush1.xpose.msra.mxu0 0.0
        %3498 = vmatprep.subr.mxu0 0.0
        %3499 = vmatpush1.xpose.msra.mxu0 0.0
        %3500 = vmatprep.subr.mxu0 0.0
        %3501 = vmatpush1.xpose.msra.mxu0 0.0
        %3502 = vmatprep.subr.mxu0 0.0
        %3503 = vmatpush1.xpose.msra.mxu0 0.0
        %3504 = vmatprep.subr.mxu0 0.0
        %3505 = vmatpush1.xpose.msra.mxu0 0.0
        %3506 = vmatprep.subr.mxu0 0.0
        %3507 = vmatpush1.xpose.msra.mxu0 0.0
        %3508 = vmatprep.subr.mxu0 0.0
        %3509 = vmatpush1.xpose.msra.mxu0 0.0
        %3510 = vmatprep.subr.mxu0 0.0
        %3511 = vmatpush1.xpose.msra.mxu0 0.0
        %3512 = vmatprep.subr.mxu0 0.0
        %3513 = vmatpush1.xpose.msra.mxu0 0.0
        %3514 = vmatprep.subr.mxu0 0.0
        %3515 = vmatpush1.xpose.msra.mxu0 0.0
        %3516 = vmatprep.subr.mxu0 0.0
        %3517 = vmatpush1.xpose.msra.mxu0 0.0
        %3518 = vmatprep.subr.mxu0 0.0
        %3519 = vmatpush1.xpose.msra.mxu0 0.0
        %3520 = vmatprep.subr.mxu0 0.0
        %3521 = vmatpush1.xpose.msra.mxu0 0.0
        %3522 = vmatprep.subr.mxu0 0.0
        %3523 = vmatpush1.xpose.msra.mxu0 0.0
        %3524 = vmatprep.subr.mxu0 0.0
        %3525 = vmatpush1.xpose.msra.mxu0 0.0
        %3526 = vmatprep.subr.mxu0 0.0
        %3527 = vmatpush1.xpose.msra.mxu0 0.0
        %3528 = vmatprep.subr.mxu0 0.0
        %3529 = vmatpush1.xpose.msra.mxu0 0.0
        %3530 = vmatprep.subr.mxu0 0.0
        %3531 = vmatpush1.xpose.msra.mxu0 0.0
        %3532 = vmatprep.subr.mxu0 0.0
        %3533 = vmatpush1.xpose.msra.mxu0 0.0
        %3534 = vmatprep.subr.mxu0 0.0
        %3535 = vmatpush1.xpose.msra.mxu0 0.0
        %3536 = vmatprep.subr.mxu0 0.0
        %3537 = vmatpush1.xpose.msra.mxu0 0.0
        %3538 = vmatprep.subr.mxu0 0.0
        %3539 = vmatpush1.xpose.msra.mxu0 0.0
        %3540 = vmatprep.subr.mxu0 0.0
        %3541 = vmatpush1.xpose.msra.mxu0 0.0
        %3542 = vmatprep.subr.mxu0 0.0
        %3543 = vmatpush1.xpose.msra.mxu0 0.0
        %3544 = vmatprep.subr.mxu0 0.0
        %3545 = vmatpush1.xpose.msra.mxu0 0.0
        %3546 = vmatprep.subr.mxu0 0.0
        %3547 = vmatpush1.xpose.msra.mxu0 0.0
        %3548 = vmatprep.subr.mxu0 0.0
        %3549 = vmatpush1.xpose.msra.mxu0 0.0
        %3550 = vmatprep.subr.mxu0 0.0
        %3551 = vmatpush1.xpose.msra.mxu0 0.0
        %3552 = vmatprep.subr.mxu0 0.0
        %3553 = vmatpush1.xpose.msra.mxu0 0.0
        %3554 = vmatprep.subr.mxu0 0.0
        %3555 = vmatpush1.xpose.msra.mxu0 0.0
        %3556 = vmatprep.mubr.f32.mxu0 0.0
        %v3557 = vand.u32 %v3487, 4294901760
        %v3558 = vsub.f32 %v3487, %v3557
        %v3559 = vand.u32 %v3558, 4294901760
        %v3560 = vsub.f32 %v3558, %v3559
        %v3561 = vand.u32 %v3560, 4294901760
        %3562 = vmatmul.mubr.f32.gmra.mrb[0].mxu0 %v3561
        %v3563 = vpop.f32.mrb[0].mxu0
        %v3564 = vadd.f32 0.0, %v3563
        %v3565 = vpop.f32.mrb[0].mxu0
        %3566 = vdwg.mxu0
        %3567 = vmatprep.subr.mxu0 0.0
        %v3568 = vand.u32 %v3489, 4294901760
        %v3569 = vsub.f32 %v3489, %v3568
        %v3570 = vand.u32 %v3569, 4294901760
        %v3571 = vsub.f32 %v3569, %v3570
        %v3572 = vand.u32 %v3571, 4294901760
        %3573 = vmatpush1.xpose.msra.mxu0 %v3572
        %3574 = vmatprep.subr.mxu0 0.0
        %3575 = vmatpush1.xpose.msra.mxu0 0.0
        %3576 = vmatprep.subr.mxu0 0.0
        %3577 = vmatpush1.xpose.msra.mxu0 0.0
        %3578 = vmatprep.subr.mxu0 0.0
        %3579 = vmatpush1.xpose.msra.mxu0 0.0
        %3580 = vmatprep.subr.mxu0 0.0
        %3581 = vmatpush1.xpose.msra.mxu0 0.0
        %3582 = vmatprep.subr.mxu0 0.0
        %3583 = vmatpush1.xpose.msra.mxu0 0.0
        %3584 = vmatprep.subr.mxu0 0.0
        %3585 = vmatpush1.xpose.msra.mxu0 0.0
        %3586 = vmatprep.subr.mxu0 0.0
        %3587 = vmatpush1.xpose.msra.mxu0 0.0
        %3588 = vmatprep.subr.mxu0 0.0
        %3589 = vmatpush1.xpose.msra.mxu0 0.0
        %3590 = vmatprep.subr.mxu0 0.0
        %3591 = vmatpush1.xpose.msra.mxu0 0.0
        %3592 = vmatprep.subr.mxu0 0.0
        %3593 = vmatpush1.xpose.msra.mxu0 0.0
        %3594 = vmatprep.subr.mxu0 0.0
        %3595 = vmatpush1.xpose.msra.mxu0 0.0
        %3596 = vmatprep.subr.mxu0 0.0
        %3597 = vmatpush1.xpose.msra.mxu0 0.0
        %3598 = vmatprep.subr.mxu0 0.0
        %3599 = vmatpush1.xpose.msra.mxu0 0.0
        %3600 = vmatprep.subr.mxu0 0.0
        %3601 = vmatpush1.xpose.msra.mxu0 0.0
        %3602 = vmatprep.subr.mxu0 0.0
        %3603 = vmatpush1.xpose.msra.mxu0 0.0
        %3604 = vmatprep.subr.mxu0 0.0
        %3605 = vmatpush1.xpose.msra.mxu0 0.0
        %3606 = vmatprep.subr.mxu0 0.0
        %3607 = vmatpush1.xpose.msra.mxu0 0.0
        %3608 = vmatprep.subr.mxu0 0.0
        %3609 = vmatpush1.xpose.msra.mxu0 0.0
        %3610 = vmatprep.subr.mxu0 0.0
        %3611 = vmatpush1.xpose.msra.mxu0 0.0
        %3612 = vmatprep.subr.mxu0 0.0
        %3613 = vmatpush1.xpose.msra.mxu0 0.0
        %3614 = vmatprep.subr.mxu0 0.0
        %3615 = vmatpush1.xpose.msra.mxu0 0.0
        %3616 = vmatprep.subr.mxu0 0.0
        %3617 = vmatpush1.xpose.msra.mxu0 0.0
        %3618 = vmatprep.subr.mxu0 0.0
        %3619 = vmatpush1.xpose.msra.mxu0 0.0
        %3620 = vmatprep.subr.mxu0 0.0
        %3621 = vmatpush1.xpose.msra.mxu0 0.0
        %3622 = vmatprep.subr.mxu0 0.0
        %3623 = vmatpush1.xpose.msra.mxu0 0.0
        %3624 = vmatprep.subr.mxu0 0.0
        %3625 = vmatpush1.xpose.msra.mxu0 0.0
        %3626 = vmatprep.subr.mxu0 0.0
        %3627 = vmatpush1.xpose.msra.mxu0 0.0
        %3628 = vmatprep.subr.mxu0 0.0
        %3629 = vmatpush1.xpose.msra.mxu0 0.0
        %3630 = vmatprep.subr.mxu0 0.0
        %3631 = vmatpush1.xpose.msra.mxu0 0.0
        %3632 = vmatprep.subr.mxu0 0.0
        %3633 = vmatpush1.xpose.msra.mxu0 0.0
        %3634 = vmatprep.subr.mxu0 0.0
        %3635 = vmatpush1.xpose.msra.mxu0 0.0
        %3636 = vmatprep.mubr.f32.mxu0 0.0
        %v3637 = vand.u32 %v3487, 4294901760
        %3638 = vmatmul.mubr.f32.gmra.mrb[0].mxu0 %v3637
        %v3639 = vpop.f32.mrb[0].mxu0
        %v3640 = vadd.f32 %v3564, %v3639
        %v3641 = vpop.f32.mrb[0].mxu0
        %3642 = vdwg.mxu0
        %3643 = vmatprep.subr.mxu0 0.0
        %v3644 = vand.u32 %v3489, 4294901760
        %v3645 = vsub.f32 %v3489, %v3644
        %3646 = vmatpush1.xpose.msra.mxu0 %v3645
        %3647 = vmatprep.subr.mxu0 0.0
        %3648 = vmatpush1.xpose.msra.mxu0 0.0
        %3649 = vmatprep.subr.mxu0 0.0
        %3650 = vmatpush1.xpose.msra.mxu0 0.0
        %3651 = vmatprep.subr.mxu0 0.0
        %3652 = vmatpush1.xpose.msra.mxu0 0.0
        %3653 = vmatprep.subr.mxu0 0.0
        %3654 = vmatpush1.xpose.msra.mxu0 0.0
        %3655 = vmatprep.subr.mxu0 0.0
        %3656 = vmatpush1.xpose.msra.mxu0 0.0
        %3657 = vmatprep.subr.mxu0 0.0
        %3658 = vmatpush1.xpose.msra.mxu0 0.0
        %3659 = vmatprep.subr.mxu0 0.0
        %3660 = vmatpush1.xpose.msra.mxu0 0.0
        %3661 = vmatprep.subr.mxu0 0.0
        %3662 = vmatpush1.xpose.msra.mxu0 0.0
        %3663 = vmatprep.subr.mxu0 0.0
        %3664 = vmatpush1.xpose.msra.mxu0 0.0
        %3665 = vmatprep.subr.mxu0 0.0
        %3666 = vmatpush1.xpose.msra.mxu0 0.0
        %3667 = vmatprep.subr.mxu0 0.0
        %3668 = vmatpush1.xpose.msra.mxu0 0.0
        %3669 = vmatprep.subr.mxu0 0.0
        %3670 = vmatpush1.xpose.msra.mxu0 0.0
        %3671 = vmatprep.subr.mxu0 0.0
        %3672 = vmatpush1.xpose.msra.mxu0 0.0
        %3673 = vmatprep.subr.mxu0 0.0
        %3674 = vmatpush1.xpose.msra.mxu0 0.0
        %3675 = vmatprep.subr.mxu0 0.0
        %3676 = vmatpush1.xpose.msra.mxu0 0.0
        %3677 = vmatprep.subr.mxu0 0.0
        %3678 = vmatpush1.xpose.msra.mxu0 0.0
        %3679 = vmatprep.subr.mxu0 0.0
        %3680 = vmatpush1.xpose.msra.mxu0 0.0
        %3681 = vmatprep.subr.mxu0 0.0
        %3682 = vmatpush1.xpose.msra.mxu0 0.0
        %3683 = vmatprep.subr.mxu0 0.0
        %3684 = vmatpush1.xpose.msra.mxu0 0.0
        %3685 = vmatprep.subr.mxu0 0.0
        %3686 = vmatpush1.xpose.msra.mxu0 0.0
        %3687 = vmatprep.subr.mxu0 0.0
        %3688 = vmatpush1.xpose.msra.mxu0 0.0
        %3689 = vmatprep.subr.mxu0 0.0
        %3690 = vmatpush1.xpose.msra.mxu0 0.0
        %3691 = vmatprep.subr.mxu0 0.0
        %3692 = vmatpush1.xpose.msra.mxu0 0.0
        %3693 = vmatprep.subr.mxu0 0.0
        %3694 = vmatpush1.xpose.msra.mxu0 0.0
        %3695 = vmatprep.subr.mxu0 0.0
        %3696 = vmatpush1.xpose.msra.mxu0 0.0
        %3697 = vmatprep.subr.mxu0 0.0
        %3698 = vmatpush1.xpose.msra.mxu0 0.0
        %3699 = vmatprep.subr.mxu0 0.0
        %3700 = vmatpush1.xpose.msra.mxu0 0.0
        %3701 = vmatprep.subr.mxu0 0.0
        %3702 = vmatpush1.xpose.msra.mxu0 0.0
        %3703 = vmatprep.subr.mxu0 0.0
        %3704 = vmatpush1.xpose.msra.mxu0 0.0
        %3705 = vmatprep.subr.mxu0 0.0
        %3706 = vmatpush1.xpose.msra.mxu0 0.0
        %3707 = vmatprep.subr.mxu0 0.0
        %3708 = vmatpush1.xpose.msra.mxu0 0.0
        %3709 = vmatprep.mubr.f32.mxu0 0.0
        %v3710 = vand.u32 %v3487, 4294901760
        %v3711 = vsub.f32 %v3487, %v3710
        %3712 = vmatmul.mubr.f32.gmra.mrb[0].mxu0 %v3711
        %v3713 = vpop.f32.mrb[0].mxu0
        %v3714 = vadd.f32 %v3640, %v3713
        %v3715 = vpop.f32.mrb[0].mxu0
        %3716 = vdwg.mxu0
        %3717 = vmatprep.subr.mxu0 0.0
        %v3718 = vand.u32 %v3489, 4294901760
        %3719 = vmatpush1.xpose.msra.mxu0 %v3718
        %3720 = vmatprep.subr.mxu0 0.0
        %3721 = vmatpush1.xpose.msra.mxu0 0.0
        %3722 = vmatprep.subr.mxu0 0.0
        %3723 = vmatpush1.xpose.msra.mxu0 0.0
        %3724 = vmatprep.subr.mxu0 0.0
        %3725 = vmatpush1.xpose.msra.mxu0 0.0
        %3726 = vmatprep.subr.mxu0 0.0
        %3727 = vmatpush1.xpose.msra.mxu0 0.0
        %3728 = vmatprep.subr.mxu0 0.0
        %3729 = vmatpush1.xpose.msra.mxu0 0.0
        %3730 = vmatprep.subr.mxu0 0.0
        %3731 = vmatpush1.xpose.msra.mxu0 0.0
        %3732 = vmatprep.subr.mxu0 0.0
        %3733 = vmatpush1.xpose.msra.mxu0 0.0
        %3734 = vmatprep.subr.mxu0 0.0
        %3735 = vmatpush1.xpose.msra.mxu0 0.0
        %3736 = vmatprep.subr.mxu0 0.0
        %3737 = vmatpush1.xpose.msra.mxu0 0.0
        %3738 = vmatprep.subr.mxu0 0.0
        %3739 = vmatpush1.xpose.msra.mxu0 0.0
        %3740 = vmatprep.subr.mxu0 0.0
        %3741 = vmatpush1.xpose.msra.mxu0 0.0
        %3742 = vmatprep.subr.mxu0 0.0
        %3743 = vmatpush1.xpose.msra.mxu0 0.0
        %3744 = vmatprep.subr.mxu0 0.0
        %3745 = vmatpush1.xpose.msra.mxu0 0.0
        %3746 = vmatprep.subr.mxu0 0.0
        %3747 = vmatpush1.xpose.msra.mxu0 0.0
        %3748 = vmatprep.subr.mxu0 0.0
        %3749 = vmatpush1.xpose.msra.mxu0 0.0
        %3750 = vmatprep.subr.mxu0 0.0
        %3751 = vmatpush1.xpose.msra.mxu0 0.0
        %3752 = vmatprep.subr.mxu0 0.0
        %3753 = vmatpush1.xpose.msra.mxu0 0.0
        %3754 = vmatprep.subr.mxu0 0.0
        %3755 = vmatpush1.xpose.msra.mxu0 0.0
        %3756 = vmatprep.subr.mxu0 0.0
        %3757 = vmatpush1.xpose.msra.mxu0 0.0
        %3758 = vmatprep.subr.mxu0 0.0
        %3759 = vmatpush1.xpose.msra.mxu0 0.0
        %3760 = vmatprep.subr.mxu0 0.0
        %3761 = vmatpush1.xpose.msra.mxu0 0.0
        %3762 = vmatprep.subr.mxu0 0.0
        %3763 = vmatpush1.xpose.msra.mxu0 0.0
        %3764 = vmatprep.subr.mxu0 0.0
        %3765 = vmatpush1.xpose.msra.mxu0 0.0
        %3766 = vmatprep.subr.mxu0 0.0
        %3767 = vmatpush1.xpose.msra.mxu0 0.0
        %3768 = vmatprep.subr.mxu0 0.0
        %3769 = vmatpush1.xpose.msra.mxu0 0.0
        %3770 = vmatprep.subr.mxu0 0.0
        %3771 = vmatpush1.xpose.msra.mxu0 0.0
        %3772 = vmatprep.subr.mxu0 0.0
        %3773 = vmatpush1.xpose.msra.mxu0 0.0
        %3774 = vmatprep.subr.mxu0 0.0
        %3775 = vmatpush1.xpose.msra.mxu0 0.0
        %3776 = vmatprep.subr.mxu0 0.0
        %3777 = vmatpush1.xpose.msra.mxu0 0.0
        %3778 = vmatprep.subr.mxu0 0.0
        %3779 = vmatpush1.xpose.msra.mxu0 0.0
        %3780 = vmatprep.subr.mxu0 0.0
        %3781 = vmatpush1.xpose.msra.mxu0 0.0
        %3782 = vmatprep.mubr.f32.mxu0 0.0
        %v3783 = vand.u32 %v3487, 4294901760
        %v3784 = vsub.f32 %v3487, %v3783
        %v3785 = vand.u32 %v3784, 4294901760
        %3786 = vmatmul.mubr.f32.gmra.mrb[0].mxu0 %v3785
        %v3787 = vpop.f32.mrb[0].mxu0
        %v3788 = vadd.f32 %v3714, %v3787
        %v3789 = vpop.f32.mrb[0].mxu0
        %3790 = vdwg.mxu0
        %3791 = vmatprep.subr.mxu0 0.0
        %v3792 = vand.u32 %v3489, 4294901760
        %v3793 = vsub.f32 %v3489, %v3792
        %v3794 = vand.u32 %v3793, 4294901760
        %3795 = vmatpush1.xpose.msra.mxu0 %v3794
        %3796 = vmatprep.subr.mxu0 0.0
        %3797 = vmatpush1.xpose.msra.mxu0 0.0
        %3798 = vmatprep.subr.mxu0 0.0
        %3799 = vmatpush1.xpose.msra.mxu0 0.0
        %3800 = vmatprep.subr.mxu0 0.0
        %3801 = vmatpush1.xpose.msra.mxu0 0.0
        %3802 = vmatprep.subr.mxu0 0.0
        %3803 = vmatpush1.xpose.msra.mxu0 0.0
        %3804 = vmatprep.subr.mxu0 0.0
        %3805 = vmatpush1.xpose.msra.mxu0 0.0
        %3806 = vmatprep.subr.mxu0 0.0
        %3807 = vmatpush1.xpose.msra.mxu0 0.0
        %3808 = vmatprep.subr.mxu0 0.0
        %3809 = vmatpush1.xpose.msra.mxu0 0.0
        %3810 = vmatprep.subr.mxu0 0.0
        %3811 = vmatpush1.xpose.msra.mxu0 0.0
        %3812 = vmatprep.subr.mxu0 0.0
        %3813 = vmatpush1.xpose.msra.mxu0 0.0
        %3814 = vmatprep.subr.mxu0 0.0
        %3815 = vmatpush1.xpose.msra.mxu0 0.0
        %3816 = vmatprep.subr.mxu0 0.0
        %3817 = vmatpush1.xpose.msra.mxu0 0.0
        %3818 = vmatprep.subr.mxu0 0.0
        %3819 = vmatpush1.xpose.msra.mxu0 0.0
        %3820 = vmatprep.subr.mxu0 0.0
        %3821 = vmatpush1.xpose.msra.mxu0 0.0
        %3822 = vmatprep.subr.mxu0 0.0
        %3823 = vmatpush1.xpose.msra.mxu0 0.0
        %3824 = vmatprep.subr.mxu0 0.0
        %3825 = vmatpush1.xpose.msra.mxu0 0.0
        %3826 = vmatprep.subr.mxu0 0.0
        %3827 = vmatpush1.xpose.msra.mxu0 0.0
        %3828 = vmatprep.subr.mxu0 0.0
        %3829 = vmatpush1.xpose.msra.mxu0 0.0
        %3830 = vmatprep.subr.mxu0 0.0
        %3831 = vmatpush1.xpose.msra.mxu0 0.0
        %3832 = vmatprep.subr.mxu0 0.0
        %3833 = vmatpush1.xpose.msra.mxu0 0.0
        %3834 = vmatprep.subr.mxu0 0.0
        %3835 = vmatpush1.xpose.msra.mxu0 0.0
        %3836 = vmatprep.subr.mxu0 0.0
        %3837 = vmatpush1.xpose.msra.mxu0 0.0
        %3838 = vmatprep.subr.mxu0 0.0
        %3839 = vmatpush1.xpose.msra.mxu0 0.0
        %3840 = vmatprep.subr.mxu0 0.0
        %3841 = vmatpush1.xpose.msra.mxu0 0.0
        %3842 = vmatprep.subr.mxu0 0.0
        %3843 = vmatpush1.xpose.msra.mxu0 0.0
        %3844 = vmatprep.subr.mxu0 0.0
        %3845 = vmatpush1.xpose.msra.mxu0 0.0
        %3846 = vmatprep.subr.mxu0 0.0
        %3847 = vmatpush1.xpose.msra.mxu0 0.0
        %3848 = vmatprep.subr.mxu0 0.0
        %3849 = vmatpush1.xpose.msra.mxu0 0.0
        %3850 = vmatprep.subr.mxu0 0.0
        %3851 = vmatpush1.xpose.msra.mxu0 0.0
        %3852 = vmatprep.subr.mxu0 0.0
        %3853 = vmatpush1.xpose.msra.mxu0 0.0
        %3854 = vmatprep.subr.mxu0 0.0
        %3855 = vmatpush1.xpose.msra.mxu0 0.0
        %3856 = vmatprep.subr.mxu0 0.0
        %3857 = vmatpush1.xpose.msra.mxu0 0.0
        %3858 = vmatprep.mubr.f32.mxu0 0.0
        %v3859 = vand.u32 %v3487, 4294901760
        %3860 = vmatmul.mubr.f32.gmra.mrb[0].mxu0 %v3859
        %v3861 = vpop.f32.mrb[0].mxu0
        %v3862 = vadd.f32 %v3788, %v3861
        %v3863 = vpop.f32.mrb[0].mxu0
        %3864 = vdwg.mxu0
        %3865 = vmatprep.subr.mxu0 0.0
        %v3866 = vand.u32 %v3489, 4294901760
        %3867 = vmatpush1.xpose.msra.mxu0 %v3866
        %3868 = vmatprep.subr.mxu0 0.0
        %3869 = vmatpush1.xpose.msra.mxu0 0.0
        %3870 = vmatprep.subr.mxu0 0.0
        %3871 = vmatpush1.xpose.msra.mxu0 0.0
        %3872 = vmatprep.subr.mxu0 0.0
        %3873 = vmatpush1.xpose.msra.mxu0 0.0
        %3874 = vmatprep.subr.mxu0 0.0
        %3875 = vmatpush1.xpose.msra.mxu0 0.0
        %3876 = vmatprep.subr.mxu0 0.0
        %3877 = vmatpush1.xpose.msra.mxu0 0.0
        %3878 = vmatprep.subr.mxu0 0.0
        %3879 = vmatpush1.xpose.msra.mxu0 0.0
        %3880 = vmatprep.subr.mxu0 0.0
        %3881 = vmatpush1.xpose.msra.mxu0 0.0
        %3882 = vmatprep.subr.mxu0 0.0
        %3883 = vmatpush1.xpose.msra.mxu0 0.0
        %3884 = vmatprep.subr.mxu0 0.0
        %3885 = vmatpush1.xpose.msra.mxu0 0.0
        %3886 = vmatprep.subr.mxu0 0.0
        %3887 = vmatpush1.xpose.msra.mxu0 0.0
        %3888 = vmatprep.subr.mxu0 0.0
        %3889 = vmatpush1.xpose.msra.mxu0 0.0
        %3890 = vmatprep.subr.mxu0 0.0
        %3891 = vmatpush1.xpose.msra.mxu0 0.0
        %3892 = vmatprep.subr.mxu0 0.0
        %3893 = vmatpush1.xpose.msra.mxu0 0.0
        %3894 = vmatprep.subr.mxu0 0.0
        %3895 = vmatpush1.xpose.msra.mxu0 0.0
        %3896 = vmatprep.subr.mxu0 0.0
        %3897 = vmatpush1.xpose.msra.mxu0 0.0
        %3898 = vmatprep.subr.mxu0 0.0
        %3899 = vmatpush1.xpose.msra.mxu0 0.0
        %3900 = vmatprep.subr.mxu0 0.0
        %3901 = vmatpush1.xpose.msra.mxu0 0.0
        %3902 = vmatprep.subr.mxu0 0.0
        %3903 = vmatpush1.xpose.msra.mxu0 0.0
        %3904 = vmatprep.subr.mxu0 0.0
        %3905 = vmatpush1.xpose.msra.mxu0 0.0
        %3906 = vmatprep.subr.mxu0 0.0
        %3907 = vmatpush1.xpose.msra.mxu0 0.0
        %3908 = vmatprep.subr.mxu0 0.0
        %3909 = vmatpush1.xpose.msra.mxu0 0.0
        %3910 = vmatprep.subr.mxu0 0.0
        %3911 = vmatpush1.xpose.msra.mxu0 0.0
        %3912 = vmatprep.subr.mxu0 0.0
        %3913 = vmatpush1.xpose.msra.mxu0 0.0
        %3914 = vmatprep.subr.mxu0 0.0
        %3915 = vmatpush1.xpose.msra.mxu0 0.0
        %3916 = vmatprep.subr.mxu0 0.0
        %3917 = vmatpush1.xpose.msra.mxu0 0.0
        %3918 = vmatprep.subr.mxu0 0.0
        %3919 = vmatpush1.xpose.msra.mxu0 0.0
        %3920 = vmatprep.subr.mxu0 0.0
        %3921 = vmatpush1.xpose.msra.mxu0 0.0
        %3922 = vmatprep.subr.mxu0 0.0
        %3923 = vmatpush1.xpose.msra.mxu0 0.0
        %3924 = vmatprep.subr.mxu0 0.0
        %3925 = vmatpush1.xpose.msra.mxu0 0.0
        %3926 = vmatprep.subr.mxu0 0.0
        %3927 = vmatpush1.xpose.msra.mxu0 0.0
        %3928 = vmatprep.subr.mxu0 0.0
        %3929 = vmatpush1.xpose.msra.mxu0 0.0
        %3930 = vmatprep.mubr.f32.mxu0 0.0
        %v3931 = vand.u32 %v3487, 4294901760
        %3932 = vmatmul.mubr.f32.gmra.mrb[0].mxu0 %v3931
        %v3933 = vpop.f32.mrb[0].mxu0
        %v3934 = vadd.f32 %v3862, %v3933
        %v3935 = vpop.f32.mrb[0].mxu0
        %3936 = vdwg.mxu0
        %3937 = vrot.lane.b32.xlu0 %v754, 96
        %v3938 = vpop.permute.xlu0 %3937
        %v3940 = vsel %vm767, %v764, 0
        %v3942 = vsel %vm767, %v3938, 0
        %3944 = vmatprep.subr.mxu0 0.0
        %v3945 = vand.u32 %v3942, 4294901760
        %3946 = vmatpush1.xpose.msra.mxu0 %v3945
        %3947 = vmatprep.subr.mxu0 0.0
        %3948 = vmatpush1.xpose.msra.mxu0 0.0
        %3949 = vmatprep.subr.mxu0 0.0
        %3950 = vmatpush1.xpose.msra.mxu0 0.0
        %3951 = vmatprep.subr.mxu0 0.0
        %3952 = vmatpush1.xpose.msra.mxu0 0.0
        %3953 = vmatprep.subr.mxu0 0.0
        %3954 = vmatpush1.xpose.msra.mxu0 0.0
        %3955 = vmatprep.subr.mxu0 0.0
        %3956 = vmatpush1.xpose.msra.mxu0 0.0
        %3957 = vmatprep.subr.mxu0 0.0
        %3958 = vmatpush1.xpose.msra.mxu0 0.0
        %3959 = vmatprep.subr.mxu0 0.0
        %3960 = vmatpush1.xpose.msra.mxu0 0.0
        %3961 = vmatprep.subr.mxu0 0.0
        %3962 = vmatpush1.xpose.msra.mxu0 0.0
        %3963 = vmatprep.subr.mxu0 0.0
        %3964 = vmatpush1.xpose.msra.mxu0 0.0
        %3965 = vmatprep.subr.mxu0 0.0
        %3966 = vmatpush1.xpose.msra.mxu0 0.0
        %3967 = vmatprep.subr.mxu0 0.0
        %3968 = vmatpush1.xpose.msra.mxu0 0.0
        %3969 = vmatprep.subr.mxu0 0.0
        %3970 = vmatpush1.xpose.msra.mxu0 0.0
        %3971 = vmatprep.subr.mxu0 0.0
        %3972 = vmatpush1.xpose.msra.mxu0 0.0
        %3973 = vmatprep.subr.mxu0 0.0
        %3974 = vmatpush1.xpose.msra.mxu0 0.0
        %3975 = vmatprep.subr.mxu0 0.0
        %3976 = vmatpush1.xpose.msra.mxu0 0.0
        %3977 = vmatprep.subr.mxu0 0.0
        %3978 = vmatpush1.xpose.msra.mxu0 0.0
        %3979 = vmatprep.subr.mxu0 0.0
        %3980 = vmatpush1.xpose.msra.mxu0 0.0
        %3981 = vmatprep.subr.mxu0 0.0
        %3982 = vmatpush1.xpose.msra.mxu0 0.0
        %3983 = vmatprep.subr.mxu0 0.0
        %3984 = vmatpush1.xpose.msra.mxu0 0.0
        %3985 = vmatprep.subr.mxu0 0.0
        %3986 = vmatpush1.xpose.msra.mxu0 0.0
        %3987 = vmatprep.subr.mxu0 0.0
        %3988 = vmatpush1.xpose.msra.mxu0 0.0
        %3989 = vmatprep.subr.mxu0 0.0
        %3990 = vmatpush1.xpose.msra.mxu0 0.0
        %3991 = vmatprep.subr.mxu0 0.0
        %3992 = vmatpush1.xpose.msra.mxu0 0.0
        %3993 = vmatprep.subr.mxu0 0.0
        %3994 = vmatpush1.xpose.msra.mxu0 0.0
        %3995 = vmatprep.subr.mxu0 0.0
        %3996 = vmatpush1.xpose.msra.mxu0 0.0
        %3997 = vmatprep.subr.mxu0 0.0
        %3998 = vmatpush1.xpose.msra.mxu0 0.0
        %3999 = vmatprep.subr.mxu0 0.0
        %4000 = vmatpush1.xpose.msra.mxu0 0.0
        %4001 = vmatprep.subr.mxu0 0.0
        %4002 = vmatpush1.xpose.msra.mxu0 0.0
        %4003 = vmatprep.subr.mxu0 0.0
        %4004 = vmatpush1.xpose.msra.mxu0 0.0
        %4005 = vmatprep.subr.mxu0 0.0
        %4006 = vmatpush1.xpose.msra.mxu0 0.0
        %4007 = vmatprep.subr.mxu0 0.0
        %4008 = vmatpush1.xpose.msra.mxu0 0.0
        %4009 = vmatprep.mubr.f32.mxu0 0.0
        %v4010 = vand.u32 %v3940, 4294901760
        %v4011 = vsub.f32 %v3940, %v4010
        %v4012 = vand.u32 %v4011, 4294901760
        %v4013 = vsub.f32 %v4011, %v4012
        %v4014 = vand.u32 %v4013, 4294901760
        %4015 = vmatmul.mubr.f32.gmra.mrb[0].mxu0 %v4014
        %v4016 = vpop.f32.mrb[0].mxu0
        %v4017 = vadd.f32 0.0, %v4016
        %v4018 = vpop.f32.mrb[0].mxu0
        %4019 = vdwg.mxu0
        %4020 = vmatprep.subr.mxu0 0.0
        %v4021 = vand.u32 %v3942, 4294901760
        %v4022 = vsub.f32 %v3942, %v4021
        %v4023 = vand.u32 %v4022, 4294901760
        %v4024 = vsub.f32 %v4022, %v4023
        %v4025 = vand.u32 %v4024, 4294901760
        %4026 = vmatpush1.xpose.msra.mxu0 %v4025
        %4027 = vmatprep.subr.mxu0 0.0
        %4028 = vmatpush1.xpose.msra.mxu0 0.0
        %4029 = vmatprep.subr.mxu0 0.0
        %4030 = vmatpush1.xpose.msra.mxu0 0.0
        %4031 = vmatprep.subr.mxu0 0.0
        %4032 = vmatpush1.xpose.msra.mxu0 0.0
        %4033 = vmatprep.subr.mxu0 0.0
        %4034 = vmatpush1.xpose.msra.mxu0 0.0
        %4035 = vmatprep.subr.mxu0 0.0
        %4036 = vmatpush1.xpose.msra.mxu0 0.0
        %4037 = vmatprep.subr.mxu0 0.0
        %4038 = vmatpush1.xpose.msra.mxu0 0.0
        %4039 = vmatprep.subr.mxu0 0.0
        %4040 = vmatpush1.xpose.msra.mxu0 0.0
        %4041 = vmatprep.subr.mxu0 0.0
        %4042 = vmatpush1.xpose.msra.mxu0 0.0
        %4043 = vmatprep.subr.mxu0 0.0
        %4044 = vmatpush1.xpose.msra.mxu0 0.0
        %4045 = vmatprep.subr.mxu0 0.0
        %4046 = vmatpush1.xpose.msra.mxu0 0.0
        %4047 = vmatprep.subr.mxu0 0.0
        %4048 = vmatpush1.xpose.msra.mxu0 0.0
        %4049 = vmatprep.subr.mxu0 0.0
        %4050 = vmatpush1.xpose.msra.mxu0 0.0
        %4051 = vmatprep.subr.mxu0 0.0
        %4052 = vmatpush1.xpose.msra.mxu0 0.0
        %4053 = vmatprep.subr.mxu0 0.0
        %4054 = vmatpush1.xpose.msra.mxu0 0.0
        %4055 = vmatprep.subr.mxu0 0.0
        %4056 = vmatpush1.xpose.msra.mxu0 0.0
        %4057 = vmatprep.subr.mxu0 0.0
        %4058 = vmatpush1.xpose.msra.mxu0 0.0
        %4059 = vmatprep.subr.mxu0 0.0
        %4060 = vmatpush1.xpose.msra.mxu0 0.0
        %4061 = vmatprep.subr.mxu0 0.0
        %4062 = vmatpush1.xpose.msra.mxu0 0.0
        %4063 = vmatprep.subr.mxu0 0.0
        %4064 = vmatpush1.xpose.msra.mxu0 0.0
        %4065 = vmatprep.subr.mxu0 0.0
        %4066 = vmatpush1.xpose.msra.mxu0 0.0
        %4067 = vmatprep.subr.mxu0 0.0
        %4068 = vmatpush1.xpose.msra.mxu0 0.0
        %4069 = vmatprep.subr.mxu0 0.0
        %4070 = vmatpush1.xpose.msra.mxu0 0.0
        %4071 = vmatprep.subr.mxu0 0.0
        %4072 = vmatpush1.xpose.msra.mxu0 0.0
        %4073 = vmatprep.subr.mxu0 0.0
        %4074 = vmatpush1.xpose.msra.mxu0 0.0
        %4075 = vmatprep.subr.mxu0 0.0
        %4076 = vmatpush1.xpose.msra.mxu0 0.0
        %4077 = vmatprep.subr.mxu0 0.0
        %4078 = vmatpush1.xpose.msra.mxu0 0.0
        %4079 = vmatprep.subr.mxu0 0.0
        %4080 = vmatpush1.xpose.msra.mxu0 0.0
        %4081 = vmatprep.subr.mxu0 0.0
        %4082 = vmatpush1.xpose.msra.mxu0 0.0
        %4083 = vmatprep.subr.mxu0 0.0
        %4084 = vmatpush1.xpose.msra.mxu0 0.0
        %4085 = vmatprep.subr.mxu0 0.0
        %4086 = vmatpush1.xpose.msra.mxu0 0.0
        %4087 = vmatprep.subr.mxu0 0.0
        %4088 = vmatpush1.xpose.msra.mxu0 0.0
        %4089 = vmatprep.mubr.f32.mxu0 0.0
        %v4090 = vand.u32 %v3940, 4294901760
        %4091 = vmatmul.mubr.f32.gmra.mrb[0].mxu0 %v4090
        %v4092 = vpop.f32.mrb[0].mxu0
        %v4093 = vadd.f32 %v4017, %v4092
        %v4094 = vpop.f32.mrb[0].mxu0
        %4095 = vdwg.mxu0
        %4096 = vmatprep.subr.mxu0 0.0
        %v4097 = vand.u32 %v3942, 4294901760
        %v4098 = vsub.f32 %v3942, %v4097
        %4099 = vmatpush1.xpose.msra.mxu0 %v4098
        %4100 = vmatprep.subr.mxu0 0.0
        %4101 = vmatpush1.xpose.msra.mxu0 0.0
        %4102 = vmatprep.subr.mxu0 0.0
        %4103 = vmatpush1.xpose.msra.mxu0 0.0
        %4104 = vmatprep.subr.mxu0 0.0
        %4105 = vmatpush1.xpose.msra.mxu0 0.0
        %4106 = vmatprep.subr.mxu0 0.0
        %4107 = vmatpush1.xpose.msra.mxu0 0.0
        %4108 = vmatprep.subr.mxu0 0.0
        %4109 = vmatpush1.xpose.msra.mxu0 0.0
        %4110 = vmatprep.subr.mxu0 0.0
        %4111 = vmatpush1.xpose.msra.mxu0 0.0
        %4112 = vmatprep.subr.mxu0 0.0
        %4113 = vmatpush1.xpose.msra.mxu0 0.0
        %4114 = vmatprep.subr.mxu0 0.0
        %4115 = vmatpush1.xpose.msra.mxu0 0.0
        %4116 = vmatprep.subr.mxu0 0.0
        %4117 = vmatpush1.xpose.msra.mxu0 0.0
        %4118 = vmatprep.subr.mxu0 0.0
        %4119 = vmatpush1.xpose.msra.mxu0 0.0
        %4120 = vmatprep.subr.mxu0 0.0
        %4121 = vmatpush1.xpose.msra.mxu0 0.0
        %4122 = vmatprep.subr.mxu0 0.0
        %4123 = vmatpush1.xpose.msra.mxu0 0.0
        %4124 = vmatprep.subr.mxu0 0.0
        %4125 = vmatpush1.xpose.msra.mxu0 0.0
        %4126 = vmatprep.subr.mxu0 0.0
        %4127 = vmatpush1.xpose.msra.mxu0 0.0
        %4128 = vmatprep.subr.mxu0 0.0
        %4129 = vmatpush1.xpose.msra.mxu0 0.0
        %4130 = vmatprep.subr.mxu0 0.0
        %4131 = vmatpush1.xpose.msra.mxu0 0.0
        %4132 = vmatprep.subr.mxu0 0.0
        %4133 = vmatpush1.xpose.msra.mxu0 0.0
        %4134 = vmatprep.subr.mxu0 0.0
        %4135 = vmatpush1.xpose.msra.mxu0 0.0
        %4136 = vmatprep.subr.mxu0 0.0
        %4137 = vmatpush1.xpose.msra.mxu0 0.0
        %4138 = vmatprep.subr.mxu0 0.0
        %4139 = vmatpush1.xpose.msra.mxu0 0.0
        %4140 = vmatprep.subr.mxu0 0.0
        %4141 = vmatpush1.xpose.msra.mxu0 0.0
        %4142 = vmatprep.subr.mxu0 0.0
        %4143 = vmatpush1.xpose.msra.mxu0 0.0
        %4144 = vmatprep.subr.mxu0 0.0
        %4145 = vmatpush1.xpose.msra.mxu0 0.0
        %4146 = vmatprep.subr.mxu0 0.0
        %4147 = vmatpush1.xpose.msra.mxu0 0.0
        %4148 = vmatprep.subr.mxu0 0.0
        %4149 = vmatpush1.xpose.msra.mxu0 0.0
        %4150 = vmatprep.subr.mxu0 0.0
        %4151 = vmatpush1.xpose.msra.mxu0 0.0
        %4152 = vmatprep.subr.mxu0 0.0
        %4153 = vmatpush1.xpose.msra.mxu0 0.0
        %4154 = vmatprep.subr.mxu0 0.0
        %4155 = vmatpush1.xpose.msra.mxu0 0.0
        %4156 = vmatprep.subr.mxu0 0.0
        %4157 = vmatpush1.xpose.msra.mxu0 0.0
        %4158 = vmatprep.subr.mxu0 0.0
        %4159 = vmatpush1.xpose.msra.mxu0 0.0
        %4160 = vmatprep.subr.mxu0 0.0
        %4161 = vmatpush1.xpose.msra.mxu0 0.0
        %4162 = vmatprep.mubr.f32.mxu0 0.0
        %v4163 = vand.u32 %v3940, 4294901760
        %v4164 = vsub.f32 %v3940, %v4163
        %4165 = vmatmul.mubr.f32.gmra.mrb[0].mxu0 %v4164
        %v4166 = vpop.f32.mrb[0].mxu0
        %v4167 = vadd.f32 %v4093, %v4166
        %v4168 = vpop.f32.mrb[0].mxu0
        %4169 = vdwg.mxu0
        %4170 = vmatprep.subr.mxu0 0.0
        %v4171 = vand.u32 %v3942, 4294901760
        %4172 = vmatpush1.xpose.msra.mxu0 %v4171
        %4173 = vmatprep.subr.mxu0 0.0
        %4174 = vmatpush1.xpose.msra.mxu0 0.0
        %4175 = vmatprep.subr.mxu0 0.0
        %4176 = vmatpush1.xpose.msra.mxu0 0.0
        %4177 = vmatprep.subr.mxu0 0.0
        %4178 = vmatpush1.xpose.msra.mxu0 0.0
        %4179 = vmatprep.subr.mxu0 0.0
        %4180 = vmatpush1.xpose.msra.mxu0 0.0
        %4181 = vmatprep.subr.mxu0 0.0
        %4182 = vmatpush1.xpose.msra.mxu0 0.0
        %4183 = vmatprep.subr.mxu0 0.0
        %4184 = vmatpush1.xpose.msra.mxu0 0.0
        %4185 = vmatprep.subr.mxu0 0.0
        %4186 = vmatpush1.xpose.msra.mxu0 0.0
        %4187 = vmatprep.subr.mxu0 0.0
        %4188 = vmatpush1.xpose.msra.mxu0 0.0
        %4189 = vmatprep.subr.mxu0 0.0
        %4190 = vmatpush1.xpose.msra.mxu0 0.0
        %4191 = vmatprep.subr.mxu0 0.0
        %4192 = vmatpush1.xpose.msra.mxu0 0.0
        %4193 = vmatprep.subr.mxu0 0.0
        %4194 = vmatpush1.xpose.msra.mxu0 0.0
        %4195 = vmatprep.subr.mxu0 0.0
        %4196 = vmatpush1.xpose.msra.mxu0 0.0
        %4197 = vmatprep.subr.mxu0 0.0
        %4198 = vmatpush1.xpose.msra.mxu0 0.0
        %4199 = vmatprep.subr.mxu0 0.0
        %4200 = vmatpush1.xpose.msra.mxu0 0.0
        %4201 = vmatprep.subr.mxu0 0.0
        %4202 = vmatpush1.xpose.msra.mxu0 0.0
        %4203 = vmatprep.subr.mxu0 0.0
        %4204 = vmatpush1.xpose.msra.mxu0 0.0
        %4205 = vmatprep.subr.mxu0 0.0
        %4206 = vmatpush1.xpose.msra.mxu0 0.0
        %4207 = vmatprep.subr.mxu0 0.0
        %4208 = vmatpush1.xpose.msra.mxu0 0.0
        %4209 = vmatprep.subr.mxu0 0.0
        %4210 = vmatpush1.xpose.msra.mxu0 0.0
        %4211 = vmatprep.subr.mxu0 0.0
        %4212 = vmatpush1.xpose.msra.mxu0 0.0
        %4213 = vmatprep.subr.mxu0 0.0
        %4214 = vmatpush1.xpose.msra.mxu0 0.0
        %4215 = vmatprep.subr.mxu0 0.0
        %4216 = vmatpush1.xpose.msra.mxu0 0.0
        %4217 = vmatprep.subr.mxu0 0.0
        %4218 = vmatpush1.xpose.msra.mxu0 0.0
        %4219 = vmatprep.subr.mxu0 0.0
        %4220 = vmatpush1.xpose.msra.mxu0 0.0
        %4221 = vmatprep.subr.mxu0 0.0
        %4222 = vmatpush1.xpose.msra.mxu0 0.0
        %4223 = vmatprep.subr.mxu0 0.0
        %4224 = vmatpush1.xpose.msra.mxu0 0.0
        %4225 = vmatprep.subr.mxu0 0.0
        %4226 = vmatpush1.xpose.msra.mxu0 0.0
        %4227 = vmatprep.subr.mxu0 0.0
        %4228 = vmatpush1.xpose.msra.mxu0 0.0
        %4229 = vmatprep.subr.mxu0 0.0
        %4230 = vmatpush1.xpose.msra.mxu0 0.0
        %4231 = vmatprep.subr.mxu0 0.0
        %4232 = vmatpush1.xpose.msra.mxu0 0.0
        %4233 = vmatprep.subr.mxu0 0.0
        %4234 = vmatpush1.xpose.msra.mxu0 0.0
        %4235 = vmatprep.mubr.f32.mxu0 0.0
        %v4236 = vand.u32 %v3940, 4294901760
        %v4237 = vsub.f32 %v3940, %v4236
        %v4238 = vand.u32 %v4237, 4294901760
        %4239 = vmatmul.mubr.f32.gmra.mrb[0].mxu0 %v4238
        %v4240 = vpop.f32.mrb[0].mxu0
        %v4241 = vadd.f32 %v4167, %v4240
        %v4242 = vpop.f32.mrb[0].mxu0
        %4243 = vdwg.mxu0
        %4244 = vmatprep.subr.mxu0 0.0
        %v4245 = vand.u32 %v3942, 4294901760
        %v4246 = vsub.f32 %v3942, %v4245
        %v4247 = vand.u32 %v4246, 4294901760
        %4248 = vmatpush1.xpose.msra.mxu0 %v4247
        %4249 = vmatprep.subr.mxu0 0.0
        %4250 = vmatpush1.xpose.msra.mxu0 0.0
        %4251 = vmatprep.subr.mxu0 0.0
        %4252 = vmatpush1.xpose.msra.mxu0 0.0
        %4253 = vmatprep.subr.mxu0 0.0
        %4254 = vmatpush1.xpose.msra.mxu0 0.0
        %4255 = vmatprep.subr.mxu0 0.0
        %4256 = vmatpush1.xpose.msra.mxu0 0.0
        %4257 = vmatprep.subr.mxu0 0.0
        %4258 = vmatpush1.xpose.msra.mxu0 0.0
        %4259 = vmatprep.subr.mxu0 0.0
        %4260 = vmatpush1.xpose.msra.mxu0 0.0
        %4261 = vmatprep.subr.mxu0 0.0
        %4262 = vmatpush1.xpose.msra.mxu0 0.0
        %4263 = vmatprep.subr.mxu0 0.0
        %4264 = vmatpush1.xpose.msra.mxu0 0.0
        %4265 = vmatprep.subr.mxu0 0.0
        %4266 = vmatpush1.xpose.msra.mxu0 0.0
        %4267 = vmatprep.subr.mxu0 0.0
        %4268 = vmatpush1.xpose.msra.mxu0 0.0
        %4269 = vmatprep.subr.mxu0 0.0
        %4270 = vmatpush1.xpose.msra.mxu0 0.0
        %4271 = vmatprep.subr.mxu0 0.0
        %4272 = vmatpush1.xpose.msra.mxu0 0.0
        %4273 = vmatprep.subr.mxu0 0.0
        %4274 = vmatpush1.xpose.msra.mxu0 0.0
        %4275 = vmatprep.subr.mxu0 0.0
        %4276 = vmatpush1.xpose.msra.mxu0 0.0
        %4277 = vmatprep.subr.mxu0 0.0
        %4278 = vmatpush1.xpose.msra.mxu0 0.0
        %4279 = vmatprep.subr.mxu0 0.0
        %4280 = vmatpush1.xpose.msra.mxu0 0.0
        %4281 = vmatprep.subr.mxu0 0.0
        %4282 = vmatpush1.xpose.msra.mxu0 0.0
        %4283 = vmatprep.subr.mxu0 0.0
        %4284 = vmatpush1.xpose.msra.mxu0 0.0
        %4285 = vmatprep.subr.mxu0 0.0
        %4286 = vmatpush1.xpose.msra.mxu0 0.0
        %4287 = vmatprep.subr.mxu0 0.0
        %4288 = vmatpush1.xpose.msra.mxu0 0.0
        %4289 = vmatprep.subr.mxu0 0.0
        %4290 = vmatpush1.xpose.msra.mxu0 0.0
        %4291 = vmatprep.subr.mxu0 0.0
        %4292 = vmatpush1.xpose.msra.mxu0 0.0
        %4293 = vmatprep.subr.mxu0 0.0
        %4294 = vmatpush1.xpose.msra.mxu0 0.0
        %4295 = vmatprep.subr.mxu0 0.0
        %4296 = vmatpush1.xpose.msra.mxu0 0.0
        %4297 = vmatprep.subr.mxu0 0.0
        %4298 = vmatpush1.xpose.msra.mxu0 0.0
        %4299 = vmatprep.subr.mxu0 0.0
        %4300 = vmatpush1.xpose.msra.mxu0 0.0
        %4301 = vmatprep.subr.mxu0 0.0
        %4302 = vmatpush1.xpose.msra.mxu0 0.0
        %4303 = vmatprep.subr.mxu0 0.0
        %4304 = vmatpush1.xpose.msra.mxu0 0.0
        %4305 = vmatprep.subr.mxu0 0.0
        %4306 = vmatpush1.xpose.msra.mxu0 0.0
        %4307 = vmatprep.subr.mxu0 0.0
        %4308 = vmatpush1.xpose.msra.mxu0 0.0
        %4309 = vmatprep.subr.mxu0 0.0
        %4310 = vmatpush1.xpose.msra.mxu0 0.0
        %4311 = vmatprep.mubr.f32.mxu0 0.0
        %v4312 = vand.u32 %v3940, 4294901760
        %4313 = vmatmul.mubr.f32.gmra.mrb[0].mxu0 %v4312
        %v4314 = vpop.f32.mrb[0].mxu0
        %v4315 = vadd.f32 %v4241, %v4314
        %v4316 = vpop.f32.mrb[0].mxu0
        %4317 = vdwg.mxu0
        %4318 = vmatprep.subr.mxu0 0.0
        %v4319 = vand.u32 %v3942, 4294901760
        %4320 = vmatpush1.xpose.msra.mxu0 %v4319
        %4321 = vmatprep.subr.mxu0 0.0
        %4322 = vmatpush1.xpose.msra.mxu0 0.0
        %4323 = vmatprep.subr.mxu0 0.0
        %4324 = vmatpush1.xpose.msra.mxu0 0.0
        %4325 = vmatprep.subr.mxu0 0.0
        %4326 = vmatpush1.xpose.msra.mxu0 0.0
        %4327 = vmatprep.subr.mxu0 0.0
        %4328 = vmatpush1.xpose.msra.mxu0 0.0
        %4329 = vmatprep.subr.mxu0 0.0
        %4330 = vmatpush1.xpose.msra.mxu0 0.0
        %4331 = vmatprep.subr.mxu0 0.0
        %4332 = vmatpush1.xpose.msra.mxu0 0.0
        %4333 = vmatprep.subr.mxu0 0.0
        %4334 = vmatpush1.xpose.msra.mxu0 0.0
        %4335 = vmatprep.subr.mxu0 0.0
        %4336 = vmatpush1.xpose.msra.mxu0 0.0
        %4337 = vmatprep.subr.mxu0 0.0
        %4338 = vmatpush1.xpose.msra.mxu0 0.0
        %4339 = vmatprep.subr.mxu0 0.0
        %4340 = vmatpush1.xpose.msra.mxu0 0.0
        %4341 = vmatprep.subr.mxu0 0.0
        %4342 = vmatpush1.xpose.msra.mxu0 0.0
        %4343 = vmatprep.subr.mxu0 0.0
        %4344 = vmatpush1.xpose.msra.mxu0 0.0
        %4345 = vmatprep.subr.mxu0 0.0
        %4346 = vmatpush1.xpose.msra.mxu0 0.0
        %4347 = vmatprep.subr.mxu0 0.0
        %4348 = vmatpush1.xpose.msra.mxu0 0.0
        %4349 = vmatprep.subr.mxu0 0.0
        %4350 = vmatpush1.xpose.msra.mxu0 0.0
        %4351 = vmatprep.subr.mxu0 0.0
        %4352 = vmatpush1.xpose.msra.mxu0 0.0
        %4353 = vmatprep.subr.mxu0 0.0
        %4354 = vmatpush1.xpose.msra.mxu0 0.0
        %4355 = vmatprep.subr.mxu0 0.0
        %4356 = vmatpush1.xpose.msra.mxu0 0.0
        %4357 = vmatprep.subr.mxu0 0.0
        %4358 = vmatpush1.xpose.msra.mxu0 0.0
        %4359 = vmatprep.subr.mxu0 0.0
        %4360 = vmatpush1.xpose.msra.mxu0 0.0
        %4361 = vmatprep.subr.mxu0 0.0
        %4362 = vmatpush1.xpose.msra.mxu0 0.0
        %4363 = vmatprep.subr.mxu0 0.0
        %4364 = vmatpush1.xpose.msra.mxu0 0.0
        %4365 = vmatprep.subr.mxu0 0.0
        %4366 = vmatpush1.xpose.msra.mxu0 0.0
        %4367 = vmatprep.subr.mxu0 0.0
        %4368 = vmatpush1.xpose.msra.mxu0 0.0
        %4369 = vmatprep.subr.mxu0 0.0
        %4370 = vmatpush1.xpose.msra.mxu0 0.0
        %4371 = vmatprep.subr.mxu0 0.0
        %4372 = vmatpush1.xpose.msra.mxu0 0.0
        %4373 = vmatprep.subr.mxu0 0.0
        %4374 = vmatpush1.xpose.msra.mxu0 0.0
        %4375 = vmatprep.subr.mxu0 0.0
        %4376 = vmatpush1.xpose.msra.mxu0 0.0
        %4377 = vmatprep.subr.mxu0 0.0
        %4378 = vmatpush1.xpose.msra.mxu0 0.0
        %4379 = vmatprep.subr.mxu0 0.0
        %4380 = vmatpush1.xpose.msra.mxu0 0.0
        %4381 = vmatprep.subr.mxu0 0.0
        %4382 = vmatpush1.xpose.msra.mxu0 0.0
        %4383 = vmatprep.mubr.f32.mxu0 0.0
        %v4384 = vand.u32 %v3940, 4294901760
        %4385 = vmatmul.mubr.f32.gmra.mrb[0].mxu0 %v4384
        %v4386 = vpop.f32.mrb[0].mxu0
        %v4387 = vadd.f32 %v4315, %v4386
        %v4388 = vpop.f32.mrb[0].mxu0
        %4389 = vdwg.mxu0
        %v4390 = vsel %vm767, %v1216, -inf
        %4391 = vmax.xlane.f32.xlu0 %v4390
        %v4392 = vpop.xlane.xlu0 %4391
        %v4393 = vsel %vm767, %v1669, -inf
        %4394 = vmax.xlane.f32.xlu0 %v4393
        %v4395 = vpop.xlane.xlu0 %4394
        %v4396 = vsel %vm767, %v2122, -inf
        %4397 = vmax.xlane.f32.xlu0 %v4396
        %v4398 = vpop.xlane.xlu0 %4397
        %v4399 = vsel %vm767, %v2575, -inf
        %4400 = vmax.xlane.f32.xlu0 %v4399
        %v4401 = vpop.xlane.xlu0 %4400
        %v4402 = vsel %vm767, %v3028, -inf
        %4403 = vmax.xlane.f32.xlu0 %v4402
        %v4404 = vpop.xlane.xlu0 %4403
        %v4405 = vsel %vm767, %v3481, -inf
        %4406 = vmax.xlane.f32.xlu0 %v4405
        %v4407 = vpop.xlane.xlu0 %4406
        %v4408 = vsel %vm767, %v3934, -inf
        %4409 = vmax.xlane.f32.xlu0 %v4408
        %v4410 = vpop.xlane.xlu0 %4409
        %v4411 = vsel %vm767, %v4387, -inf
        %4412 = vmax.xlane.f32.xlu0 %v4411
        %v4413 = vpop.xlane.xlu0 %4412
        %v4414 = vsub.f32 %v1216, %v4392
        %v4415 = vsub.f32 %v1669, %v4395
        %v4416 = vsub.f32 %v2122, %v4398
        %v4417 = vsub.f32 %v2575, %v4401
        %v4418 = vsub.f32 %v3028, %v4404
        %v4419 = vsub.f32 %v3481, %v4407
        %v4420 = vsub.f32 %v3934, %v4410
        %v4421 = vsub.f32 %v4387, %v4413
        %v4422 = vmul.f32 %v4414, 1.442695
        %v4423 = vpow.pop %v4422
        %v4424 = vmul.f32 %v4415, 1.442695
        %v4425 = vpow.pop %v4424
        %v4426 = vmul.f32 %v4416, 1.442695
        %v4427 = vpow.pop %v4426
        %v4428 = vmul.f32 %v4417, 1.442695
        %v4429 = vpow.pop %v4428
        %v4430 = vmul.f32 %v4418, 1.442695
        %v4431 = vpow.pop %v4430
        %v4432 = vmul.f32 %v4419, 1.442695
        %v4433 = vpow.pop %v4432
        %v4434 = vmul.f32 %v4420, 1.442695
        %v4435 = vpow.pop %v4434
        %v4436 = vmul.f32 %v4421, 1.442695
        %v4437 = vpow.pop %v4436
        %v4438 = vsel %vm767, %v4423, 0.0
        %4439 = vadd.xlane.f32.xlu0 %v4438
        %v4440 = vpop.xlane.xlu0 %4439
        %v4441 = vsel %vm767, %v4425, 0.0
        %4442 = vadd.xlane.f32.xlu0 %v4441
        %v4443 = vpop.xlane.xlu0 %4442
        %v4444 = vsel %vm767, %v4427, 0.0
        %4445 = vadd.xlane.f32.xlu0 %v4444
        %v4446 = vpop.xlane.xlu0 %4445
        %v4447 = vsel %vm767, %v4429, 0.0
        %4448 = vadd.xlane.f32.xlu0 %v4447
        %v4449 = vpop.xlane.xlu0 %4448
        %v4450 = vsel %vm767, %v4431, 0.0
        %4451 = vadd.xlane.f32.xlu0 %v4450
        %v4452 = vpop.xlane.xlu0 %4451
        %v4453 = vsel %vm767, %v4433, 0.0
        %4454 = vadd.xlane.f32.xlu0 %v4453
        %v4455 = vpop.xlane.xlu0 %4454
        %v4456 = vsel %vm767, %v4435, 0.0
        %4457 = vadd.xlane.f32.xlu0 %v4456
        %v4458 = vpop.xlane.xlu0 %4457
        %v4459 = vsel %vm767, %v4437, 0.0
        %4460 = vadd.xlane.f32.xlu0 %v4459
        %v4461 = vpop.xlane.xlu0 %4460
        %v4462 = vrcp.pop %v4440
        %v4463 = vrcp.pop %v4443
        %v4464 = vrcp.pop %v4446
        %v4465 = vrcp.pop %v4449
        %v4466 = vrcp.pop %v4452
        %v4467 = vrcp.pop %v4455
        %v4468 = vrcp.pop %v4458
        %v4469 = vrcp.pop %v4461
        %v4470 = vmul.f32 %v4423, %v4462
        %v4471 = vmul.f32 %v4425, %v4463
        %v4472 = vmul.f32 %v4427, %v4464
        %v4473 = vmul.f32 %v4429, %v4465
        %v4474 = vmul.f32 %v4431, %v4466
        %v4475 = vmul.f32 %v4433, %v4467
        %v4476 = vmul.f32 %v4435, %v4468
        %v4477 = vmul.f32 %v4437, %v4469
        %4478 = vrot.lane.b32.xlu0 %v731, 64
        %v4479 = vpop.permute.xlu0 %4478
        %v4482 = vsel %vm767, %v4470, 0
        %4484 = vmatprep.subr.mxu0 0.0
        %v4485 = vand.u32 %v4479, 4294901760
        %4486 = vmatpush1.msra.mxu0 %v4485
        %4487 = vmatprep.subr.mxu0 0.0
        %4488 = vmatpush1.msra.mxu0 0.0
        %4489 = vmatprep.subr.mxu0 0.0
        %4490 = vmatpush1.msra.mxu0 0.0
        %4491 = vmatprep.subr.mxu0 0.0
        %4492 = vmatpush1.msra.mxu0 0.0
        %4493 = vmatprep.subr.mxu0 0.0
        %4494 = vmatpush1.msra.mxu0 0.0
        %4495 = vmatprep.subr.mxu0 0.0
        %4496 = vmatpush1.msra.mxu0 0.0
        %4497 = vmatprep.subr.mxu0 0.0
        %4498 = vmatpush1.msra.mxu0 0.0
        %4499 = vmatprep.subr.mxu0 0.0
        %4500 = vmatpush1.msra.mxu0 0.0
        %4501 = vmatprep.subr.mxu0 0.0
        %4502 = vmatpush1.msra.mxu0 0.0
        %4503 = vmatprep.subr.mxu0 0.0
        %4504 = vmatpush1.msra.mxu0 0.0
        %4505 = vmatprep.subr.mxu0 0.0
        %4506 = vmatpush1.msra.mxu0 0.0
        %4507 = vmatprep.subr.mxu0 0.0
        %4508 = vmatpush1.msra.mxu0 0.0
        %4509 = vmatprep.subr.mxu0 0.0
        %4510 = vmatpush1.msra.mxu0 0.0
        %4511 = vmatprep.subr.mxu0 0.0
        %4512 = vmatpush1.msra.mxu0 0.0
        %4513 = vmatprep.subr.mxu0 0.0
        %4514 = vmatpush1.msra.mxu0 0.0
        %4515 = vmatprep.subr.mxu0 0.0
        %4516 = vmatpush1.msra.mxu0 0.0
        %4517 = vmatprep.subr.mxu0 0.0
        %4518 = vmatpush1.msra.mxu0 0.0
        %4519 = vmatprep.subr.mxu0 0.0
        %4520 = vmatpush1.msra.mxu0 0.0
        %4521 = vmatprep.subr.mxu0 0.0
        %4522 = vmatpush1.msra.mxu0 0.0
        %4523 = vmatprep.subr.mxu0 0.0
        %4524 = vmatpush1.msra.mxu0 0.0
        %4525 = vmatprep.subr.mxu0 0.0
        %4526 = vmatpush1.msra.mxu0 0.0
        %4527 = vmatprep.subr.mxu0 0.0
        %4528 = vmatpush1.msra.mxu0 0.0
        %4529 = vmatprep.subr.mxu0 0.0
        %4530 = vmatpush1.msra.mxu0 0.0
        %4531 = vmatprep.subr.mxu0 0.0
        %4532 = vmatpush1.msra.mxu0 0.0
        %4533 = vmatprep.subr.mxu0 0.0
        %4534 = vmatpush1.msra.mxu0 0.0
        %4535 = vmatprep.subr.mxu0 0.0
        %4536 = vmatpush1.msra.mxu0 0.0
        %4537 = vmatprep.subr.mxu0 0.0
        %4538 = vmatpush1.msra.mxu0 0.0
        %4539 = vmatprep.subr.mxu0 0.0
        %4540 = vmatpush1.msra.mxu0 0.0
        %4541 = vmatprep.subr.mxu0 0.0
        %4542 = vmatpush1.msra.mxu0 0.0
        %4543 = vmatprep.subr.mxu0 0.0
        %4544 = vmatpush1.msra.mxu0 0.0
        %4545 = vmatprep.subr.mxu0 0.0
        %4546 = vmatpush1.msra.mxu0 0.0
        %4547 = vmatprep.subr.mxu0 0.0
        %4548 = vmatpush1.msra.mxu0 0.0
        %4549 = vmatprep.mubr.f32.mxu0 0.0
        %v4550 = vand.u32 %v4482, 4294901760
        %v4551 = vsub.f32 %v4482, %v4550
        %v4552 = vand.u32 %v4551, 4294901760
        %v4553 = vsub.f32 %v4551, %v4552
        %v4554 = vand.u32 %v4553, 4294901760
        %4555 = vmatmul.mubr.f32.gmra.mrb[0].mxu0 %v4554
        %v4556 = vpop.f32.mrb[0].mxu0
        %v4557 = vadd.f32 0.0, %v4556
        %v4558 = vpop.f32.mrb[0].mxu0
        %4559 = vdwg.mxu0
        %4560 = vmatprep.subr.mxu0 0.0
        %v4561 = vand.u32 %v4479, 4294901760
        %v4562 = vsub.f32 %v4479, %v4561
        %v4563 = vand.u32 %v4562, 4294901760
        %v4564 = vsub.f32 %v4562, %v4563
        %v4565 = vand.u32 %v4564, 4294901760
        %4566 = vmatpush1.msra.mxu0 %v4565
        %4567 = vmatprep.subr.mxu0 0.0
        %4568 = vmatpush1.msra.mxu0 0.0
        %4569 = vmatprep.subr.mxu0 0.0
        %4570 = vmatpush1.msra.mxu0 0.0
        %4571 = vmatprep.subr.mxu0 0.0
        %4572 = vmatpush1.msra.mxu0 0.0
        %4573 = vmatprep.subr.mxu0 0.0
        %4574 = vmatpush1.msra.mxu0 0.0
        %4575 = vmatprep.subr.mxu0 0.0
        %4576 = vmatpush1.msra.mxu0 0.0
        %4577 = vmatprep.subr.mxu0 0.0
        %4578 = vmatpush1.msra.mxu0 0.0
        %4579 = vmatprep.subr.mxu0 0.0
        %4580 = vmatpush1.msra.mxu0 0.0
        %4581 = vmatprep.subr.mxu0 0.0
        %4582 = vmatpush1.msra.mxu0 0.0
        %4583 = vmatprep.subr.mxu0 0.0
        %4584 = vmatpush1.msra.mxu0 0.0
        %4585 = vmatprep.subr.mxu0 0.0
        %4586 = vmatpush1.msra.mxu0 0.0
        %4587 = vmatprep.subr.mxu0 0.0
        %4588 = vmatpush1.msra.mxu0 0.0
        %4589 = vmatprep.subr.mxu0 0.0
        %4590 = vmatpush1.msra.mxu0 0.0
        %4591 = vmatprep.subr.mxu0 0.0
        %4592 = vmatpush1.msra.mxu0 0.0
        %4593 = vmatprep.subr.mxu0 0.0
        %4594 = vmatpush1.msra.mxu0 0.0
        %4595 = vmatprep.subr.mxu0 0.0
        %4596 = vmatpush1.msra.mxu0 0.0
        %4597 = vmatprep.subr.mxu0 0.0
        %4598 = vmatpush1.msra.mxu0 0.0
        %4599 = vmatprep.subr.mxu0 0.0
        %4600 = vmatpush1.msra.mxu0 0.0
        %4601 = vmatprep.subr.mxu0 0.0
        %4602 = vmatpush1.msra.mxu0 0.0
        %4603 = vmatprep.subr.mxu0 0.0
        %4604 = vmatpush1.msra.mxu0 0.0
        %4605 = vmatprep.subr.mxu0 0.0
        %4606 = vmatpush1.msra.mxu0 0.0
        %4607 = vmatprep.subr.mxu0 0.0
        %4608 = vmatpush1.msra.mxu0 0.0
        %4609 = vmatprep.subr.mxu0 0.0
        %4610 = vmatpush1.msra.mxu0 0.0
        %4611 = vmatprep.subr.mxu0 0.0
        %4612 = vmatpush1.msra.mxu0 0.0
        %4613 = vmatprep.subr.mxu0 0.0
        %4614 = vmatpush1.msra.mxu0 0.0
        %4615 = vmatprep.subr.mxu0 0.0
        %4616 = vmatpush1.msra.mxu0 0.0
        %4617 = vmatprep.subr.mxu0 0.0
        %4618 = vmatpush1.msra.mxu0 0.0
        %4619 = vmatprep.subr.mxu0 0.0
        %4620 = vmatpush1.msra.mxu0 0.0
        %4621 = vmatprep.subr.mxu0 0.0
        %4622 = vmatpush1.msra.mxu0 0.0
        %4623 = vmatprep.subr.mxu0 0.0
        %4624 = vmatpush1.msra.mxu0 0.0
        %4625 = vmatprep.subr.mxu0 0.0
        %4626 = vmatpush1.msra.mxu0 0.0
        %4627 = vmatprep.subr.mxu0 0.0
        %4628 = vmatpush1.msra.mxu0 0.0
        %4629 = vmatprep.mubr.f32.mxu0 0.0
        %v4630 = vand.u32 %v4482, 4294901760
        %4631 = vmatmul.mubr.f32.gmra.mrb[0].mxu0 %v4630
        %v4632 = vpop.f32.mrb[0].mxu0
        %v4633 = vadd.f32 %v4557, %v4632
        %v4634 = vpop.f32.mrb[0].mxu0
        %4635 = vdwg.mxu0
        %4636 = vmatprep.subr.mxu0 0.0
        %v4637 = vand.u32 %v4479, 4294901760
        %v4638 = vsub.f32 %v4479, %v4637
        %4639 = vmatpush1.msra.mxu0 %v4638
        %4640 = vmatprep.subr.mxu0 0.0
        %4641 = vmatpush1.msra.mxu0 0.0
        %4642 = vmatprep.subr.mxu0 0.0
        %4643 = vmatpush1.msra.mxu0 0.0
        %4644 = vmatprep.subr.mxu0 0.0
        %4645 = vmatpush1.msra.mxu0 0.0
        %4646 = vmatprep.subr.mxu0 0.0
        %4647 = vmatpush1.msra.mxu0 0.0
        %4648 = vmatprep.subr.mxu0 0.0
        %4649 = vmatpush1.msra.mxu0 0.0
        %4650 = vmatprep.subr.mxu0 0.0
        %4651 = vmatpush1.msra.mxu0 0.0
        %4652 = vmatprep.subr.mxu0 0.0
        %4653 = vmatpush1.msra.mxu0 0.0
        %4654 = vmatprep.subr.mxu0 0.0
        %4655 = vmatpush1.msra.mxu0 0.0
        %4656 = vmatprep.subr.mxu0 0.0
        %4657 = vmatpush1.msra.mxu0 0.0
        %4658 = vmatprep.subr.mxu0 0.0
        %4659 = vmatpush1.msra.mxu0 0.0
        %4660 = vmatprep.subr.mxu0 0.0
        %4661 = vmatpush1.msra.mxu0 0.0
        %4662 = vmatprep.subr.mxu0 0.0
        %4663 = vmatpush1.msra.mxu0 0.0
        %4664 = vmatprep.subr.mxu0 0.0
        %4665 = vmatpush1.msra.mxu0 0.0
        %4666 = vmatprep.subr.mxu0 0.0
        %4667 = vmatpush1.msra.mxu0 0.0
        %4668 = vmatprep.subr.mxu0 0.0
        %4669 = vmatpush1.msra.mxu0 0.0
        %4670 = vmatprep.subr.mxu0 0.0
        %4671 = vmatpush1.msra.mxu0 0.0
        %4672 = vmatprep.subr.mxu0 0.0
        %4673 = vmatpush1.msra.mxu0 0.0
        %4674 = vmatprep.subr.mxu0 0.0
        %4675 = vmatpush1.msra.mxu0 0.0
        %4676 = vmatprep.subr.mxu0 0.0
        %4677 = vmatpush1.msra.mxu0 0.0
        %4678 = vmatprep.subr.mxu0 0.0
        %4679 = vmatpush1.msra.mxu0 0.0
        %4680 = vmatprep.subr.mxu0 0.0
        %4681 = vmatpush1.msra.mxu0 0.0
        %4682 = vmatprep.subr.mxu0 0.0
        %4683 = vmatpush1.msra.mxu0 0.0
        %4684 = vmatprep.subr.mxu0 0.0
        %4685 = vmatpush1.msra.mxu0 0.0
        %4686 = vmatprep.subr.mxu0 0.0
        %4687 = vmatpush1.msra.mxu0 0.0
        %4688 = vmatprep.subr.mxu0 0.0
        %4689 = vmatpush1.msra.mxu0 0.0
        %4690 = vmatprep.subr.mxu0 0.0
        %4691 = vmatpush1.msra.mxu0 0.0
        %4692 = vmatprep.subr.mxu0 0.0
        %4693 = vmatpush1.msra.mxu0 0.0
        %4694 = vmatprep.subr.mxu0 0.0
        %4695 = vmatpush1.msra.mxu0 0.0
        %4696 = vmatprep.subr.mxu0 0.0
        %4697 = vmatpush1.msra.mxu0 0.0
        %4698 = vmatprep.subr.mxu0 0.0
        %4699 = vmatpush1.msra.mxu0 0.0
        %4700 = vmatprep.subr.mxu0 0.0
        %4701 = vmatpush1.msra.mxu0 0.0
        %4702 = vmatprep.mubr.f32.mxu0 0.0
        %v4703 = vand.u32 %v4482, 4294901760
        %v4704 = vsub.f32 %v4482, %v4703
        %4705 = vmatmul.mubr.f32.gmra.mrb[0].mxu0 %v4704
        %v4706 = vpop.f32.mrb[0].mxu0
        %v4707 = vadd.f32 %v4633, %v4706
        %v4708 = vpop.f32.mrb[0].mxu0
        %4709 = vdwg.mxu0
        %4710 = vmatprep.subr.mxu0 0.0
        %v4711 = vand.u32 %v4479, 4294901760
        %4712 = vmatpush1.msra.mxu0 %v4711
        %4713 = vmatprep.subr.mxu0 0.0
        %4714 = vmatpush1.msra.mxu0 0.0
        %4715 = vmatprep.subr.mxu0 0.0
        %4716 = vmatpush1.msra.mxu0 0.0
        %4717 = vmatprep.subr.mxu0 0.0
        %4718 = vmatpush1.msra.mxu0 0.0
        %4719 = vmatprep.subr.mxu0 0.0
        %4720 = vmatpush1.msra.mxu0 0.0
        %4721 = vmatprep.subr.mxu0 0.0
        %4722 = vmatpush1.msra.mxu0 0.0
        %4723 = vmatprep.subr.mxu0 0.0
        %4724 = vmatpush1.msra.mxu0 0.0
        %4725 = vmatprep.subr.mxu0 0.0
        %4726 = vmatpush1.msra.mxu0 0.0
        %4727 = vmatprep.subr.mxu0 0.0
        %4728 = vmatpush1.msra.mxu0 0.0
        %4729 = vmatprep.subr.mxu0 0.0
        %4730 = vmatpush1.msra.mxu0 0.0
        %4731 = vmatprep.subr.mxu0 0.0
        %4732 = vmatpush1.msra.mxu0 0.0
        %4733 = vmatprep.subr.mxu0 0.0
        %4734 = vmatpush1.msra.mxu0 0.0
        %4735 = vmatprep.subr.mxu0 0.0
        %4736 = vmatpush1.msra.mxu0 0.0
        %4737 = vmatprep.subr.mxu0 0.0
        %4738 = vmatpush1.msra.mxu0 0.0
        %4739 = vmatprep.subr.mxu0 0.0
        %4740 = vmatpush1.msra.mxu0 0.0
        %4741 = vmatprep.subr.mxu0 0.0
        %4742 = vmatpush1.msra.mxu0 0.0
        %4743 = vmatprep.subr.mxu0 0.0
        %4744 = vmatpush1.msra.mxu0 0.0
        %4745 = vmatprep.subr.mxu0 0.0
        %4746 = vmatpush1.msra.mxu0 0.0
        %4747 = vmatprep.subr.mxu0 0.0
        %4748 = vmatpush1.msra.mxu0 0.0
        %4749 = vmatprep.subr.mxu0 0.0
        %4750 = vmatpush1.msra.mxu0 0.0
        %4751 = vmatprep.subr.mxu0 0.0
        %4752 = vmatpush1.msra.mxu0 0.0
        %4753 = vmatprep.subr.mxu0 0.0
        %4754 = vmatpush1.msra.mxu0 0.0
        %4755 = vmatprep.subr.mxu0 0.0
        %4756 = vmatpush1.msra.mxu0 0.0
        %4757 = vmatprep.subr.mxu0 0.0
        %4758 = vmatpush1.msra.mxu0 0.0
        %4759 = vmatprep.subr.mxu0 0.0
        %4760 = vmatpush1.msra.mxu0 0.0
        %4761 = vmatprep.subr.mxu0 0.0
        %4762 = vmatpush1.msra.mxu0 0.0
        %4763 = vmatprep.subr.mxu0 0.0
        %4764 = vmatpush1.msra.mxu0 0.0
        %4765 = vmatprep.subr.mxu0 0.0
        %4766 = vmatpush1.msra.mxu0 0.0
        %4767 = vmatprep.subr.mxu0 0.0
        %4768 = vmatpush1.msra.mxu0 0.0
        %4769 = vmatprep.subr.mxu0 0.0
        %4770 = vmatpush1.msra.mxu0 0.0
        %4771 = vmatprep.subr.mxu0 0.0
        %4772 = vmatpush1.msra.mxu0 0.0
        %4773 = vmatprep.subr.mxu0 0.0
        %4774 = vmatpush1.msra.mxu0 0.0
        %4775 = vmatprep.mubr.f32.mxu0 0.0
        %v4776 = vand.u32 %v4482, 4294901760
        %v4777 = vsub.f32 %v4482, %v4776
        %v4778 = vand.u32 %v4777, 4294901760
        %4779 = vmatmul.mubr.f32.gmra.mrb[0].mxu0 %v4778
        %v4780 = vpop.f32.mrb[0].mxu0
        %v4781 = vadd.f32 %v4707, %v4780
        %v4782 = vpop.f32.mrb[0].mxu0
        %4783 = vdwg.mxu0
        %4784 = vmatprep.subr.mxu0 0.0
        %v4785 = vand.u32 %v4479, 4294901760
        %v4786 = vsub.f32 %v4479, %v4785
        %v4787 = vand.u32 %v4786, 4294901760
        %4788 = vmatpush1.msra.mxu0 %v4787
        %4789 = vmatprep.subr.mxu0 0.0
        %4790 = vmatpush1.msra.mxu0 0.0
        %4791 = vmatprep.subr.mxu0 0.0
        %4792 = vmatpush1.msra.mxu0 0.0
        %4793 = vmatprep.subr.mxu0 0.0
        %4794 = vmatpush1.msra.mxu0 0.0
        %4795 = vmatprep.subr.mxu0 0.0
        %4796 = vmatpush1.msra.mxu0 0.0
        %4797 = vmatprep.subr.mxu0 0.0
        %4798 = vmatpush1.msra.mxu0 0.0
        %4799 = vmatprep.subr.mxu0 0.0
        %4800 = vmatpush1.msra.mxu0 0.0
        %4801 = vmatprep.subr.mxu0 0.0
        %4802 = vmatpush1.msra.mxu0 0.0
        %4803 = vmatprep.subr.mxu0 0.0
        %4804 = vmatpush1.msra.mxu0 0.0
        %4805 = vmatprep.subr.mxu0 0.0
        %4806 = vmatpush1.msra.mxu0 0.0
        %4807 = vmatprep.subr.mxu0 0.0
        %4808 = vmatpush1.msra.mxu0 0.0
        %4809 = vmatprep.subr.mxu0 0.0
        %4810 = vmatpush1.msra.mxu0 0.0
        %4811 = vmatprep.subr.mxu0 0.0
        %4812 = vmatpush1.msra.mxu0 0.0
        %4813 = vmatprep.subr.mxu0 0.0
        %4814 = vmatpush1.msra.mxu0 0.0
        %4815 = vmatprep.subr.mxu0 0.0
        %4816 = vmatpush1.msra.mxu0 0.0
        %4817 = vmatprep.subr.mxu0 0.0
        %4818 = vmatpush1.msra.mxu0 0.0
        %4819 = vmatprep.subr.mxu0 0.0
        %4820 = vmatpush1.msra.mxu0 0.0
        %4821 = vmatprep.subr.mxu0 0.0
        %4822 = vmatpush1.msra.mxu0 0.0
        %4823 = vmatprep.subr.mxu0 0.0
        %4824 = vmatpush1.msra.mxu0 0.0
        %4825 = vmatprep.subr.mxu0 0.0
        %4826 = vmatpush1.msra.mxu0 0.0
        %4827 = vmatprep.subr.mxu0 0.0
        %4828 = vmatpush1.msra.mxu0 0.0
        %4829 = vmatprep.subr.mxu0 0.0
        %4830 = vmatpush1.msra.mxu0 0.0
        %4831 = vmatprep.subr.mxu0 0.0
        %4832 = vmatpush1.msra.mxu0 0.0
        %4833 = vmatprep.subr.mxu0 0.0
        %4834 = vmatpush1.msra.mxu0 0.0
        %4835 = vmatprep.subr.mxu0 0.0
        %4836 = vmatpush1.msra.mxu0 0.0
        %4837 = vmatprep.subr.mxu0 0.0
        %4838 = vmatpush1.msra.mxu0 0.0
        %4839 = vmatprep.subr.mxu0 0.0
        %4840 = vmatpush1.msra.mxu0 0.0
        %4841 = vmatprep.subr.mxu0 0.0
        %4842 = vmatpush1.msra.mxu0 0.0
        %4843 = vmatprep.subr.mxu0 0.0
        %4844 = vmatpush1.msra.mxu0 0.0
        %4845 = vmatprep.subr.mxu0 0.0
        %4846 = vmatpush1.msra.mxu0 0.0
        %4847 = vmatprep.subr.mxu0 0.0
        %4848 = vmatpush1.msra.mxu0 0.0
        %4849 = vmatprep.subr.mxu0 0.0
        %4850 = vmatpush1.msra.mxu0 0.0
        %4851 = vmatprep.mubr.f32.mxu0 0.0
        %v4852 = vand.u32 %v4482, 4294901760
        %4853 = vmatmul.mubr.f32.gmra.mrb[0].mxu0 %v4852
        %v4854 = vpop.f32.mrb[0].mxu0
        %v4855 = vadd.f32 %v4781, %v4854
        %v4856 = vpop.f32.mrb[0].mxu0
        %4857 = vdwg.mxu0
        %4858 = vmatprep.subr.mxu0 0.0
        %v4859 = vand.u32 %v4479, 4294901760
        %4860 = vmatpush1.msra.mxu0 %v4859
        %4861 = vmatprep.subr.mxu0 0.0
        %4862 = vmatpush1.msra.mxu0 0.0
        %4863 = vmatprep.subr.mxu0 0.0
        %4864 = vmatpush1.msra.mxu0 0.0
        %4865 = vmatprep.subr.mxu0 0.0
        %4866 = vmatpush1.msra.mxu0 0.0
        %4867 = vmatprep.subr.mxu0 0.0
        %4868 = vmatpush1.msra.mxu0 0.0
        %4869 = vmatprep.subr.mxu0 0.0
        %4870 = vmatpush1.msra.mxu0 0.0
        %4871 = vmatprep.subr.mxu0 0.0
        %4872 = vmatpush1.msra.mxu0 0.0
        %4873 = vmatprep.subr.mxu0 0.0
        %4874 = vmatpush1.msra.mxu0 0.0
        %4875 = vmatprep.subr.mxu0 0.0
        %4876 = vmatpush1.msra.mxu0 0.0
        %4877 = vmatprep.subr.mxu0 0.0
        %4878 = vmatpush1.msra.mxu0 0.0
        %4879 = vmatprep.subr.mxu0 0.0
        %4880 = vmatpush1.msra.mxu0 0.0
        %4881 = vmatprep.subr.mxu0 0.0
        %4882 = vmatpush1.msra.mxu0 0.0
        %4883 = vmatprep.subr.mxu0 0.0
        %4884 = vmatpush1.msra.mxu0 0.0
        %4885 = vmatprep.subr.mxu0 0.0
        %4886 = vmatpush1.msra.mxu0 0.0
        %4887 = vmatprep.subr.mxu0 0.0
        %4888 = vmatpush1.msra.mxu0 0.0
        %4889 = vmatprep.subr.mxu0 0.0
        %4890 = vmatpush1.msra.mxu0 0.0
        %4891 = vmatprep.subr.mxu0 0.0
        %4892 = vmatpush1.msra.mxu0 0.0
        %4893 = vmatprep.subr.mxu0 0.0
        %4894 = vmatpush1.msra.mxu0 0.0
        %4895 = vmatprep.subr.mxu0 0.0
        %4896 = vmatpush1.msra.mxu0 0.0
        %4897 = vmatprep.subr.mxu0 0.0
        %4898 = vmatpush1.msra.mxu0 0.0
        %4899 = vmatprep.subr.mxu0 0.0
        %4900 = vmatpush1.msra.mxu0 0.0
        %4901 = vmatprep.subr.mxu0 0.0
        %4902 = vmatpush1.msra.mxu0 0.0
        %4903 = vmatprep.subr.mxu0 0.0
        %4904 = vmatpush1.msra.mxu0 0.0
        %4905 = vmatprep.subr.mxu0 0.0
        %4906 = vmatpush1.msra.mxu0 0.0
        %4907 = vmatprep.subr.mxu0 0.0
        %4908 = vmatpush1.msra.mxu0 0.0
        %4909 = vmatprep.subr.mxu0 0.0
        %4910 = vmatpush1.msra.mxu0 0.0
        %4911 = vmatprep.subr.mxu0 0.0
        %4912 = vmatpush1.msra.mxu0 0.0
        %4913 = vmatprep.subr.mxu0 0.0
        %4914 = vmatpush1.msra.mxu0 0.0
        %4915 = vmatprep.subr.mxu0 0.0
        %4916 = vmatpush1.msra.mxu0 0.0
        %4917 = vmatprep.subr.mxu0 0.0
        %4918 = vmatpush1.msra.mxu0 0.0
        %4919 = vmatprep.subr.mxu0 0.0
        %4920 = vmatpush1.msra.mxu0 0.0
        %4921 = vmatprep.subr.mxu0 0.0
        %4922 = vmatpush1.msra.mxu0 0.0
        %4923 = vmatprep.mubr.f32.mxu0 0.0
        %v4924 = vand.u32 %v4482, 4294901760
        %4925 = vmatmul.mubr.f32.gmra.mrb[0].mxu0 %v4924
        %v4926 = vpop.f32.mrb[0].mxu0
        %v4927 = vadd.f32 %v4855, %v4926
        %v4928 = vpop.f32.mrb[0].mxu0
        %4929 = vdwg.mxu0
        %4930 = vrot.lane.b32.xlu0 %v734, 64
        %v4931 = vpop.permute.xlu0 %4930
        %v4934 = vsel %vm767, %v4471, 0
        %4936 = vmatprep.subr.mxu0 0.0
        %v4937 = vand.u32 %v4931, 4294901760
        %4938 = vmatpush1.msra.mxu0 %v4937
        %4939 = vmatprep.subr.mxu0 0.0
        %4940 = vmatpush1.msra.mxu0 0.0
        %4941 = vmatprep.subr.mxu0 0.0
        %4942 = vmatpush1.msra.mxu0 0.0
        %4943 = vmatprep.subr.mxu0 0.0
        %4944 = vmatpush1.msra.mxu0 0.0
        %4945 = vmatprep.subr.mxu0 0.0
        %4946 = vmatpush1.msra.mxu0 0.0
        %4947 = vmatprep.subr.mxu0 0.0
        %4948 = vmatpush1.msra.mxu0 0.0
        %4949 = vmatprep.subr.mxu0 0.0
        %4950 = vmatpush1.msra.mxu0 0.0
        %4951 = vmatprep.subr.mxu0 0.0
        %4952 = vmatpush1.msra.mxu0 0.0
        %4953 = vmatprep.subr.mxu0 0.0
        %4954 = vmatpush1.msra.mxu0 0.0
        %4955 = vmatprep.subr.mxu0 0.0
        %4956 = vmatpush1.msra.mxu0 0.0
        %4957 = vmatprep.subr.mxu0 0.0
        %4958 = vmatpush1.msra.mxu0 0.0
        %4959 = vmatprep.subr.mxu0 0.0
        %4960 = vmatpush1.msra.mxu0 0.0
        %4961 = vmatprep.subr.mxu0 0.0
        %4962 = vmatpush1.msra.mxu0 0.0
        %4963 = vmatprep.subr.mxu0 0.0
        %4964 = vmatpush1.msra.mxu0 0.0
        %4965 = vmatprep.subr.mxu0 0.0
        %4966 = vmatpush1.msra.mxu0 0.0
        %4967 = vmatprep.subr.mxu0 0.0
        %4968 = vmatpush1.msra.mxu0 0.0
        %4969 = vmatprep.subr.mxu0 0.0
        %4970 = vmatpush1.msra.mxu0 0.0
        %4971 = vmatprep.subr.mxu0 0.0
        %4972 = vmatpush1.msra.mxu0 0.0
        %4973 = vmatprep.subr.mxu0 0.0
        %4974 = vmatpush1.msra.mxu0 0.0
        %4975 = vmatprep.subr.mxu0 0.0
        %4976 = vmatpush1.msra.mxu0 0.0
        %4977 = vmatprep.subr.mxu0 0.0
        %4978 = vmatpush1.msra.mxu0 0.0
        %4979 = vmatprep.subr.mxu0 0.0
        %4980 = vmatpush1.msra.mxu0 0.0
        %4981 = vmatprep.subr.mxu0 0.0
        %4982 = vmatpush1.msra.mxu0 0.0
        %4983 = vmatprep.subr.mxu0 0.0
        %4984 = vmatpush1.msra.mxu0 0.0
        %4985 = vmatprep.subr.mxu0 0.0
        %4986 = vmatpush1.msra.mxu0 0.0
        %4987 = vmatprep.subr.mxu0 0.0
        %4988 = vmatpush1.msra.mxu0 0.0
        %4989 = vmatprep.subr.mxu0 0.0
        %4990 = vmatpush1.msra.mxu0 0.0
        %4991 = vmatprep.subr.mxu0 0.0
        %4992 = vmatpush1.msra.mxu0 0.0
        %4993 = vmatprep.subr.mxu0 0.0
        %4994 = vmatpush1.msra.mxu0 0.0
        %4995 = vmatprep.subr.mxu0 0.0
        %4996 = vmatpush1.msra.mxu0 0.0
        %4997 = vmatprep.subr.mxu0 0.0
        %4998 = vmatpush1.msra.mxu0 0.0
        %4999 = vmatprep.subr.mxu0 0.0
        %5000 = vmatpush1.msra.mxu0 0.0
        %5001 = vmatprep.mubr.f32.mxu0 0.0
        %v5002 = vand.u32 %v4934, 4294901760
        %v5003 = vsub.f32 %v4934, %v5002
        %v5004 = vand.u32 %v5003, 4294901760
        %v5005 = vsub.f32 %v5003, %v5004
        %v5006 = vand.u32 %v5005, 4294901760
        %5007 = vmatmul.mubr.f32.gmra.mrb[0].mxu0 %v5006
        %v5008 = vpop.f32.mrb[0].mxu0
        %v5009 = vadd.f32 0.0, %v5008
        %v5010 = vpop.f32.mrb[0].mxu0
        %5011 = vdwg.mxu0
        %5012 = vmatprep.subr.mxu0 0.0
        %v5013 = vand.u32 %v4931, 4294901760
        %v5014 = vsub.f32 %v4931, %v5013
        %v5015 = vand.u32 %v5014, 4294901760
        %v5016 = vsub.f32 %v5014, %v5015
        %v5017 = vand.u32 %v5016, 4294901760
        %5018 = vmatpush1.msra.mxu0 %v5017
        %5019 = vmatprep.subr.mxu0 0.0
        %5020 = vmatpush1.msra.mxu0 0.0
        %5021 = vmatprep.subr.mxu0 0.0
        %5022 = vmatpush1.msra.mxu0 0.0
        %5023 = vmatprep.subr.mxu0 0.0
        %5024 = vmatpush1.msra.mxu0 0.0
        %5025 = vmatprep.subr.mxu0 0.0
        %5026 = vmatpush1.msra.mxu0 0.0
        %5027 = vmatprep.subr.mxu0 0.0
        %5028 = vmatpush1.msra.mxu0 0.0
        %5029 = vmatprep.subr.mxu0 0.0
        %5030 = vmatpush1.msra.mxu0 0.0
        %5031 = vmatprep.subr.mxu0 0.0
        %5032 = vmatpush1.msra.mxu0 0.0
        %5033 = vmatprep.subr.mxu0 0.0
        %5034 = vmatpush1.msra.mxu0 0.0
        %5035 = vmatprep.subr.mxu0 0.0
        %5036 = vmatpush1.msra.mxu0 0.0
        %5037 = vmatprep.subr.mxu0 0.0
        %5038 = vmatpush1.msra.mxu0 0.0
        %5039 = vmatprep.subr.mxu0 0.0
        %5040 = vmatpush1.msra.mxu0 0.0
        %5041 = vmatprep.subr.mxu0 0.0
        %5042 = vmatpush1.msra.mxu0 0.0
        %5043 = vmatprep.subr.mxu0 0.0
        %5044 = vmatpush1.msra.mxu0 0.0
        %5045 = vmatprep.subr.mxu0 0.0
        %5046 = vmatpush1.msra.mxu0 0.0
        %5047 = vmatprep.subr.mxu0 0.0
        %5048 = vmatpush1.msra.mxu0 0.0
        %5049 = vmatprep.subr.mxu0 0.0
        %5050 = vmatpush1.msra.mxu0 0.0
        %5051 = vmatprep.subr.mxu0 0.0
        %5052 = vmatpush1.msra.mxu0 0.0
        %5053 = vmatprep.subr.mxu0 0.0
        %5054 = vmatpush1.msra.mxu0 0.0
        %5055 = vmatprep.subr.mxu0 0.0
        %5056 = vmatpush1.msra.mxu0 0.0
        %5057 = vmatprep.subr.mxu0 0.0
        %5058 = vmatpush1.msra.mxu0 0.0
        %5059 = vmatprep.subr.mxu0 0.0
        %5060 = vmatpush1.msra.mxu0 0.0
        %5061 = vmatprep.subr.mxu0 0.0
        %5062 = vmatpush1.msra.mxu0 0.0
        %5063 = vmatprep.subr.mxu0 0.0
        %5064 = vmatpush1.msra.mxu0 0.0
        %5065 = vmatprep.subr.mxu0 0.0
        %5066 = vmatpush1.msra.mxu0 0.0
        %5067 = vmatprep.subr.mxu0 0.0
        %5068 = vmatpush1.msra.mxu0 0.0
        %5069 = vmatprep.subr.mxu0 0.0
        %5070 = vmatpush1.msra.mxu0 0.0
        %5071 = vmatprep.subr.mxu0 0.0
        %5072 = vmatpush1.msra.mxu0 0.0
        %5073 = vmatprep.subr.mxu0 0.0
        %5074 = vmatpush1.msra.mxu0 0.0
        %5075 = vmatprep.subr.mxu0 0.0
        %5076 = vmatpush1.msra.mxu0 0.0
        %5077 = vmatprep.subr.mxu0 0.0
        %5078 = vmatpush1.msra.mxu0 0.0
        %5079 = vmatprep.subr.mxu0 0.0
        %5080 = vmatpush1.msra.mxu0 0.0
        %5081 = vmatprep.mubr.f32.mxu0 0.0
        %v5082 = vand.u32 %v4934, 4294901760
        %5083 = vmatmul.mubr.f32.gmra.mrb[0].mxu0 %v5082
        %v5084 = vpop.f32.mrb[0].mxu0
        %v5085 = vadd.f32 %v5009, %v5084
        %v5086 = vpop.f32.mrb[0].mxu0
        %5087 = vdwg.mxu0
        %5088 = vmatprep.subr.mxu0 0.0
        %v5089 = vand.u32 %v4931, 4294901760
        %v5090 = vsub.f32 %v4931, %v5089
        %5091 = vmatpush1.msra.mxu0 %v5090
        %5092 = vmatprep.subr.mxu0 0.0
        %5093 = vmatpush1.msra.mxu0 0.0
        %5094 = vmatprep.subr.mxu0 0.0
        %5095 = vmatpush1.msra.mxu0 0.0
        %5096 = vmatprep.subr.mxu0 0.0
        %5097 = vmatpush1.msra.mxu0 0.0
        %5098 = vmatprep.subr.mxu0 0.0
        %5099 = vmatpush1.msra.mxu0 0.0
        %5100 = vmatprep.subr.mxu0 0.0
        %5101 = vmatpush1.msra.mxu0 0.0
        %5102 = vmatprep.subr.mxu0 0.0
        %5103 = vmatpush1.msra.mxu0 0.0
        %5104 = vmatprep.subr.mxu0 0.0
        %5105 = vmatpush1.msra.mxu0 0.0
        %5106 = vmatprep.subr.mxu0 0.0
        %5107 = vmatpush1.msra.mxu0 0.0
        %5108 = vmatprep.subr.mxu0 0.0
        %5109 = vmatpush1.msra.mxu0 0.0
        %5110 = vmatprep.subr.mxu0 0.0
        %5111 = vmatpush1.msra.mxu0 0.0
        %5112 = vmatprep.subr.mxu0 0.0
        %5113 = vmatpush1.msra.mxu0 0.0
        %5114 = vmatprep.subr.mxu0 0.0
        %5115 = vmatpush1.msra.mxu0 0.0
        %5116 = vmatprep.subr.mxu0 0.0
        %5117 = vmatpush1.msra.mxu0 0.0
        %5118 = vmatprep.subr.mxu0 0.0
        %5119 = vmatpush1.msra.mxu0 0.0
        %5120 = vmatprep.subr.mxu0 0.0
        %5121 = vmatpush1.msra.mxu0 0.0
        %5122 = vmatprep.subr.mxu0 0.0
        %5123 = vmatpush1.msra.mxu0 0.0
        %5124 = vmatprep.subr.mxu0 0.0
        %5125 = vmatpush1.msra.mxu0 0.0
        %5126 = vmatprep.subr.mxu0 0.0
        %5127 = vmatpush1.msra.mxu0 0.0
        %5128 = vmatprep.subr.mxu0 0.0
        %5129 = vmatpush1.msra.mxu0 0.0
        %5130 = vmatprep.subr.mxu0 0.0
        %5131 = vmatpush1.msra.mxu0 0.0
        %5132 = vmatprep.subr.mxu0 0.0
        %5133 = vmatpush1.msra.mxu0 0.0
        %5134 = vmatprep.subr.mxu0 0.0
        %5135 = vmatpush1.msra.mxu0 0.0
        %5136 = vmatprep.subr.mxu0 0.0
        %5137 = vmatpush1.msra.mxu0 0.0
        %5138 = vmatprep.subr.mxu0 0.0
        %5139 = vmatpush1.msra.mxu0 0.0
        %5140 = vmatprep.subr.mxu0 0.0
        %5141 = vmatpush1.msra.mxu0 0.0
        %5142 = vmatprep.subr.mxu0 0.0
        %5143 = vmatpush1.msra.mxu0 0.0
        %5144 = vmatprep.subr.mxu0 0.0
        %5145 = vmatpush1.msra.mxu0 0.0
        %5146 = vmatprep.subr.mxu0 0.0
        %5147 = vmatpush1.msra.mxu0 0.0
        %5148 = vmatprep.subr.mxu0 0.0
        %5149 = vmatpush1.msra.mxu0 0.0
        %5150 = vmatprep.subr.mxu0 0.0
        %5151 = vmatpush1.msra.mxu0 0.0
        %5152 = vmatprep.subr.mxu0 0.0
        %5153 = vmatpush1.msra.mxu0 0.0
        %5154 = vmatprep.mubr.f32.mxu0 0.0
        %v5155 = vand.u32 %v4934, 4294901760
        %v5156 = vsub.f32 %v4934, %v5155
        %5157 = vmatmul.mubr.f32.gmra.mrb[0].mxu0 %v5156
        %v5158 = vpop.f32.mrb[0].mxu0
        %v5159 = vadd.f32 %v5085, %v5158
        %v5160 = vpop.f32.mrb[0].mxu0
        %5161 = vdwg.mxu0
        %5162 = vmatprep.subr.mxu0 0.0
        %v5163 = vand.u32 %v4931, 4294901760
        %5164 = vmatpush1.msra.mxu0 %v5163
        %5165 = vmatprep.subr.mxu0 0.0
        %5166 = vmatpush1.msra.mxu0 0.0
        %5167 = vmatprep.subr.mxu0 0.0
        %5168 = vmatpush1.msra.mxu0 0.0
        %5169 = vmatprep.subr.mxu0 0.0
        %5170 = vmatpush1.msra.mxu0 0.0
        %5171 = vmatprep.subr.mxu0 0.0
        %5172 = vmatpush1.msra.mxu0 0.0
        %5173 = vmatprep.subr.mxu0 0.0
        %5174 = vmatpush1.msra.mxu0 0.0
        %5175 = vmatprep.subr.mxu0 0.0
        %5176 = vmatpush1.msra.mxu0 0.0
        %5177 = vmatprep.subr.mxu0 0.0
        %5178 = vmatpush1.msra.mxu0 0.0
        %5179 = vmatprep.subr.mxu0 0.0
        %5180 = vmatpush1.msra.mxu0 0.0
        %5181 = vmatprep.subr.mxu0 0.0
        %5182 = vmatpush1.msra.mxu0 0.0
        %5183 = vmatprep.subr.mxu0 0.0
        %5184 = vmatpush1.msra.mxu0 0.0
        %5185 = vmatprep.subr.mxu0 0.0
        %5186 = vmatpush1.msra.mxu0 0.0
        %5187 = vmatprep.subr.mxu0 0.0
        %5188 = vmatpush1.msra.mxu0 0.0
        %5189 = vmatprep.subr.mxu0 0.0
        %5190 = vmatpush1.msra.mxu0 0.0
        %5191 = vmatprep.subr.mxu0 0.0
        %5192 = vmatpush1.msra.mxu0 0.0
        %5193 = vmatprep.subr.mxu0 0.0
        %5194 = vmatpush1.msra.mxu0 0.0
        %5195 = vmatprep.subr.mxu0 0.0
        %5196 = vmatpush1.msra.mxu0 0.0
        %5197 = vmatprep.subr.mxu0 0.0
        %5198 = vmatpush1.msra.mxu0 0.0
        %5199 = vmatprep.subr.mxu0 0.0
        %5200 = vmatpush1.msra.mxu0 0.0
        %5201 = vmatprep.subr.mxu0 0.0
        %5202 = vmatpush1.msra.mxu0 0.0
        %5203 = vmatprep.subr.mxu0 0.0
        %5204 = vmatpush1.msra.mxu0 0.0
        %5205 = vmatprep.subr.mxu0 0.0
        %5206 = vmatpush1.msra.mxu0 0.0
        %5207 = vmatprep.subr.mxu0 0.0
        %5208 = vmatpush1.msra.mxu0 0.0
        %5209 = vmatprep.subr.mxu0 0.0
        %5210 = vmatpush1.msra.mxu0 0.0
        %5211 = vmatprep.subr.mxu0 0.0
        %5212 = vmatpush1.msra.mxu0 0.0
        %5213 = vmatprep.subr.mxu0 0.0
        %5214 = vmatpush1.msra.mxu0 0.0
        %5215 = vmatprep.subr.mxu0 0.0
        %5216 = vmatpush1.msra.mxu0 0.0
        %5217 = vmatprep.subr.mxu0 0.0
        %5218 = vmatpush1.msra.mxu0 0.0
        %5219 = vmatprep.subr.mxu0 0.0
        %5220 = vmatpush1.msra.mxu0 0.0
        %5221 = vmatprep.subr.mxu0 0.0
        %5222 = vmatpush1.msra.mxu0 0.0
        %5223 = vmatprep.subr.mxu0 0.0
        %5224 = vmatpush1.msra.mxu0 0.0
        %5225 = vmatprep.subr.mxu0 0.0
        %5226 = vmatpush1.msra.mxu0 0.0
        %5227 = vmatprep.mubr.f32.mxu0 0.0
        %v5228 = vand.u32 %v4934, 4294901760
        %v5229 = vsub.f32 %v4934, %v5228
        %v5230 = vand.u32 %v5229, 4294901760
        %5231 = vmatmul.mubr.f32.gmra.mrb[0].mxu0 %v5230
        %v5232 = vpop.f32.mrb[0].mxu0
        %v5233 = vadd.f32 %v5159, %v5232
        %v5234 = vpop.f32.mrb[0].mxu0
        %5235 = vdwg.mxu0
        %5236 = vmatprep.subr.mxu0 0.0
        %v5237 = vand.u32 %v4931, 4294901760
        %v5238 = vsub.f32 %v4931, %v5237
        %v5239 = vand.u32 %v5238, 4294901760
        %5240 = vmatpush1.msra.mxu0 %v5239
        %5241 = vmatprep.subr.mxu0 0.0
        %5242 = vmatpush1.msra.mxu0 0.0
        %5243 = vmatprep.subr.mxu0 0.0
        %5244 = vmatpush1.msra.mxu0 0.0
        %5245 = vmatprep.subr.mxu0 0.0
        %5246 = vmatpush1.msra.mxu0 0.0
        %5247 = vmatprep.subr.mxu0 0.0
        %5248 = vmatpush1.msra.mxu0 0.0
        %5249 = vmatprep.subr.mxu0 0.0
        %5250 = vmatpush1.msra.mxu0 0.0
        %5251 = vmatprep.subr.mxu0 0.0
        %5252 = vmatpush1.msra.mxu0 0.0
        %5253 = vmatprep.subr.mxu0 0.0
        %5254 = vmatpush1.msra.mxu0 0.0
        %5255 = vmatprep.subr.mxu0 0.0
        %5256 = vmatpush1.msra.mxu0 0.0
        %5257 = vmatprep.subr.mxu0 0.0
        %5258 = vmatpush1.msra.mxu0 0.0
        %5259 = vmatprep.subr.mxu0 0.0
        %5260 = vmatpush1.msra.mxu0 0.0
        %5261 = vmatprep.subr.mxu0 0.0
        %5262 = vmatpush1.msra.mxu0 0.0
        %5263 = vmatprep.subr.mxu0 0.0
        %5264 = vmatpush1.msra.mxu0 0.0
        %5265 = vmatprep.subr.mxu0 0.0
        %5266 = vmatpush1.msra.mxu0 0.0
        %5267 = vmatprep.subr.mxu0 0.0
        %5268 = vmatpush1.msra.mxu0 0.0
        %5269 = vmatprep.subr.mxu0 0.0
        %5270 = vmatpush1.msra.mxu0 0.0
        %5271 = vmatprep.subr.mxu0 0.0
        %5272 = vmatpush1.msra.mxu0 0.0
        %5273 = vmatprep.subr.mxu0 0.0
        %5274 = vmatpush1.msra.mxu0 0.0
        %5275 = vmatprep.subr.mxu0 0.0
        %5276 = vmatpush1.msra.mxu0 0.0
        %5277 = vmatprep.subr.mxu0 0.0
        %5278 = vmatpush1.msra.mxu0 0.0
        %5279 = vmatprep.subr.mxu0 0.0
        %5280 = vmatpush1.msra.mxu0 0.0
        %5281 = vmatprep.subr.mxu0 0.0
        %5282 = vmatpush1.msra.mxu0 0.0
        %5283 = vmatprep.subr.mxu0 0.0
        %5284 = vmatpush1.msra.mxu0 0.0
        %5285 = vmatprep.subr.mxu0 0.0
        %5286 = vmatpush1.msra.mxu0 0.0
        %5287 = vmatprep.subr.mxu0 0.0
        %5288 = vmatpush1.msra.mxu0 0.0
        %5289 = vmatprep.subr.mxu0 0.0
        %5290 = vmatpush1.msra.mxu0 0.0
        %5291 = vmatprep.subr.mxu0 0.0
        %5292 = vmatpush1.msra.mxu0 0.0
        %5293 = vmatprep.subr.mxu0 0.0
        %5294 = vmatpush1.msra.mxu0 0.0
        %5295 = vmatprep.subr.mxu0 0.0
        %5296 = vmatpush1.msra.mxu0 0.0
        %5297 = vmatprep.subr.mxu0 0.0
        %5298 = vmatpush1.msra.mxu0 0.0
        %5299 = vmatprep.subr.mxu0 0.0
        %5300 = vmatpush1.msra.mxu0 0.0
        %5301 = vmatprep.subr.mxu0 0.0
        %5302 = vmatpush1.msra.mxu0 0.0
        %5303 = vmatprep.mubr.f32.mxu0 0.0
        %v5304 = vand.u32 %v4934, 4294901760
        %5305 = vmatmul.mubr.f32.gmra.mrb[0].mxu0 %v5304
        %v5306 = vpop.f32.mrb[0].mxu0
        %v5307 = vadd.f32 %v5233, %v5306
        %v5308 = vpop.f32.mrb[0].mxu0
        %5309 = vdwg.mxu0
        %5310 = vmatprep.subr.mxu0 0.0
        %v5311 = vand.u32 %v4931, 4294901760
        %5312 = vmatpush1.msra.mxu0 %v5311
        %5313 = vmatprep.subr.mxu0 0.0
        %5314 = vmatpush1.msra.mxu0 0.0
        %5315 = vmatprep.subr.mxu0 0.0
        %5316 = vmatpush1.msra.mxu0 0.0
        %5317 = vmatprep.subr.mxu0 0.0
        %5318 = vmatpush1.msra.mxu0 0.0
        %5319 = vmatprep.subr.mxu0 0.0
        %5320 = vmatpush1.msra.mxu0 0.0
        %5321 = vmatprep.subr.mxu0 0.0
        %5322 = vmatpush1.msra.mxu0 0.0
        %5323 = vmatprep.subr.mxu0 0.0
        %5324 = vmatpush1.msra.mxu0 0.0
        %5325 = vmatprep.subr.mxu0 0.0
        %5326 = vmatpush1.msra.mxu0 0.0
        %5327 = vmatprep.subr.mxu0 0.0
        %5328 = vmatpush1.msra.mxu0 0.0
        %5329 = vmatprep.subr.mxu0 0.0
        %5330 = vmatpush1.msra.mxu0 0.0
        %5331 = vmatprep.subr.mxu0 0.0
        %5332 = vmatpush1.msra.mxu0 0.0
        %5333 = vmatprep.subr.mxu0 0.0
        %5334 = vmatpush1.msra.mxu0 0.0
        %5335 = vmatprep.subr.mxu0 0.0
        %5336 = vmatpush1.msra.mxu0 0.0
        %5337 = vmatprep.subr.mxu0 0.0
        %5338 = vmatpush1.msra.mxu0 0.0
        %5339 = vmatprep.subr.mxu0 0.0
        %5340 = vmatpush1.msra.mxu0 0.0
        %5341 = vmatprep.subr.mxu0 0.0
        %5342 = vmatpush1.msra.mxu0 0.0
        %5343 = vmatprep.subr.mxu0 0.0
        %5344 = vmatpush1.msra.mxu0 0.0
        %5345 = vmatprep.subr.mxu0 0.0
        %5346 = vmatpush1.msra.mxu0 0.0
        %5347 = vmatprep.subr.mxu0 0.0
        %5348 = vmatpush1.msra.mxu0 0.0
        %5349 = vmatprep.subr.mxu0 0.0
        %5350 = vmatpush1.msra.mxu0 0.0
        %5351 = vmatprep.subr.mxu0 0.0
        %5352 = vmatpush1.msra.mxu0 0.0
        %5353 = vmatprep.subr.mxu0 0.0
        %5354 = vmatpush1.msra.mxu0 0.0
        %5355 = vmatprep.subr.mxu0 0.0
        %5356 = vmatpush1.msra.mxu0 0.0
        %5357 = vmatprep.subr.mxu0 0.0
        %5358 = vmatpush1.msra.mxu0 0.0
        %5359 = vmatprep.subr.mxu0 0.0
        %5360 = vmatpush1.msra.mxu0 0.0
        %5361 = vmatprep.subr.mxu0 0.0
        %5362 = vmatpush1.msra.mxu0 0.0
        %5363 = vmatprep.subr.mxu0 0.0
        %5364 = vmatpush1.msra.mxu0 0.0
        %5365 = vmatprep.subr.mxu0 0.0
        %5366 = vmatpush1.msra.mxu0 0.0
        %5367 = vmatprep.subr.mxu0 0.0
        %5368 = vmatpush1.msra.mxu0 0.0
        %5369 = vmatprep.subr.mxu0 0.0
        %5370 = vmatpush1.msra.mxu0 0.0
        %5371 = vmatprep.subr.mxu0 0.0
        %5372 = vmatpush1.msra.mxu0 0.0
        %5373 = vmatprep.subr.mxu0 0.0
        %5374 = vmatpush1.msra.mxu0 0.0
        %5375 = vmatprep.mubr.f32.mxu0 0.0
        %v5376 = vand.u32 %v4934, 4294901760
        %5377 = vmatmul.mubr.f32.gmra.mrb[0].mxu0 %v5376
        %v5378 = vpop.f32.mrb[0].mxu0
        %v5379 = vadd.f32 %v5307, %v5378
        %v5380 = vpop.f32.mrb[0].mxu0
        %5381 = vdwg.mxu0
        %5382 = vrot.lane.b32.xlu0 %v740, 64
        %v5383 = vpop.permute.xlu0 %5382
        %v5386 = vsel %vm767, %v4472, 0
        %5388 = vmatprep.subr.mxu0 0.0
        %v5389 = vand.u32 %v5383, 4294901760
        %5390 = vmatpush1.msra.mxu0 %v5389
        %5391 = vmatprep.subr.mxu0 0.0
        %5392 = vmatpush1.msra.mxu0 0.0
        %5393 = vmatprep.subr.mxu0 0.0
        %5394 = vmatpush1.msra.mxu0 0.0
        %5395 = vmatprep.subr.mxu0 0.0
        %5396 = vmatpush1.msra.mxu0 0.0
        %5397 = vmatprep.subr.mxu0 0.0
        %5398 = vmatpush1.msra.mxu0 0.0
        %5399 = vmatprep.subr.mxu0 0.0
        %5400 = vmatpush1.msra.mxu0 0.0
        %5401 = vmatprep.subr.mxu0 0.0
        %5402 = vmatpush1.msra.mxu0 0.0
        %5403 = vmatprep.subr.mxu0 0.0
        %5404 = vmatpush1.msra.mxu0 0.0
        %5405 = vmatprep.subr.mxu0 0.0
        %5406 = vmatpush1.msra.mxu0 0.0
        %5407 = vmatprep.subr.mxu0 0.0
        %5408 = vmatpush1.msra.mxu0 0.0
        %5409 = vmatprep.subr.mxu0 0.0
        %5410 = vmatpush1.msra.mxu0 0.0
        %5411 = vmatprep.subr.mxu0 0.0
        %5412 = vmatpush1.msra.mxu0 0.0
        %5413 = vmatprep.subr.mxu0 0.0
        %5414 = vmatpush1.msra.mxu0 0.0
        %5415 = vmatprep.subr.mxu0 0.0
        %5416 = vmatpush1.msra.mxu0 0.0
        %5417 = vmatprep.subr.mxu0 0.0
        %5418 = vmatpush1.msra.mxu0 0.0
        %5419 = vmatprep.subr.mxu0 0.0
        %5420 = vmatpush1.msra.mxu0 0.0
        %5421 = vmatprep.subr.mxu0 0.0
        %5422 = vmatpush1.msra.mxu0 0.0
        %5423 = vmatprep.subr.mxu0 0.0
        %5424 = vmatpush1.msra.mxu0 0.0
        %5425 = vmatprep.subr.mxu0 0.0
        %5426 = vmatpush1.msra.mxu0 0.0
        %5427 = vmatprep.subr.mxu0 0.0
        %5428 = vmatpush1.msra.mxu0 0.0
        %5429 = vmatprep.subr.mxu0 0.0
        %5430 = vmatpush1.msra.mxu0 0.0
        %5431 = vmatprep.subr.mxu0 0.0
        %5432 = vmatpush1.msra.mxu0 0.0
        %5433 = vmatprep.subr.mxu0 0.0
        %5434 = vmatpush1.msra.mxu0 0.0
        %5435 = vmatprep.subr.mxu0 0.0
        %5436 = vmatpush1.msra.mxu0 0.0
        %5437 = vmatprep.subr.mxu0 0.0
        %5438 = vmatpush1.msra.mxu0 0.0
        %5439 = vmatprep.subr.mxu0 0.0
        %5440 = vmatpush1.msra.mxu0 0.0
        %5441 = vmatprep.subr.mxu0 0.0
        %5442 = vmatpush1.msra.mxu0 0.0
        %5443 = vmatprep.subr.mxu0 0.0
        %5444 = vmatpush1.msra.mxu0 0.0
        %5445 = vmatprep.subr.mxu0 0.0
        %5446 = vmatpush1.msra.mxu0 0.0
        %5447 = vmatprep.subr.mxu0 0.0
        %5448 = vmatpush1.msra.mxu0 0.0
        %5449 = vmatprep.subr.mxu0 0.0
        %5450 = vmatpush1.msra.mxu0 0.0
        %5451 = vmatprep.subr.mxu0 0.0
        %5452 = vmatpush1.msra.mxu0 0.0
        %5453 = vmatprep.mubr.f32.mxu0 0.0
        %v5454 = vand.u32 %v5386, 4294901760
        %v5455 = vsub.f32 %v5386, %v5454
        %v5456 = vand.u32 %v5455, 4294901760
        %v5457 = vsub.f32 %v5455, %v5456
        %v5458 = vand.u32 %v5457, 4294901760
        %5459 = vmatmul.mubr.f32.gmra.mrb[0].mxu0 %v5458
        %v5460 = vpop.f32.mrb[0].mxu0
        %v5461 = vadd.f32 0.0, %v5460
        %v5462 = vpop.f32.mrb[0].mxu0
        %5463 = vdwg.mxu0
        %5464 = vmatprep.subr.mxu0 0.0
        %v5465 = vand.u32 %v5383, 4294901760
        %v5466 = vsub.f32 %v5383, %v5465
        %v5467 = vand.u32 %v5466, 4294901760
        %v5468 = vsub.f32 %v5466, %v5467
        %v5469 = vand.u32 %v5468, 4294901760
        %5470 = vmatpush1.msra.mxu0 %v5469
        %5471 = vmatprep.subr.mxu0 0.0
        %5472 = vmatpush1.msra.mxu0 0.0
        %5473 = vmatprep.subr.mxu0 0.0
        %5474 = vmatpush1.msra.mxu0 0.0
        %5475 = vmatprep.subr.mxu0 0.0
        %5476 = vmatpush1.msra.mxu0 0.0
        %5477 = vmatprep.subr.mxu0 0.0
        %5478 = vmatpush1.msra.mxu0 0.0
        %5479 = vmatprep.subr.mxu0 0.0
        %5480 = vmatpush1.msra.mxu0 0.0
        %5481 = vmatprep.subr.mxu0 0.0
        %5482 = vmatpush1.msra.mxu0 0.0
        %5483 = vmatprep.subr.mxu0 0.0
        %5484 = vmatpush1.msra.mxu0 0.0
        %5485 = vmatprep.subr.mxu0 0.0
        %5486 = vmatpush1.msra.mxu0 0.0
        %5487 = vmatprep.subr.mxu0 0.0
        %5488 = vmatpush1.msra.mxu0 0.0
        %5489 = vmatprep.subr.mxu0 0.0
        %5490 = vmatpush1.msra.mxu0 0.0
        %5491 = vmatprep.subr.mxu0 0.0
        %5492 = vmatpush1.msra.mxu0 0.0
        %5493 = vmatprep.subr.mxu0 0.0
        %5494 = vmatpush1.msra.mxu0 0.0
        %5495 = vmatprep.subr.mxu0 0.0
        %5496 = vmatpush1.msra.mxu0 0.0
        %5497 = vmatprep.subr.mxu0 0.0
        %5498 = vmatpush1.msra.mxu0 0.0
        %5499 = vmatprep.subr.mxu0 0.0
        %5500 = vmatpush1.msra.mxu0 0.0
        %5501 = vmatprep.subr.mxu0 0.0
        %5502 = vmatpush1.msra.mxu0 0.0
        %5503 = vmatprep.subr.mxu0 0.0
        %5504 = vmatpush1.msra.mxu0 0.0
        %5505 = vmatprep.subr.mxu0 0.0
        %5506 = vmatpush1.msra.mxu0 0.0
        %5507 = vmatprep.subr.mxu0 0.0
        %5508 = vmatpush1.msra.mxu0 0.0
        %5509 = vmatprep.subr.mxu0 0.0
        %5510 = vmatpush1.msra.mxu0 0.0
        %5511 = vmatprep.subr.mxu0 0.0
        %5512 = vmatpush1.msra.mxu0 0.0
        %5513 = vmatprep.subr.mxu0 0.0
        %5514 = vmatpush1.msra.mxu0 0.0
        %5515 = vmatprep.subr.mxu0 0.0
        %5516 = vmatpush1.msra.mxu0 0.0
        %5517 = vmatprep.subr.mxu0 0.0
        %5518 = vmatpush1.msra.mxu0 0.0
        %5519 = vmatprep.subr.mxu0 0.0
        %5520 = vmatpush1.msra.mxu0 0.0
        %5521 = vmatprep.subr.mxu0 0.0
        %5522 = vmatpush1.msra.mxu0 0.0
        %5523 = vmatprep.subr.mxu0 0.0
        %5524 = vmatpush1.msra.mxu0 0.0
        %5525 = vmatprep.subr.mxu0 0.0
        %5526 = vmatpush1.msra.mxu0 0.0
        %5527 = vmatprep.subr.mxu0 0.0
        %5528 = vmatpush1.msra.mxu0 0.0
        %5529 = vmatprep.subr.mxu0 0.0
        %5530 = vmatpush1.msra.mxu0 0.0
        %5531 = vmatprep.subr.mxu0 0.0
        %5532 = vmatpush1.msra.mxu0 0.0
        %5533 = vmatprep.mubr.f32.mxu0 0.0
        %v5534 = vand.u32 %v5386, 4294901760
        %5535 = vmatmul.mubr.f32.gmra.mrb[0].mxu0 %v5534
        %v5536 = vpop.f32.mrb[0].mxu0
        %v5537 = vadd.f32 %v5461, %v5536
        %v5538 = vpop.f32.mrb[0].mxu0
        %5539 = vdwg.mxu0
        %5540 = vmatprep.subr.mxu0 0.0
        %v5541 = vand.u32 %v5383, 4294901760
        %v5542 = vsub.f32 %v5383, %v5541
        %5543 = vmatpush1.msra.mxu0 %v5542
        %5544 = vmatprep.subr.mxu0 0.0
        %5545 = vmatpush1.msra.mxu0 0.0
        %5546 = vmatprep.subr.mxu0 0.0
        %5547 = vmatpush1.msra.mxu0 0.0
        %5548 = vmatprep.subr.mxu0 0.0
        %5549 = vmatpush1.msra.mxu0 0.0
        %5550 = vmatprep.subr.mxu0 0.0
        %5551 = vmatpush1.msra.mxu0 0.0
        %5552 = vmatprep.subr.mxu0 0.0
        %5553 = vmatpush1.msra.mxu0 0.0
        %5554 = vmatprep.subr.mxu0 0.0
        %5555 = vmatpush1.msra.mxu0 0.0
        %5556 = vmatprep.subr.mxu0 0.0
        %5557 = vmatpush1.msra.mxu0 0.0
        %5558 = vmatprep.subr.mxu0 0.0
        %5559 = vmatpush1.msra.mxu0 0.0
        %5560 = vmatprep.subr.mxu0 0.0
        %5561 = vmatpush1.msra.mxu0 0.0
        %5562 = vmatprep.subr.mxu0 0.0
        %5563 = vmatpush1.msra.mxu0 0.0
        %5564 = vmatprep.subr.mxu0 0.0
        %5565 = vmatpush1.msra.mxu0 0.0
        %5566 = vmatprep.subr.mxu0 0.0
        %5567 = vmatpush1.msra.mxu0 0.0
        %5568 = vmatprep.subr.mxu0 0.0
        %5569 = vmatpush1.msra.mxu0 0.0
        %5570 = vmatprep.subr.mxu0 0.0
        %5571 = vmatpush1.msra.mxu0 0.0
        %5572 = vmatprep.subr.mxu0 0.0
        %5573 = vmatpush1.msra.mxu0 0.0
        %5574 = vmatprep.subr.mxu0 0.0
        %5575 = vmatpush1.msra.mxu0 0.0
        %5576 = vmatprep.subr.mxu0 0.0
        %5577 = vmatpush1.msra.mxu0 0.0
        %5578 = vmatprep.subr.mxu0 0.0
        %5579 = vmatpush1.msra.mxu0 0.0
        %5580 = vmatprep.subr.mxu0 0.0
        %5581 = vmatpush1.msra.mxu0 0.0
        %5582 = vmatprep.subr.mxu0 0.0
        %5583 = vmatpush1.msra.mxu0 0.0
        %5584 = vmatprep.subr.mxu0 0.0
        %5585 = vmatpush1.msra.mxu0 0.0
        %5586 = vmatprep.subr.mxu0 0.0
        %5587 = vmatpush1.msra.mxu0 0.0
        %5588 = vmatprep.subr.mxu0 0.0
        %5589 = vmatpush1.msra.mxu0 0.0
        %5590 = vmatprep.subr.mxu0 0.0
        %5591 = vmatpush1.msra.mxu0 0.0
        %5592 = vmatprep.subr.mxu0 0.0
        %5593 = vmatpush1.msra.mxu0 0.0
        %5594 = vmatprep.subr.mxu0 0.0
        %5595 = vmatpush1.msra.mxu0 0.0
        %5596 = vmatprep.subr.mxu0 0.0
        %5597 = vmatpush1.msra.mxu0 0.0
        %5598 = vmatprep.subr.mxu0 0.0
        %5599 = vmatpush1.msra.mxu0 0.0
        %5600 = vmatprep.subr.mxu0 0.0
        %5601 = vmatpush1.msra.mxu0 0.0
        %5602 = vmatprep.subr.mxu0 0.0
        %5603 = vmatpush1.msra.mxu0 0.0
        %5604 = vmatprep.subr.mxu0 0.0
        %5605 = vmatpush1.msra.mxu0 0.0
        %5606 = vmatprep.mubr.f32.mxu0 0.0
        %v5607 = vand.u32 %v5386, 4294901760
        %v5608 = vsub.f32 %v5386, %v5607
        %5609 = vmatmul.mubr.f32.gmra.mrb[0].mxu0 %v5608
        %v5610 = vpop.f32.mrb[0].mxu0
        %v5611 = vadd.f32 %v5537, %v5610
        %v5612 = vpop.f32.mrb[0].mxu0
        %5613 = vdwg.mxu0
        %5614 = vmatprep.subr.mxu0 0.0
        %v5615 = vand.u32 %v5383, 4294901760
        %5616 = vmatpush1.msra.mxu0 %v5615
        %5617 = vmatprep.subr.mxu0 0.0
        %5618 = vmatpush1.msra.mxu0 0.0
        %5619 = vmatprep.subr.mxu0 0.0
        %5620 = vmatpush1.msra.mxu0 0.0
        %5621 = vmatprep.subr.mxu0 0.0
        %5622 = vmatpush1.msra.mxu0 0.0
        %5623 = vmatprep.subr.mxu0 0.0
        %5624 = vmatpush1.msra.mxu0 0.0
        %5625 = vmatprep.subr.mxu0 0.0
        %5626 = vmatpush1.msra.mxu0 0.0
        %5627 = vmatprep.subr.mxu0 0.0
        %5628 = vmatpush1.msra.mxu0 0.0
        %5629 = vmatprep.subr.mxu0 0.0
        %5630 = vmatpush1.msra.mxu0 0.0
        %5631 = vmatprep.subr.mxu0 0.0
        %5632 = vmatpush1.msra.mxu0 0.0
        %5633 = vmatprep.subr.mxu0 0.0
        %5634 = vmatpush1.msra.mxu0 0.0
        %5635 = vmatprep.subr.mxu0 0.0
        %5636 = vmatpush1.msra.mxu0 0.0
        %5637 = vmatprep.subr.mxu0 0.0
        %5638 = vmatpush1.msra.mxu0 0.0
        %5639 = vmatprep.subr.mxu0 0.0
        %5640 = vmatpush1.msra.mxu0 0.0
        %5641 = vmatprep.subr.mxu0 0.0
        %5642 = vmatpush1.msra.mxu0 0.0
        %5643 = vmatprep.subr.mxu0 0.0
        %5644 = vmatpush1.msra.mxu0 0.0
        %5645 = vmatprep.subr.mxu0 0.0
        %5646 = vmatpush1.msra.mxu0 0.0
        %5647 = vmatprep.subr.mxu0 0.0
        %5648 = vmatpush1.msra.mxu0 0.0
        %5649 = vmatprep.subr.mxu0 0.0
        %5650 = vmatpush1.msra.mxu0 0.0
        %5651 = vmatprep.subr.mxu0 0.0
        %5652 = vmatpush1.msra.mxu0 0.0
        %5653 = vmatprep.subr.mxu0 0.0
        %5654 = vmatpush1.msra.mxu0 0.0
        %5655 = vmatprep.subr.mxu0 0.0
        %5656 = vmatpush1.msra.mxu0 0.0
        %5657 = vmatprep.subr.mxu0 0.0
        %5658 = vmatpush1.msra.mxu0 0.0
        %5659 = vmatprep.subr.mxu0 0.0
        %5660 = vmatpush1.msra.mxu0 0.0
        %5661 = vmatprep.subr.mxu0 0.0
        %5662 = vmatpush1.msra.mxu0 0.0
        %5663 = vmatprep.subr.mxu0 0.0
        %5664 = vmatpush1.msra.mxu0 0.0
        %5665 = vmatprep.subr.mxu0 0.0
        %5666 = vmatpush1.msra.mxu0 0.0
        %5667 = vmatprep.subr.mxu0 0.0
        %5668 = vmatpush1.msra.mxu0 0.0
        %5669 = vmatprep.subr.mxu0 0.0
        %5670 = vmatpush1.msra.mxu0 0.0
        %5671 = vmatprep.subr.mxu0 0.0
        %5672 = vmatpush1.msra.mxu0 0.0
        %5673 = vmatprep.subr.mxu0 0.0
        %5674 = vmatpush1.msra.mxu0 0.0
        %5675 = vmatprep.subr.mxu0 0.0
        %5676 = vmatpush1.msra.mxu0 0.0
        %5677 = vmatprep.subr.mxu0 0.0
        %5678 = vmatpush1.msra.mxu0 0.0
        %5679 = vmatprep.mubr.f32.mxu0 0.0
        %v5680 = vand.u32 %v5386, 4294901760
        %v5681 = vsub.f32 %v5386, %v5680
        %v5682 = vand.u32 %v5681, 4294901760
        %5683 = vmatmul.mubr.f32.gmra.mrb[0].mxu0 %v5682
        %v5684 = vpop.f32.mrb[0].mxu0
        %v5685 = vadd.f32 %v5611, %v5684
        %v5686 = vpop.f32.mrb[0].mxu0
        %5687 = vdwg.mxu0
        %5688 = vmatprep.subr.mxu0 0.0
        %v5689 = vand.u32 %v5383, 4294901760
        %v5690 = vsub.f32 %v5383, %v5689
        %v5691 = vand.u32 %v5690, 4294901760
        %5692 = vmatpush1.msra.mxu0 %v5691
        %5693 = vmatprep.subr.mxu0 0.0
        %5694 = vmatpush1.msra.mxu0 0.0
        %5695 = vmatprep.subr.mxu0 0.0
        %5696 = vmatpush1.msra.mxu0 0.0
        %5697 = vmatprep.subr.mxu0 0.0
        %5698 = vmatpush1.msra.mxu0 0.0
        %5699 = vmatprep.subr.mxu0 0.0
        %5700 = vmatpush1.msra.mxu0 0.0
        %5701 = vmatprep.subr.mxu0 0.0
        %5702 = vmatpush1.msra.mxu0 0.0
        %5703 = vmatprep.subr.mxu0 0.0
        %5704 = vmatpush1.msra.mxu0 0.0
        %5705 = vmatprep.subr.mxu0 0.0
        %5706 = vmatpush1.msra.mxu0 0.0
        %5707 = vmatprep.subr.mxu0 0.0
        %5708 = vmatpush1.msra.mxu0 0.0
        %5709 = vmatprep.subr.mxu0 0.0
        %5710 = vmatpush1.msra.mxu0 0.0
        %5711 = vmatprep.subr.mxu0 0.0
        %5712 = vmatpush1.msra.mxu0 0.0
        %5713 = vmatprep.subr.mxu0 0.0
        %5714 = vmatpush1.msra.mxu0 0.0
        %5715 = vmatprep.subr.mxu0 0.0
        %5716 = vmatpush1.msra.mxu0 0.0
        %5717 = vmatprep.subr.mxu0 0.0
        %5718 = vmatpush1.msra.mxu0 0.0
        %5719 = vmatprep.subr.mxu0 0.0
        %5720 = vmatpush1.msra.mxu0 0.0
        %5721 = vmatprep.subr.mxu0 0.0
        %5722 = vmatpush1.msra.mxu0 0.0
        %5723 = vmatprep.subr.mxu0 0.0
        %5724 = vmatpush1.msra.mxu0 0.0
        %5725 = vmatprep.subr.mxu0 0.0
        %5726 = vmatpush1.msra.mxu0 0.0
        %5727 = vmatprep.subr.mxu0 0.0
        %5728 = vmatpush1.msra.mxu0 0.0
        %5729 = vmatprep.subr.mxu0 0.0
        %5730 = vmatpush1.msra.mxu0 0.0
        %5731 = vmatprep.subr.mxu0 0.0
        %5732 = vmatpush1.msra.mxu0 0.0
        %5733 = vmatprep.subr.mxu0 0.0
        %5734 = vmatpush1.msra.mxu0 0.0
        %5735 = vmatprep.subr.mxu0 0.0
        %5736 = vmatpush1.msra.mxu0 0.0
        %5737 = vmatprep.subr.mxu0 0.0
        %5738 = vmatpush1.msra.mxu0 0.0
        %5739 = vmatprep.subr.mxu0 0.0
        %5740 = vmatpush1.msra.mxu0 0.0
        %5741 = vmatprep.subr.mxu0 0.0
        %5742 = vmatpush1.msra.mxu0 0.0
        %5743 = vmatprep.subr.mxu0 0.0
        %5744 = vmatpush1.msra.mxu0 0.0
        %5745 = vmatprep.subr.mxu0 0.0
        %5746 = vmatpush1.msra.mxu0 0.0
        %5747 = vmatprep.subr.mxu0 0.0
        %5748 = vmatpush1.msra.mxu0 0.0
        %5749 = vmatprep.subr.mxu0 0.0
        %5750 = vmatpush1.msra.mxu0 0.0
        %5751 = vmatprep.subr.mxu0 0.0
        %5752 = vmatpush1.msra.mxu0 0.0
        %5753 = vmatprep.subr.mxu0 0.0
        %5754 = vmatpush1.msra.mxu0 0.0
        %5755 = vmatprep.mubr.f32.mxu0 0.0
        %v5756 = vand.u32 %v5386, 4294901760
        %5757 = vmatmul.mubr.f32.gmra.mrb[0].mxu0 %v5756
        %v5758 = vpop.f32.mrb[0].mxu0
        %v5759 = vadd.f32 %v5685, %v5758
        %v5760 = vpop.f32.mrb[0].mxu0
        %5761 = vdwg.mxu0
        %5762 = vmatprep.subr.mxu0 0.0
        %v5763 = vand.u32 %v5383, 4294901760
        %5764 = vmatpush1.msra.mxu0 %v5763
        %5765 = vmatprep.subr.mxu0 0.0
        %5766 = vmatpush1.msra.mxu0 0.0
        %5767 = vmatprep.subr.mxu0 0.0
        %5768 = vmatpush1.msra.mxu0 0.0
        %5769 = vmatprep.subr.mxu0 0.0
        %5770 = vmatpush1.msra.mxu0 0.0
        %5771 = vmatprep.subr.mxu0 0.0
        %5772 = vmatpush1.msra.mxu0 0.0
        %5773 = vmatprep.subr.mxu0 0.0
        %5774 = vmatpush1.msra.mxu0 0.0
        %5775 = vmatprep.subr.mxu0 0.0
        %5776 = vmatpush1.msra.mxu0 0.0
        %5777 = vmatprep.subr.mxu0 0.0
        %5778 = vmatpush1.msra.mxu0 0.0
        %5779 = vmatprep.subr.mxu0 0.0
        %5780 = vmatpush1.msra.mxu0 0.0
        %5781 = vmatprep.subr.mxu0 0.0
        %5782 = vmatpush1.msra.mxu0 0.0
        %5783 = vmatprep.subr.mxu0 0.0
        %5784 = vmatpush1.msra.mxu0 0.0
        %5785 = vmatprep.subr.mxu0 0.0
        %5786 = vmatpush1.msra.mxu0 0.0
        %5787 = vmatprep.subr.mxu0 0.0
        %5788 = vmatpush1.msra.mxu0 0.0
        %5789 = vmatprep.subr.mxu0 0.0
        %5790 = vmatpush1.msra.mxu0 0.0
        %5791 = vmatprep.subr.mxu0 0.0
        %5792 = vmatpush1.msra.mxu0 0.0
        %5793 = vmatprep.subr.mxu0 0.0
        %5794 = vmatpush1.msra.mxu0 0.0
        %5795 = vmatprep.subr.mxu0 0.0
        %5796 = vmatpush1.msra.mxu0 0.0
        %5797 = vmatprep.subr.mxu0 0.0
        %5798 = vmatpush1.msra.mxu0 0.0
        %5799 = vmatprep.subr.mxu0 0.0
        %5800 = vmatpush1.msra.mxu0 0.0
        %5801 = vmatprep.subr.mxu0 0.0
        %5802 = vmatpush1.msra.mxu0 0.0
        %5803 = vmatprep.subr.mxu0 0.0
        %5804 = vmatpush1.msra.mxu0 0.0
        %5805 = vmatprep.subr.mxu0 0.0
        %5806 = vmatpush1.msra.mxu0 0.0
        %5807 = vmatprep.subr.mxu0 0.0
        %5808 = vmatpush1.msra.mxu0 0.0
        %5809 = vmatprep.subr.mxu0 0.0
        %5810 = vmatpush1.msra.mxu0 0.0
        %5811 = vmatprep.subr.mxu0 0.0
        %5812 = vmatpush1.msra.mxu0 0.0
        %5813 = vmatprep.subr.mxu0 0.0
        %5814 = vmatpush1.msra.mxu0 0.0
        %5815 = vmatprep.subr.mxu0 0.0
        %5816 = vmatpush1.msra.mxu0 0.0
        %5817 = vmatprep.subr.mxu0 0.0
        %5818 = vmatpush1.msra.mxu0 0.0
        %5819 = vmatprep.subr.mxu0 0.0
        %5820 = vmatpush1.msra.mxu0 0.0
        %5821 = vmatprep.subr.mxu0 0.0
        %5822 = vmatpush1.msra.mxu0 0.0
        %5823 = vmatprep.subr.mxu0 0.0
        %5824 = vmatpush1.msra.mxu0 0.0
        %5825 = vmatprep.subr.mxu0 0.0
        %5826 = vmatpush1.msra.mxu0 0.0
        %5827 = vmatprep.mubr.f32.mxu0 0.0
        %v5828 = vand.u32 %v5386, 4294901760
        %5829 = vmatmul.mubr.f32.gmra.mrb[0].mxu0 %v5828
        %v5830 = vpop.f32.mrb[0].mxu0
        %v5831 = vadd.f32 %v5759, %v5830
        %v5832 = vpop.f32.mrb[0].mxu0
        %5833 = vdwg.mxu0
        %5834 = vrot.lane.b32.xlu0 %v742, 64
        %v5835 = vpop.permute.xlu0 %5834
        %v5838 = vsel %vm767, %v4473, 0
        %5840 = vmatprep.subr.mxu0 0.0
        %v5841 = vand.u32 %v5835, 4294901760
        %5842 = vmatpush1.msra.mxu0 %v5841
        %5843 = vmatprep.subr.mxu0 0.0
        %5844 = vmatpush1.msra.mxu0 0.0
        %5845 = vmatprep.subr.mxu0 0.0
        %5846 = vmatpush1.msra.mxu0 0.0
        %5847 = vmatprep.subr.mxu0 0.0
        %5848 = vmatpush1.msra.mxu0 0.0
        %5849 = vmatprep.subr.mxu0 0.0
        %5850 = vmatpush1.msra.mxu0 0.0
        %5851 = vmatprep.subr.mxu0 0.0
        %5852 = vmatpush1.msra.mxu0 0.0
        %5853 = vmatprep.subr.mxu0 0.0
        %5854 = vmatpush1.msra.mxu0 0.0
        %5855 = vmatprep.subr.mxu0 0.0
        %5856 = vmatpush1.msra.mxu0 0.0
        %5857 = vmatprep.subr.mxu0 0.0
        %5858 = vmatpush1.msra.mxu0 0.0
        %5859 = vmatprep.subr.mxu0 0.0
        %5860 = vmatpush1.msra.mxu0 0.0
        %5861 = vmatprep.subr.mxu0 0.0
        %5862 = vmatpush1.msra.mxu0 0.0
        %5863 = vmatprep.subr.mxu0 0.0
        %5864 = vmatpush1.msra.mxu0 0.0
        %5865 = vmatprep.subr.mxu0 0.0
        %5866 = vmatpush1.msra.mxu0 0.0
        %5867 = vmatprep.subr.mxu0 0.0
        %5868 = vmatpush1.msra.mxu0 0.0
        %5869 = vmatprep.subr.mxu0 0.0
        %5870 = vmatpush1.msra.mxu0 0.0
        %5871 = vmatprep.subr.mxu0 0.0
        %5872 = vmatpush1.msra.mxu0 0.0
        %5873 = vmatprep.subr.mxu0 0.0
        %5874 = vmatpush1.msra.mxu0 0.0
        %5875 = vmatprep.subr.mxu0 0.0
        %5876 = vmatpush1.msra.mxu0 0.0
        %5877 = vmatprep.subr.mxu0 0.0
        %5878 = vmatpush1.msra.mxu0 0.0
        %5879 = vmatprep.subr.mxu0 0.0
        %5880 = vmatpush1.msra.mxu0 0.0
        %5881 = vmatprep.subr.mxu0 0.0
        %5882 = vmatpush1.msra.mxu0 0.0
        %5883 = vmatprep.subr.mxu0 0.0
        %5884 = vmatpush1.msra.mxu0 0.0
        %5885 = vmatprep.subr.mxu0 0.0
        %5886 = vmatpush1.msra.mxu0 0.0
        %5887 = vmatprep.subr.mxu0 0.0
        %5888 = vmatpush1.msra.mxu0 0.0
        %5889 = vmatprep.subr.mxu0 0.0
        %5890 = vmatpush1.msra.mxu0 0.0
        %5891 = vmatprep.subr.mxu0 0.0
        %5892 = vmatpush1.msra.mxu0 0.0
        %5893 = vmatprep.subr.mxu0 0.0
        %5894 = vmatpush1.msra.mxu0 0.0
        %5895 = vmatprep.subr.mxu0 0.0
        %5896 = vmatpush1.msra.mxu0 0.0
        %5897 = vmatprep.subr.mxu0 0.0
        %5898 = vmatpush1.msra.mxu0 0.0
        %5899 = vmatprep.subr.mxu0 0.0
        %5900 = vmatpush1.msra.mxu0 0.0
        %5901 = vmatprep.subr.mxu0 0.0
        %5902 = vmatpush1.msra.mxu0 0.0
        %5903 = vmatprep.subr.mxu0 0.0
        %5904 = vmatpush1.msra.mxu0 0.0
        %5905 = vmatprep.mubr.f32.mxu0 0.0
        %v5906 = vand.u32 %v5838, 4294901760
        %v5907 = vsub.f32 %v5838, %v5906
        %v5908 = vand.u32 %v5907, 4294901760
        %v5909 = vsub.f32 %v5907, %v5908
        %v5910 = vand.u32 %v5909, 4294901760
        %5911 = vmatmul.mubr.f32.gmra.mrb[0].mxu0 %v5910
        %v5912 = vpop.f32.mrb[0].mxu0
        %v5913 = vadd.f32 0.0, %v5912
        %v5914 = vpop.f32.mrb[0].mxu0
        %5915 = vdwg.mxu0
        %5916 = vmatprep.subr.mxu0 0.0
        %v5917 = vand.u32 %v5835, 4294901760
        %v5918 = vsub.f32 %v5835, %v5917
        %v5919 = vand.u32 %v5918, 4294901760
        %v5920 = vsub.f32 %v5918, %v5919
        %v5921 = vand.u32 %v5920, 4294901760
        %5922 = vmatpush1.msra.mxu0 %v5921
        %5923 = vmatprep.subr.mxu0 0.0
        %5924 = vmatpush1.msra.mxu0 0.0
        %5925 = vmatprep.subr.mxu0 0.0
        %5926 = vmatpush1.msra.mxu0 0.0
        %5927 = vmatprep.subr.mxu0 0.0
        %5928 = vmatpush1.msra.mxu0 0.0
        %5929 = vmatprep.subr.mxu0 0.0
        %5930 = vmatpush1.msra.mxu0 0.0
        %5931 = vmatprep.subr.mxu0 0.0
        %5932 = vmatpush1.msra.mxu0 0.0
        %5933 = vmatprep.subr.mxu0 0.0
        %5934 = vmatpush1.msra.mxu0 0.0
        %5935 = vmatprep.subr.mxu0 0.0
        %5936 = vmatpush1.msra.mxu0 0.0
        %5937 = vmatprep.subr.mxu0 0.0
        %5938 = vmatpush1.msra.mxu0 0.0
        %5939 = vmatprep.subr.mxu0 0.0
        %5940 = vmatpush1.msra.mxu0 0.0
        %5941 = vmatprep.subr.mxu0 0.0
        %5942 = vmatpush1.msra.mxu0 0.0
        %5943 = vmatprep.subr.mxu0 0.0
        %5944 = vmatpush1.msra.mxu0 0.0
        %5945 = vmatprep.subr.mxu0 0.0
        %5946 = vmatpush1.msra.mxu0 0.0
        %5947 = vmatprep.subr.mxu0 0.0
        %5948 = vmatpush1.msra.mxu0 0.0
        %5949 = vmatprep.subr.mxu0 0.0
        %5950 = vmatpush1.msra.mxu0 0.0
        %5951 = vmatprep.subr.mxu0 0.0
        %5952 = vmatpush1.msra.mxu0 0.0
        %5953 = vmatprep.subr.mxu0 0.0
        %5954 = vmatpush1.msra.mxu0 0.0
        %5955 = vmatprep.subr.mxu0 0.0
        %5956 = vmatpush1.msra.mxu0 0.0
        %5957 = vmatprep.subr.mxu0 0.0
        %5958 = vmatpush1.msra.mxu0 0.0
        %5959 = vmatprep.subr.mxu0 0.0
        %5960 = vmatpush1.msra.mxu0 0.0
        %5961 = vmatprep.subr.mxu0 0.0
        %5962 = vmatpush1.msra.mxu0 0.0
        %5963 = vmatprep.subr.mxu0 0.0
        %5964 = vmatpush1.msra.mxu0 0.0
        %5965 = vmatprep.subr.mxu0 0.0
        %5966 = vmatpush1.msra.mxu0 0.0
        %5967 = vmatprep.subr.mxu0 0.0
        %5968 = vmatpush1.msra.mxu0 0.0
        %5969 = vmatprep.subr.mxu0 0.0
        %5970 = vmatpush1.msra.mxu0 0.0
        %5971 = vmatprep.subr.mxu0 0.0
        %5972 = vmatpush1.msra.mxu0 0.0
        %5973 = vmatprep.subr.mxu0 0.0
        %5974 = vmatpush1.msra.mxu0 0.0
        %5975 = vmatprep.subr.mxu0 0.0
        %5976 = vmatpush1.msra.mxu0 0.0
        %5977 = vmatprep.subr.mxu0 0.0
        %5978 = vmatpush1.msra.mxu0 0.0
        %5979 = vmatprep.subr.mxu0 0.0
        %5980 = vmatpush1.msra.mxu0 0.0
        %5981 = vmatprep.subr.mxu0 0.0
        %5982 = vmatpush1.msra.mxu0 0.0
        %5983 = vmatprep.subr.mxu0 0.0
        %5984 = vmatpush1.msra.mxu0 0.0
        %5985 = vmatprep.mubr.f32.mxu0 0.0
        %v5986 = vand.u32 %v5838, 4294901760
        %5987 = vmatmul.mubr.f32.gmra.mrb[0].mxu0 %v5986
        %v5988 = vpop.f32.mrb[0].mxu0
        %v5989 = vadd.f32 %v5913, %v5988
        %v5990 = vpop.f32.mrb[0].mxu0
        %5991 = vdwg.mxu0
        %5992 = vmatprep.subr.mxu0 0.0
        %v5993 = vand.u32 %v5835, 4294901760
        %v5994 = vsub.f32 %v5835, %v5993
        %5995 = vmatpush1.msra.mxu0 %v5994
        %5996 = vmatprep.subr.mxu0 0.0
        %5997 = vmatpush1.msra.mxu0 0.0
        %5998 = vmatprep.subr.mxu0 0.0
        %5999 = vmatpush1.msra.mxu0 0.0
        %6000 = vmatprep.subr.mxu0 0.0
        %6001 = vmatpush1.msra.mxu0 0.0
        %6002 = vmatprep.subr.mxu0 0.0
        %6003 = vmatpush1.msra.mxu0 0.0
        %6004 = vmatprep.subr.mxu0 0.0
        %6005 = vmatpush1.msra.mxu0 0.0
        %6006 = vmatprep.subr.mxu0 0.0
        %6007 = vmatpush1.msra.mxu0 0.0
        %6008 = vmatprep.subr.mxu0 0.0
        %6009 = vmatpush1.msra.mxu0 0.0
        %6010 = vmatprep.subr.mxu0 0.0
        %6011 = vmatpush1.msra.mxu0 0.0
        %6012 = vmatprep.subr.mxu0 0.0
        %6013 = vmatpush1.msra.mxu0 0.0
        %6014 = vmatprep.subr.mxu0 0.0
        %6015 = vmatpush1.msra.mxu0 0.0
        %6016 = vmatprep.subr.mxu0 0.0
        %6017 = vmatpush1.msra.mxu0 0.0
        %6018 = vmatprep.subr.mxu0 0.0
        %6019 = vmatpush1.msra.mxu0 0.0
        %6020 = vmatprep.subr.mxu0 0.0
        %6021 = vmatpush1.msra.mxu0 0.0
        %6022 = vmatprep.subr.mxu0 0.0
        %6023 = vmatpush1.msra.mxu0 0.0
        %6024 = vmatprep.subr.mxu0 0.0
        %6025 = vmatpush1.msra.mxu0 0.0
        %6026 = vmatprep.subr.mxu0 0.0
        %6027 = vmatpush1.msra.mxu0 0.0
        %6028 = vmatprep.subr.mxu0 0.0
        %6029 = vmatpush1.msra.mxu0 0.0
        %6030 = vmatprep.subr.mxu0 0.0
        %6031 = vmatpush1.msra.mxu0 0.0
        %6032 = vmatprep.subr.mxu0 0.0
        %6033 = vmatpush1.msra.mxu0 0.0
        %6034 = vmatprep.subr.mxu0 0.0
        %6035 = vmatpush1.msra.mxu0 0.0
        %6036 = vmatprep.subr.mxu0 0.0
        %6037 = vmatpush1.msra.mxu0 0.0
        %6038 = vmatprep.subr.mxu0 0.0
        %6039 = vmatpush1.msra.mxu0 0.0
        %6040 = vmatprep.subr.mxu0 0.0
        %6041 = vmatpush1.msra.mxu0 0.0
        %6042 = vmatprep.subr.mxu0 0.0
        %6043 = vmatpush1.msra.mxu0 0.0
        %6044 = vmatprep.subr.mxu0 0.0
        %6045 = vmatpush1.msra.mxu0 0.0
        %6046 = vmatprep.subr.mxu0 0.0
        %6047 = vmatpush1.msra.mxu0 0.0
        %6048 = vmatprep.subr.mxu0 0.0
        %6049 = vmatpush1.msra.mxu0 0.0
        %6050 = vmatprep.subr.mxu0 0.0
        %6051 = vmatpush1.msra.mxu0 0.0
        %6052 = vmatprep.subr.mxu0 0.0
        %6053 = vmatpush1.msra.mxu0 0.0
        %6054 = vmatprep.subr.mxu0 0.0
        %6055 = vmatpush1.msra.mxu0 0.0
        %6056 = vmatprep.subr.mxu0 0.0
        %6057 = vmatpush1.msra.mxu0 0.0
        %6058 = vmatprep.mubr.f32.mxu0 0.0
        %v6059 = vand.u32 %v5838, 4294901760
        %v6060 = vsub.f32 %v5838, %v6059
        %6061 = vmatmul.mubr.f32.gmra.mrb[0].mxu0 %v6060
        %v6062 = vpop.f32.mrb[0].mxu0
        %v6063 = vadd.f32 %v5989, %v6062
        %v6064 = vpop.f32.mrb[0].mxu0
        %6065 = vdwg.mxu0
        %6066 = vmatprep.subr.mxu0 0.0
        %v6067 = vand.u32 %v5835, 4294901760
        %6068 = vmatpush1.msra.mxu0 %v6067
        %6069 = vmatprep.subr.mxu0 0.0
        %6070 = vmatpush1.msra.mxu0 0.0
        %6071 = vmatprep.subr.mxu0 0.0
        %6072 = vmatpush1.msra.mxu0 0.0
        %6073 = vmatprep.subr.mxu0 0.0
        %6074 = vmatpush1.msra.mxu0 0.0
        %6075 = vmatprep.subr.mxu0 0.0
        %6076 = vmatpush1.msra.mxu0 0.0
        %6077 = vmatprep.subr.mxu0 0.0
        %6078 = vmatpush1.msra.mxu0 0.0
        %6079 = vmatprep.subr.mxu0 0.0
        %6080 = vmatpush1.msra.mxu0 0.0
        %6081 = vmatprep.subr.mxu0 0.0
        %6082 = vmatpush1.msra.mxu0 0.0
        %6083 = vmatprep.subr.mxu0 0.0
        %6084 = vmatpush1.msra.mxu0 0.0
        %6085 = vmatprep.subr.mxu0 0.0
        %6086 = vmatpush1.msra.mxu0 0.0
        %6087 = vmatprep.subr.mxu0 0.0
        %6088 = vmatpush1.msra.mxu0 0.0
        %6089 = vmatprep.subr.mxu0 0.0
        %6090 = vmatpush1.msra.mxu0 0.0
        %6091 = vmatprep.subr.mxu0 0.0
        %6092 = vmatpush1.msra.mxu0 0.0
        %6093 = vmatprep.subr.mxu0 0.0
        %6094 = vmatpush1.msra.mxu0 0.0
        %6095 = vmatprep.subr.mxu0 0.0
        %6096 = vmatpush1.msra.mxu0 0.0
        %6097 = vmatprep.subr.mxu0 0.0
        %6098 = vmatpush1.msra.mxu0 0.0
        %6099 = vmatprep.subr.mxu0 0.0
        %6100 = vmatpush1.msra.mxu0 0.0
        %6101 = vmatprep.subr.mxu0 0.0
        %6102 = vmatpush1.msra.mxu0 0.0
        %6103 = vmatprep.subr.mxu0 0.0
        %6104 = vmatpush1.msra.mxu0 0.0
        %6105 = vmatprep.subr.mxu0 0.0
        %6106 = vmatpush1.msra.mxu0 0.0
        %6107 = vmatprep.subr.mxu0 0.0
        %6108 = vmatpush1.msra.mxu0 0.0
        %6109 = vmatprep.subr.mxu0 0.0
        %6110 = vmatpush1.msra.mxu0 0.0
        %6111 = vmatprep.subr.mxu0 0.0
        %6112 = vmatpush1.msra.mxu0 0.0
        %6113 = vmatprep.subr.mxu0 0.0
        %6114 = vmatpush1.msra.mxu0 0.0
        %6115 = vmatprep.subr.mxu0 0.0
        %6116 = vmatpush1.msra.mxu0 0.0
        %6117 = vmatprep.subr.mxu0 0.0
        %6118 = vmatpush1.msra.mxu0 0.0
        %6119 = vmatprep.subr.mxu0 0.0
        %6120 = vmatpush1.msra.mxu0 0.0
        %6121 = vmatprep.subr.mxu0 0.0
        %6122 = vmatpush1.msra.mxu0 0.0
        %6123 = vmatprep.subr.mxu0 0.0
        %6124 = vmatpush1.msra.mxu0 0.0
        %6125 = vmatprep.subr.mxu0 0.0
        %6126 = vmatpush1.msra.mxu0 0.0
        %6127 = vmatprep.subr.mxu0 0.0
        %6128 = vmatpush1.msra.mxu0 0.0
        %6129 = vmatprep.subr.mxu0 0.0
        %6130 = vmatpush1.msra.mxu0 0.0
        %6131 = vmatprep.mubr.f32.mxu0 0.0
        %v6132 = vand.u32 %v5838, 4294901760
        %v6133 = vsub.f32 %v5838, %v6132
        %v6134 = vand.u32 %v6133, 4294901760
        %6135 = vmatmul.mubr.f32.gmra.mrb[0].mxu0 %v6134
        %v6136 = vpop.f32.mrb[0].mxu0
        %v6137 = vadd.f32 %v6063, %v6136
        %v6138 = vpop.f32.mrb[0].mxu0
        %6139 = vdwg.mxu0
        %6140 = vmatprep.subr.mxu0 0.0
        %v6141 = vand.u32 %v5835, 4294901760
        %v6142 = vsub.f32 %v5835, %v6141
        %v6143 = vand.u32 %v6142, 4294901760
        %6144 = vmatpush1.msra.mxu0 %v6143
        %6145 = vmatprep.subr.mxu0 0.0
        %6146 = vmatpush1.msra.mxu0 0.0
        %6147 = vmatprep.subr.mxu0 0.0
        %6148 = vmatpush1.msra.mxu0 0.0
        %6149 = vmatprep.subr.mxu0 0.0
        %6150 = vmatpush1.msra.mxu0 0.0
        %6151 = vmatprep.subr.mxu0 0.0
        %6152 = vmatpush1.msra.mxu0 0.0
        %6153 = vmatprep.subr.mxu0 0.0
        %6154 = vmatpush1.msra.mxu0 0.0
        %6155 = vmatprep.subr.mxu0 0.0
        %6156 = vmatpush1.msra.mxu0 0.0
        %6157 = vmatprep.subr.mxu0 0.0
        %6158 = vmatpush1.msra.mxu0 0.0
        %6159 = vmatprep.subr.mxu0 0.0
        %6160 = vmatpush1.msra.mxu0 0.0
        %6161 = vmatprep.subr.mxu0 0.0
        %6162 = vmatpush1.msra.mxu0 0.0
        %6163 = vmatprep.subr.mxu0 0.0
        %6164 = vmatpush1.msra.mxu0 0.0
        %6165 = vmatprep.subr.mxu0 0.0
        %6166 = vmatpush1.msra.mxu0 0.0
        %6167 = vmatprep.subr.mxu0 0.0
        %6168 = vmatpush1.msra.mxu0 0.0
        %6169 = vmatprep.subr.mxu0 0.0
        %6170 = vmatpush1.msra.mxu0 0.0
        %6171 = vmatprep.subr.mxu0 0.0
        %6172 = vmatpush1.msra.mxu0 0.0
        %6173 = vmatprep.subr.mxu0 0.0
        %6174 = vmatpush1.msra.mxu0 0.0
        %6175 = vmatprep.subr.mxu0 0.0
        %6176 = vmatpush1.msra.mxu0 0.0
        %6177 = vmatprep.subr.mxu0 0.0
        %6178 = vmatpush1.msra.mxu0 0.0
        %6179 = vmatprep.subr.mxu0 0.0
        %6180 = vmatpush1.msra.mxu0 0.0
        %6181 = vmatprep.subr.mxu0 0.0
        %6182 = vmatpush1.msra.mxu0 0.0
        %6183 = vmatprep.subr.mxu0 0.0
        %6184 = vmatpush1.msra.mxu0 0.0
        %6185 = vmatprep.subr.mxu0 0.0
        %6186 = vmatpush1.msra.mxu0 0.0
        %6187 = vmatprep.subr.mxu0 0.0
        %6188 = vmatpush1.msra.mxu0 0.0
        %6189 = vmatprep.subr.mxu0 0.0
        %6190 = vmatpush1.msra.mxu0 0.0
        %6191 = vmatprep.subr.mxu0 0.0
        %6192 = vmatpush1.msra.mxu0 0.0
        %6193 = vmatprep.subr.mxu0 0.0
        %6194 = vmatpush1.msra.mxu0 0.0
        %6195 = vmatprep.subr.mxu0 0.0
        %6196 = vmatpush1.msra.mxu0 0.0
        %6197 = vmatprep.subr.mxu0 0.0
        %6198 = vmatpush1.msra.mxu0 0.0
        %6199 = vmatprep.subr.mxu0 0.0
        %6200 = vmatpush1.msra.mxu0 0.0
        %6201 = vmatprep.subr.mxu0 0.0
        %6202 = vmatpush1.msra.mxu0 0.0
        %6203 = vmatprep.subr.mxu0 0.0
        %6204 = vmatpush1.msra.mxu0 0.0
        %6205 = vmatprep.subr.mxu0 0.0
        %6206 = vmatpush1.msra.mxu0 0.0
        %6207 = vmatprep.mubr.f32.mxu0 0.0
        %v6208 = vand.u32 %v5838, 4294901760
        %6209 = vmatmul.mubr.f32.gmra.mrb[0].mxu0 %v6208
        %v6210 = vpop.f32.mrb[0].mxu0
        %v6211 = vadd.f32 %v6137, %v6210
        %v6212 = vpop.f32.mrb[0].mxu0
        %6213 = vdwg.mxu0
        %6214 = vmatprep.subr.mxu0 0.0
        %v6215 = vand.u32 %v5835, 4294901760
        %6216 = vmatpush1.msra.mxu0 %v6215
        %6217 = vmatprep.subr.mxu0 0.0
        %6218 = vmatpush1.msra.mxu0 0.0
        %6219 = vmatprep.subr.mxu0 0.0
        %6220 = vmatpush1.msra.mxu0 0.0
        %6221 = vmatprep.subr.mxu0 0.0
        %6222 = vmatpush1.msra.mxu0 0.0
        %6223 = vmatprep.subr.mxu0 0.0
        %6224 = vmatpush1.msra.mxu0 0.0
        %6225 = vmatprep.subr.mxu0 0.0
        %6226 = vmatpush1.msra.mxu0 0.0
        %6227 = vmatprep.subr.mxu0 0.0
        %6228 = vmatpush1.msra.mxu0 0.0
        %6229 = vmatprep.subr.mxu0 0.0
        %6230 = vmatpush1.msra.mxu0 0.0
        %6231 = vmatprep.subr.mxu0 0.0
        %6232 = vmatpush1.msra.mxu0 0.0
        %6233 = vmatprep.subr.mxu0 0.0
        %6234 = vmatpush1.msra.mxu0 0.0
        %6235 = vmatprep.subr.mxu0 0.0
        %6236 = vmatpush1.msra.mxu0 0.0
        %6237 = vmatprep.subr.mxu0 0.0
        %6238 = vmatpush1.msra.mxu0 0.0
        %6239 = vmatprep.subr.mxu0 0.0
        %6240 = vmatpush1.msra.mxu0 0.0
        %6241 = vmatprep.subr.mxu0 0.0
        %6242 = vmatpush1.msra.mxu0 0.0
        %6243 = vmatprep.subr.mxu0 0.0
        %6244 = vmatpush1.msra.mxu0 0.0
        %6245 = vmatprep.subr.mxu0 0.0
        %6246 = vmatpush1.msra.mxu0 0.0
        %6247 = vmatprep.subr.mxu0 0.0
        %6248 = vmatpush1.msra.mxu0 0.0
        %6249 = vmatprep.subr.mxu0 0.0
        %6250 = vmatpush1.msra.mxu0 0.0
        %6251 = vmatprep.subr.mxu0 0.0
        %6252 = vmatpush1.msra.mxu0 0.0
        %6253 = vmatprep.subr.mxu0 0.0
        %6254 = vmatpush1.msra.mxu0 0.0
        %6255 = vmatprep.subr.mxu0 0.0
        %6256 = vmatpush1.msra.mxu0 0.0
        %6257 = vmatprep.subr.mxu0 0.0
        %6258 = vmatpush1.msra.mxu0 0.0
        %6259 = vmatprep.subr.mxu0 0.0
        %6260 = vmatpush1.msra.mxu0 0.0
        %6261 = vmatprep.subr.mxu0 0.0
        %6262 = vmatpush1.msra.mxu0 0.0
        %6263 = vmatprep.subr.mxu0 0.0
        %6264 = vmatpush1.msra.mxu0 0.0
        %6265 = vmatprep.subr.mxu0 0.0
        %6266 = vmatpush1.msra.mxu0 0.0
        %6267 = vmatprep.subr.mxu0 0.0
        %6268 = vmatpush1.msra.mxu0 0.0
        %6269 = vmatprep.subr.mxu0 0.0
        %6270 = vmatpush1.msra.mxu0 0.0
        %6271 = vmatprep.subr.mxu0 0.0
        %6272 = vmatpush1.msra.mxu0 0.0
        %6273 = vmatprep.subr.mxu0 0.0
        %6274 = vmatpush1.msra.mxu0 0.0
        %6275 = vmatprep.subr.mxu0 0.0
        %6276 = vmatpush1.msra.mxu0 0.0
        %6277 = vmatprep.subr.mxu0 0.0
        %6278 = vmatpush1.msra.mxu0 0.0
        %6279 = vmatprep.mubr.f32.mxu0 0.0
        %v6280 = vand.u32 %v5838, 4294901760
        %6281 = vmatmul.mubr.f32.gmra.mrb[0].mxu0 %v6280
        %v6282 = vpop.f32.mrb[0].mxu0
        %v6283 = vadd.f32 %v6211, %v6282
        %v6284 = vpop.f32.mrb[0].mxu0
        %6285 = vdwg.mxu0
        %6286 = vrot.lane.b32.xlu0 %v746, 64
        %v6287 = vpop.permute.xlu0 %6286
        %v6290 = vsel %vm767, %v4474, 0
        %6292 = vmatprep.subr.mxu0 0.0
        %v6293 = vand.u32 %v6287, 4294901760
        %6294 = vmatpush1.msra.mxu0 %v6293
        %6295 = vmatprep.subr.mxu0 0.0
        %6296 = vmatpush1.msra.mxu0 0.0
        %6297 = vmatprep.subr.mxu0 0.0
        %6298 = vmatpush1.msra.mxu0 0.0
        %6299 = vmatprep.subr.mxu0 0.0
        %6300 = vmatpush1.msra.mxu0 0.0
        %6301 = vmatprep.subr.mxu0 0.0
        %6302 = vmatpush1.msra.mxu0 0.0
        %6303 = vmatprep.subr.mxu0 0.0
        %6304 = vmatpush1.msra.mxu0 0.0
        %6305 = vmatprep.subr.mxu0 0.0
        %6306 = vmatpush1.msra.mxu0 0.0
        %6307 = vmatprep.subr.mxu0 0.0
        %6308 = vmatpush1.msra.mxu0 0.0
        %6309 = vmatprep.subr.mxu0 0.0
        %6310 = vmatpush1.msra.mxu0 0.0
        %6311 = vmatprep.subr.mxu0 0.0
        %6312 = vmatpush1.msra.mxu0 0.0
        %6313 = vmatprep.subr.mxu0 0.0
        %6314 = vmatpush1.msra.mxu0 0.0
        %6315 = vmatprep.subr.mxu0 0.0
        %6316 = vmatpush1.msra.mxu0 0.0
        %6317 = vmatprep.subr.mxu0 0.0
        %6318 = vmatpush1.msra.mxu0 0.0
        %6319 = vmatprep.subr.mxu0 0.0
        %6320 = vmatpush1.msra.mxu0 0.0
        %6321 = vmatprep.subr.mxu0 0.0
        %6322 = vmatpush1.msra.mxu0 0.0
        %6323 = vmatprep.subr.mxu0 0.0
        %6324 = vmatpush1.msra.mxu0 0.0
        %6325 = vmatprep.subr.mxu0 0.0
        %6326 = vmatpush1.msra.mxu0 0.0
        %6327 = vmatprep.subr.mxu0 0.0
        %6328 = vmatpush1.msra.mxu0 0.0
        %6329 = vmatprep.subr.mxu0 0.0
        %6330 = vmatpush1.msra.mxu0 0.0
        %6331 = vmatprep.subr.mxu0 0.0
        %6332 = vmatpush1.msra.mxu0 0.0
        %6333 = vmatprep.subr.mxu0 0.0
        %6334 = vmatpush1.msra.mxu0 0.0
        %6335 = vmatprep.subr.mxu0 0.0
        %6336 = vmatpush1.msra.mxu0 0.0
        %6337 = vmatprep.subr.mxu0 0.0
        %6338 = vmatpush1.msra.mxu0 0.0
        %6339 = vmatprep.subr.mxu0 0.0
        %6340 = vmatpush1.msra.mxu0 0.0
        %6341 = vmatprep.subr.mxu0 0.0
        %6342 = vmatpush1.msra.mxu0 0.0
        %6343 = vmatprep.subr.mxu0 0.0
        %6344 = vmatpush1.msra.mxu0 0.0
        %6345 = vmatprep.subr.mxu0 0.0
        %6346 = vmatpush1.msra.mxu0 0.0
        %6347 = vmatprep.subr.mxu0 0.0
        %6348 = vmatpush1.msra.mxu0 0.0
        %6349 = vmatprep.subr.mxu0 0.0
        %6350 = vmatpush1.msra.mxu0 0.0
        %6351 = vmatprep.subr.mxu0 0.0
        %6352 = vmatpush1.msra.mxu0 0.0
        %6353 = vmatprep.subr.mxu0 0.0
        %6354 = vmatpush1.msra.mxu0 0.0
        %6355 = vmatprep.subr.mxu0 0.0
        %6356 = vmatpush1.msra.mxu0 0.0
        %6357 = vmatprep.mubr.f32.mxu0 0.0
        %v6358 = vand.u32 %v6290, 4294901760
        %v6359 = vsub.f32 %v6290, %v6358
        %v6360 = vand.u32 %v6359, 4294901760
        %v6361 = vsub.f32 %v6359, %v6360
        %v6362 = vand.u32 %v6361, 4294901760
        %6363 = vmatmul.mubr.f32.gmra.mrb[0].mxu0 %v6362
        %v6364 = vpop.f32.mrb[0].mxu0
        %v6365 = vadd.f32 0.0, %v6364
        %v6366 = vpop.f32.mrb[0].mxu0
        %6367 = vdwg.mxu0
        %6368 = vmatprep.subr.mxu0 0.0
        %v6369 = vand.u32 %v6287, 4294901760
        %v6370 = vsub.f32 %v6287, %v6369
        %v6371 = vand.u32 %v6370, 4294901760
        %v6372 = vsub.f32 %v6370, %v6371
        %v6373 = vand.u32 %v6372, 4294901760
        %6374 = vmatpush1.msra.mxu0 %v6373
        %6375 = vmatprep.subr.mxu0 0.0
        %6376 = vmatpush1.msra.mxu0 0.0
        %6377 = vmatprep.subr.mxu0 0.0
        %6378 = vmatpush1.msra.mxu0 0.0
        %6379 = vmatprep.subr.mxu0 0.0
        %6380 = vmatpush1.msra.mxu0 0.0
        %6381 = vmatprep.subr.mxu0 0.0
        %6382 = vmatpush1.msra.mxu0 0.0
        %6383 = vmatprep.subr.mxu0 0.0
        %6384 = vmatpush1.msra.mxu0 0.0
        %6385 = vmatprep.subr.mxu0 0.0
        %6386 = vmatpush1.msra.mxu0 0.0
        %6387 = vmatprep.subr.mxu0 0.0
        %6388 = vmatpush1.msra.mxu0 0.0
        %6389 = vmatprep.subr.mxu0 0.0
        %6390 = vmatpush1.msra.mxu0 0.0
        %6391 = vmatprep.subr.mxu0 0.0
        %6392 = vmatpush1.msra.mxu0 0.0
        %6393 = vmatprep.subr.mxu0 0.0
        %6394 = vmatpush1.msra.mxu0 0.0
        %6395 = vmatprep.subr.mxu0 0.0
        %6396 = vmatpush1.msra.mxu0 0.0
        %6397 = vmatprep.subr.mxu0 0.0
        %6398 = vmatpush1.msra.mxu0 0.0
        %6399 = vmatprep.subr.mxu0 0.0
        %6400 = vmatpush1.msra.mxu0 0.0
        %6401 = vmatprep.subr.mxu0 0.0
        %6402 = vmatpush1.msra.mxu0 0.0
        %6403 = vmatprep.subr.mxu0 0.0
        %6404 = vmatpush1.msra.mxu0 0.0
        %6405 = vmatprep.subr.mxu0 0.0
        %6406 = vmatpush1.msra.mxu0 0.0
        %6407 = vmatprep.subr.mxu0 0.0
        %6408 = vmatpush1.msra.mxu0 0.0
        %6409 = vmatprep.subr.mxu0 0.0
        %6410 = vmatpush1.msra.mxu0 0.0
        %6411 = vmatprep.subr.mxu0 0.0
        %6412 = vmatpush1.msra.mxu0 0.0
        %6413 = vmatprep.subr.mxu0 0.0
        %6414 = vmatpush1.msra.mxu0 0.0
        %6415 = vmatprep.subr.mxu0 0.0
        %6416 = vmatpush1.msra.mxu0 0.0
        %6417 = vmatprep.subr.mxu0 0.0
        %6418 = vmatpush1.msra.mxu0 0.0
        %6419 = vmatprep.subr.mxu0 0.0
        %6420 = vmatpush1.msra.mxu0 0.0
        %6421 = vmatprep.subr.mxu0 0.0
        %6422 = vmatpush1.msra.mxu0 0.0
        %6423 = vmatprep.subr.mxu0 0.0
        %6424 = vmatpush1.msra.mxu0 0.0
        %6425 = vmatprep.subr.mxu0 0.0
        %6426 = vmatpush1.msra.mxu0 0.0
        %6427 = vmatprep.subr.mxu0 0.0
        %6428 = vmatpush1.msra.mxu0 0.0
        %6429 = vmatprep.subr.mxu0 0.0
        %6430 = vmatpush1.msra.mxu0 0.0
        %6431 = vmatprep.subr.mxu0 0.0
        %6432 = vmatpush1.msra.mxu0 0.0
        %6433 = vmatprep.subr.mxu0 0.0
        %6434 = vmatpush1.msra.mxu0 0.0
        %6435 = vmatprep.subr.mxu0 0.0
        %6436 = vmatpush1.msra.mxu0 0.0
        %6437 = vmatprep.mubr.f32.mxu0 0.0
        %v6438 = vand.u32 %v6290, 4294901760
        %6439 = vmatmul.mubr.f32.gmra.mrb[0].mxu0 %v6438
        %v6440 = vpop.f32.mrb[0].mxu0
        %v6441 = vadd.f32 %v6365, %v6440
        %v6442 = vpop.f32.mrb[0].mxu0
        %6443 = vdwg.mxu0
        %6444 = vmatprep.subr.mxu0 0.0
        %v6445 = vand.u32 %v6287, 4294901760
        %v6446 = vsub.f32 %v6287, %v6445
        %6447 = vmatpush1.msra.mxu0 %v6446
        %6448 = vmatprep.subr.mxu0 0.0
        %6449 = vmatpush1.msra.mxu0 0.0
        %6450 = vmatprep.subr.mxu0 0.0
        %6451 = vmatpush1.msra.mxu0 0.0
        %6452 = vmatprep.subr.mxu0 0.0
        %6453 = vmatpush1.msra.mxu0 0.0
        %6454 = vmatprep.subr.mxu0 0.0
        %6455 = vmatpush1.msra.mxu0 0.0
        %6456 = vmatprep.subr.mxu0 0.0
        %6457 = vmatpush1.msra.mxu0 0.0
        %6458 = vmatprep.subr.mxu0 0.0
        %6459 = vmatpush1.msra.mxu0 0.0
        %6460 = vmatprep.subr.mxu0 0.0
        %6461 = vmatpush1.msra.mxu0 0.0
        %6462 = vmatprep.subr.mxu0 0.0
        %6463 = vmatpush1.msra.mxu0 0.0
        %6464 = vmatprep.subr.mxu0 0.0
        %6465 = vmatpush1.msra.mxu0 0.0
        %6466 = vmatprep.subr.mxu0 0.0
        %6467 = vmatpush1.msra.mxu0 0.0
        %6468 = vmatprep.subr.mxu0 0.0
        %6469 = vmatpush1.msra.mxu0 0.0
        %6470 = vmatprep.subr.mxu0 0.0
        %6471 = vmatpush1.msra.mxu0 0.0
        %6472 = vmatprep.subr.mxu0 0.0
        %6473 = vmatpush1.msra.mxu0 0.0
        %6474 = vmatprep.subr.mxu0 0.0
        %6475 = vmatpush1.msra.mxu0 0.0
        %6476 = vmatprep.subr.mxu0 0.0
        %6477 = vmatpush1.msra.mxu0 0.0
        %6478 = vmatprep.subr.mxu0 0.0
        %6479 = vmatpush1.msra.mxu0 0.0
        %6480 = vmatprep.subr.mxu0 0.0
        %6481 = vmatpush1.msra.mxu0 0.0
        %6482 = vmatprep.subr.mxu0 0.0
        %6483 = vmatpush1.msra.mxu0 0.0
        %6484 = vmatprep.subr.mxu0 0.0
        %6485 = vmatpush1.msra.mxu0 0.0
        %6486 = vmatprep.subr.mxu0 0.0
        %6487 = vmatpush1.msra.mxu0 0.0
        %6488 = vmatprep.subr.mxu0 0.0
        %6489 = vmatpush1.msra.mxu0 0.0
        %6490 = vmatprep.subr.mxu0 0.0
        %6491 = vmatpush1.msra.mxu0 0.0
        %6492 = vmatprep.subr.mxu0 0.0
        %6493 = vmatpush1.msra.mxu0 0.0
        %6494 = vmatprep.subr.mxu0 0.0
        %6495 = vmatpush1.msra.mxu0 0.0
        %6496 = vmatprep.subr.mxu0 0.0
        %6497 = vmatpush1.msra.mxu0 0.0
        %6498 = vmatprep.subr.mxu0 0.0
        %6499 = vmatpush1.msra.mxu0 0.0
        %6500 = vmatprep.subr.mxu0 0.0
        %6501 = vmatpush1.msra.mxu0 0.0
        %6502 = vmatprep.subr.mxu0 0.0
        %6503 = vmatpush1.msra.mxu0 0.0
        %6504 = vmatprep.subr.mxu0 0.0
        %6505 = vmatpush1.msra.mxu0 0.0
        %6506 = vmatprep.subr.mxu0 0.0
        %6507 = vmatpush1.msra.mxu0 0.0
        %6508 = vmatprep.subr.mxu0 0.0
        %6509 = vmatpush1.msra.mxu0 0.0
        %6510 = vmatprep.mubr.f32.mxu0 0.0
        %v6511 = vand.u32 %v6290, 4294901760
        %v6512 = vsub.f32 %v6290, %v6511
        %6513 = vmatmul.mubr.f32.gmra.mrb[0].mxu0 %v6512
        %v6514 = vpop.f32.mrb[0].mxu0
        %v6515 = vadd.f32 %v6441, %v6514
        %v6516 = vpop.f32.mrb[0].mxu0
        %6517 = vdwg.mxu0
        %6518 = vmatprep.subr.mxu0 0.0
        %v6519 = vand.u32 %v6287, 4294901760
        %6520 = vmatpush1.msra.mxu0 %v6519
        %6521 = vmatprep.subr.mxu0 0.0
        %6522 = vmatpush1.msra.mxu0 0.0
        %6523 = vmatprep.subr.mxu0 0.0
        %6524 = vmatpush1.msra.mxu0 0.0
        %6525 = vmatprep.subr.mxu0 0.0
        %6526 = vmatpush1.msra.mxu0 0.0
        %6527 = vmatprep.subr.mxu0 0.0
        %6528 = vmatpush1.msra.mxu0 0.0
        %6529 = vmatprep.subr.mxu0 0.0
        %6530 = vmatpush1.msra.mxu0 0.0
        %6531 = vmatprep.subr.mxu0 0.0
        %6532 = vmatpush1.msra.mxu0 0.0
        %6533 = vmatprep.subr.mxu0 0.0
        %6534 = vmatpush1.msra.mxu0 0.0
        %6535 = vmatprep.subr.mxu0 0.0
        %6536 = vmatpush1.msra.mxu0 0.0
        %6537 = vmatprep.subr.mxu0 0.0
        %6538 = vmatpush1.msra.mxu0 0.0
        %6539 = vmatprep.subr.mxu0 0.0
        %6540 = vmatpush1.msra.mxu0 0.0
        %6541 = vmatprep.subr.mxu0 0.0
        %6542 = vmatpush1.msra.mxu0 0.0
        %6543 = vmatprep.subr.mxu0 0.0
        %6544 = vmatpush1.msra.mxu0 0.0
        %6545 = vmatprep.subr.mxu0 0.0
        %6546 = vmatpush1.msra.mxu0 0.0
        %6547 = vmatprep.subr.mxu0 0.0
        %6548 = vmatpush1.msra.mxu0 0.0
        %6549 = vmatprep.subr.mxu0 0.0
        %6550 = vmatpush1.msra.mxu0 0.0
        %6551 = vmatprep.subr.mxu0 0.0
        %6552 = vmatpush1.msra.mxu0 0.0
        %6553 = vmatprep.subr.mxu0 0.0
        %6554 = vmatpush1.msra.mxu0 0.0
        %6555 = vmatprep.subr.mxu0 0.0
        %6556 = vmatpush1.msra.mxu0 0.0
        %6557 = vmatprep.subr.mxu0 0.0
        %6558 = vmatpush1.msra.mxu0 0.0
        %6559 = vmatprep.subr.mxu0 0.0
        %6560 = vmatpush1.msra.mxu0 0.0
        %6561 = vmatprep.subr.mxu0 0.0
        %6562 = vmatpush1.msra.mxu0 0.0
        %6563 = vmatprep.subr.mxu0 0.0
        %6564 = vmatpush1.msra.mxu0 0.0
        %6565 = vmatprep.subr.mxu0 0.0
        %6566 = vmatpush1.msra.mxu0 0.0
        %6567 = vmatprep.subr.mxu0 0.0
        %6568 = vmatpush1.msra.mxu0 0.0
        %6569 = vmatprep.subr.mxu0 0.0
        %6570 = vmatpush1.msra.mxu0 0.0
        %6571 = vmatprep.subr.mxu0 0.0
        %6572 = vmatpush1.msra.mxu0 0.0
        %6573 = vmatprep.subr.mxu0 0.0
        %6574 = vmatpush1.msra.mxu0 0.0
        %6575 = vmatprep.subr.mxu0 0.0
        %6576 = vmatpush1.msra.mxu0 0.0
        %6577 = vmatprep.subr.mxu0 0.0
        %6578 = vmatpush1.msra.mxu0 0.0
        %6579 = vmatprep.subr.mxu0 0.0
        %6580 = vmatpush1.msra.mxu0 0.0
        %6581 = vmatprep.subr.mxu0 0.0
        %6582 = vmatpush1.msra.mxu0 0.0
        %6583 = vmatprep.mubr.f32.mxu0 0.0
        %v6584 = vand.u32 %v6290, 4294901760
        %v6585 = vsub.f32 %v6290, %v6584
        %v6586 = vand.u32 %v6585, 4294901760
        %6587 = vmatmul.mubr.f32.gmra.mrb[0].mxu0 %v6586
        %v6588 = vpop.f32.mrb[0].mxu0
        %v6589 = vadd.f32 %v6515, %v6588
        %v6590 = vpop.f32.mrb[0].mxu0
        %6591 = vdwg.mxu0
        %6592 = vmatprep.subr.mxu0 0.0
        %v6593 = vand.u32 %v6287, 4294901760
        %v6594 = vsub.f32 %v6287, %v6593
        %v6595 = vand.u32 %v6594, 4294901760
        %6596 = vmatpush1.msra.mxu0 %v6595
        %6597 = vmatprep.subr.mxu0 0.0
        %6598 = vmatpush1.msra.mxu0 0.0
        %6599 = vmatprep.subr.mxu0 0.0
        %6600 = vmatpush1.msra.mxu0 0.0
        %6601 = vmatprep.subr.mxu0 0.0
        %6602 = vmatpush1.msra.mxu0 0.0
        %6603 = vmatprep.subr.mxu0 0.0
        %6604 = vmatpush1.msra.mxu0 0.0
        %6605 = vmatprep.subr.mxu0 0.0
        %6606 = vmatpush1.msra.mxu0 0.0
        %6607 = vmatprep.subr.mxu0 0.0
        %6608 = vmatpush1.msra.mxu0 0.0
        %6609 = vmatprep.subr.mxu0 0.0
        %6610 = vmatpush1.msra.mxu0 0.0
        %6611 = vmatprep.subr.mxu0 0.0
        %6612 = vmatpush1.msra.mxu0 0.0
        %6613 = vmatprep.subr.mxu0 0.0
        %6614 = vmatpush1.msra.mxu0 0.0
        %6615 = vmatprep.subr.mxu0 0.0
        %6616 = vmatpush1.msra.mxu0 0.0
        %6617 = vmatprep.subr.mxu0 0.0
        %6618 = vmatpush1.msra.mxu0 0.0
        %6619 = vmatprep.subr.mxu0 0.0
        %6620 = vmatpush1.msra.mxu0 0.0
        %6621 = vmatprep.subr.mxu0 0.0
        %6622 = vmatpush1.msra.mxu0 0.0
        %6623 = vmatprep.subr.mxu0 0.0
        %6624 = vmatpush1.msra.mxu0 0.0
        %6625 = vmatprep.subr.mxu0 0.0
        %6626 = vmatpush1.msra.mxu0 0.0
        %6627 = vmatprep.subr.mxu0 0.0
        %6628 = vmatpush1.msra.mxu0 0.0
        %6629 = vmatprep.subr.mxu0 0.0
        %6630 = vmatpush1.msra.mxu0 0.0
        %6631 = vmatprep.subr.mxu0 0.0
        %6632 = vmatpush1.msra.mxu0 0.0
        %6633 = vmatprep.subr.mxu0 0.0
        %6634 = vmatpush1.msra.mxu0 0.0
        %6635 = vmatprep.subr.mxu0 0.0
        %6636 = vmatpush1.msra.mxu0 0.0
        %6637 = vmatprep.subr.mxu0 0.0
        %6638 = vmatpush1.msra.mxu0 0.0
        %6639 = vmatprep.subr.mxu0 0.0
        %6640 = vmatpush1.msra.mxu0 0.0
        %6641 = vmatprep.subr.mxu0 0.0
        %6642 = vmatpush1.msra.mxu0 0.0
        %6643 = vmatprep.subr.mxu0 0.0
        %6644 = vmatpush1.msra.mxu0 0.0
        %6645 = vmatprep.subr.mxu0 0.0
        %6646 = vmatpush1.msra.mxu0 0.0
        %6647 = vmatprep.subr.mxu0 0.0
        %6648 = vmatpush1.msra.mxu0 0.0
        %6649 = vmatprep.subr.mxu0 0.0
        %6650 = vmatpush1.msra.mxu0 0.0
        %6651 = vmatprep.subr.mxu0 0.0
        %6652 = vmatpush1.msra.mxu0 0.0
        %6653 = vmatprep.subr.mxu0 0.0
        %6654 = vmatpush1.msra.mxu0 0.0
        %6655 = vmatprep.subr.mxu0 0.0
        %6656 = vmatpush1.msra.mxu0 0.0
        %6657 = vmatprep.subr.mxu0 0.0
        %6658 = vmatpush1.msra.mxu0 0.0
        %6659 = vmatprep.mubr.f32.mxu0 0.0
        %v6660 = vand.u32 %v6290, 4294901760
        %6661 = vmatmul.mubr.f32.gmra.mrb[0].mxu0 %v6660
        %v6662 = vpop.f32.mrb[0].mxu0
        %v6663 = vadd.f32 %v6589, %v6662
        %v6664 = vpop.f32.mrb[0].mxu0
        %6665 = vdwg.mxu0
        %6666 = vmatprep.subr.mxu0 0.0
        %v6667 = vand.u32 %v6287, 4294901760
        %6668 = vmatpush1.msra.mxu0 %v6667
        %6669 = vmatprep.subr.mxu0 0.0
        %6670 = vmatpush1.msra.mxu0 0.0
        %6671 = vmatprep.subr.mxu0 0.0
        %6672 = vmatpush1.msra.mxu0 0.0
        %6673 = vmatprep.subr.mxu0 0.0
        %6674 = vmatpush1.msra.mxu0 0.0
        %6675 = vmatprep.subr.mxu0 0.0
        %6676 = vmatpush1.msra.mxu0 0.0
        %6677 = vmatprep.subr.mxu0 0.0
        %6678 = vmatpush1.msra.mxu0 0.0
        %6679 = vmatprep.subr.mxu0 0.0
        %6680 = vmatpush1.msra.mxu0 0.0
        %6681 = vmatprep.subr.mxu0 0.0
        %6682 = vmatpush1.msra.mxu0 0.0
        %6683 = vmatprep.subr.mxu0 0.0
        %6684 = vmatpush1.msra.mxu0 0.0
        %6685 = vmatprep.subr.mxu0 0.0
        %6686 = vmatpush1.msra.mxu0 0.0
        %6687 = vmatprep.subr.mxu0 0.0
        %6688 = vmatpush1.msra.mxu0 0.0
        %6689 = vmatprep.subr.mxu0 0.0
        %6690 = vmatpush1.msra.mxu0 0.0
        %6691 = vmatprep.subr.mxu0 0.0
        %6692 = vmatpush1.msra.mxu0 0.0
        %6693 = vmatprep.subr.mxu0 0.0
        %6694 = vmatpush1.msra.mxu0 0.0
        %6695 = vmatprep.subr.mxu0 0.0
        %6696 = vmatpush1.msra.mxu0 0.0
        %6697 = vmatprep.subr.mxu0 0.0
        %6698 = vmatpush1.msra.mxu0 0.0
        %6699 = vmatprep.subr.mxu0 0.0
        %6700 = vmatpush1.msra.mxu0 0.0
        %6701 = vmatprep.subr.mxu0 0.0
        %6702 = vmatpush1.msra.mxu0 0.0
        %6703 = vmatprep.subr.mxu0 0.0
        %6704 = vmatpush1.msra.mxu0 0.0
        %6705 = vmatprep.subr.mxu0 0.0
        %6706 = vmatpush1.msra.mxu0 0.0
        %6707 = vmatprep.subr.mxu0 0.0
        %6708 = vmatpush1.msra.mxu0 0.0
        %6709 = vmatprep.subr.mxu0 0.0
        %6710 = vmatpush1.msra.mxu0 0.0
        %6711 = vmatprep.subr.mxu0 0.0
        %6712 = vmatpush1.msra.mxu0 0.0
        %6713 = vmatprep.subr.mxu0 0.0
        %6714 = vmatpush1.msra.mxu0 0.0
        %6715 = vmatprep.subr.mxu0 0.0
        %6716 = vmatpush1.msra.mxu0 0.0
        %6717 = vmatprep.subr.mxu0 0.0
        %6718 = vmatpush1.msra.mxu0 0.0
        %6719 = vmatprep.subr.mxu0 0.0
        %6720 = vmatpush1.msra.mxu0 0.0
        %6721 = vmatprep.subr.mxu0 0.0
        %6722 = vmatpush1.msra.mxu0 0.0
        %6723 = vmatprep.subr.mxu0 0.0
        %6724 = vmatpush1.msra.mxu0 0.0
        %6725 = vmatprep.subr.mxu0 0.0
        %6726 = vmatpush1.msra.mxu0 0.0
        %6727 = vmatprep.subr.mxu0 0.0
        %6728 = vmatpush1.msra.mxu0 0.0
        %6729 = vmatprep.subr.mxu0 0.0
        %6730 = vmatpush1.msra.mxu0 0.0
        %6731 = vmatprep.mubr.f32.mxu0 0.0
        %v6732 = vand.u32 %v6290, 4294901760
        %6733 = vmatmul.mubr.f32.gmra.mrb[0].mxu0 %v6732
        %v6734 = vpop.f32.mrb[0].mxu0
        %v6735 = vadd.f32 %v6663, %v6734
        %v6736 = vpop.f32.mrb[0].mxu0
        %6737 = vdwg.mxu0
        %6738 = vrot.lane.b32.xlu0 %v748, 64
        %v6739 = vpop.permute.xlu0 %6738
        %v6742 = vsel %vm767, %v4475, 0
        %6744 = vmatprep.subr.mxu0 0.0
        %v6745 = vand.u32 %v6739, 4294901760
        %6746 = vmatpush1.msra.mxu0 %v6745
        %6747 = vmatprep.subr.mxu0 0.0
        %6748 = vmatpush1.msra.mxu0 0.0
        %6749 = vmatprep.subr.mxu0 0.0
        %6750 = vmatpush1.msra.mxu0 0.0
        %6751 = vmatprep.subr.mxu0 0.0
        %6752 = vmatpush1.msra.mxu0 0.0
        %6753 = vmatprep.subr.mxu0 0.0
        %6754 = vmatpush1.msra.mxu0 0.0
        %6755 = vmatprep.subr.mxu0 0.0
        %6756 = vmatpush1.msra.mxu0 0.0
        %6757 = vmatprep.subr.mxu0 0.0
        %6758 = vmatpush1.msra.mxu0 0.0
        %6759 = vmatprep.subr.mxu0 0.0
        %6760 = vmatpush1.msra.mxu0 0.0
        %6761 = vmatprep.subr.mxu0 0.0
        %6762 = vmatpush1.msra.mxu0 0.0
        %6763 = vmatprep.subr.mxu0 0.0
        %6764 = vmatpush1.msra.mxu0 0.0
        %6765 = vmatprep.subr.mxu0 0.0
        %6766 = vmatpush1.msra.mxu0 0.0
        %6767 = vmatprep.subr.mxu0 0.0
        %6768 = vmatpush1.msra.mxu0 0.0
        %6769 = vmatprep.subr.mxu0 0.0
        %6770 = vmatpush1.msra.mxu0 0.0
        %6771 = vmatprep.subr.mxu0 0.0
        %6772 = vmatpush1.msra.mxu0 0.0
        %6773 = vmatprep.subr.mxu0 0.0
        %6774 = vmatpush1.msra.mxu0 0.0
        %6775 = vmatprep.subr.mxu0 0.0
        %6776 = vmatpush1.msra.mxu0 0.0
        %6777 = vmatprep.subr.mxu0 0.0
        %6778 = vmatpush1.msra.mxu0 0.0
        %6779 = vmatprep.subr.mxu0 0.0
        %6780 = vmatpush1.msra.mxu0 0.0
        %6781 = vmatprep.subr.mxu0 0.0
        %6782 = vmatpush1.msra.mxu0 0.0
        %6783 = vmatprep.subr.mxu0 0.0
        %6784 = vmatpush1.msra.mxu0 0.0
        %6785 = vmatprep.subr.mxu0 0.0
        %6786 = vmatpush1.msra.mxu0 0.0
        %6787 = vmatprep.subr.mxu0 0.0
        %6788 = vmatpush1.msra.mxu0 0.0
        %6789 = vmatprep.subr.mxu0 0.0
        %6790 = vmatpush1.msra.mxu0 0.0
        %6791 = vmatprep.subr.mxu0 0.0
        %6792 = vmatpush1.msra.mxu0 0.0
        %6793 = vmatprep.subr.mxu0 0.0
        %6794 = vmatpush1.msra.mxu0 0.0
        %6795 = vmatprep.subr.mxu0 0.0
        %6796 = vmatpush1.msra.mxu0 0.0
        %6797 = vmatprep.subr.mxu0 0.0
        %6798 = vmatpush1.msra.mxu0 0.0
        %6799 = vmatprep.subr.mxu0 0.0
        %6800 = vmatpush1.msra.mxu0 0.0
        %6801 = vmatprep.subr.mxu0 0.0
        %6802 = vmatpush1.msra.mxu0 0.0
        %6803 = vmatprep.subr.mxu0 0.0
        %6804 = vmatpush1.msra.mxu0 0.0
        %6805 = vmatprep.subr.mxu0 0.0
        %6806 = vmatpush1.msra.mxu0 0.0
        %6807 = vmatprep.subr.mxu0 0.0
        %6808 = vmatpush1.msra.mxu0 0.0
        %6809 = vmatprep.mubr.f32.mxu0 0.0
        %v6810 = vand.u32 %v6742, 4294901760
        %v6811 = vsub.f32 %v6742, %v6810
        %v6812 = vand.u32 %v6811, 4294901760
        %v6813 = vsub.f32 %v6811, %v6812
        %v6814 = vand.u32 %v6813, 4294901760
        %6815 = vmatmul.mubr.f32.gmra.mrb[0].mxu0 %v6814
        %v6816 = vpop.f32.mrb[0].mxu0
        %v6817 = vadd.f32 0.0, %v6816
        %v6818 = vpop.f32.mrb[0].mxu0
        %6819 = vdwg.mxu0
        %6820 = vmatprep.subr.mxu0 0.0
        %v6821 = vand.u32 %v6739, 4294901760
        %v6822 = vsub.f32 %v6739, %v6821
        %v6823 = vand.u32 %v6822, 4294901760
        %v6824 = vsub.f32 %v6822, %v6823
        %v6825 = vand.u32 %v6824, 4294901760
        %6826 = vmatpush1.msra.mxu0 %v6825
        %6827 = vmatprep.subr.mxu0 0.0
        %6828 = vmatpush1.msra.mxu0 0.0
        %6829 = vmatprep.subr.mxu0 0.0
        %6830 = vmatpush1.msra.mxu0 0.0
        %6831 = vmatprep.subr.mxu0 0.0
        %6832 = vmatpush1.msra.mxu0 0.0
        %6833 = vmatprep.subr.mxu0 0.0
        %6834 = vmatpush1.msra.mxu0 0.0
        %6835 = vmatprep.subr.mxu0 0.0
        %6836 = vmatpush1.msra.mxu0 0.0
        %6837 = vmatprep.subr.mxu0 0.0
        %6838 = vmatpush1.msra.mxu0 0.0
        %6839 = vmatprep.subr.mxu0 0.0
        %6840 = vmatpush1.msra.mxu0 0.0
        %6841 = vmatprep.subr.mxu0 0.0
        %6842 = vmatpush1.msra.mxu0 0.0
        %6843 = vmatprep.subr.mxu0 0.0
        %6844 = vmatpush1.msra.mxu0 0.0
        %6845 = vmatprep.subr.mxu0 0.0
        %6846 = vmatpush1.msra.mxu0 0.0
        %6847 = vmatprep.subr.mxu0 0.0
        %6848 = vmatpush1.msra.mxu0 0.0
        %6849 = vmatprep.subr.mxu0 0.0
        %6850 = vmatpush1.msra.mxu0 0.0
        %6851 = vmatprep.subr.mxu0 0.0
        %6852 = vmatpush1.msra.mxu0 0.0
        %6853 = vmatprep.subr.mxu0 0.0
        %6854 = vmatpush1.msra.mxu0 0.0
        %6855 = vmatprep.subr.mxu0 0.0
        %6856 = vmatpush1.msra.mxu0 0.0
        %6857 = vmatprep.subr.mxu0 0.0
        %6858 = vmatpush1.msra.mxu0 0.0
        %6859 = vmatprep.subr.mxu0 0.0
        %6860 = vmatpush1.msra.mxu0 0.0
        %6861 = vmatprep.subr.mxu0 0.0
        %6862 = vmatpush1.msra.mxu0 0.0
        %6863 = vmatprep.subr.mxu0 0.0
        %6864 = vmatpush1.msra.mxu0 0.0
        %6865 = vmatprep.subr.mxu0 0.0
        %6866 = vmatpush1.msra.mxu0 0.0
        %6867 = vmatprep.subr.mxu0 0.0
        %6868 = vmatpush1.msra.mxu0 0.0
        %6869 = vmatprep.subr.mxu0 0.0
        %6870 = vmatpush1.msra.mxu0 0.0
        %6871 = vmatprep.subr.mxu0 0.0
        %6872 = vmatpush1.msra.mxu0 0.0
        %6873 = vmatprep.subr.mxu0 0.0
        %6874 = vmatpush1.msra.mxu0 0.0
        %6875 = vmatprep.subr.mxu0 0.0
        %6876 = vmatpush1.msra.mxu0 0.0
        %6877 = vmatprep.subr.mxu0 0.0
        %6878 = vmatpush1.msra.mxu0 0.0
        %6879 = vmatprep.subr.mxu0 0.0
        %6880 = vmatpush1.msra.mxu0 0.0
        %6881 = vmatprep.subr.mxu0 0.0
        %6882 = vmatpush1.msra.mxu0 0.0
        %6883 = vmatprep.subr.mxu0 0.0
        %6884 = vmatpush1.msra.mxu0 0.0
        %6885 = vmatprep.subr.mxu0 0.0
        %6886 = vmatpush1.msra.mxu0 0.0
        %6887 = vmatprep.subr.mxu0 0.0
        %6888 = vmatpush1.msra.mxu0 0.0
        %6889 = vmatprep.mubr.f32.mxu0 0.0
        %v6890 = vand.u32 %v6742, 4294901760
        %6891 = vmatmul.mubr.f32.gmra.mrb[0].mxu0 %v6890
        %v6892 = vpop.f32.mrb[0].mxu0
        %v6893 = vadd.f32 %v6817, %v6892
        %v6894 = vpop.f32.mrb[0].mxu0
        %6895 = vdwg.mxu0
        %6896 = vmatprep.subr.mxu0 0.0
        %v6897 = vand.u32 %v6739, 4294901760
        %v6898 = vsub.f32 %v6739, %v6897
        %6899 = vmatpush1.msra.mxu0 %v6898
        %6900 = vmatprep.subr.mxu0 0.0
        %6901 = vmatpush1.msra.mxu0 0.0
        %6902 = vmatprep.subr.mxu0 0.0
        %6903 = vmatpush1.msra.mxu0 0.0
        %6904 = vmatprep.subr.mxu0 0.0
        %6905 = vmatpush1.msra.mxu0 0.0
        %6906 = vmatprep.subr.mxu0 0.0
        %6907 = vmatpush1.msra.mxu0 0.0
        %6908 = vmatprep.subr.mxu0 0.0
        %6909 = vmatpush1.msra.mxu0 0.0
        %6910 = vmatprep.subr.mxu0 0.0
        %6911 = vmatpush1.msra.mxu0 0.0
        %6912 = vmatprep.subr.mxu0 0.0
        %6913 = vmatpush1.msra.mxu0 0.0
        %6914 = vmatprep.subr.mxu0 0.0
        %6915 = vmatpush1.msra.mxu0 0.0
        %6916 = vmatprep.subr.mxu0 0.0
        %6917 = vmatpush1.msra.mxu0 0.0
        %6918 = vmatprep.subr.mxu0 0.0
        %6919 = vmatpush1.msra.mxu0 0.0
        %6920 = vmatprep.subr.mxu0 0.0
        %6921 = vmatpush1.msra.mxu0 0.0
        %6922 = vmatprep.subr.mxu0 0.0
        %6923 = vmatpush1.msra.mxu0 0.0
        %6924 = vmatprep.subr.mxu0 0.0
        %6925 = vmatpush1.msra.mxu0 0.0
        %6926 = vmatprep.subr.mxu0 0.0
        %6927 = vmatpush1.msra.mxu0 0.0
        %6928 = vmatprep.subr.mxu0 0.0
        %6929 = vmatpush1.msra.mxu0 0.0
        %6930 = vmatprep.subr.mxu0 0.0
        %6931 = vmatpush1.msra.mxu0 0.0
        %6932 = vmatprep.subr.mxu0 0.0
        %6933 = vmatpush1.msra.mxu0 0.0
        %6934 = vmatprep.subr.mxu0 0.0
        %6935 = vmatpush1.msra.mxu0 0.0
        %6936 = vmatprep.subr.mxu0 0.0
        %6937 = vmatpush1.msra.mxu0 0.0
        %6938 = vmatprep.subr.mxu0 0.0
        %6939 = vmatpush1.msra.mxu0 0.0
        %6940 = vmatprep.subr.mxu0 0.0
        %6941 = vmatpush1.msra.mxu0 0.0
        %6942 = vmatprep.subr.mxu0 0.0
        %6943 = vmatpush1.msra.mxu0 0.0
        %6944 = vmatprep.subr.mxu0 0.0
        %6945 = vmatpush1.msra.mxu0 0.0
        %6946 = vmatprep.subr.mxu0 0.0
        %6947 = vmatpush1.msra.mxu0 0.0
        %6948 = vmatprep.subr.mxu0 0.0
        %6949 = vmatpush1.msra.mxu0 0.0
        %6950 = vmatprep.subr.mxu0 0.0
        %6951 = vmatpush1.msra.mxu0 0.0
        %6952 = vmatprep.subr.mxu0 0.0
        %6953 = vmatpush1.msra.mxu0 0.0
        %6954 = vmatprep.subr.mxu0 0.0
        %6955 = vmatpush1.msra.mxu0 0.0
        %6956 = vmatprep.subr.mxu0 0.0
        %6957 = vmatpush1.msra.mxu0 0.0
        %6958 = vmatprep.subr.mxu0 0.0
        %6959 = vmatpush1.msra.mxu0 0.0
        %6960 = vmatprep.subr.mxu0 0.0
        %6961 = vmatpush1.msra.mxu0 0.0
        %6962 = vmatprep.mubr.f32.mxu0 0.0
        %v6963 = vand.u32 %v6742, 4294901760
        %v6964 = vsub.f32 %v6742, %v6963
        %6965 = vmatmul.mubr.f32.gmra.mrb[0].mxu0 %v6964
        %v6966 = vpop.f32.mrb[0].mxu0
        %v6967 = vadd.f32 %v6893, %v6966
        %v6968 = vpop.f32.mrb[0].mxu0
        %6969 = vdwg.mxu0
        %6970 = vmatprep.subr.mxu0 0.0
        %v6971 = vand.u32 %v6739, 4294901760
        %6972 = vmatpush1.msra.mxu0 %v6971
        %6973 = vmatprep.subr.mxu0 0.0
        %6974 = vmatpush1.msra.mxu0 0.0
        %6975 = vmatprep.subr.mxu0 0.0
        %6976 = vmatpush1.msra.mxu0 0.0
        %6977 = vmatprep.subr.mxu0 0.0
        %6978 = vmatpush1.msra.mxu0 0.0
        %6979 = vmatprep.subr.mxu0 0.0
        %6980 = vmatpush1.msra.mxu0 0.0
        %6981 = vmatprep.subr.mxu0 0.0
        %6982 = vmatpush1.msra.mxu0 0.0
        %6983 = vmatprep.subr.mxu0 0.0
        %6984 = vmatpush1.msra.mxu0 0.0
        %6985 = vmatprep.subr.mxu0 0.0
        %6986 = vmatpush1.msra.mxu0 0.0
        %6987 = vmatprep.subr.mxu0 0.0
        %6988 = vmatpush1.msra.mxu0 0.0
        %6989 = vmatprep.subr.mxu0 0.0
        %6990 = vmatpush1.msra.mxu0 0.0
        %6991 = vmatprep.subr.mxu0 0.0
        %6992 = vmatpush1.msra.mxu0 0.0
        %6993 = vmatprep.subr.mxu0 0.0
        %6994 = vmatpush1.msra.mxu0 0.0
        %6995 = vmatprep.subr.mxu0 0.0
        %6996 = vmatpush1.msra.mxu0 0.0
        %6997 = vmatprep.subr.mxu0 0.0
        %6998 = vmatpush1.msra.mxu0 0.0
        %6999 = vmatprep.subr.mxu0 0.0
        %7000 = vmatpush1.msra.mxu0 0.0
        %7001 = vmatprep.subr.mxu0 0.0
        %7002 = vmatpush1.msra.mxu0 0.0
        %7003 = vmatprep.subr.mxu0 0.0
        %7004 = vmatpush1.msra.mxu0 0.0
        %7005 = vmatprep.subr.mxu0 0.0
        %7006 = vmatpush1.msra.mxu0 0.0
        %7007 = vmatprep.subr.mxu0 0.0
        %7008 = vmatpush1.msra.mxu0 0.0
        %7009 = vmatprep.subr.mxu0 0.0
        %7010 = vmatpush1.msra.mxu0 0.0
        %7011 = vmatprep.subr.mxu0 0.0
        %7012 = vmatpush1.msra.mxu0 0.0
        %7013 = vmatprep.subr.mxu0 0.0
        %7014 = vmatpush1.msra.mxu0 0.0
        %7015 = vmatprep.subr.mxu0 0.0
        %7016 = vmatpush1.msra.mxu0 0.0
        %7017 = vmatprep.subr.mxu0 0.0
        %7018 = vmatpush1.msra.mxu0 0.0
        %7019 = vmatprep.subr.mxu0 0.0
        %7020 = vmatpush1.msra.mxu0 0.0
        %7021 = vmatprep.subr.mxu0 0.0
        %7022 = vmatpush1.msra.mxu0 0.0
        %7023 = vmatprep.subr.mxu0 0.0
        %7024 = vmatpush1.msra.mxu0 0.0
        %7025 = vmatprep.subr.mxu0 0.0
        %7026 = vmatpush1.msra.mxu0 0.0
        %7027 = vmatprep.subr.mxu0 0.0
        %7028 = vmatpush1.msra.mxu0 0.0
        %7029 = vmatprep.subr.mxu0 0.0
        %7030 = vmatpush1.msra.mxu0 0.0
        %7031 = vmatprep.subr.mxu0 0.0
        %7032 = vmatpush1.msra.mxu0 0.0
        %7033 = vmatprep.subr.mxu0 0.0
        %7034 = vmatpush1.msra.mxu0 0.0
        %7035 = vmatprep.mubr.f32.mxu0 0.0
        %v7036 = vand.u32 %v6742, 4294901760
        %v7037 = vsub.f32 %v6742, %v7036
        %v7038 = vand.u32 %v7037, 4294901760
        %7039 = vmatmul.mubr.f32.gmra.mrb[0].mxu0 %v7038
        %v7040 = vpop.f32.mrb[0].mxu0
        %v7041 = vadd.f32 %v6967, %v7040
        %v7042 = vpop.f32.mrb[0].mxu0
        %7043 = vdwg.mxu0
        %7044 = vmatprep.subr.mxu0 0.0
        %v7045 = vand.u32 %v6739, 4294901760
        %v7046 = vsub.f32 %v6739, %v7045
        %v7047 = vand.u32 %v7046, 4294901760
        %7048 = vmatpush1.msra.mxu0 %v7047
        %7049 = vmatprep.subr.mxu0 0.0
        %7050 = vmatpush1.msra.mxu0 0.0
        %7051 = vmatprep.subr.mxu0 0.0
        %7052 = vmatpush1.msra.mxu0 0.0
        %7053 = vmatprep.subr.mxu0 0.0
        %7054 = vmatpush1.msra.mxu0 0.0
        %7055 = vmatprep.subr.mxu0 0.0
        %7056 = vmatpush1.msra.mxu0 0.0
        %7057 = vmatprep.subr.mxu0 0.0
        %7058 = vmatpush1.msra.mxu0 0.0
        %7059 = vmatprep.subr.mxu0 0.0
        %7060 = vmatpush1.msra.mxu0 0.0
        %7061 = vmatprep.subr.mxu0 0.0
        %7062 = vmatpush1.msra.mxu0 0.0
        %7063 = vmatprep.subr.mxu0 0.0
        %7064 = vmatpush1.msra.mxu0 0.0
        %7065 = vmatprep.subr.mxu0 0.0
        %7066 = vmatpush1.msra.mxu0 0.0
        %7067 = vmatprep.subr.mxu0 0.0
        %7068 = vmatpush1.msra.mxu0 0.0
        %7069 = vmatprep.subr.mxu0 0.0
        %7070 = vmatpush1.msra.mxu0 0.0
        %7071 = vmatprep.subr.mxu0 0.0
        %7072 = vmatpush1.msra.mxu0 0.0
        %7073 = vmatprep.subr.mxu0 0.0
        %7074 = vmatpush1.msra.mxu0 0.0
        %7075 = vmatprep.subr.mxu0 0.0
        %7076 = vmatpush1.msra.mxu0 0.0
        %7077 = vmatprep.subr.mxu0 0.0
        %7078 = vmatpush1.msra.mxu0 0.0
        %7079 = vmatprep.subr.mxu0 0.0
        %7080 = vmatpush1.msra.mxu0 0.0
        %7081 = vmatprep.subr.mxu0 0.0
        %7082 = vmatpush1.msra.mxu0 0.0
        %7083 = vmatprep.subr.mxu0 0.0
        %7084 = vmatpush1.msra.mxu0 0.0
        %7085 = vmatprep.subr.mxu0 0.0
        %7086 = vmatpush1.msra.mxu0 0.0
        %7087 = vmatprep.subr.mxu0 0.0
        %7088 = vmatpush1.msra.mxu0 0.0
        %7089 = vmatprep.subr.mxu0 0.0
        %7090 = vmatpush1.msra.mxu0 0.0
        %7091 = vmatprep.subr.mxu0 0.0
        %7092 = vmatpush1.msra.mxu0 0.0
        %7093 = vmatprep.subr.mxu0 0.0
        %7094 = vmatpush1.msra.mxu0 0.0
        %7095 = vmatprep.subr.mxu0 0.0
        %7096 = vmatpush1.msra.mxu0 0.0
        %7097 = vmatprep.subr.mxu0 0.0
        %7098 = vmatpush1.msra.mxu0 0.0
        %7099 = vmatprep.subr.mxu0 0.0
        %7100 = vmatpush1.msra.mxu0 0.0
        %7101 = vmatprep.subr.mxu0 0.0
        %7102 = vmatpush1.msra.mxu0 0.0
        %7103 = vmatprep.subr.mxu0 0.0
        %7104 = vmatpush1.msra.mxu0 0.0
        %7105 = vmatprep.subr.mxu0 0.0
        %7106 = vmatpush1.msra.mxu0 0.0
        %7107 = vmatprep.subr.mxu0 0.0
        %7108 = vmatpush1.msra.mxu0 0.0
        %7109 = vmatprep.subr.mxu0 0.0
        %7110 = vmatpush1.msra.mxu0 0.0
        %7111 = vmatprep.mubr.f32.mxu0 0.0
        %v7112 = vand.u32 %v6742, 4294901760
        %7113 = vmatmul.mubr.f32.gmra.mrb[0].mxu0 %v7112
        %v7114 = vpop.f32.mrb[0].mxu0
        %v7115 = vadd.f32 %v7041, %v7114
        %v7116 = vpop.f32.mrb[0].mxu0
        %7117 = vdwg.mxu0
        %7118 = vmatprep.subr.mxu0 0.0
        %v7119 = vand.u32 %v6739, 4294901760
        %7120 = vmatpush1.msra.mxu0 %v7119
        %7121 = vmatprep.subr.mxu0 0.0
        %7122 = vmatpush1.msra.mxu0 0.0
        %7123 = vmatprep.subr.mxu0 0.0
        %7124 = vmatpush1.msra.mxu0 0.0
        %7125 = vmatprep.subr.mxu0 0.0
        %7126 = vmatpush1.msra.mxu0 0.0
        %7127 = vmatprep.subr.mxu0 0.0
        %7128 = vmatpush1.msra.mxu0 0.0
        %7129 = vmatprep.subr.mxu0 0.0
        %7130 = vmatpush1.msra.mxu0 0.0
        %7131 = vmatprep.subr.mxu0 0.0
        %7132 = vmatpush1.msra.mxu0 0.0
        %7133 = vmatprep.subr.mxu0 0.0
        %7134 = vmatpush1.msra.mxu0 0.0
        %7135 = vmatprep.subr.mxu0 0.0
        %7136 = vmatpush1.msra.mxu0 0.0
        %7137 = vmatprep.subr.mxu0 0.0
        %7138 = vmatpush1.msra.mxu0 0.0
        %7139 = vmatprep.subr.mxu0 0.0
        %7140 = vmatpush1.msra.mxu0 0.0
        %7141 = vmatprep.subr.mxu0 0.0
        %7142 = vmatpush1.msra.mxu0 0.0
        %7143 = vmatprep.subr.mxu0 0.0
        %7144 = vmatpush1.msra.mxu0 0.0
        %7145 = vmatprep.subr.mxu0 0.0
        %7146 = vmatpush1.msra.mxu0 0.0
        %7147 = vmatprep.subr.mxu0 0.0
        %7148 = vmatpush1.msra.mxu0 0.0
        %7149 = vmatprep.subr.mxu0 0.0
        %7150 = vmatpush1.msra.mxu0 0.0
        %7151 = vmatprep.subr.mxu0 0.0
        %7152 = vmatpush1.msra.mxu0 0.0
        %7153 = vmatprep.subr.mxu0 0.0
        %7154 = vmatpush1.msra.mxu0 0.0
        %7155 = vmatprep.subr.mxu0 0.0
        %7156 = vmatpush1.msra.mxu0 0.0
        %7157 = vmatprep.subr.mxu0 0.0
        %7158 = vmatpush1.msra.mxu0 0.0
        %7159 = vmatprep.subr.mxu0 0.0
        %7160 = vmatpush1.msra.mxu0 0.0
        %7161 = vmatprep.subr.mxu0 0.0
        %7162 = vmatpush1.msra.mxu0 0.0
        %7163 = vmatprep.subr.mxu0 0.0
        %7164 = vmatpush1.msra.mxu0 0.0
        %7165 = vmatprep.subr.mxu0 0.0
        %7166 = vmatpush1.msra.mxu0 0.0
        %7167 = vmatprep.subr.mxu0 0.0
        %7168 = vmatpush1.msra.mxu0 0.0
        %7169 = vmatprep.subr.mxu0 0.0
        %7170 = vmatpush1.msra.mxu0 0.0
        %7171 = vmatprep.subr.mxu0 0.0
        %7172 = vmatpush1.msra.mxu0 0.0
        %7173 = vmatprep.subr.mxu0 0.0
        %7174 = vmatpush1.msra.mxu0 0.0
        %7175 = vmatprep.subr.mxu0 0.0
        %7176 = vmatpush1.msra.mxu0 0.0
        %7177 = vmatprep.subr.mxu0 0.0
        %7178 = vmatpush1.msra.mxu0 0.0
        %7179 = vmatprep.subr.mxu0 0.0
        %7180 = vmatpush1.msra.mxu0 0.0
        %7181 = vmatprep.subr.mxu0 0.0
        %7182 = vmatpush1.msra.mxu0 0.0
        %7183 = vmatprep.mubr.f32.mxu0 0.0
        %v7184 = vand.u32 %v6742, 4294901760
        %7185 = vmatmul.mubr.f32.gmra.mrb[0].mxu0 %v7184
        %v7186 = vpop.f32.mrb[0].mxu0
        %v7187 = vadd.f32 %v7115, %v7186
        %v7188 = vpop.f32.mrb[0].mxu0
        %7189 = vdwg.mxu0
        %7190 = vrot.lane.b32.xlu0 %v752, 64
        %v7191 = vpop.permute.xlu0 %7190
        %v7194 = vsel %vm767, %v4476, 0
        %7196 = vmatprep.subr.mxu0 0.0
        %v7197 = vand.u32 %v7191, 4294901760
        %7198 = vmatpush1.msra.mxu0 %v7197
        %7199 = vmatprep.subr.mxu0 0.0
        %7200 = vmatpush1.msra.mxu0 0.0
        %7201 = vmatprep.subr.mxu0 0.0
        %7202 = vmatpush1.msra.mxu0 0.0
        %7203 = vmatprep.subr.mxu0 0.0
        %7204 = vmatpush1.msra.mxu0 0.0
        %7205 = vmatprep.subr.mxu0 0.0
        %7206 = vmatpush1.msra.mxu0 0.0
        %7207 = vmatprep.subr.mxu0 0.0
        %7208 = vmatpush1.msra.mxu0 0.0
        %7209 = vmatprep.subr.mxu0 0.0
        %7210 = vmatpush1.msra.mxu0 0.0
        %7211 = vmatprep.subr.mxu0 0.0
        %7212 = vmatpush1.msra.mxu0 0.0
        %7213 = vmatprep.subr.mxu0 0.0
        %7214 = vmatpush1.msra.mxu0 0.0
        %7215 = vmatprep.subr.mxu0 0.0
        %7216 = vmatpush1.msra.mxu0 0.0
        %7217 = vmatprep.subr.mxu0 0.0
        %7218 = vmatpush1.msra.mxu0 0.0
        %7219 = vmatprep.subr.mxu0 0.0
        %7220 = vmatpush1.msra.mxu0 0.0
        %7221 = vmatprep.subr.mxu0 0.0
        %7222 = vmatpush1.msra.mxu0 0.0
        %7223 = vmatprep.subr.mxu0 0.0
        %7224 = vmatpush1.msra.mxu0 0.0
        %7225 = vmatprep.subr.mxu0 0.0
        %7226 = vmatpush1.msra.mxu0 0.0
        %7227 = vmatprep.subr.mxu0 0.0
        %7228 = vmatpush1.msra.mxu0 0.0
        %7229 = vmatprep.subr.mxu0 0.0
        %7230 = vmatpush1.msra.mxu0 0.0
        %7231 = vmatprep.subr.mxu0 0.0
        %7232 = vmatpush1.msra.mxu0 0.0
        %7233 = vmatprep.subr.mxu0 0.0
        %7234 = vmatpush1.msra.mxu0 0.0
        %7235 = vmatprep.subr.mxu0 0.0
        %7236 = vmatpush1.msra.mxu0 0.0
        %7237 = vmatprep.subr.mxu0 0.0
        %7238 = vmatpush1.msra.mxu0 0.0
        %7239 = vmatprep.subr.mxu0 0.0
        %7240 = vmatpush1.msra.mxu0 0.0
        %7241 = vmatprep.subr.mxu0 0.0
        %7242 = vmatpush1.msra.mxu0 0.0
        %7243 = vmatprep.subr.mxu0 0.0
        %7244 = vmatpush1.msra.mxu0 0.0
        %7245 = vmatprep.subr.mxu0 0.0
        %7246 = vmatpush1.msra.mxu0 0.0
        %7247 = vmatprep.subr.mxu0 0.0
        %7248 = vmatpush1.msra.mxu0 0.0
        %7249 = vmatprep.subr.mxu0 0.0
        %7250 = vmatpush1.msra.mxu0 0.0
        %7251 = vmatprep.subr.mxu0 0.0
        %7252 = vmatpush1.msra.mxu0 0.0
        %7253 = vmatprep.subr.mxu0 0.0
        %7254 = vmatpush1.msra.mxu0 0.0
        %7255 = vmatprep.subr.mxu0 0.0
        %7256 = vmatpush1.msra.mxu0 0.0
        %7257 = vmatprep.subr.mxu0 0.0
        %7258 = vmatpush1.msra.mxu0 0.0
        %7259 = vmatprep.subr.mxu0 0.0
        %7260 = vmatpush1.msra.mxu0 0.0
        %7261 = vmatprep.mubr.f32.mxu0 0.0
        %v7262 = vand.u32 %v7194, 4294901760
        %v7263 = vsub.f32 %v7194, %v7262
        %v7264 = vand.u32 %v7263, 4294901760
        %v7265 = vsub.f32 %v7263, %v7264
        %v7266 = vand.u32 %v7265, 4294901760
        %7267 = vmatmul.mubr.f32.gmra.mrb[0].mxu0 %v7266
        %v7268 = vpop.f32.mrb[0].mxu0
        %v7269 = vadd.f32 0.0, %v7268
        %v7270 = vpop.f32.mrb[0].mxu0
        %7271 = vdwg.mxu0
        %7272 = vmatprep.subr.mxu0 0.0
        %v7273 = vand.u32 %v7191, 4294901760
        %v7274 = vsub.f32 %v7191, %v7273
        %v7275 = vand.u32 %v7274, 4294901760
        %v7276 = vsub.f32 %v7274, %v7275
        %v7277 = vand.u32 %v7276, 4294901760
        %7278 = vmatpush1.msra.mxu0 %v7277
        %7279 = vmatprep.subr.mxu0 0.0
        %7280 = vmatpush1.msra.mxu0 0.0
        %7281 = vmatprep.subr.mxu0 0.0
        %7282 = vmatpush1.msra.mxu0 0.0
        %7283 = vmatprep.subr.mxu0 0.0
        %7284 = vmatpush1.msra.mxu0 0.0
        %7285 = vmatprep.subr.mxu0 0.0
        %7286 = vmatpush1.msra.mxu0 0.0
        %7287 = vmatprep.subr.mxu0 0.0
        %7288 = vmatpush1.msra.mxu0 0.0
        %7289 = vmatprep.subr.mxu0 0.0
        %7290 = vmatpush1.msra.mxu0 0.0
        %7291 = vmatprep.subr.mxu0 0.0
        %7292 = vmatpush1.msra.mxu0 0.0
        %7293 = vmatprep.subr.mxu0 0.0
        %7294 = vmatpush1.msra.mxu0 0.0
        %7295 = vmatprep.subr.mxu0 0.0
        %7296 = vmatpush1.msra.mxu0 0.0
        %7297 = vmatprep.subr.mxu0 0.0
        %7298 = vmatpush1.msra.mxu0 0.0
        %7299 = vmatprep.subr.mxu0 0.0
        %7300 = vmatpush1.msra.mxu0 0.0
        %7301 = vmatprep.subr.mxu0 0.0
        %7302 = vmatpush1.msra.mxu0 0.0
        %7303 = vmatprep.subr.mxu0 0.0
        %7304 = vmatpush1.msra.mxu0 0.0
        %7305 = vmatprep.subr.mxu0 0.0
        %7306 = vmatpush1.msra.mxu0 0.0
        %7307 = vmatprep.subr.mxu0 0.0
        %7308 = vmatpush1.msra.mxu0 0.0
        %7309 = vmatprep.subr.mxu0 0.0
        %7310 = vmatpush1.msra.mxu0 0.0
        %7311 = vmatprep.subr.mxu0 0.0
        %7312 = vmatpush1.msra.mxu0 0.0
        %7313 = vmatprep.subr.mxu0 0.0
        %7314 = vmatpush1.msra.mxu0 0.0
        %7315 = vmatprep.subr.mxu0 0.0
        %7316 = vmatpush1.msra.mxu0 0.0
        %7317 = vmatprep.subr.mxu0 0.0
        %7318 = vmatpush1.msra.mxu0 0.0
        %7319 = vmatprep.subr.mxu0 0.0
        %7320 = vmatpush1.msra.mxu0 0.0
        %7321 = vmatprep.subr.mxu0 0.0
        %7322 = vmatpush1.msra.mxu0 0.0
        %7323 = vmatprep.subr.mxu0 0.0
        %7324 = vmatpush1.msra.mxu0 0.0
        %7325 = vmatprep.subr.mxu0 0.0
        %7326 = vmatpush1.msra.mxu0 0.0
        %7327 = vmatprep.subr.mxu0 0.0
        %7328 = vmatpush1.msra.mxu0 0.0
        %7329 = vmatprep.subr.mxu0 0.0
        %7330 = vmatpush1.msra.mxu0 0.0
        %7331 = vmatprep.subr.mxu0 0.0
        %7332 = vmatpush1.msra.mxu0 0.0
        %7333 = vmatprep.subr.mxu0 0.0
        %7334 = vmatpush1.msra.mxu0 0.0
        %7335 = vmatprep.subr.mxu0 0.0
        %7336 = vmatpush1.msra.mxu0 0.0
        %7337 = vmatprep.subr.mxu0 0.0
        %7338 = vmatpush1.msra.mxu0 0.0
        %7339 = vmatprep.subr.mxu0 0.0
        %7340 = vmatpush1.msra.mxu0 0.0
        %7341 = vmatprep.mubr.f32.mxu0 0.0
        %v7342 = vand.u32 %v7194, 4294901760
        %7343 = vmatmul.mubr.f32.gmra.mrb[0].mxu0 %v7342
        %v7344 = vpop.f32.mrb[0].mxu0
        %v7345 = vadd.f32 %v7269, %v7344
        %v7346 = vpop.f32.mrb[0].mxu0
        %7347 = vdwg.mxu0
        %7348 = vmatprep.subr.mxu0 0.0
        %v7349 = vand.u32 %v7191, 4294901760
        %v7350 = vsub.f32 %v7191, %v7349
        %7351 = vmatpush1.msra.mxu0 %v7350
        %7352 = vmatprep.subr.mxu0 0.0
        %7353 = vmatpush1.msra.mxu0 0.0
        %7354 = vmatprep.subr.mxu0 0.0
        %7355 = vmatpush1.msra.mxu0 0.0
        %7356 = vmatprep.subr.mxu0 0.0
        %7357 = vmatpush1.msra.mxu0 0.0
        %7358 = vmatprep.subr.mxu0 0.0
        %7359 = vmatpush1.msra.mxu0 0.0
        %7360 = vmatprep.subr.mxu0 0.0
        %7361 = vmatpush1.msra.mxu0 0.0
        %7362 = vmatprep.subr.mxu0 0.0
        %7363 = vmatpush1.msra.mxu0 0.0
        %7364 = vmatprep.subr.mxu0 0.0
        %7365 = vmatpush1.msra.mxu0 0.0
        %7366 = vmatprep.subr.mxu0 0.0
        %7367 = vmatpush1.msra.mxu0 0.0
        %7368 = vmatprep.subr.mxu0 0.0
        %7369 = vmatpush1.msra.mxu0 0.0
        %7370 = vmatprep.subr.mxu0 0.0
        %7371 = vmatpush1.msra.mxu0 0.0
        %7372 = vmatprep.subr.mxu0 0.0
        %7373 = vmatpush1.msra.mxu0 0.0
        %7374 = vmatprep.subr.mxu0 0.0
        %7375 = vmatpush1.msra.mxu0 0.0
        %7376 = vmatprep.subr.mxu0 0.0
        %7377 = vmatpush1.msra.mxu0 0.0
        %7378 = vmatprep.subr.mxu0 0.0
        %7379 = vmatpush1.msra.mxu0 0.0
        %7380 = vmatprep.subr.mxu0 0.0
        %7381 = vmatpush1.msra.mxu0 0.0
        %7382 = vmatprep.subr.mxu0 0.0
        %7383 = vmatpush1.msra.mxu0 0.0
        %7384 = vmatprep.subr.mxu0 0.0
        %7385 = vmatpush1.msra.mxu0 0.0
        %7386 = vmatprep.subr.mxu0 0.0
        %7387 = vmatpush1.msra.mxu0 0.0
        %7388 = vmatprep.subr.mxu0 0.0
        %7389 = vmatpush1.msra.mxu0 0.0
        %7390 = vmatprep.subr.mxu0 0.0
        %7391 = vmatpush1.msra.mxu0 0.0
        %7392 = vmatprep.subr.mxu0 0.0
        %7393 = vmatpush1.msra.mxu0 0.0
        %7394 = vmatprep.subr.mxu0 0.0
        %7395 = vmatpush1.msra.mxu0 0.0
        %7396 = vmatprep.subr.mxu0 0.0
        %7397 = vmatpush1.msra.mxu0 0.0
        %7398 = vmatprep.subr.mxu0 0.0
        %7399 = vmatpush1.msra.mxu0 0.0
        %7400 = vmatprep.subr.mxu0 0.0
        %7401 = vmatpush1.msra.mxu0 0.0
        %7402 = vmatprep.subr.mxu0 0.0
        %7403 = vmatpush1.msra.mxu0 0.0
        %7404 = vmatprep.subr.mxu0 0.0
        %7405 = vmatpush1.msra.mxu0 0.0
        %7406 = vmatprep.subr.mxu0 0.0
        %7407 = vmatpush1.msra.mxu0 0.0
        %7408 = vmatprep.subr.mxu0 0.0
        %7409 = vmatpush1.msra.mxu0 0.0
        %7410 = vmatprep.subr.mxu0 0.0
        %7411 = vmatpush1.msra.mxu0 0.0
        %7412 = vmatprep.subr.mxu0 0.0
        %7413 = vmatpush1.msra.mxu0 0.0
        %7414 = vmatprep.mubr.f32.mxu0 0.0
        %v7415 = vand.u32 %v7194, 4294901760
        %v7416 = vsub.f32 %v7194, %v7415
        %7417 = vmatmul.mubr.f32.gmra.mrb[0].mxu0 %v7416
        %v7418 = vpop.f32.mrb[0].mxu0
        %v7419 = vadd.f32 %v7345, %v7418
        %v7420 = vpop.f32.mrb[0].mxu0
        %7421 = vdwg.mxu0
        %7422 = vmatprep.subr.mxu0 0.0
        %v7423 = vand.u32 %v7191, 4294901760
        %7424 = vmatpush1.msra.mxu0 %v7423
        %7425 = vmatprep.subr.mxu0 0.0
        %7426 = vmatpush1.msra.mxu0 0.0
        %7427 = vmatprep.subr.mxu0 0.0
        %7428 = vmatpush1.msra.mxu0 0.0
        %7429 = vmatprep.subr.mxu0 0.0
        %7430 = vmatpush1.msra.mxu0 0.0
        %7431 = vmatprep.subr.mxu0 0.0
        %7432 = vmatpush1.msra.mxu0 0.0
        %7433 = vmatprep.subr.mxu0 0.0
        %7434 = vmatpush1.msra.mxu0 0.0
        %7435 = vmatprep.subr.mxu0 0.0
        %7436 = vmatpush1.msra.mxu0 0.0
        %7437 = vmatprep.subr.mxu0 0.0
        %7438 = vmatpush1.msra.mxu0 0.0
        %7439 = vmatprep.subr.mxu0 0.0
        %7440 = vmatpush1.msra.mxu0 0.0
        %7441 = vmatprep.subr.mxu0 0.0
        %7442 = vmatpush1.msra.mxu0 0.0
        %7443 = vmatprep.subr.mxu0 0.0
        %7444 = vmatpush1.msra.mxu0 0.0
        %7445 = vmatprep.subr.mxu0 0.0
        %7446 = vmatpush1.msra.mxu0 0.0
        %7447 = vmatprep.subr.mxu0 0.0
        %7448 = vmatpush1.msra.mxu0 0.0
        %7449 = vmatprep.subr.mxu0 0.0
        %7450 = vmatpush1.msra.mxu0 0.0
        %7451 = vmatprep.subr.mxu0 0.0
        %7452 = vmatpush1.msra.mxu0 0.0
        %7453 = vmatprep.subr.mxu0 0.0
        %7454 = vmatpush1.msra.mxu0 0.0
        %7455 = vmatprep.subr.mxu0 0.0
        %7456 = vmatpush1.msra.mxu0 0.0
        %7457 = vmatprep.subr.mxu0 0.0
        %7458 = vmatpush1.msra.mxu0 0.0
        %7459 = vmatprep.subr.mxu0 0.0
        %7460 = vmatpush1.msra.mxu0 0.0
        %7461 = vmatprep.subr.mxu0 0.0
        %7462 = vmatpush1.msra.mxu0 0.0
        %7463 = vmatprep.subr.mxu0 0.0
        %7464 = vmatpush1.msra.mxu0 0.0
        %7465 = vmatprep.subr.mxu0 0.0
        %7466 = vmatpush1.msra.mxu0 0.0
        %7467 = vmatprep.subr.mxu0 0.0
        %7468 = vmatpush1.msra.mxu0 0.0
        %7469 = vmatprep.subr.mxu0 0.0
        %7470 = vmatpush1.msra.mxu0 0.0
        %7471 = vmatprep.subr.mxu0 0.0
        %7472 = vmatpush1.msra.mxu0 0.0
        %7473 = vmatprep.subr.mxu0 0.0
        %7474 = vmatpush1.msra.mxu0 0.0
        %7475 = vmatprep.subr.mxu0 0.0
        %7476 = vmatpush1.msra.mxu0 0.0
        %7477 = vmatprep.subr.mxu0 0.0
        %7478 = vmatpush1.msra.mxu0 0.0
        %7479 = vmatprep.subr.mxu0 0.0
        %7480 = vmatpush1.msra.mxu0 0.0
        %7481 = vmatprep.subr.mxu0 0.0
        %7482 = vmatpush1.msra.mxu0 0.0
        %7483 = vmatprep.subr.mxu0 0.0
        %7484 = vmatpush1.msra.mxu0 0.0
        %7485 = vmatprep.subr.mxu0 0.0
        %7486 = vmatpush1.msra.mxu0 0.0
        %7487 = vmatprep.mubr.f32.mxu0 0.0
        %v7488 = vand.u32 %v7194, 4294901760
        %v7489 = vsub.f32 %v7194, %v7488
        %v7490 = vand.u32 %v7489, 4294901760
        %7491 = vmatmul.mubr.f32.gmra.mrb[0].mxu0 %v7490
        %v7492 = vpop.f32.mrb[0].mxu0
        %v7493 = vadd.f32 %v7419, %v7492
        %v7494 = vpop.f32.mrb[0].mxu0
        %7495 = vdwg.mxu0
        %7496 = vmatprep.subr.mxu0 0.0
        %v7497 = vand.u32 %v7191, 4294901760
        %v7498 = vsub.f32 %v7191, %v7497
        %v7499 = vand.u32 %v7498, 4294901760
        %7500 = vmatpush1.msra.mxu0 %v7499
        %7501 = vmatprep.subr.mxu0 0.0
        %7502 = vmatpush1.msra.mxu0 0.0
        %7503 = vmatprep.subr.mxu0 0.0
        %7504 = vmatpush1.msra.mxu0 0.0
        %7505 = vmatprep.subr.mxu0 0.0
        %7506 = vmatpush1.msra.mxu0 0.0
        %7507 = vmatprep.subr.mxu0 0.0
        %7508 = vmatpush1.msra.mxu0 0.0
        %7509 = vmatprep.subr.mxu0 0.0
        %7510 = vmatpush1.msra.mxu0 0.0
        %7511 = vmatprep.subr.mxu0 0.0
        %7512 = vmatpush1.msra.mxu0 0.0
        %7513 = vmatprep.subr.mxu0 0.0
        %7514 = vmatpush1.msra.mxu0 0.0
        %7515 = vmatprep.subr.mxu0 0.0
        %7516 = vmatpush1.msra.mxu0 0.0
        %7517 = vmatprep.subr.mxu0 0.0
        %7518 = vmatpush1.msra.mxu0 0.0
        %7519 = vmatprep.subr.mxu0 0.0
        %7520 = vmatpush1.msra.mxu0 0.0
        %7521 = vmatprep.subr.mxu0 0.0
        %7522 = vmatpush1.msra.mxu0 0.0
        %7523 = vmatprep.subr.mxu0 0.0
        %7524 = vmatpush1.msra.mxu0 0.0
        %7525 = vmatprep.subr.mxu0 0.0
        %7526 = vmatpush1.msra.mxu0 0.0
        %7527 = vmatprep.subr.mxu0 0.0
        %7528 = vmatpush1.msra.mxu0 0.0
        %7529 = vmatprep.subr.mxu0 0.0
        %7530 = vmatpush1.msra.mxu0 0.0
        %7531 = vmatprep.subr.mxu0 0.0
        %7532 = vmatpush1.msra.mxu0 0.0
        %7533 = vmatprep.subr.mxu0 0.0
        %7534 = vmatpush1.msra.mxu0 0.0
        %7535 = vmatprep.subr.mxu0 0.0
        %7536 = vmatpush1.msra.mxu0 0.0
        %7537 = vmatprep.subr.mxu0 0.0
        %7538 = vmatpush1.msra.mxu0 0.0
        %7539 = vmatprep.subr.mxu0 0.0
        %7540 = vmatpush1.msra.mxu0 0.0
        %7541 = vmatprep.subr.mxu0 0.0
        %7542 = vmatpush1.msra.mxu0 0.0
        %7543 = vmatprep.subr.mxu0 0.0
        %7544 = vmatpush1.msra.mxu0 0.0
        %7545 = vmatprep.subr.mxu0 0.0
        %7546 = vmatpush1.msra.mxu0 0.0
        %7547 = vmatprep.subr.mxu0 0.0
        %7548 = vmatpush1.msra.mxu0 0.0
        %7549 = vmatprep.subr.mxu0 0.0
        %7550 = vmatpush1.msra.mxu0 0.0
        %7551 = vmatprep.subr.mxu0 0.0
        %7552 = vmatpush1.msra.mxu0 0.0
        %7553 = vmatprep.subr.mxu0 0.0
        %7554 = vmatpush1.msra.mxu0 0.0
        %7555 = vmatprep.subr.mxu0 0.0
        %7556 = vmatpush1.msra.mxu0 0.0
        %7557 = vmatprep.subr.mxu0 0.0
        %7558 = vmatpush1.msra.mxu0 0.0
        %7559 = vmatprep.subr.mxu0 0.0
        %7560 = vmatpush1.msra.mxu0 0.0
        %7561 = vmatprep.subr.mxu0 0.0
        %7562 = vmatpush1.msra.mxu0 0.0
        %7563 = vmatprep.mubr.f32.mxu0 0.0
        %v7564 = vand.u32 %v7194, 4294901760
        %7565 = vmatmul.mubr.f32.gmra.mrb[0].mxu0 %v7564
        %v7566 = vpop.f32.mrb[0].mxu0
        %v7567 = vadd.f32 %v7493, %v7566
        %v7568 = vpop.f32.mrb[0].mxu0
        %7569 = vdwg.mxu0
        %7570 = vmatprep.subr.mxu0 0.0
        %v7571 = vand.u32 %v7191, 4294901760
        %7572 = vmatpush1.msra.mxu0 %v7571
        %7573 = vmatprep.subr.mxu0 0.0
        %7574 = vmatpush1.msra.mxu0 0.0
        %7575 = vmatprep.subr.mxu0 0.0
        %7576 = vmatpush1.msra.mxu0 0.0
        %7577 = vmatprep.subr.mxu0 0.0
        %7578 = vmatpush1.msra.mxu0 0.0
        %7579 = vmatprep.subr.mxu0 0.0
        %7580 = vmatpush1.msra.mxu0 0.0
        %7581 = vmatprep.subr.mxu0 0.0
        %7582 = vmatpush1.msra.mxu0 0.0
        %7583 = vmatprep.subr.mxu0 0.0
        %7584 = vmatpush1.msra.mxu0 0.0
        %7585 = vmatprep.subr.mxu0 0.0
        %7586 = vmatpush1.msra.mxu0 0.0
        %7587 = vmatprep.subr.mxu0 0.0
        %7588 = vmatpush1.msra.mxu0 0.0
        %7589 = vmatprep.subr.mxu0 0.0
        %7590 = vmatpush1.msra.mxu0 0.0
        %7591 = vmatprep.subr.mxu0 0.0
        %7592 = vmatpush1.msra.mxu0 0.0
        %7593 = vmatprep.subr.mxu0 0.0
        %7594 = vmatpush1.msra.mxu0 0.0
        %7595 = vmatprep.subr.mxu0 0.0
        %7596 = vmatpush1.msra.mxu0 0.0
        %7597 = vmatprep.subr.mxu0 0.0
        %7598 = vmatpush1.msra.mxu0 0.0
        %7599 = vmatprep.subr.mxu0 0.0
        %7600 = vmatpush1.msra.mxu0 0.0
        %7601 = vmatprep.subr.mxu0 0.0
        %7602 = vmatpush1.msra.mxu0 0.0
        %7603 = vmatprep.subr.mxu0 0.0
        %7604 = vmatpush1.msra.mxu0 0.0
        %7605 = vmatprep.subr.mxu0 0.0
        %7606 = vmatpush1.msra.mxu0 0.0
        %7607 = vmatprep.subr.mxu0 0.0
        %7608 = vmatpush1.msra.mxu0 0.0
        %7609 = vmatprep.subr.mxu0 0.0
        %7610 = vmatpush1.msra.mxu0 0.0
        %7611 = vmatprep.subr.mxu0 0.0
        %7612 = vmatpush1.msra.mxu0 0.0
        %7613 = vmatprep.subr.mxu0 0.0
        %7614 = vmatpush1.msra.mxu0 0.0
        %7615 = vmatprep.subr.mxu0 0.0
        %7616 = vmatpush1.msra.mxu0 0.0
        %7617 = vmatprep.subr.mxu0 0.0
        %7618 = vmatpush1.msra.mxu0 0.0
        %7619 = vmatprep.subr.mxu0 0.0
        %7620 = vmatpush1.msra.mxu0 0.0
        %7621 = vmatprep.subr.mxu0 0.0
        %7622 = vmatpush1.msra.mxu0 0.0
        %7623 = vmatprep.subr.mxu0 0.0
        %7624 = vmatpush1.msra.mxu0 0.0
        %7625 = vmatprep.subr.mxu0 0.0
        %7626 = vmatpush1.msra.mxu0 0.0
        %7627 = vmatprep.subr.mxu0 0.0
        %7628 = vmatpush1.msra.mxu0 0.0
        %7629 = vmatprep.subr.mxu0 0.0
        %7630 = vmatpush1.msra.mxu0 0.0
        %7631 = vmatprep.subr.mxu0 0.0
        %7632 = vmatpush1.msra.mxu0 0.0
        %7633 = vmatprep.subr.mxu0 0.0
        %7634 = vmatpush1.msra.mxu0 0.0
        %7635 = vmatprep.mubr.f32.mxu0 0.0
        %v7636 = vand.u32 %v7194, 4294901760
        %7637 = vmatmul.mubr.f32.gmra.mrb[0].mxu0 %v7636
        %v7638 = vpop.f32.mrb[0].mxu0
        %v7639 = vadd.f32 %v7567, %v7638
        %v7640 = vpop.f32.mrb[0].mxu0
        %7641 = vdwg.mxu0
        %7642 = vrot.lane.b32.xlu0 %v754, 64
        %v7643 = vpop.permute.xlu0 %7642
        %v7646 = vsel %vm767, %v4477, 0
        %7648 = vmatprep.subr.mxu0 0.0
        %v7649 = vand.u32 %v7643, 4294901760
        %7650 = vmatpush1.msra.mxu0 %v7649
        %7651 = vmatprep.subr.mxu0 0.0
        %7652 = vmatpush1.msra.mxu0 0.0
        %7653 = vmatprep.subr.mxu0 0.0
        %7654 = vmatpush1.msra.mxu0 0.0
        %7655 = vmatprep.subr.mxu0 0.0
        %7656 = vmatpush1.msra.mxu0 0.0
        %7657 = vmatprep.subr.mxu0 0.0
        %7658 = vmatpush1.msra.mxu0 0.0
        %7659 = vmatprep.subr.mxu0 0.0
        %7660 = vmatpush1.msra.mxu0 0.0
        %7661 = vmatprep.subr.mxu0 0.0
        %7662 = vmatpush1.msra.mxu0 0.0
        %7663 = vmatprep.subr.mxu0 0.0
        %7664 = vmatpush1.msra.mxu0 0.0
        %7665 = vmatprep.subr.mxu0 0.0
        %7666 = vmatpush1.msra.mxu0 0.0
        %7667 = vmatprep.subr.mxu0 0.0
        %7668 = vmatpush1.msra.mxu0 0.0
        %7669 = vmatprep.subr.mxu0 0.0
        %7670 = vmatpush1.msra.mxu0 0.0
        %7671 = vmatprep.subr.mxu0 0.0
        %7672 = vmatpush1.msra.mxu0 0.0
        %7673 = vmatprep.subr.mxu0 0.0
        %7674 = vmatpush1.msra.mxu0 0.0
        %7675 = vmatprep.subr.mxu0 0.0
        %7676 = vmatpush1.msra.mxu0 0.0
        %7677 = vmatprep.subr.mxu0 0.0
        %7678 = vmatpush1.msra.mxu0 0.0
        %7679 = vmatprep.subr.mxu0 0.0
        %7680 = vmatpush1.msra.mxu0 0.0
        %7681 = vmatprep.subr.mxu0 0.0
        %7682 = vmatpush1.msra.mxu0 0.0
        %7683 = vmatprep.subr.mxu0 0.0
        %7684 = vmatpush1.msra.mxu0 0.0
        %7685 = vmatprep.subr.mxu0 0.0
        %7686 = vmatpush1.msra.mxu0 0.0
        %7687 = vmatprep.subr.mxu0 0.0
        %7688 = vmatpush1.msra.mxu0 0.0
        %7689 = vmatprep.subr.mxu0 0.0
        %7690 = vmatpush1.msra.mxu0 0.0
        %7691 = vmatprep.subr.mxu0 0.0
        %7692 = vmatpush1.msra.mxu0 0.0
        %7693 = vmatprep.subr.mxu0 0.0
        %7694 = vmatpush1.msra.mxu0 0.0
        %7695 = vmatprep.subr.mxu0 0.0
        %7696 = vmatpush1.msra.mxu0 0.0
        %7697 = vmatprep.subr.mxu0 0.0
        %7698 = vmatpush1.msra.mxu0 0.0
        %7699 = vmatprep.subr.mxu0 0.0
        %7700 = vmatpush1.msra.mxu0 0.0
        %7701 = vmatprep.subr.mxu0 0.0
        %7702 = vmatpush1.msra.mxu0 0.0
        %7703 = vmatprep.subr.mxu0 0.0
        %7704 = vmatpush1.msra.mxu0 0.0
        %7705 = vmatprep.subr.mxu0 0.0
        %7706 = vmatpush1.msra.mxu0 0.0
        %7707 = vmatprep.subr.mxu0 0.0
        %7708 = vmatpush1.msra.mxu0 0.0
        %7709 = vmatprep.subr.mxu0 0.0
        %7710 = vmatpush1.msra.mxu0 0.0
        %7711 = vmatprep.subr.mxu0 0.0
        %7712 = vmatpush1.msra.mxu0 0.0
        %7713 = vmatprep.mubr.f32.mxu0 0.0
        %v7714 = vand.u32 %v7646, 4294901760
        %v7715 = vsub.f32 %v7646, %v7714
        %v7716 = vand.u32 %v7715, 4294901760
        %v7717 = vsub.f32 %v7715, %v7716
        %v7718 = vand.u32 %v7717, 4294901760
        %7719 = vmatmul.mubr.f32.gmra.mrb[0].mxu0 %v7718
        %v7720 = vpop.f32.mrb[0].mxu0
        %v7721 = vadd.f32 0.0, %v7720
        %v7722 = vpop.f32.mrb[0].mxu0
        %7723 = vdwg.mxu0
        %7724 = vmatprep.subr.mxu0 0.0
        %v7725 = vand.u32 %v7643, 4294901760
        %v7726 = vsub.f32 %v7643, %v7725
        %v7727 = vand.u32 %v7726, 4294901760
        %v7728 = vsub.f32 %v7726, %v7727
        %v7729 = vand.u32 %v7728, 4294901760
        %7730 = vmatpush1.msra.mxu0 %v7729
        %7731 = vmatprep.subr.mxu0 0.0
        %7732 = vmatpush1.msra.mxu0 0.0
        %7733 = vmatprep.subr.mxu0 0.0
        %7734 = vmatpush1.msra.mxu0 0.0
        %7735 = vmatprep.subr.mxu0 0.0
        %7736 = vmatpush1.msra.mxu0 0.0
        %7737 = vmatprep.subr.mxu0 0.0
        %7738 = vmatpush1.msra.mxu0 0.0
        %7739 = vmatprep.subr.mxu0 0.0
        %7740 = vmatpush1.msra.mxu0 0.0
        %7741 = vmatprep.subr.mxu0 0.0
        %7742 = vmatpush1.msra.mxu0 0.0
        %7743 = vmatprep.subr.mxu0 0.0
        %7744 = vmatpush1.msra.mxu0 0.0
        %7745 = vmatprep.subr.mxu0 0.0
        %7746 = vmatpush1.msra.mxu0 0.0
        %7747 = vmatprep.subr.mxu0 0.0
        %7748 = vmatpush1.msra.mxu0 0.0
        %7749 = vmatprep.subr.mxu0 0.0
        %7750 = vmatpush1.msra.mxu0 0.0
        %7751 = vmatprep.subr.mxu0 0.0
        %7752 = vmatpush1.msra.mxu0 0.0
        %7753 = vmatprep.subr.mxu0 0.0
        %7754 = vmatpush1.msra.mxu0 0.0
        %7755 = vmatprep.subr.mxu0 0.0
        %7756 = vmatpush1.msra.mxu0 0.0
        %7757 = vmatprep.subr.mxu0 0.0
        %7758 = vmatpush1.msra.mxu0 0.0
        %7759 = vmatprep.subr.mxu0 0.0
        %7760 = vmatpush1.msra.mxu0 0.0
        %7761 = vmatprep.subr.mxu0 0.0
        %7762 = vmatpush1.msra.mxu0 0.0
        %7763 = vmatprep.subr.mxu0 0.0
        %7764 = vmatpush1.msra.mxu0 0.0
        %7765 = vmatprep.subr.mxu0 0.0
        %7766 = vmatpush1.msra.mxu0 0.0
        %7767 = vmatprep.subr.mxu0 0.0
        %7768 = vmatpush1.msra.mxu0 0.0
        %7769 = vmatprep.subr.mxu0 0.0
        %7770 = vmatpush1.msra.mxu0 0.0
        %7771 = vmatprep.subr.mxu0 0.0
        %7772 = vmatpush1.msra.mxu0 0.0
        %7773 = vmatprep.subr.mxu0 0.0
        %7774 = vmatpush1.msra.mxu0 0.0
        %7775 = vmatprep.subr.mxu0 0.0
        %7776 = vmatpush1.msra.mxu0 0.0
        %7777 = vmatprep.subr.mxu0 0.0
        %7778 = vmatpush1.msra.mxu0 0.0
        %7779 = vmatprep.subr.mxu0 0.0
        %7780 = vmatpush1.msra.mxu0 0.0
        %7781 = vmatprep.subr.mxu0 0.0
        %7782 = vmatpush1.msra.mxu0 0.0
        %7783 = vmatprep.subr.mxu0 0.0
        %7784 = vmatpush1.msra.mxu0 0.0
        %7785 = vmatprep.subr.mxu0 0.0
        %7786 = vmatpush1.msra.mxu0 0.0
        %7787 = vmatprep.subr.mxu0 0.0
        %7788 = vmatpush1.msra.mxu0 0.0
        %7789 = vmatprep.subr.mxu0 0.0
        %7790 = vmatpush1.msra.mxu0 0.0
        %7791 = vmatprep.subr.mxu0 0.0
        %7792 = vmatpush1.msra.mxu0 0.0
        %7793 = vmatprep.mubr.f32.mxu0 0.0
        %v7794 = vand.u32 %v7646, 4294901760
        %7795 = vmatmul.mubr.f32.gmra.mrb[0].mxu0 %v7794
        %v7796 = vpop.f32.mrb[0].mxu0
        %v7797 = vadd.f32 %v7721, %v7796
        %v7798 = vpop.f32.mrb[0].mxu0
        %7799 = vdwg.mxu0
        %7800 = vmatprep.subr.mxu0 0.0
        %v7801 = vand.u32 %v7643, 4294901760
        %v7802 = vsub.f32 %v7643, %v7801
        %7803 = vmatpush1.msra.mxu0 %v7802
        %7804 = vmatprep.subr.mxu0 0.0
        %7805 = vmatpush1.msra.mxu0 0.0
        %7806 = vmatprep.subr.mxu0 0.0
        %7807 = vmatpush1.msra.mxu0 0.0
        %7808 = vmatprep.subr.mxu0 0.0
        %7809 = vmatpush1.msra.mxu0 0.0
        %7810 = vmatprep.subr.mxu0 0.0
        %7811 = vmatpush1.msra.mxu0 0.0
        %7812 = vmatprep.subr.mxu0 0.0
        %7813 = vmatpush1.msra.mxu0 0.0
        %7814 = vmatprep.subr.mxu0 0.0
        %7815 = vmatpush1.msra.mxu0 0.0
        %7816 = vmatprep.subr.mxu0 0.0
        %7817 = vmatpush1.msra.mxu0 0.0
        %7818 = vmatprep.subr.mxu0 0.0
        %7819 = vmatpush1.msra.mxu0 0.0
        %7820 = vmatprep.subr.mxu0 0.0
        %7821 = vmatpush1.msra.mxu0 0.0
        %7822 = vmatprep.subr.mxu0 0.0
        %7823 = vmatpush1.msra.mxu0 0.0
        %7824 = vmatprep.subr.mxu0 0.0
        %7825 = vmatpush1.msra.mxu0 0.0
        %7826 = vmatprep.subr.mxu0 0.0
        %7827 = vmatpush1.msra.mxu0 0.0
        %7828 = vmatprep.subr.mxu0 0.0
        %7829 = vmatpush1.msra.mxu0 0.0
        %7830 = vmatprep.subr.mxu0 0.0
        %7831 = vmatpush1.msra.mxu0 0.0
        %7832 = vmatprep.subr.mxu0 0.0
        %7833 = vmatpush1.msra.mxu0 0.0
        %7834 = vmatprep.subr.mxu0 0.0
        %7835 = vmatpush1.msra.mxu0 0.0
        %7836 = vmatprep.subr.mxu0 0.0
        %7837 = vmatpush1.msra.mxu0 0.0
        %7838 = vmatprep.subr.mxu0 0.0
        %7839 = vmatpush1.msra.mxu0 0.0
        %7840 = vmatprep.subr.mxu0 0.0
        %7841 = vmatpush1.msra.mxu0 0.0
        %7842 = vmatprep.subr.mxu0 0.0
        %7843 = vmatpush1.msra.mxu0 0.0
        %7844 = vmatprep.subr.mxu0 0.0
        %7845 = vmatpush1.msra.mxu0 0.0
        %7846 = vmatprep.subr.mxu0 0.0
        %7847 = vmatpush1.msra.mxu0 0.0
        %7848 = vmatprep.subr.mxu0 0.0
        %7849 = vmatpush1.msra.mxu0 0.0
        %7850 = vmatprep.subr.mxu0 0.0
        %7851 = vmatpush1.msra.mxu0 0.0
        %7852 = vmatprep.subr.mxu0 0.0
        %7853 = vmatpush1.msra.mxu0 0.0
        %7854 = vmatprep.subr.mxu0 0.0
        %7855 = vmatpush1.msra.mxu0 0.0
        %7856 = vmatprep.subr.mxu0 0.0
        %7857 = vmatpush1.msra.mxu0 0.0
        %7858 = vmatprep.subr.mxu0 0.0
        %7859 = vmatpush1.msra.mxu0 0.0
        %7860 = vmatprep.subr.mxu0 0.0
        %7861 = vmatpush1.msra.mxu0 0.0
        %7862 = vmatprep.subr.mxu0 0.0
        %7863 = vmatpush1.msra.mxu0 0.0
        %7864 = vmatprep.subr.mxu0 0.0
        %7865 = vmatpush1.msra.mxu0 0.0
        %7866 = vmatprep.mubr.f32.mxu0 0.0
        %v7867 = vand.u32 %v7646, 4294901760
        %v7868 = vsub.f32 %v7646, %v7867
        %7869 = vmatmul.mubr.f32.gmra.mrb[0].mxu0 %v7868
        %v7870 = vpop.f32.mrb[0].mxu0
        %v7871 = vadd.f32 %v7797, %v7870
        %v7872 = vpop.f32.mrb[0].mxu0
        %7873 = vdwg.mxu0
        %7874 = vmatprep.subr.mxu0 0.0
        %v7875 = vand.u32 %v7643, 4294901760
        %7876 = vmatpush1.msra.mxu0 %v7875
        %7877 = vmatprep.subr.mxu0 0.0
        %7878 = vmatpush1.msra.mxu0 0.0
        %7879 = vmatprep.subr.mxu0 0.0
        %7880 = vmatpush1.msra.mxu0 0.0
        %7881 = vmatprep.subr.mxu0 0.0
        %7882 = vmatpush1.msra.mxu0 0.0
        %7883 = vmatprep.subr.mxu0 0.0
        %7884 = vmatpush1.msra.mxu0 0.0
        %7885 = vmatprep.subr.mxu0 0.0
        %7886 = vmatpush1.msra.mxu0 0.0
        %7887 = vmatprep.subr.mxu0 0.0
        %7888 = vmatpush1.msra.mxu0 0.0
        %7889 = vmatprep.subr.mxu0 0.0
        %7890 = vmatpush1.msra.mxu0 0.0
        %7891 = vmatprep.subr.mxu0 0.0
        %7892 = vmatpush1.msra.mxu0 0.0
        %7893 = vmatprep.subr.mxu0 0.0
        %7894 = vmatpush1.msra.mxu0 0.0
        %7895 = vmatprep.subr.mxu0 0.0
        %7896 = vmatpush1.msra.mxu0 0.0
        %7897 = vmatprep.subr.mxu0 0.0
        %7898 = vmatpush1.msra.mxu0 0.0
        %7899 = vmatprep.subr.mxu0 0.0
        %7900 = vmatpush1.msra.mxu0 0.0
        %7901 = vmatprep.subr.mxu0 0.0
        %7902 = vmatpush1.msra.mxu0 0.0
        %7903 = vmatprep.subr.mxu0 0.0
        %7904 = vmatpush1.msra.mxu0 0.0
        %7905 = vmatprep.subr.mxu0 0.0
        %7906 = vmatpush1.msra.mxu0 0.0
        %7907 = vmatprep.subr.mxu0 0.0
        %7908 = vmatpush1.msra.mxu0 0.0
        %7909 = vmatprep.subr.mxu0 0.0
        %7910 = vmatpush1.msra.mxu0 0.0
        %7911 = vmatprep.subr.mxu0 0.0
        %7912 = vmatpush1.msra.mxu0 0.0
        %7913 = vmatprep.subr.mxu0 0.0
        %7914 = vmatpush1.msra.mxu0 0.0
        %7915 = vmatprep.subr.mxu0 0.0
        %7916 = vmatpush1.msra.mxu0 0.0
        %7917 = vmatprep.subr.mxu0 0.0
        %7918 = vmatpush1.msra.mxu0 0.0
        %7919 = vmatprep.subr.mxu0 0.0
        %7920 = vmatpush1.msra.mxu0 0.0
        %7921 = vmatprep.subr.mxu0 0.0
        %7922 = vmatpush1.msra.mxu0 0.0
        %7923 = vmatprep.subr.mxu0 0.0
        %7924 = vmatpush1.msra.mxu0 0.0
        %7925 = vmatprep.subr.mxu0 0.0
        %7926 = vmatpush1.msra.mxu0 0.0
        %7927 = vmatprep.subr.mxu0 0.0
        %7928 = vmatpush1.msra.mxu0 0.0
        %7929 = vmatprep.subr.mxu0 0.0
        %7930 = vmatpush1.msra.mxu0 0.0
        %7931 = vmatprep.subr.mxu0 0.0
        %7932 = vmatpush1.msra.mxu0 0.0
        %7933 = vmatprep.subr.mxu0 0.0
        %7934 = vmatpush1.msra.mxu0 0.0
        %7935 = vmatprep.subr.mxu0 0.0
        %7936 = vmatpush1.msra.mxu0 0.0
        %7937 = vmatprep.subr.mxu0 0.0
        %7938 = vmatpush1.msra.mxu0 0.0
        %7939 = vmatprep.mubr.f32.mxu0 0.0
        %v7940 = vand.u32 %v7646, 4294901760
        %v7941 = vsub.f32 %v7646, %v7940
        %v7942 = vand.u32 %v7941, 4294901760
        %7943 = vmatmul.mubr.f32.gmra.mrb[0].mxu0 %v7942
        %v7944 = vpop.f32.mrb[0].mxu0
        %v7945 = vadd.f32 %v7871, %v7944
        %v7946 = vpop.f32.mrb[0].mxu0
        %7947 = vdwg.mxu0
        %7948 = vmatprep.subr.mxu0 0.0
        %v7949 = vand.u32 %v7643, 4294901760
        %v7950 = vsub.f32 %v7643, %v7949
        %v7951 = vand.u32 %v7950, 4294901760
        %7952 = vmatpush1.msra.mxu0 %v7951
        %7953 = vmatprep.subr.mxu0 0.0
        %7954 = vmatpush1.msra.mxu0 0.0
        %7955 = vmatprep.subr.mxu0 0.0
        %7956 = vmatpush1.msra.mxu0 0.0
        %7957 = vmatprep.subr.mxu0 0.0
        %7958 = vmatpush1.msra.mxu0 0.0
        %7959 = vmatprep.subr.mxu0 0.0
        %7960 = vmatpush1.msra.mxu0 0.0
        %7961 = vmatprep.subr.mxu0 0.0
        %7962 = vmatpush1.msra.mxu0 0.0
        %7963 = vmatprep.subr.mxu0 0.0
        %7964 = vmatpush1.msra.mxu0 0.0
        %7965 = vmatprep.subr.mxu0 0.0
        %7966 = vmatpush1.msra.mxu0 0.0
        %7967 = vmatprep.subr.mxu0 0.0
        %7968 = vmatpush1.msra.mxu0 0.0
        %7969 = vmatprep.subr.mxu0 0.0
        %7970 = vmatpush1.msra.mxu0 0.0
        %7971 = vmatprep.subr.mxu0 0.0
        %7972 = vmatpush1.msra.mxu0 0.0
        %7973 = vmatprep.subr.mxu0 0.0
        %7974 = vmatpush1.msra.mxu0 0.0
        %7975 = vmatprep.subr.mxu0 0.0
        %7976 = vmatpush1.msra.mxu0 0.0
        %7977 = vmatprep.subr.mxu0 0.0
        %7978 = vmatpush1.msra.mxu0 0.0
        %7979 = vmatprep.subr.mxu0 0.0
        %7980 = vmatpush1.msra.mxu0 0.0
        %7981 = vmatprep.subr.mxu0 0.0
        %7982 = vmatpush1.msra.mxu0 0.0
        %7983 = vmatprep.subr.mxu0 0.0
        %7984 = vmatpush1.msra.mxu0 0.0
        %7985 = vmatprep.subr.mxu0 0.0
        %7986 = vmatpush1.msra.mxu0 0.0
        %7987 = vmatprep.subr.mxu0 0.0
        %7988 = vmatpush1.msra.mxu0 0.0
        %7989 = vmatprep.subr.mxu0 0.0
        %7990 = vmatpush1.msra.mxu0 0.0
        %7991 = vmatprep.subr.mxu0 0.0
        %7992 = vmatpush1.msra.mxu0 0.0
        %7993 = vmatprep.subr.mxu0 0.0
        %7994 = vmatpush1.msra.mxu0 0.0
        %7995 = vmatprep.subr.mxu0 0.0
        %7996 = vmatpush1.msra.mxu0 0.0
        %7997 = vmatprep.subr.mxu0 0.0
        %7998 = vmatpush1.msra.mxu0 0.0
        %7999 = vmatprep.subr.mxu0 0.0
        %8000 = vmatpush1.msra.mxu0 0.0
        %8001 = vmatprep.subr.mxu0 0.0
        %8002 = vmatpush1.msra.mxu0 0.0
        %8003 = vmatprep.subr.mxu0 0.0
        %8004 = vmatpush1.msra.mxu0 0.0
        %8005 = vmatprep.subr.mxu0 0.0
        %8006 = vmatpush1.msra.mxu0 0.0
        %8007 = vmatprep.subr.mxu0 0.0
        %8008 = vmatpush1.msra.mxu0 0.0
        %8009 = vmatprep.subr.mxu0 0.0
        %8010 = vmatpush1.msra.mxu0 0.0
        %8011 = vmatprep.subr.mxu0 0.0
        %8012 = vmatpush1.msra.mxu0 0.0
        %8013 = vmatprep.subr.mxu0 0.0
        %8014 = vmatpush1.msra.mxu0 0.0
        %8015 = vmatprep.mubr.f32.mxu0 0.0
        %v8016 = vand.u32 %v7646, 4294901760
        %8017 = vmatmul.mubr.f32.gmra.mrb[0].mxu0 %v8016
        %v8018 = vpop.f32.mrb[0].mxu0
        %v8019 = vadd.f32 %v7945, %v8018
        %v8020 = vpop.f32.mrb[0].mxu0
        %8021 = vdwg.mxu0
        %8022 = vmatprep.subr.mxu0 0.0
        %v8023 = vand.u32 %v7643, 4294901760
        %8024 = vmatpush1.msra.mxu0 %v8023
        %8025 = vmatprep.subr.mxu0 0.0
        %8026 = vmatpush1.msra.mxu0 0.0
        %8027 = vmatprep.subr.mxu0 0.0
        %8028 = vmatpush1.msra.mxu0 0.0
        %8029 = vmatprep.subr.mxu0 0.0
        %8030 = vmatpush1.msra.mxu0 0.0
        %8031 = vmatprep.subr.mxu0 0.0
        %8032 = vmatpush1.msra.mxu0 0.0
        %8033 = vmatprep.subr.mxu0 0.0
        %8034 = vmatpush1.msra.mxu0 0.0
        %8035 = vmatprep.subr.mxu0 0.0
        %8036 = vmatpush1.msra.mxu0 0.0
        %8037 = vmatprep.subr.mxu0 0.0
        %8038 = vmatpush1.msra.mxu0 0.0
        %8039 = vmatprep.subr.mxu0 0.0
        %8040 = vmatpush1.msra.mxu0 0.0
        %8041 = vmatprep.subr.mxu0 0.0
        %8042 = vmatpush1.msra.mxu0 0.0
        %8043 = vmatprep.subr.mxu0 0.0
        %8044 = vmatpush1.msra.mxu0 0.0
        %8045 = vmatprep.subr.mxu0 0.0
        %8046 = vmatpush1.msra.mxu0 0.0
        %8047 = vmatprep.subr.mxu0 0.0
        %8048 = vmatpush1.msra.mxu0 0.0
        %8049 = vmatprep.subr.mxu0 0.0
        %8050 = vmatpush1.msra.mxu0 0.0
        %8051 = vmatprep.subr.mxu0 0.0
        %8052 = vmatpush1.msra.mxu0 0.0
        %8053 = vmatprep.subr.mxu0 0.0
        %8054 = vmatpush1.msra.mxu0 0.0
        %8055 = vmatprep.subr.mxu0 0.0
        %8056 = vmatpush1.msra.mxu0 0.0
        %8057 = vmatprep.subr.mxu0 0.0
        %8058 = vmatpush1.msra.mxu0 0.0
        %8059 = vmatprep.subr.mxu0 0.0
        %8060 = vmatpush1.msra.mxu0 0.0
        %8061 = vmatprep.subr.mxu0 0.0
        %8062 = vmatpush1.msra.mxu0 0.0
        %8063 = vmatprep.subr.mxu0 0.0
        %8064 = vmatpush1.msra.mxu0 0.0
        %8065 = vmatprep.subr.mxu0 0.0
        %8066 = vmatpush1.msra.mxu0 0.0
        %8067 = vmatprep.subr.mxu0 0.0
        %8068 = vmatpush1.msra.mxu0 0.0
        %8069 = vmatprep.subr.mxu0 0.0
        %8070 = vmatpush1.msra.mxu0 0.0
        %8071 = vmatprep.subr.mxu0 0.0
        %8072 = vmatpush1.msra.mxu0 0.0
        %8073 = vmatprep.subr.mxu0 0.0
        %8074 = vmatpush1.msra.mxu0 0.0
        %8075 = vmatprep.subr.mxu0 0.0
        %8076 = vmatpush1.msra.mxu0 0.0
        %8077 = vmatprep.subr.mxu0 0.0
        %8078 = vmatpush1.msra.mxu0 0.0
        %8079 = vmatprep.subr.mxu0 0.0
        %8080 = vmatpush1.msra.mxu0 0.0
        %8081 = vmatprep.subr.mxu0 0.0
        %8082 = vmatpush1.msra.mxu0 0.0
        %8083 = vmatprep.subr.mxu0 0.0
        %8084 = vmatpush1.msra.mxu0 0.0
        %8085 = vmatprep.subr.mxu0 0.0
        %8086 = vmatpush1.msra.mxu0 0.0
        %8087 = vmatprep.mubr.f32.mxu0 0.0
        %v8088 = vand.u32 %v7646, 4294901760
        %8089 = vmatmul.mubr.f32.gmra.mrb[0].mxu0 %v8088
        %v8090 = vpop.f32.mrb[0].mxu0
        %v8091 = vadd.f32 %v8019, %v8090
        %v8092 = vpop.f32.mrb[0].mxu0
        %8093 = vdwg.mxu0
        %8096 = vrot.lane.b32.xlu0 %v5831, 8
        %v8097 = vpop.permute.xlu0 %8096
        %8098 = vrot.lane.b32.xlu0 %v6283, 8
        %v8099 = vpop.permute.xlu0 %8098
        %8104 = vrot.lane.b32.xlu0 %v6735, 16
        %v8105 = vpop.permute.xlu0 %8104
        %8106 = vrot.lane.b32.xlu0 %v7187, 16
        %v8107 = vpop.permute.xlu0 %8106
        %8112 = vrot.lane.b32.xlu0 %v7639, 24
        %v8113 = vpop.permute.xlu0 %8112
        %8114 = vrot.lane.b32.xlu0 %v8091, 24
        %v8115 = vpop.permute.xlu0 %8114
        %v8118 = vsel %vm767, %v4927, %v8097
        %v8119 = vsel %vm767, %v5379, %v8099
        %vm8120 = vcmask 130048
        %v8121 = vsel %vm8120, %v8118, %v8105
        %v8122 = vsel %vm8120, %v8119, %v8107
        %vm8123 = vcmask 195584
        %v8124 = vsel %vm8123, %v8121, %v8113
        %v8125 = vsel %vm8123, %v8122, %v8115
        %v8126 = vpack.c.bf16 %v8125, %v8124
        %v8127 = vld [vmem:[%s623] sm:$0xf]
        %v8128 = vld [vmem:[%s623 + $0x4] sm:$0xf]
        %v8129 = vld [vmem:[%s623 + $0x8] sm:$0xf]
        %v8130 = vld [vmem:[%s623 + $0xc] sm:$0xf]
        %v8131 = vld [vmem:[%s626] sm:$0x1]
        %v8133 = vlaneseq
        %v8134 = vshrl.u32 %v8133, 7
        %v8135 = vsub.s32 0, %v8134
        %v8136 = vrot.slane %v8131, %v8135
        %v8142 = vunpack.c.l.b16 %v8127
        %v8143 = vunpack.c.l.b16 %v8128
        %v8144 = vunpack.c.l.b16 %v8129
        %v8145 = vunpack.c.l.b16 %v8130
        %v8146 = vpack.c.b16 %v8143, %v8142
        %v8147 = vpack.c.b16 %v8145, %v8144
        %v8151 = vsel %vm692, %v8126, 0
        %8153 = vmatprep.subr.bf16.mxu0 0
        %8154 = vmatpush1.bf16.msra.mxu0 %v8146
        %8155 = vmatprep.subr.bf16.mxu0 0
        %8156 = vmatpush1.bf16.msra.mxu0 %v8147
        %8157 = vmatprep.subr.bf16.mxu0 0
        %8158 = vmatpush1.bf16.msra.mxu0 0
        %8159 = vmatprep.subr.bf16.mxu0 0
        %8160 = vmatpush1.bf16.msra.mxu0 0
        %8161 = vmatprep.subr.bf16.mxu0 0
        %8162 = vmatpush1.bf16.msra.mxu0 0
        %8163 = vmatprep.subr.bf16.mxu0 0
        %8164 = vmatpush1.bf16.msra.mxu0 0
        %8165 = vmatprep.subr.bf16.mxu0 0
        %8166 = vmatpush1.bf16.msra.mxu0 0
        %8167 = vmatprep.subr.bf16.mxu0 0
        %8168 = vmatpush1.bf16.msra.mxu0 0
        %8169 = vmatprep.subr.bf16.mxu0 0
        %8170 = vmatpush1.bf16.msra.mxu0 0
        %8171 = vmatprep.subr.bf16.mxu0 0
        %8172 = vmatpush1.bf16.msra.mxu0 0
        %8173 = vmatprep.subr.bf16.mxu0 0
        %8174 = vmatpush1.bf16.msra.mxu0 0
        %8175 = vmatprep.subr.bf16.mxu0 0
        %8176 = vmatpush1.bf16.msra.mxu0 0
        %8177 = vmatprep.subr.bf16.mxu0 0
        %8178 = vmatpush1.bf16.msra.mxu0 0
        %8179 = vmatprep.subr.bf16.mxu0 0
        %8180 = vmatpush1.bf16.msra.mxu0 0
        %8181 = vmatprep.subr.bf16.mxu0 0
        %8182 = vmatpush1.bf16.msra.mxu0 0
        %8183 = vmatprep.subr.bf16.mxu0 0
        %8184 = vmatpush1.bf16.msra.mxu0 0
        %8185 = vmatprep.mubr.bf16.mxu0 0
        %8186 = vmatmul.mubr.bf16.gmra.mrb[0].mxu0 %v8151
        %v8187 = vpop.f32.mrb[0].mxu0
        %v8188 = vadd.f32 %v8136, %v8187
        %v8189 = vpop.f32.mrb[0].mxu0
        %v8190 = vpop.f32.mrb[0].mxu0
        %v8191 = vadd.f32 %v8136, %v8190
        %v8192 = vpop.f32.mrb[0].mxu0
        %8193 = vdwg.mxu0
        %v8194 = vadd.f32 %v666, %v8188
        %v8195 = vadd.f32 %v667, %v8191
        %v8196 = vld [vmem:[%s629] sm:$0x1]
        %v8197 = vld [vmem:[%s632] sm:$0x1]
        %v8198 = vsel %vm692, %v8194, 0.0
        %8199 = vadd.xlane.f32.xlu0 %v8198
        %v8200 = vpop.xlane.xlu0 %8199
        %v8201 = vsel %vm692, %v8195, 0.0
        %8202 = vadd.xlane.f32.xlu0 %v8201
        %v8203 = vpop.xlane.xlu0 %8202
        %v8204 = vrcp.pop 32.0
        %v8205 = vmul.f32 %v8200, %v8204
        %v8206 = vmul.f32 %v8203, %v8204
        %v8207 = vsub.f32 %v8194, %v8205
        %v8208 = vsub.f32 %v8195, %v8206
        %v8209 = vmul.f32 %v8207, %v8207
        %v8210 = vmul.f32 %v8208, %v8208
        %v8211 = vsel %vm692, %v8209, 0.0
        %8212 = vadd.xlane.f32.xlu0 %v8211
        %v8213 = vpop.xlane.xlu0 %8212
        %v8214 = vsel %vm692, %v8210, 0.0
        %8215 = vadd.xlane.f32.xlu0 %v8214
        %v8216 = vpop.xlane.xlu0 %8215
        %v8217 = vmul.f32 %v8213, %v8204
        %v8218 = vmul.f32 %v8216, %v8204
        %v8219 = vadd.f32 %v8217, 1e-05
        %v8220 = vadd.f32 %v8218, 1e-05
        %v8221 = vrsqrt.pop %v8219
        %v8222 = vrsqrt.pop %v8220
        %v8223 = vmul.f32 %v8207, %v8221
        %v8224 = vmul.f32 %v8208, %v8222
        %v8226 = vlaneseq
        %v8227 = vshrl.u32 %v8226, 7
        %v8228 = vsub.s32 0, %v8227
        %v8229 = vrot.slane %v8196, %v8228
        %v8231 = vmul.f32 %v8223, %v8229
        %v8232 = vmul.f32 %v8224, %v8229
        %v8234 = vlaneseq
        %v8235 = vshrl.u32 %v8234, 7
        %v8236 = vsub.s32 0, %v8235
        %v8237 = vrot.slane %v8197, %v8236
        %v8239 = vadd.f32 %v8231, %v8237
        %v8240 = vadd.f32 %v8232, %v8237
        %v8241 = vpack.c.bf16 %v8240, %v8239
        %v8242 = vld [vmem:[%s637] sm:$0xff]
        %v8243 = vld [vmem:[%s637 + $0x8] sm:$0xff]
        %v8244 = vld [vmem:[%s637 + $0x10] sm:$0xff]
        %v8245 = vld [vmem:[%s637 + $0x18] sm:$0xff]
        %v8246 = vld [vmem:[%s637 + $0x20] sm:$0xff]
        %v8247 = vld [vmem:[%s637 + $0x28] sm:$0xff]
        %v8248 = vld [vmem:[%s637 + $0x30] sm:$0xff]
        %v8249 = vld [vmem:[%s637 + $0x38] sm:$0xff]
        %v8250 = vld [vmem:[%s637 + $0x40] sm:$0xff]
        %v8251 = vld [vmem:[%s637 + $0x48] sm:$0xff]
        %v8252 = vld [vmem:[%s637 + $0x50] sm:$0xff]
        %v8253 = vld [vmem:[%s637 + $0x58] sm:$0xff]
        %v8254 = vld [vmem:[%s637 + $0x60] sm:$0xff]
        %v8255 = vld [vmem:[%s637 + $0x68] sm:$0xff]
        %v8256 = vld [vmem:[%s637 + $0x70] sm:$0xff]
        %v8257 = vld [vmem:[%s637 + $0x78] sm:$0xff]
        %v8258 = vld [vmem:[%s637 + $0x80] sm:$0xff]
        %v8259 = vld [vmem:[%s637 + $0x88] sm:$0xff]
        %v8260 = vld [vmem:[%s637 + $0x90] sm:$0xff]
        %v8261 = vld [vmem:[%s637 + $0x98] sm:$0xff]
        %v8262 = vld [vmem:[%s637 + $0xa0] sm:$0xff]
        %v8263 = vld [vmem:[%s637 + $0xa8] sm:$0xff]
        %v8264 = vld [vmem:[%s637 + $0xb0] sm:$0xff]
        %v8265 = vld [vmem:[%s637 + $0xb8] sm:$0xff]
        %v8266 = vld [vmem:[%s637 + $0xc0] sm:$0xff]
        %v8267 = vld [vmem:[%s637 + $0xc8] sm:$0xff]
        %v8268 = vld [vmem:[%s637 + $0xd0] sm:$0xff]
        %v8269 = vld [vmem:[%s637 + $0xd8] sm:$0xff]
        %v8270 = vld [vmem:[%s637 + $0xe0] sm:$0xff]
        %v8271 = vld [vmem:[%s637 + $0xe8] sm:$0xff]
        %v8272 = vld [vmem:[%s637 + $0xf0] sm:$0xff]
        %v8273 = vld [vmem:[%s637 + $0xf8] sm:$0xff]
        %v8274 = vld [vmem:[%s641] sm:$0xff]
        %v8275 = vld [vmem:[%s641 + $0x8] sm:$0xff]
        %v8278 = vlaneseq
        %v8279 = vshrl.u32 %v8278, 7
        %v8280 = vsub.s32 0, %v8279
        %v8281 = vrot.slane %v8274, %v8280
        %v8282 = vlaneseq
        %v8283 = vshrl.u32 %v8282, 7
        %v8284 = vsub.s32 1, %v8283
        %v8285 = vrot.slane %v8274, %v8284
        %v8286 = vlaneseq
        %v8287 = vshrl.u32 %v8286, 7
        %v8288 = vsub.s32 2, %v8287
        %v8289 = vrot.slane %v8274, %v8288
        %v8290 = vlaneseq
        %v8291 = vshrl.u32 %v8290, 7
        %v8292 = vsub.s32 3, %v8291
        %v8293 = vrot.slane %v8274, %v8292
        %v8294 = vlaneseq
        %v8295 = vshrl.u32 %v8294, 7
        %v8296 = vsub.s32 4, %v8295
        %v8297 = vrot.slane %v8274, %v8296
        %v8298 = vlaneseq
        %v8299 = vshrl.u32 %v8298, 7
        %v8300 = vsub.s32 5, %v8299
        %v8301 = vrot.slane %v8274, %v8300
        %v8302 = vlaneseq
        %v8303 = vshrl.u32 %v8302, 7
        %v8304 = vsub.s32 6, %v8303
        %v8305 = vrot.slane %v8274, %v8304
        %v8306 = vlaneseq
        %v8307 = vshrl.u32 %v8306, 7
        %v8308 = vsub.s32 7, %v8307
        %v8309 = vrot.slane %v8274, %v8308
        %v8310 = vlaneseq
        %v8311 = vshrl.u32 %v8310, 7
        %v8312 = vsub.s32 0, %v8311
        %v8313 = vrot.slane %v8275, %v8312
        %v8314 = vlaneseq
        %v8315 = vshrl.u32 %v8314, 7
        %v8316 = vsub.s32 1, %v8315
        %v8317 = vrot.slane %v8275, %v8316
        %v8318 = vlaneseq
        %v8319 = vshrl.u32 %v8318, 7
        %v8320 = vsub.s32 2, %v8319
        %v8321 = vrot.slane %v8275, %v8320
        %v8322 = vlaneseq
        %v8323 = vshrl.u32 %v8322, 7
        %v8324 = vsub.s32 3, %v8323
        %v8325 = vrot.slane %v8275, %v8324
        %v8326 = vlaneseq
        %v8327 = vshrl.u32 %v8326, 7
        %v8328 = vsub.s32 4, %v8327
        %v8329 = vrot.slane %v8275, %v8328
        %v8330 = vlaneseq
        %v8331 = vshrl.u32 %v8330, 7
        %v8332 = vsub.s32 5, %v8331
        %v8333 = vrot.slane %v8275, %v8332
        %v8334 = vlaneseq
        %v8335 = vshrl.u32 %v8334, 7
        %v8336 = vsub.s32 6, %v8335
        %v8337 = vrot.slane %v8275, %v8336
        %v8338 = vlaneseq
        %v8339 = vshrl.u32 %v8338, 7
        %v8340 = vsub.s32 7, %v8339
        %v8341 = vrot.slane %v8275, %v8340
        %v8390 = vunpack.c.l.b16 %v8242
        %v8391 = vunpack.c.h.b16 %v8242
        %v8392 = vunpack.c.l.b16 %v8243
        %v8393 = vunpack.c.h.b16 %v8243
        %v8394 = vunpack.c.l.b16 %v8244
        %v8395 = vunpack.c.h.b16 %v8244
        %v8396 = vunpack.c.l.b16 %v8245
        %v8397 = vunpack.c.h.b16 %v8245
        %v8398 = vunpack.c.l.b16 %v8246
        %v8399 = vunpack.c.h.b16 %v8246
        %v8400 = vunpack.c.l.b16 %v8247
        %v8401 = vunpack.c.h.b16 %v8247
        %v8402 = vunpack.c.l.b16 %v8248
        %v8403 = vunpack.c.h.b16 %v8248
        %v8404 = vunpack.c.l.b16 %v8249
        %v8405 = vunpack.c.h.b16 %v8249
        %v8406 = vunpack.c.l.b16 %v8250
        %v8407 = vunpack.c.h.b16 %v8250
        %v8408 = vunpack.c.l.b16 %v8251
        %v8409 = vunpack.c.h.b16 %v8251
        %v8410 = vunpack.c.l.b16 %v8252
        %v8411 = vunpack.c.h.b16 %v8252
        %v8412 = vunpack.c.l.b16 %v8253
        %v8413 = vunpack.c.h.b16 %v8253
        %v8414 = vunpack.c.l.b16 %v8254
        %v8415 = vunpack.c.h.b16 %v8254
        %v8416 = vunpack.c.l.b16 %v8255
        %v8417 = vunpack.c.h.b16 %v8255
        %v8418 = vunpack.c.l.b16 %v8256
        %v8419 = vunpack.c.h.b16 %v8256
        %v8420 = vunpack.c.l.b16 %v8257
        %v8421 = vunpack.c.h.b16 %v8257
        %v8422 = vunpack.c.l.b16 %v8258
        %v8423 = vunpack.c.h.b16 %v8258
        %v8424 = vunpack.c.l.b16 %v8259
        %v8425 = vunpack.c.h.b16 %v8259
        %v8426 = vunpack.c.l.b16 %v8260
        %v8427 = vunpack.c.h.b16 %v8260
        %v8428 = vunpack.c.l.b16 %v8261
        %v8429 = vunpack.c.h.b16 %v8261
        %v8430 = vunpack.c.l.b16 %v8262
        %v8431 = vunpack.c.h.b16 %v8262
        %v8432 = vunpack.c.l.b16 %v8263
        %v8433 = vunpack.c.h.b16 %v8263
        %v8434 = vunpack.c.l.b16 %v8264
        %v8435 = vunpack.c.h.b16 %v8264
        %v8436 = vunpack.c.l.b16 %v8265
        %v8437 = vunpack.c.h.b16 %v8265
        %v8438 = vunpack.c.l.b16 %v8266
        %v8439 = vunpack.c.h.b16 %v8266
        %v8440 = vunpack.c.l.b16 %v8267
        %v8441 = vunpack.c.h.b16 %v8267
        %v8442 = vunpack.c.l.b16 %v8268
        %v8443 = vunpack.c.h.b16 %v8268
        %v8444 = vunpack.c.l.b16 %v8269
        %v8445 = vunpack.c.h.b16 %v8269
        %v8446 = vunpack.c.l.b16 %v8270
        %v8447 = vunpack.c.h.b16 %v8270
        %v8448 = vunpack.c.l.b16 %v8271
        %v8449 = vunpack.c.h.b16 %v8271
        %v8450 = vunpack.c.l.b16 %v8272
        %v8451 = vunpack.c.h.b16 %v8272
        %v8452 = vunpack.c.l.b16 %v8273
        %v8453 = vunpack.c.h.b16 %v8273
        %v8454 = vpack.c.b16 %v8406, %v8390
        %v8455 = vpack.c.b16 %v8407, %v8391
        %v8456 = vpack.c.b16 %v8408, %v8392
        %v8457 = vpack.c.b16 %v8409, %v8393
        %v8458 = vpack.c.b16 %v8410, %v8394
        %v8459 = vpack.c.b16 %v8411, %v8395
        %v8460 = vpack.c.b16 %v8412, %v8396
        %v8461 = vpack.c.b16 %v8413, %v8397
        %v8462 = vpack.c.b16 %v8414, %v8398
        %v8463 = vpack.c.b16 %v8415, %v8399
        %v8464 = vpack.c.b16 %v8416, %v8400
        %v8465 = vpack.c.b16 %v8417, %v8401
        %v8466 = vpack.c.b16 %v8418, %v8402
        %v8467 = vpack.c.b16 %v8419, %v8403
        %v8468 = vpack.c.b16 %v8420, %v8404
        %v8469 = vpack.c.b16 %v8421, %v8405
        %v8470 = vpack.c.b16 %v8438, %v8422
        %v8471 = vpack.c.b16 %v8439, %v8423
        %v8472 = vpack.c.b16 %v8440, %v8424
        %v8473 = vpack.c.b16 %v8441, %v8425
        %v8474 = vpack.c.b16 %v8442, %v8426
        %v8475 = vpack.c.b16 %v8443, %v8427
        %v8476 = vpack.c.b16 %v8444, %v8428
        %v8477 = vpack.c.b16 %v8445, %v8429
        %v8478 = vpack.c.b16 %v8446, %v8430
        %v8479 = vpack.c.b16 %v8447, %v8431
        %v8480 = vpack.c.b16 %v8448, %v8432
        %v8481 = vpack.c.b16 %v8449, %v8433
        %v8482 = vpack.c.b16 %v8450, %v8434
        %v8483 = vpack.c.b16 %v8451, %v8435
        %v8484 = vpack.c.b16 %v8452, %v8436
        %v8485 = vpack.c.b16 %v8453, %v8437
        %v8519 = vsel %vm692, %v8241, 0
        %8521 = vmatprep.subr.bf16.mxu0 %v8455
        %8522 = vmatpush1.bf16.msra.mxu0 %v8454
        %8523 = vmatprep.subr.bf16.mxu0 %v8471
        %8524 = vmatpush1.bf16.msra.mxu0 %v8470
        %8525 = vmatprep.subr.bf16.mxu0 0
        %8526 = vmatpush1.bf16.msra.mxu0 0
        %8527 = vmatprep.subr.bf16.mxu0 0
        %8528 = vmatpush1.bf16.msra.mxu0 0
        %8529 = vmatprep.subr.bf16.mxu0 0
        %8530 = vmatpush1.bf16.msra.mxu0 0
        %8531 = vmatprep.subr.bf16.mxu0 0
        %8532 = vmatpush1.bf16.msra.mxu0 0
        %8533 = vmatprep.subr.bf16.mxu0 0
        %8534 = vmatpush1.bf16.msra.mxu0 0
        %8535 = vmatprep.subr.bf16.mxu0 0
        %8536 = vmatpush1.bf16.msra.mxu0 0
        %8537 = vmatprep.subr.bf16.mxu0 0
        %8538 = vmatpush1.bf16.msra.mxu0 0
        %8539 = vmatprep.subr.bf16.mxu0 0
        %8540 = vmatpush1.bf16.msra.mxu0 0
        %8541 = vmatprep.subr.bf16.mxu0 0
        %8542 = vmatpush1.bf16.msra.mxu0 0
        %8543 = vmatprep.subr.bf16.mxu0 0
        %8544 = vmatpush1.bf16.msra.mxu0 0
        %8545 = vmatprep.subr.bf16.mxu0 0
        %8546 = vmatpush1.bf16.msra.mxu0 0
        %8547 = vmatprep.subr.bf16.mxu0 0
        %8548 = vmatpush1.bf16.msra.mxu0 0
        %8549 = vmatprep.subr.bf16.mxu0 0
        %8550 = vmatpush1.bf16.msra.mxu0 0
        %8551 = vmatprep.subr.bf16.mxu0 0
        %8552 = vmatpush1.bf16.msra.mxu0 0
        %8553 = vmatprep.mubr.bf16.mxu0 0
        %8554 = vmatmul.mubr.bf16.gmra.mrb[0].mxu0 %v8519
        %v8555 = vpop.f32.mrb[0].mxu0
        %v8556 = vadd.f32 %v8281, %v8555
        %v8557 = vpop.f32.mrb[0].mxu0
        %v8558 = vadd.f32 %v8285, %v8557
        %v8559 = vpop.f32.mrb[0].mxu0
        %v8560 = vadd.f32 %v8281, %v8559
        %v8561 = vpop.f32.mrb[0].mxu0
        %v8562 = vadd.f32 %v8285, %v8561
        %8563 = vdwg.mxu0
        %8564 = vmatprep.subr.bf16.mxu0 %v8457
        %8565 = vmatpush1.bf16.msra.mxu0 %v8456
        %8566 = vmatprep.subr.bf16.mxu0 %v8473
        %8567 = vmatpush1.bf16.msra.mxu0 %v8472
        %8568 = vmatprep.subr.bf16.mxu0 0
        %8569 = vmatpush1.bf16.msra.mxu0 0
        %8570 = vmatprep.subr.bf16.mxu0 0
        %8571 = vmatpush1.bf16.msra.mxu0 0
        %8572 = vmatprep.subr.bf16.mxu0 0
        %8573 = vmatpush1.bf16.msra.mxu0 0
        %8574 = vmatprep.subr.bf16.mxu0 0
        %8575 = vmatpush1.bf16.msra.mxu0 0
        %8576 = vmatprep.subr.bf16.mxu0 0
        %8577 = vmatpush1.bf16.msra.mxu0 0
        %8578 = vmatprep.subr.bf16.mxu0 0
        %8579 = vmatpush1.bf16.msra.mxu0 0
        %8580 = vmatprep.subr.bf16.mxu0 0
        %8581 = vmatpush1.bf16.msra.mxu0 0
        %8582 = vmatprep.subr.bf16.mxu0 0
        %8583 = vmatpush1.bf16.msra.mxu0 0
        %8584 = vmatprep.subr.bf16.mxu0 0
        %8585 = vmatpush1.bf16.msra.mxu0 0
        %8586 = vmatprep.subr.bf16.mxu0 0
        %8587 = vmatpush1.bf16.msra.mxu0 0
        %8588 = vmatprep.subr.bf16.mxu0 0
        %8589 = vmatpush1.bf16.msra.mxu0 0
        %8590 = vmatprep.subr.bf16.mxu0 0
        %8591 = vmatpush1.bf16.msra.mxu0 0
        %8592 = vmatprep.subr.bf16.mxu0 0
        %8593 = vmatpush1.bf16.msra.mxu0 0
        %8594 = vmatprep.subr.bf16.mxu0 0
        %8595 = vmatpush1.bf16.msra.mxu0 0
        %8596 = vmatprep.mubr.bf16.mxu0 0
        %8597 = vmatmul.mubr.bf16.gmra.mrb[0].mxu0 %v8519
        %v8598 = vpop.f32.mrb[0].mxu0
        %v8599 = vadd.f32 %v8289, %v8598
        %v8600 = vpop.f32.mrb[0].mxu0
        %v8601 = vadd.f32 %v8293, %v8600
        %v8602 = vpop.f32.mrb[0].mxu0
        %v8603 = vadd.f32 %v8289, %v8602
        %v8604 = vpop.f32.mrb[0].mxu0
        %v8605 = vadd.f32 %v8293, %v8604
        %8606 = vdwg.mxu0
        %8607 = vmatprep.subr.bf16.mxu0 %v8459
        %8608 = vmatpush1.bf16.msra.mxu0 %v8458
        %8609 = vmatprep.subr.bf16.mxu0 %v8475
        %8610 = vmatpush1.bf16.msra.mxu0 %v8474
        %8611 = vmatprep.subr.bf16.mxu0 0
        %8612 = vmatpush1.bf16.msra.mxu0 0
        %8613 = vmatprep.subr.bf16.mxu0 0
        %8614 = vmatpush1.bf16.msra.mxu0 0
        %8615 = vmatprep.subr.bf16.mxu0 0
        %8616 = vmatpush1.bf16.msra.mxu0 0
        %8617 = vmatprep.subr.bf16.mxu0 0
        %8618 = vmatpush1.bf16.msra.mxu0 0
        %8619 = vmatprep.subr.bf16.mxu0 0
        %8620 = vmatpush1.bf16.msra.mxu0 0
        %8621 = vmatprep.subr.bf16.mxu0 0
        %8622 = vmatpush1.bf16.msra.mxu0 0
        %8623 = vmatprep.subr.bf16.mxu0 0
        %8624 = vmatpush1.bf16.msra.mxu0 0
        %8625 = vmatprep.subr.bf16.mxu0 0
        %8626 = vmatpush1.bf16.msra.mxu0 0
        %8627 = vmatprep.subr.bf16.mxu0 0
        %8628 = vmatpush1.bf16.msra.mxu0 0
        %8629 = vmatprep.subr.bf16.mxu0 0
        %8630 = vmatpush1.bf16.msra.mxu0 0
        %8631 = vmatprep.subr.bf16.mxu0 0
        %8632 = vmatpush1.bf16.msra.mxu0 0
        %8633 = vmatprep.subr.bf16.mxu0 0
        %8634 = vmatpush1.bf16.msra.mxu0 0
        %8635 = vmatprep.subr.bf16.mxu0 0
        %8636 = vmatpush1.bf16.msra.mxu0 0
        %8637 = vmatprep.subr.bf16.mxu0 0
        %8638 = vmatpush1.bf16.msra.mxu0 0
        %8639 = vmatprep.mubr.bf16.mxu0 0
        %8640 = vmatmul.mubr.bf16.gmra.mrb[0].mxu0 %v8519
        %v8641 = vpop.f32.mrb[0].mxu0
        %v8642 = vadd.f32 %v8297, %v8641
        %v8643 = vpop.f32.mrb[0].mxu0
        %v8644 = vadd.f32 %v8301, %v8643
        %v8645 = vpop.f32.mrb[0].mxu0
        %v8646 = vadd.f32 %v8297, %v8645
        %v8647 = vpop.f32.mrb[0].mxu0
        %v8648 = vadd.f32 %v8301, %v8647
        %8649 = vdwg.mxu0
        %8650 = vmatprep.subr.bf16.mxu0 %v8461
        %8651 = vmatpush1.bf16.msra.mxu0 %v8460
        %8652 = vmatprep.subr.bf16.mxu0 %v8477
        %8653 = vmatpush1.bf16.msra.mxu0 %v8476
        %8654 = vmatprep.subr.bf16.mxu0 0
        %8655 = vmatpush1.bf16.msra.mxu0 0
        %8656 = vmatprep.subr.bf16.mxu0 0
        %8657 = vmatpush1.bf16.msra.mxu0 0
        %8658 = vmatprep.subr.bf16.mxu0 0
        %8659 = vmatpush1.bf16.msra.mxu0 0
        %8660 = vmatprep.subr.bf16.mxu0 0
        %8661 = vmatpush1.bf16.msra.mxu0 0
        %8662 = vmatprep.subr.bf16.mxu0 0
        %8663 = vmatpush1.bf16.msra.mxu0 0
        %8664 = vmatprep.subr.bf16.mxu0 0
        %8665 = vmatpush1.bf16.msra.mxu0 0
        %8666 = vmatprep.subr.bf16.mxu0 0
        %8667 = vmatpush1.bf16.msra.mxu0 0
        %8668 = vmatprep.subr.bf16.mxu0 0
        %8669 = vmatpush1.bf16.msra.mxu0 0
        %8670 = vmatprep.subr.bf16.mxu0 0
        %8671 = vmatpush1.bf16.msra.mxu0 0
        %8672 = vmatprep.subr.bf16.mxu0 0
        %8673 = vmatpush1.bf16.msra.mxu0 0
        %8674 = vmatprep.subr.bf16.mxu0 0
        %8675 = vmatpush1.bf16.msra.mxu0 0
        %8676 = vmatprep.subr.bf16.mxu0 0
        %8677 = vmatpush1.bf16.msra.mxu0 0
        %8678 = vmatprep.subr.bf16.mxu0 0
        %8679 = vmatpush1.bf16.msra.mxu0 0
        %8680 = vmatprep.subr.bf16.mxu0 0
        %8681 = vmatpush1.bf16.msra.mxu0 0
        %8682 = vmatprep.mubr.bf16.mxu0 0
        %8683 = vmatmul.mubr.bf16.gmra.mrb[0].mxu0 %v8519
        %v8684 = vpop.f32.mrb[0].mxu0
        %v8685 = vadd.f32 %v8305, %v8684
        %v8686 = vpop.f32.mrb[0].mxu0
        %v8687 = vadd.f32 %v8309, %v8686
        %v8688 = vpop.f32.mrb[0].mxu0
        %v8689 = vadd.f32 %v8305, %v8688
        %v8690 = vpop.f32.mrb[0].mxu0
        %v8691 = vadd.f32 %v8309, %v8690
        %8692 = vdwg.mxu0
        %8693 = vmatprep.subr.bf16.mxu0 %v8463
        %8694 = vmatpush1.bf16.msra.mxu0 %v8462
        %8695 = vmatprep.subr.bf16.mxu0 %v8479
        %8696 = vmatpush1.bf16.msra.mxu0 %v8478
        %8697 = vmatprep.subr.bf16.mxu0 0
        %8698 = vmatpush1.bf16.msra.mxu0 0
        %8699 = vmatprep.subr.bf16.mxu0 0
        %8700 = vmatpush1.bf16.msra.mxu0 0
        %8701 = vmatprep.subr.bf16.mxu0 0
        %8702 = vmatpush1.bf16.msra.mxu0 0
        %8703 = vmatprep.subr.bf16.mxu0 0
        %8704 = vmatpush1.bf16.msra.mxu0 0
        %8705 = vmatprep.subr.bf16.mxu0 0
        %8706 = vmatpush1.bf16.msra.mxu0 0
        %8707 = vmatprep.subr.bf16.mxu0 0
        %8708 = vmatpush1.bf16.msra.mxu0 0
        %8709 = vmatprep.subr.bf16.mxu0 0
        %8710 = vmatpush1.bf16.msra.mxu0 0
        %8711 = vmatprep.subr.bf16.mxu0 0
        %8712 = vmatpush1.bf16.msra.mxu0 0
        %8713 = vmatprep.subr.bf16.mxu0 0
        %8714 = vmatpush1.bf16.msra.mxu0 0
        %8715 = vmatprep.subr.bf16.mxu0 0
        %8716 = vmatpush1.bf16.msra.mxu0 0
        %8717 = vmatprep.subr.bf16.mxu0 0
        %8718 = vmatpush1.bf16.msra.mxu0 0
        %8719 = vmatprep.subr.bf16.mxu0 0
        %8720 = vmatpush1.bf16.msra.mxu0 0
        %8721 = vmatprep.subr.bf16.mxu0 0
        %8722 = vmatpush1.bf16.msra.mxu0 0
        %8723 = vmatprep.subr.bf16.mxu0 0
        %8724 = vmatpush1.bf16.msra.mxu0 0
        %8725 = vmatprep.mubr.bf16.mxu0 0
        %8726 = vmatmul.mubr.bf16.gmra.mrb[0].mxu0 %v8519
        %v8727 = vpop.f32.mrb[0].mxu0
        %v8728 = vadd.f32 %v8313, %v8727
        %v8729 = vpop.f32.mrb[0].mxu0
        %v8730 = vadd.f32 %v8317, %v8729
        %v8731 = vpop.f32.mrb[0].mxu0
        %v8732 = vadd.f32 %v8313, %v8731
        %v8733 = vpop.f32.mrb[0].mxu0
        %v8734 = vadd.f32 %v8317, %v8733
        %8735 = vdwg.mxu0
        %8736 = vmatprep.subr.bf16.mxu0 %v8465
        %8737 = vmatpush1.bf16.msra.mxu0 %v8464
        %8738 = vmatprep.subr.bf16.mxu0 %v8481
        %8739 = vmatpush1.bf16.msra.mxu0 %v8480
        %8740 = vmatprep.subr.bf16.mxu0 0
        %8741 = vmatpush1.bf16.msra.mxu0 0
        %8742 = vmatprep.subr.bf16.mxu0 0
        %8743 = vmatpush1.bf16.msra.mxu0 0
        %8744 = vmatprep.subr.bf16.mxu0 0
        %8745 = vmatpush1.bf16.msra.mxu0 0
        %8746 = vmatprep.subr.bf16.mxu0 0
        %8747 = vmatpush1.bf16.msra.mxu0 0
        %8748 = vmatprep.subr.bf16.mxu0 0
        %8749 = vmatpush1.bf16.msra.mxu0 0
        %8750 = vmatprep.subr.bf16.mxu0 0
        %8751 = vmatpush1.bf16.msra.mxu0 0
        %8752 = vmatprep.subr.bf16.mxu0 0
        %8753 = vmatpush1.bf16.msra.mxu0 0
        %8754 = vmatprep.subr.bf16.mxu0 0
        %8755 = vmatpush1.bf16.msra.mxu0 0
        %8756 = vmatprep.subr.bf16.mxu0 0
        %8757 = vmatpush1.bf16.msra.mxu0 0
        %8758 = vmatprep.subr.bf16.mxu0 0
        %8759 = vmatpush1.bf16.msra.mxu0 0
        %8760 = vmatprep.subr.bf16.mxu0 0
        %8761 = vmatpush1.bf16.msra.mxu0 0
        %8762 = vmatprep.subr.bf16.mxu0 0
        %8763 = vmatpush1.bf16.msra.mxu0 0
        %8764 = vmatprep.subr.bf16.mxu0 0
        %8765 = vmatpush1.bf16.msra.mxu0 0
        %8766 = vmatprep.subr.bf16.mxu0 0
        %8767 = vmatpush1.bf16.msra.mxu0 0
        %8768 = vmatprep.mubr.bf16.mxu0 0
        %8769 = vmatmul.mubr.bf16.gmra.mrb[0].mxu0 %v8519
        %v8770 = vpop.f32.mrb[0].mxu0
        %v8771 = vadd.f32 %v8321, %v8770
        %v8772 = vpop.f32.mrb[0].mxu0
        %v8773 = vadd.f32 %v8325, %v8772
        %v8774 = vpop.f32.mrb[0].mxu0
        %v8775 = vadd.f32 %v8321, %v8774
        %v8776 = vpop.f32.mrb[0].mxu0
        %v8777 = vadd.f32 %v8325, %v8776
        %8778 = vdwg.mxu0
        %8779 = vmatprep.subr.bf16.mxu0 %v8467
        %8780 = vmatpush1.bf16.msra.mxu0 %v8466
        %8781 = vmatprep.subr.bf16.mxu0 %v8483
        %8782 = vmatpush1.bf16.msra.mxu0 %v8482
        %8783 = vmatprep.subr.bf16.mxu0 0
        %8784 = vmatpush1.bf16.msra.mxu0 0
        %8785 = vmatprep.subr.bf16.mxu0 0
        %8786 = vmatpush1.bf16.msra.mxu0 0
        %8787 = vmatprep.subr.bf16.mxu0 0
        %8788 = vmatpush1.bf16.msra.mxu0 0
        %8789 = vmatprep.subr.bf16.mxu0 0
        %8790 = vmatpush1.bf16.msra.mxu0 0
        %8791 = vmatprep.subr.bf16.mxu0 0
        %8792 = vmatpush1.bf16.msra.mxu0 0
        %8793 = vmatprep.subr.bf16.mxu0 0
        %8794 = vmatpush1.bf16.msra.mxu0 0
        %8795 = vmatprep.subr.bf16.mxu0 0
        %8796 = vmatpush1.bf16.msra.mxu0 0
        %8797 = vmatprep.subr.bf16.mxu0 0
        %8798 = vmatpush1.bf16.msra.mxu0 0
        %8799 = vmatprep.subr.bf16.mxu0 0
        %8800 = vmatpush1.bf16.msra.mxu0 0
        %8801 = vmatprep.subr.bf16.mxu0 0
        %8802 = vmatpush1.bf16.msra.mxu0 0
        %8803 = vmatprep.subr.bf16.mxu0 0
        %8804 = vmatpush1.bf16.msra.mxu0 0
        %8805 = vmatprep.subr.bf16.mxu0 0
        %8806 = vmatpush1.bf16.msra.mxu0 0
        %8807 = vmatprep.subr.bf16.mxu0 0
        %8808 = vmatpush1.bf16.msra.mxu0 0
        %8809 = vmatprep.subr.bf16.mxu0 0
        %8810 = vmatpush1.bf16.msra.mxu0 0
        %8811 = vmatprep.mubr.bf16.mxu0 0
        %8812 = vmatmul.mubr.bf16.gmra.mrb[0].mxu0 %v8519
        %v8813 = vpop.f32.mrb[0].mxu0
        %v8814 = vadd.f32 %v8329, %v8813
        %v8815 = vpop.f32.mrb[0].mxu0
        %v8816 = vadd.f32 %v8333, %v8815
        %v8817 = vpop.f32.mrb[0].mxu0
        %v8818 = vadd.f32 %v8329, %v8817
        %v8819 = vpop.f32.mrb[0].mxu0
        %v8820 = vadd.f32 %v8333, %v8819
        %8821 = vdwg.mxu0
        %8822 = vmatprep.subr.bf16.mxu0 %v8469
        %8823 = vmatpush1.bf16.msra.mxu0 %v8468
        %8824 = vmatprep.subr.bf16.mxu0 %v8485
        %8825 = vmatpush1.bf16.msra.mxu0 %v8484
        %8826 = vmatprep.subr.bf16.mxu0 0
        %8827 = vmatpush1.bf16.msra.mxu0 0
        %8828 = vmatprep.subr.bf16.mxu0 0
        %8829 = vmatpush1.bf16.msra.mxu0 0
        %8830 = vmatprep.subr.bf16.mxu0 0
        %8831 = vmatpush1.bf16.msra.mxu0 0
        %8832 = vmatprep.subr.bf16.mxu0 0
        %8833 = vmatpush1.bf16.msra.mxu0 0
        %8834 = vmatprep.subr.bf16.mxu0 0
        %8835 = vmatpush1.bf16.msra.mxu0 0
        %8836 = vmatprep.subr.bf16.mxu0 0
        %8837 = vmatpush1.bf16.msra.mxu0 0
        %8838 = vmatprep.subr.bf16.mxu0 0
        %8839 = vmatpush1.bf16.msra.mxu0 0
        %8840 = vmatprep.subr.bf16.mxu0 0
        %8841 = vmatpush1.bf16.msra.mxu0 0
        %8842 = vmatprep.subr.bf16.mxu0 0
        %8843 = vmatpush1.bf16.msra.mxu0 0
        %8844 = vmatprep.subr.bf16.mxu0 0
        %8845 = vmatpush1.bf16.msra.mxu0 0
        %8846 = vmatprep.subr.bf16.mxu0 0
        %8847 = vmatpush1.bf16.msra.mxu0 0
        %8848 = vmatprep.subr.bf16.mxu0 0
        %8849 = vmatpush1.bf16.msra.mxu0 0
        %8850 = vmatprep.subr.bf16.mxu0 0
        %8851 = vmatpush1.bf16.msra.mxu0 0
        %8852 = vmatprep.subr.bf16.mxu0 0
        %8853 = vmatpush1.bf16.msra.mxu0 0
        %8854 = vmatprep.mubr.bf16.mxu0 0
        %8855 = vmatmul.mubr.bf16.gmra.mrb[0].mxu0 %v8519
        %v8856 = vpop.f32.mrb[0].mxu0
        %v8857 = vadd.f32 %v8337, %v8856
        %v8858 = vpop.f32.mrb[0].mxu0
        %v8859 = vadd.f32 %v8341, %v8858
        %v8860 = vpop.f32.mrb[0].mxu0
        %v8861 = vadd.f32 %v8337, %v8860
        %v8862 = vpop.f32.mrb[0].mxu0
        %v8863 = vadd.f32 %v8341, %v8862
        %8864 = vdwg.mxu0
        %v8865 = vmax.f32 %v8556, 0.0
        %v8866 = vmax.f32 %v8558, 0.0
        %v8867 = vmax.f32 %v8599, 0.0
        %v8868 = vmax.f32 %v8601, 0.0
        %v8869 = vmax.f32 %v8642, 0.0
        %v8870 = vmax.f32 %v8644, 0.0
        %v8871 = vmax.f32 %v8685, 0.0
        %v8872 = vmax.f32 %v8687, 0.0
        %v8873 = vmax.f32 %v8728, 0.0
        %v8874 = vmax.f32 %v8730, 0.0
        %v8875 = vmax.f32 %v8771, 0.0
        %v8876 = vmax.f32 %v8773, 0.0
        %v8877 = vmax.f32 %v8814, 0.0
        %v8878 = vmax.f32 %v8816, 0.0
        %v8879 = vmax.f32 %v8857, 0.0
        %v8880 = vmax.f32 %v8859, 0.0
        %v8881 = vmax.f32 %v8560, 0.0
        %v8882 = vmax.f32 %v8562, 0.0
        %v8883 = vmax.f32 %v8603, 0.0
        %v8884 = vmax.f32 %v8605, 0.0
        %v8885 = vmax.f32 %v8646, 0.0
        %v8886 = vmax.f32 %v8648, 0.0
        %v8887 = vmax.f32 %v8689, 0.0
        %v8888 = vmax.f32 %v8691, 0.0
        %v8889 = vmax.f32 %v8732, 0.0
        %v8890 = vmax.f32 %v8734, 0.0
        %v8891 = vmax.f32 %v8775, 0.0
        %v8892 = vmax.f32 %v8777, 0.0
        %v8893 = vmax.f32 %v8818, 0.0
        %v8894 = vmax.f32 %v8820, 0.0
        %v8895 = vmax.f32 %v8861, 0.0
        %v8896 = vmax.f32 %v8863, 0.0
        %v8897 = vpack.c.bf16 %v8881, %v8865
        %v8898 = vpack.c.bf16 %v8882, %v8866
        %v8899 = vpack.c.bf16 %v8883, %v8867
        %v8900 = vpack.c.bf16 %v8884, %v8868
        %v8901 = vpack.c.bf16 %v8885, %v8869
        %v8902 = vpack.c.bf16 %v8886, %v8870
        %v8903 = vpack.c.bf16 %v8887, %v8871
        %v8904 = vpack.c.bf16 %v8888, %v8872
        %v8905 = vpack.c.bf16 %v8889, %v8873
        %v8906 = vpack.c.bf16 %v8890, %v8874
        %v8907 = vpack.c.bf16 %v8891, %v8875
        %v8908 = vpack.c.bf16 %v8892, %v8876
        %v8909 = vpack.c.bf16 %v8893, %v8877
        %v8910 = vpack.c.bf16 %v8894, %v8878
        %v8911 = vpack.c.bf16 %v8895, %v8879
        %v8912 = vpack.c.bf16 %v8896, %v8880
        %v8913 = vld [vmem:[%s646] sm:$0xf]
        %v8914 = vld [vmem:[%s646 + $0x4] sm:$0xf]
        %v8915 = vld [vmem:[%s646 + $0x8] sm:$0xf]
        %v8916 = vld [vmem:[%s646 + $0xc] sm:$0xf]
        %v8917 = vld [vmem:[%s646 + $0x10] sm:$0xf]
        %v8918 = vld [vmem:[%s646 + $0x14] sm:$0xf]
        %v8919 = vld [vmem:[%s646 + $0x18] sm:$0xf]
        %v8920 = vld [vmem:[%s646 + $0x1c] sm:$0xf]
        %v8921 = vld [vmem:[%s646 + $0x20] sm:$0xf]
        %v8922 = vld [vmem:[%s646 + $0x24] sm:$0xf]
        %v8923 = vld [vmem:[%s646 + $0x28] sm:$0xf]
        %v8924 = vld [vmem:[%s646 + $0x2c] sm:$0xf]
        %v8925 = vld [vmem:[%s646 + $0x30] sm:$0xf]
        %v8926 = vld [vmem:[%s646 + $0x34] sm:$0xf]
        %v8927 = vld [vmem:[%s646 + $0x38] sm:$0xf]
        %v8928 = vld [vmem:[%s646 + $0x3c] sm:$0xf]
        %v8929 = vld [vmem:[%s646 + $0x40] sm:$0xf]
        %v8930 = vld [vmem:[%s646 + $0x44] sm:$0xf]
        %v8931 = vld [vmem:[%s646 + $0x48] sm:$0xf]
        %v8932 = vld [vmem:[%s646 + $0x4c] sm:$0xf]
        %v8933 = vld [vmem:[%s646 + $0x50] sm:$0xf]
        %v8934 = vld [vmem:[%s646 + $0x54] sm:$0xf]
        %v8935 = vld [vmem:[%s646 + $0x58] sm:$0xf]
        %v8936 = vld [vmem:[%s646 + $0x5c] sm:$0xf]
        %v8937 = vld [vmem:[%s646 + $0x60] sm:$0xf]
        %v8938 = vld [vmem:[%s646 + $0x64] sm:$0xf]
        %v8939 = vld [vmem:[%s646 + $0x68] sm:$0xf]
        %v8940 = vld [vmem:[%s646 + $0x6c] sm:$0xf]
        %v8941 = vld [vmem:[%s646 + $0x70] sm:$0xf]
        %v8942 = vld [vmem:[%s646 + $0x74] sm:$0xf]
        %v8943 = vld [vmem:[%s646 + $0x78] sm:$0xf]
        %v8944 = vld [vmem:[%s646 + $0x7c] sm:$0xf]
        %v8945 = vld [vmem:[%s646 + $0x80] sm:$0xf]
        %v8946 = vld [vmem:[%s646 + $0x84] sm:$0xf]
        %v8947 = vld [vmem:[%s646 + $0x88] sm:$0xf]
        %v8948 = vld [vmem:[%s646 + $0x8c] sm:$0xf]
        %v8949 = vld [vmem:[%s646 + $0x90] sm:$0xf]
        %v8950 = vld [vmem:[%s646 + $0x94] sm:$0xf]
        %v8951 = vld [vmem:[%s646 + $0x98] sm:$0xf]
        %v8952 = vld [vmem:[%s646 + $0x9c] sm:$0xf]
        %v8953 = vld [vmem:[%s646 + $0xa0] sm:$0xf]
        %v8954 = vld [vmem:[%s646 + $0xa4] sm:$0xf]
        %v8955 = vld [vmem:[%s646 + $0xa8] sm:$0xf]
        %v8956 = vld [vmem:[%s646 + $0xac] sm:$0xf]
        %v8957 = vld [vmem:[%s646 + $0xb0] sm:$0xf]
        %v8958 = vld [vmem:[%s646 + $0xb4] sm:$0xf]
        %v8959 = vld [vmem:[%s646 + $0xb8] sm:$0xf]
        %v8960 = vld [vmem:[%s646 + $0xbc] sm:$0xf]
        %v8961 = vld [vmem:[%s646 + $0xc0] sm:$0xf]
        %v8962 = vld [vmem:[%s646 + $0xc4] sm:$0xf]
        %v8963 = vld [vmem:[%s646 + $0xc8] sm:$0xf]
        %v8964 = vld [vmem:[%s646 + $0xcc] sm:$0xf]
        %v8965 = vld [vmem:[%s646 + $0xd0] sm:$0xf]
        %v8966 = vld [vmem:[%s646 + $0xd4] sm:$0xf]
        %v8967 = vld [vmem:[%s646 + $0xd8] sm:$0xf]
        %v8968 = vld [vmem:[%s646 + $0xdc] sm:$0xf]
        %v8969 = vld [vmem:[%s646 + $0xe0] sm:$0xf]
        %v8970 = vld [vmem:[%s646 + $0xe4] sm:$0xf]
        %v8971 = vld [vmem:[%s646 + $0xe8] sm:$0xf]
        %v8972 = vld [vmem:[%s646 + $0xec] sm:$0xf]
        %v8973 = vld [vmem:[%s646 + $0xf0] sm:$0xf]
        %v8974 = vld [vmem:[%s646 + $0xf4] sm:$0xf]
        %v8975 = vld [vmem:[%s646 + $0xf8] sm:$0xf]
        %v8976 = vld [vmem:[%s646 + $0xfc] sm:$0xf]
        %v8977 = vld [vmem:[%s646 + $0x100] sm:$0xf]
        %v8978 = vld [vmem:[%s646 + $0x104] sm:$0xf]
        %v8979 = vld [vmem:[%s646 + $0x108] sm:$0xf]
        %v8980 = vld [vmem:[%s646 + $0x10c] sm:$0xf]
        %v8981 = vld [vmem:[%s646 + $0x110] sm:$0xf]
        %v8982 = vld [vmem:[%s646 + $0x114] sm:$0xf]
        %v8983 = vld [vmem:[%s646 + $0x118] sm:$0xf]
        %v8984 = vld [vmem:[%s646 + $0x11c] sm:$0xf]
        %v8985 = vld [vmem:[%s646 + $0x120] sm:$0xf]
        %v8986 = vld [vmem:[%s646 + $0x124] sm:$0xf]
        %v8987 = vld [vmem:[%s646 + $0x128] sm:$0xf]
        %v8988 = vld [vmem:[%s646 + $0x12c] sm:$0xf]
        %v8989 = vld [vmem:[%s646 + $0x130] sm:$0xf]
        %v8990 = vld [vmem:[%s646 + $0x134] sm:$0xf]
        %v8991 = vld [vmem:[%s646 + $0x138] sm:$0xf]
        %v8992 = vld [vmem:[%s646 + $0x13c] sm:$0xf]
        %v8993 = vld [vmem:[%s646 + $0x140] sm:$0xf]
        %v8994 = vld [vmem:[%s646 + $0x144] sm:$0xf]
        %v8995 = vld [vmem:[%s646 + $0x148] sm:$0xf]
        %v8996 = vld [vmem:[%s646 + $0x14c] sm:$0xf]
        %v8997 = vld [vmem:[%s646 + $0x150] sm:$0xf]
        %v8998 = vld [vmem:[%s646 + $0x154] sm:$0xf]
        %v8999 = vld [vmem:[%s646 + $0x158] sm:$0xf]
        %v9000 = vld [vmem:[%s646 + $0x15c] sm:$0xf]
        %v9001 = vld [vmem:[%s646 + $0x160] sm:$0xf]
        %v9002 = vld [vmem:[%s646 + $0x164] sm:$0xf]
        %v9003 = vld [vmem:[%s646 + $0x168] sm:$0xf]
        %v9004 = vld [vmem:[%s646 + $0x16c] sm:$0xf]
        %v9005 = vld [vmem:[%s646 + $0x170] sm:$0xf]
        %v9006 = vld [vmem:[%s646 + $0x174] sm:$0xf]
        %v9007 = vld [vmem:[%s646 + $0x178] sm:$0xf]
        %v9008 = vld [vmem:[%s646 + $0x17c] sm:$0xf]
        %v9009 = vld [vmem:[%s646 + $0x180] sm:$0xf]
        %v9010 = vld [vmem:[%s646 + $0x184] sm:$0xf]
        %v9011 = vld [vmem:[%s646 + $0x188] sm:$0xf]
        %v9012 = vld [vmem:[%s646 + $0x18c] sm:$0xf]
        %v9013 = vld [vmem:[%s646 + $0x190] sm:$0xf]
        %v9014 = vld [vmem:[%s646 + $0x194] sm:$0xf]
        %v9015 = vld [vmem:[%s646 + $0x198] sm:$0xf]
        %v9016 = vld [vmem:[%s646 + $0x19c] sm:$0xf]
        %v9017 = vld [vmem:[%s646 + $0x1a0] sm:$0xf]
        %v9018 = vld [vmem:[%s646 + $0x1a4] sm:$0xf]
        %v9019 = vld [vmem:[%s646 + $0x1a8] sm:$0xf]
        %v9020 = vld [vmem:[%s646 + $0x1ac] sm:$0xf]
        %v9021 = vld [vmem:[%s646 + $0x1b0] sm:$0xf]
        %v9022 = vld [vmem:[%s646 + $0x1b4] sm:$0xf]
        %v9023 = vld [vmem:[%s646 + $0x1b8] sm:$0xf]
        %v9024 = vld [vmem:[%s646 + $0x1bc] sm:$0xf]
        %v9025 = vld [vmem:[%s646 + $0x1c0] sm:$0xf]
        %v9026 = vld [vmem:[%s646 + $0x1c4] sm:$0xf]
        %v9027 = vld [vmem:[%s646 + $0x1c8] sm:$0xf]
        %v9028 = vld [vmem:[%s646 + $0x1cc] sm:$0xf]
        %v9029 = vld [vmem:[%s646 + $0x1d0] sm:$0xf]
        %v9030 = vld [vmem:[%s646 + $0x1d4] sm:$0xf]
        %v9031 = vld [vmem:[%s646 + $0x1d8] sm:$0xf]
        %v9032 = vld [vmem:[%s646 + $0x1dc] sm:$0xf]
        %v9033 = vld [vmem:[%s646 + $0x1e0] sm:$0xf]
        %v9034 = vld [vmem:[%s646 + $0x1e4] sm:$0xf]
        %v9035 = vld [vmem:[%s646 + $0x1e8] sm:$0xf]
        %v9036 = vld [vmem:[%s646 + $0x1ec] sm:$0xf]
        %v9037 = vld [vmem:[%s646 + $0x1f0] sm:$0xf]
        %v9038 = vld [vmem:[%s646 + $0x1f4] sm:$0xf]
        %v9039 = vld [vmem:[%s646 + $0x1f8] sm:$0xf]
        %v9040 = vld [vmem:[%s646 + $0x1fc] sm:$0xf]
        %v9041 = vld [vmem:[%s646 + $0x200] sm:$0xf]
        %v9042 = vld [vmem:[%s646 + $0x204] sm:$0xf]
        %v9043 = vld [vmem:[%s646 + $0x208] sm:$0xf]
        %v9044 = vld [vmem:[%s646 + $0x20c] sm:$0xf]
        %v9045 = vld [vmem:[%s646 + $0x210] sm:$0xf]
        %v9046 = vld [vmem:[%s646 + $0x214] sm:$0xf]
        %v9047 = vld [vmem:[%s646 + $0x218] sm:$0xf]
        %v9048 = vld [vmem:[%s646 + $0x21c] sm:$0xf]
        %v9049 = vld [vmem:[%s646 + $0x220] sm:$0xf]
        %v9050 = vld [vmem:[%s646 + $0x224] sm:$0xf]
        %v9051 = vld [vmem:[%s646 + $0x228] sm:$0xf]
        %v9052 = vld [vmem:[%s646 + $0x22c] sm:$0xf]
        %v9053 = vld [vmem:[%s646 + $0x230] sm:$0xf]
        %v9054 = vld [vmem:[%s646 + $0x234] sm:$0xf]
        %v9055 = vld [vmem:[%s646 + $0x238] sm:$0xf]
        %v9056 = vld [vmem:[%s646 + $0x23c] sm:$0xf]
        %v9057 = vld [vmem:[%s646 + $0x240] sm:$0xf]
        %v9058 = vld [vmem:[%s646 + $0x244] sm:$0xf]
        %v9059 = vld [vmem:[%s646 + $0x248] sm:$0xf]
        %v9060 = vld [vmem:[%s646 + $0x24c] sm:$0xf]
        %v9061 = vld [vmem:[%s646 + $0x250] sm:$0xf]
        %v9062 = vld [vmem:[%s646 + $0x254] sm:$0xf]
        %v9063 = vld [vmem:[%s646 + $0x258] sm:$0xf]
        %v9064 = vld [vmem:[%s646 + $0x25c] sm:$0xf]
        %v9065 = vld [vmem:[%s646 + $0x260] sm:$0xf]
        %v9066 = vld [vmem:[%s646 + $0x264] sm:$0xf]
        %v9067 = vld [vmem:[%s646 + $0x268] sm:$0xf]
        %v9068 = vld [vmem:[%s646 + $0x26c] sm:$0xf]
        %v9069 = vld [vmem:[%s646 + $0x270] sm:$0xf]
        %v9070 = vld [vmem:[%s646 + $0x274] sm:$0xf]
        %v9071 = vld [vmem:[%s646 + $0x278] sm:$0xf]
        %v9072 = vld [vmem:[%s646 + $0x27c] sm:$0xf]
        %v9073 = vld [vmem:[%s646 + $0x280] sm:$0xf]
        %v9074 = vld [vmem:[%s646 + $0x284] sm:$0xf]
        %v9075 = vld [vmem:[%s646 + $0x288] sm:$0xf]
        %v9076 = vld [vmem:[%s646 + $0x28c] sm:$0xf]
        %v9077 = vld [vmem:[%s646 + $0x290] sm:$0xf]
        %v9078 = vld [vmem:[%s646 + $0x294] sm:$0xf]
        %v9079 = vld [vmem:[%s646 + $0x298] sm:$0xf]
        %v9080 = vld [vmem:[%s646 + $0x29c] sm:$0xf]
        %v9081 = vld [vmem:[%s646 + $0x2a0] sm:$0xf]
        %v9082 = vld [vmem:[%s646 + $0x2a4] sm:$0xf]
        %v9083 = vld [vmem:[%s646 + $0x2a8] sm:$0xf]
        %v9084 = vld [vmem:[%s646 + $0x2ac] sm:$0xf]
        %v9085 = vld [vmem:[%s646 + $0x2b0] sm:$0xf]
        %v9086 = vld [vmem:[%s646 + $0x2b4] sm:$0xf]
        %v9087 = vld [vmem:[%s646 + $0x2b8] sm:$0xf]
        %v9088 = vld [vmem:[%s646 + $0x2bc] sm:$0xf]
        %v9089 = vld [vmem:[%s646 + $0x2c0] sm:$0xf]
        %v9090 = vld [vmem:[%s646 + $0x2c4] sm:$0xf]
        %v9091 = vld [vmem:[%s646 + $0x2c8] sm:$0xf]
        %v9092 = vld [vmem:[%s646 + $0x2cc] sm:$0xf]
        %v9093 = vld [vmem:[%s646 + $0x2d0] sm:$0xf]
        %v9094 = vld [vmem:[%s646 + $0x2d4] sm:$0xf]
        %v9095 = vld [vmem:[%s646 + $0x2d8] sm:$0xf]
        %v9096 = vld [vmem:[%s646 + $0x2dc] sm:$0xf]
        %v9097 = vld [vmem:[%s646 + $0x2e0] sm:$0xf]
        %v9098 = vld [vmem:[%s646 + $0x2e4] sm:$0xf]
        %v9099 = vld [vmem:[%s646 + $0x2e8] sm:$0xf]
        %v9100 = vld [vmem:[%s646 + $0x2ec] sm:$0xf]
        %v9101 = vld [vmem:[%s646 + $0x2f0] sm:$0xf]
        %v9102 = vld [vmem:[%s646 + $0x2f4] sm:$0xf]
        %v9103 = vld [vmem:[%s646 + $0x2f8] sm:$0xf]
        %v9104 = vld [vmem:[%s646 + $0x2fc] sm:$0xf]
        %v9105 = vld [vmem:[%s646 + $0x300] sm:$0xf]
        %v9106 = vld [vmem:[%s646 + $0x304] sm:$0xf]
        %v9107 = vld [vmem:[%s646 + $0x308] sm:$0xf]
        %v9108 = vld [vmem:[%s646 + $0x30c] sm:$0xf]
        %v9109 = vld [vmem:[%s646 + $0x310] sm:$0xf]
        %v9110 = vld [vmem:[%s646 + $0x314] sm:$0xf]
        %v9111 = vld [vmem:[%s646 + $0x318] sm:$0xf]
        %v9112 = vld [vmem:[%s646 + $0x31c] sm:$0xf]
        %v9113 = vld [vmem:[%s646 + $0x320] sm:$0xf]
        %v9114 = vld [vmem:[%s646 + $0x324] sm:$0xf]
        %v9115 = vld [vmem:[%s646 + $0x328] sm:$0xf]
        %v9116 = vld [vmem:[%s646 + $0x32c] sm:$0xf]
        %v9117 = vld [vmem:[%s646 + $0x330] sm:$0xf]
        %v9118 = vld [vmem:[%s646 + $0x334] sm:$0xf]
        %v9119 = vld [vmem:[%s646 + $0x338] sm:$0xf]
        %v9120 = vld [vmem:[%s646 + $0x33c] sm:$0xf]
        %v9121 = vld [vmem:[%s646 + $0x340] sm:$0xf]
        %v9122 = vld [vmem:[%s646 + $0x344] sm:$0xf]
        %v9123 = vld [vmem:[%s646 + $0x348] sm:$0xf]
        %v9124 = vld [vmem:[%s646 + $0x34c] sm:$0xf]
        %v9125 = vld [vmem:[%s646 + $0x350] sm:$0xf]
        %v9126 = vld [vmem:[%s646 + $0x354] sm:$0xf]
        %v9127 = vld [vmem:[%s646 + $0x358] sm:$0xf]
        %v9128 = vld [vmem:[%s646 + $0x35c] sm:$0xf]
        %v9129 = vld [vmem:[%s646 + $0x360] sm:$0xf]
        %v9130 = vld [vmem:[%s646 + $0x364] sm:$0xf]
        %v9131 = vld [vmem:[%s646 + $0x368] sm:$0xf]
        %v9132 = vld [vmem:[%s646 + $0x36c] sm:$0xf]
        %v9133 = vld [vmem:[%s646 + $0x370] sm:$0xf]
        %v9134 = vld [vmem:[%s646 + $0x374] sm:$0xf]
        %v9135 = vld [vmem:[%s646 + $0x378] sm:$0xf]
        %v9136 = vld [vmem:[%s646 + $0x37c] sm:$0xf]
        %v9137 = vld [vmem:[%s646 + $0x380] sm:$0xf]
        %v9138 = vld [vmem:[%s646 + $0x384] sm:$0xf]
        %v9139 = vld [vmem:[%s646 + $0x388] sm:$0xf]
        %v9140 = vld [vmem:[%s646 + $0x38c] sm:$0xf]
        %v9141 = vld [vmem:[%s646 + $0x390] sm:$0xf]
        %v9142 = vld [vmem:[%s646 + $0x394] sm:$0xf]
        %v9143 = vld [vmem:[%s646 + $0x398] sm:$0xf]
        %v9144 = vld [vmem:[%s646 + $0x39c] sm:$0xf]
        %v9145 = vld [vmem:[%s646 + $0x3a0] sm:$0xf]
        %v9146 = vld [vmem:[%s646 + $0x3a4] sm:$0xf]
        %v9147 = vld [vmem:[%s646 + $0x3a8] sm:$0xf]
        %v9148 = vld [vmem:[%s646 + $0x3ac] sm:$0xf]
        %v9149 = vld [vmem:[%s646 + $0x3b0] sm:$0xf]
        %v9150 = vld [vmem:[%s646 + $0x3b4] sm:$0xf]
        %v9151 = vld [vmem:[%s646 + $0x3b8] sm:$0xf]
        %v9152 = vld [vmem:[%s646 + $0x3bc] sm:$0xf]
        %v9153 = vld [vmem:[%s646 + $0x3c0] sm:$0xf]
        %v9154 = vld [vmem:[%s646 + $0x3c4] sm:$0xf]
        %v9155 = vld [vmem:[%s646 + $0x3c8] sm:$0xf]
        %v9156 = vld [vmem:[%s646 + $0x3cc] sm:$0xf]
        %v9157 = vld [vmem:[%s646 + $0x3d0] sm:$0xf]
        %v9158 = vld [vmem:[%s646 + $0x3d4] sm:$0xf]
        %v9159 = vld [vmem:[%s646 + $0x3d8] sm:$0xf]
        %v9160 = vld [vmem:[%s646 + $0x3dc] sm:$0xf]
        %v9161 = vld [vmem:[%s646 + $0x3e0] sm:$0xf]
        %v9162 = vld [vmem:[%s646 + $0x3e4] sm:$0xf]
        %v9163 = vld [vmem:[%s646 + $0x3e8] sm:$0xf]
        %v9164 = vld [vmem:[%s646 + $0x3ec] sm:$0xf]
        %v9165 = vld [vmem:[%s646 + $0x3f0] sm:$0xf]
        %v9166 = vld [vmem:[%s646 + $0x3f4] sm:$0xf]
        %v9167 = vld [vmem:[%s646 + $0x3f8] sm:$0xf]
        %v9168 = vld [vmem:[%s646 + $0x3fc] sm:$0xf]
        %v9169 = vld [vmem:[%s649] sm:$0x1]
        %v9171 = vlaneseq
        %v9172 = vshrl.u32 %v9171, 7
        %v9173 = vsub.s32 0, %v9172
        %v9174 = vrot.slane %v9169, %v9173
        %v9432 = vunpack.c.l.b16 %v8913
        %v9433 = vunpack.c.l.b16 %v8914
        %v9434 = vunpack.c.l.b16 %v8915
        %v9435 = vunpack.c.l.b16 %v8916
        %v9436 = vunpack.c.l.b16 %v8917
        %v9437 = vunpack.c.l.b16 %v8918
        %v9438 = vunpack.c.l.b16 %v8919
        %v9439 = vunpack.c.l.b16 %v8920
        %v9440 = vunpack.c.l.b16 %v8921
        %v9441 = vunpack.c.l.b16 %v8922
        %v9442 = vunpack.c.l.b16 %v8923
        %v9443 = vunpack.c.l.b16 %v8924
        %v9444 = vunpack.c.l.b16 %v8925
        %v9445 = vunpack.c.l.b16 %v8926
        %v9446 = vunpack.c.l.b16 %v8927
        %v9447 = vunpack.c.l.b16 %v8928
        %v9448 = vunpack.c.l.b16 %v8929
        %v9449 = vunpack.c.l.b16 %v8930
        %v9450 = vunpack.c.l.b16 %v8931
        %v9451 = vunpack.c.l.b16 %v8932
        %v9452 = vunpack.c.l.b16 %v8933
        %v9453 = vunpack.c.l.b16 %v8934
        %v9454 = vunpack.c.l.b16 %v8935
        %v9455 = vunpack.c.l.b16 %v8936
        %v9456 = vunpack.c.l.b16 %v8937
        %v9457 = vunpack.c.l.b16 %v8938
        %v9458 = vunpack.c.l.b16 %v8939
        %v9459 = vunpack.c.l.b16 %v8940
        %v9460 = vunpack.c.l.b16 %v8941
        %v9461 = vunpack.c.l.b16 %v8942
        %v9462 = vunpack.c.l.b16 %v8943
        %v9463 = vunpack.c.l.b16 %v8944
        %v9464 = vunpack.c.l.b16 %v8945
        %v9465 = vunpack.c.l.b16 %v8946
        %v9466 = vunpack.c.l.b16 %v8947
        %v9467 = vunpack.c.l.b16 %v8948
        %v9468 = vunpack.c.l.b16 %v8949
        %v9469 = vunpack.c.l.b16 %v8950
        %v9470 = vunpack.c.l.b16 %v8951
        %v9471 = vunpack.c.l.b16 %v8952
        %v9472 = vunpack.c.l.b16 %v8953
        %v9473 = vunpack.c.l.b16 %v8954
        %v9474 = vunpack.c.l.b16 %v8955
        %v9475 = vunpack.c.l.b16 %v8956
        %v9476 = vunpack.c.l.b16 %v8957
        %v9477 = vunpack.c.l.b16 %v8958
        %v9478 = vunpack.c.l.b16 %v8959
        %v9479 = vunpack.c.l.b16 %v8960
        %v9480 = vunpack.c.l.b16 %v8961
        %v9481 = vunpack.c.l.b16 %v8962
        %v9482 = vunpack.c.l.b16 %v8963
        %v9483 = vunpack.c.l.b16 %v8964
        %v9484 = vunpack.c.l.b16 %v8965
        %v9485 = vunpack.c.l.b16 %v8966
        %v9486 = vunpack.c.l.b16 %v8967
        %v9487 = vunpack.c.l.b16 %v8968
        %v9488 = vunpack.c.l.b16 %v8969
        %v9489 = vunpack.c.l.b16 %v8970
        %v9490 = vunpack.c.l.b16 %v8971
        %v9491 = vunpack.c.l.b16 %v8972
        %v9492 = vunpack.c.l.b16 %v8973
        %v9493 = vunpack.c.l.b16 %v8974
        %v9494 = vunpack.c.l.b16 %v8975
        %v9495 = vunpack.c.l.b16 %v8976
        %v9496 = vunpack.c.l.b16 %v8977
        %v9497 = vunpack.c.l.b16 %v8978
        %v9498 = vunpack.c.l.b16 %v8979
        %v9499 = vunpack.c.l.b16 %v8980
        %v9500 = vunpack.c.l.b16 %v8981
        %v9501 = vunpack.c.l.b16 %v8982
        %v9502 = vunpack.c.l.b16 %v8983
        %v9503 = vunpack.c.l.b16 %v8984
        %v9504 = vunpack.c.l.b16 %v8985
        %v9505 = vunpack.c.l.b16 %v8986
        %v9506 = vunpack.c.l.b16 %v8987
        %v9507 = vunpack.c.l.b16 %v8988
        %v9508 = vunpack.c.l.b16 %v8989
        %v9509 = vunpack.c.l.b16 %v8990
        %v9510 = vunpack.c.l.b16 %v8991
        %v9511 = vunpack.c.l.b16 %v8992
        %v9512 = vunpack.c.l.b16 %v8993
        %v9513 = vunpack.c.l.b16 %v8994
        %v9514 = vunpack.c.l.b16 %v8995
        %v9515 = vunpack.c.l.b16 %v8996
        %v9516 = vunpack.c.l.b16 %v8997
        %v9517 = vunpack.c.l.b16 %v8998
        %v9518 = vunpack.c.l.b16 %v8999
        %v9519 = vunpack.c.l.b16 %v9000
        %v9520 = vunpack.c.l.b16 %v9001
        %v9521 = vunpack.c.l.b16 %v9002
        %v9522 = vunpack.c.l.b16 %v9003
        %v9523 = vunpack.c.l.b16 %v9004
        %v9524 = vunpack.c.l.b16 %v9005
        %v9525 = vunpack.c.l.b16 %v9006
        %v9526 = vunpack.c.l.b16 %v9007
        %v9527 = vunpack.c.l.b16 %v9008
        %v9528 = vunpack.c.l.b16 %v9009
        %v9529 = vunpack.c.l.b16 %v9010
        %v9530 = vunpack.c.l.b16 %v9011
        %v9531 = vunpack.c.l.b16 %v9012
        %v9532 = vunpack.c.l.b16 %v9013
        %v9533 = vunpack.c.l.b16 %v9014
        %v9534 = vunpack.c.l.b16 %v9015
        %v9535 = vunpack.c.l.b16 %v9016
        %v9536 = vunpack.c.l.b16 %v9017
        %v9537 = vunpack.c.l.b16 %v9018
        %v9538 = vunpack.c.l.b16 %v9019
        %v9539 = vunpack.c.l.b16 %v9020
        %v9540 = vunpack.c.l.b16 %v9021
        %v9541 = vunpack.c.l.b16 %v9022
        %v9542 = vunpack.c.l.b16 %v9023
        %v9543 = vunpack.c.l.b16 %v9024
        %v9544 = vunpack.c.l.b16 %v9025
        %v9545 = vunpack.c.l.b16 %v9026
        %v9546 = vunpack.c.l.b16 %v9027
        %v9547 = vunpack.c.l.b16 %v9028
        %v9548 = vunpack.c.l.b16 %v9029
        %v9549 = vunpack.c.l.b16 %v9030
        %v9550 = vunpack.c.l.b16 %v9031
        %v9551 = vunpack.c.l.b16 %v9032
        %v9552 = vunpack.c.l.b16 %v9033
        %v9553 = vunpack.c.l.b16 %v9034
        %v9554 = vunpack.c.l.b16 %v9035
        %v9555 = vunpack.c.l.b16 %v9036
        %v9556 = vunpack.c.l.b16 %v9037
        %v9557 = vunpack.c.l.b16 %v9038
        %v9558 = vunpack.c.l.b16 %v9039
        %v9559 = vunpack.c.l.b16 %v9040
        %v9560 = vunpack.c.l.b16 %v9041
        %v9561 = vunpack.c.l.b16 %v9042
        %v9562 = vunpack.c.l.b16 %v9043
        %v9563 = vunpack.c.l.b16 %v9044
        %v9564 = vunpack.c.l.b16 %v9045
        %v9565 = vunpack.c.l.b16 %v9046
        %v9566 = vunpack.c.l.b16 %v9047
        %v9567 = vunpack.c.l.b16 %v9048
        %v9568 = vunpack.c.l.b16 %v9049
        %v9569 = vunpack.c.l.b16 %v9050
        %v9570 = vunpack.c.l.b16 %v9051
        %v9571 = vunpack.c.l.b16 %v9052
        %v9572 = vunpack.c.l.b16 %v9053
        %v9573 = vunpack.c.l.b16 %v9054
        %v9574 = vunpack.c.l.b16 %v9055
        %v9575 = vunpack.c.l.b16 %v9056
        %v9576 = vunpack.c.l.b16 %v9057
        %v9577 = vunpack.c.l.b16 %v9058
        %v9578 = vunpack.c.l.b16 %v9059
        %v9579 = vunpack.c.l.b16 %v9060
        %v9580 = vunpack.c.l.b16 %v9061
        %v9581 = vunpack.c.l.b16 %v9062
        %v9582 = vunpack.c.l.b16 %v9063
        %v9583 = vunpack.c.l.b16 %v9064
        %v9584 = vunpack.c.l.b16 %v9065
        %v9585 = vunpack.c.l.b16 %v9066
        %v9586 = vunpack.c.l.b16 %v9067
        %v9587 = vunpack.c.l.b16 %v9068
        %v9588 = vunpack.c.l.b16 %v9069
        %v9589 = vunpack.c.l.b16 %v9070
        %v9590 = vunpack.c.l.b16 %v9071
        %v9591 = vunpack.c.l.b16 %v9072
        %v9592 = vunpack.c.l.b16 %v9073
        %v9593 = vunpack.c.l.b16 %v9074
        %v9594 = vunpack.c.l.b16 %v9075
        %v9595 = vunpack.c.l.b16 %v9076
        %v9596 = vunpack.c.l.b16 %v9077
        %v9597 = vunpack.c.l.b16 %v9078
        %v9598 = vunpack.c.l.b16 %v9079
        %v9599 = vunpack.c.l.b16 %v9080
        %v9600 = vunpack.c.l.b16 %v9081
        %v9601 = vunpack.c.l.b16 %v9082
        %v9602 = vunpack.c.l.b16 %v9083
        %v9603 = vunpack.c.l.b16 %v9084
        %v9604 = vunpack.c.l.b16 %v9085
        %v9605 = vunpack.c.l.b16 %v9086
        %v9606 = vunpack.c.l.b16 %v9087
        %v9607 = vunpack.c.l.b16 %v9088
        %v9608 = vunpack.c.l.b16 %v9089
        %v9609 = vunpack.c.l.b16 %v9090
        %v9610 = vunpack.c.l.b16 %v9091
        %v9611 = vunpack.c.l.b16 %v9092
        %v9612 = vunpack.c.l.b16 %v9093
        %v9613 = vunpack.c.l.b16 %v9094
        %v9614 = vunpack.c.l.b16 %v9095
        %v9615 = vunpack.c.l.b16 %v9096
        %v9616 = vunpack.c.l.b16 %v9097
        %v9617 = vunpack.c.l.b16 %v9098
        %v9618 = vunpack.c.l.b16 %v9099
        %v9619 = vunpack.c.l.b16 %v9100
        %v9620 = vunpack.c.l.b16 %v9101
        %v9621 = vunpack.c.l.b16 %v9102
        %v9622 = vunpack.c.l.b16 %v9103
        %v9623 = vunpack.c.l.b16 %v9104
        %v9624 = vunpack.c.l.b16 %v9105
        %v9625 = vunpack.c.l.b16 %v9106
        %v9626 = vunpack.c.l.b16 %v9107
        %v9627 = vunpack.c.l.b16 %v9108
        %v9628 = vunpack.c.l.b16 %v9109
        %v9629 = vunpack.c.l.b16 %v9110
        %v9630 = vunpack.c.l.b16 %v9111
        %v9631 = vunpack.c.l.b16 %v9112
        %v9632 = vunpack.c.l.b16 %v9113
        %v9633 = vunpack.c.l.b16 %v9114
        %v9634 = vunpack.c.l.b16 %v9115
        %v9635 = vunpack.c.l.b16 %v9116
        %v9636 = vunpack.c.l.b16 %v9117
        %v9637 = vunpack.c.l.b16 %v9118
        %v9638 = vunpack.c.l.b16 %v9119
        %v9639 = vunpack.c.l.b16 %v9120
        %v9640 = vunpack.c.l.b16 %v9121
        %v9641 = vunpack.c.l.b16 %v9122
        %v9642 = vunpack.c.l.b16 %v9123
        %v9643 = vunpack.c.l.b16 %v9124
        %v9644 = vunpack.c.l.b16 %v9125
        %v9645 = vunpack.c.l.b16 %v9126
        %v9646 = vunpack.c.l.b16 %v9127
        %v9647 = vunpack.c.l.b16 %v9128
        %v9648 = vunpack.c.l.b16 %v9129
        %v9649 = vunpack.c.l.b16 %v9130
        %v9650 = vunpack.c.l.b16 %v9131
        %v9651 = vunpack.c.l.b16 %v9132
        %v9652 = vunpack.c.l.b16 %v9133
        %v9653 = vunpack.c.l.b16 %v9134
        %v9654 = vunpack.c.l.b16 %v9135
        %v9655 = vunpack.c.l.b16 %v9136
        %v9656 = vunpack.c.l.b16 %v9137
        %v9657 = vunpack.c.l.b16 %v9138
        %v9658 = vunpack.c.l.b16 %v9139
        %v9659 = vunpack.c.l.b16 %v9140
        %v9660 = vunpack.c.l.b16 %v9141
        %v9661 = vunpack.c.l.b16 %v9142
        %v9662 = vunpack.c.l.b16 %v9143
        %v9663 = vunpack.c.l.b16 %v9144
        %v9664 = vunpack.c.l.b16 %v9145
        %v9665 = vunpack.c.l.b16 %v9146
        %v9666 = vunpack.c.l.b16 %v9147
        %v9667 = vunpack.c.l.b16 %v9148
        %v9668 = vunpack.c.l.b16 %v9149
        %v9669 = vunpack.c.l.b16 %v9150
        %v9670 = vunpack.c.l.b16 %v9151
        %v9671 = vunpack.c.l.b16 %v9152
        %v9672 = vunpack.c.l.b16 %v9153
        %v9673 = vunpack.c.l.b16 %v9154
        %v9674 = vunpack.c.l.b16 %v9155
        %v9675 = vunpack.c.l.b16 %v9156
        %v9676 = vunpack.c.l.b16 %v9157
        %v9677 = vunpack.c.l.b16 %v9158
        %v9678 = vunpack.c.l.b16 %v9159
        %v9679 = vunpack.c.l.b16 %v9160
        %v9680 = vunpack.c.l.b16 %v9161
        %v9681 = vunpack.c.l.b16 %v9162
        %v9682 = vunpack.c.l.b16 %v9163
        %v9683 = vunpack.c.l.b16 %v9164
        %v9684 = vunpack.c.l.b16 %v9165
        %v9685 = vunpack.c.l.b16 %v9166
        %v9686 = vunpack.c.l.b16 %v9167
        %v9687 = vunpack.c.l.b16 %v9168
        %v9688 = vpack.c.b16 %v9433, %v9432
        %v9689 = vpack.c.b16 %v9435, %v9434
        %v9690 = vpack.c.b16 %v9437, %v9436
        %v9691 = vpack.c.b16 %v9439, %v9438
        %v9692 = vpack.c.b16 %v9441, %v9440
        %v9693 = vpack.c.b16 %v9443, %v9442
        %v9694 = vpack.c.b16 %v9445, %v9444
        %v9695 = vpack.c.b16 %v9447, %v9446
        %v9696 = vpack.c.b16 %v9449, %v9448
        %v9697 = vpack.c.b16 %v9451, %v9450
        %v9698 = vpack.c.b16 %v9453, %v9452
        %v9699 = vpack.c.b16 %v9455, %v9454
        %v9700 = vpack.c.b16 %v9457, %v9456
        %v9701 = vpack.c.b16 %v9459, %v9458
        %v9702 = vpack.c.b16 %v9461, %v9460
        %v9703 = vpack.c.b16 %v9463, %v9462
        %v9704 = vpack.c.b16 %v9465, %v9464
        %v9705 = vpack.c.b16 %v9467, %v9466
        %v9706 = vpack.c.b16 %v9469, %v9468
        %v9707 = vpack.c.b16 %v9471, %v9470
        %v9708 = vpack.c.b16 %v9473, %v9472
        %v9709 = vpack.c.b16 %v9475, %v9474
        %v9710 = vpack.c.b16 %v9477, %v9476
        %v9711 = vpack.c.b16 %v9479, %v9478
        %v9712 = vpack.c.b16 %v9481, %v9480
        %v9713 = vpack.c.b16 %v9483, %v9482
        %v9714 = vpack.c.b16 %v9485, %v9484
        %v9715 = vpack.c.b16 %v9487, %v9486
        %v9716 = vpack.c.b16 %v9489, %v9488
        %v9717 = vpack.c.b16 %v9491, %v9490
        %v9718 = vpack.c.b16 %v9493, %v9492
        %v9719 = vpack.c.b16 %v9495, %v9494
        %v9720 = vpack.c.b16 %v9497, %v9496
        %v9721 = vpack.c.b16 %v9499, %v9498
        %v9722 = vpack.c.b16 %v9501, %v9500
        %v9723 = vpack.c.b16 %v9503, %v9502
        %v9724 = vpack.c.b16 %v9505, %v9504
        %v9725 = vpack.c.b16 %v9507, %v9506
        %v9726 = vpack.c.b16 %v9509, %v9508
        %v9727 = vpack.c.b16 %v9511, %v9510
        %v9728 = vpack.c.b16 %v9513, %v9512
        %v9729 = vpack.c.b16 %v9515, %v9514
        %v9730 = vpack.c.b16 %v9517, %v9516
        %v9731 = vpack.c.b16 %v9519, %v9518
        %v9732 = vpack.c.b16 %v9521, %v9520
        %v9733 = vpack.c.b16 %v9523, %v9522
        %v9734 = vpack.c.b16 %v9525, %v9524
        %v9735 = vpack.c.b16 %v9527, %v9526
        %v9736 = vpack.c.b16 %v9529, %v9528
        %v9737 = vpack.c.b16 %v9531, %v9530
        %v9738 = vpack.c.b16 %v9533, %v9532
        %v9739 = vpack.c.b16 %v9535, %v9534
        %v9740 = vpack.c.b16 %v9537, %v9536
        %v9741 = vpack.c.b16 %v9539, %v9538
        %v9742 = vpack.c.b16 %v9541, %v9540
        %v9743 = vpack.c.b16 %v9543, %v9542
        %v9744 = vpack.c.b16 %v9545, %v9544
        %v9745 = vpack.c.b16 %v9547, %v9546
        %v9746 = vpack.c.b16 %v9549, %v9548
        %v9747 = vpack.c.b16 %v9551, %v9550
        %v9748 = vpack.c.b16 %v9553, %v9552
        %v9749 = vpack.c.b16 %v9555, %v9554
        %v9750 = vpack.c.b16 %v9557, %v9556
        %v9751 = vpack.c.b16 %v9559, %v9558
        %v9752 = vpack.c.b16 %v9561, %v9560
        %v9753 = vpack.c.b16 %v9563, %v9562
        %v9754 = vpack.c.b16 %v9565, %v9564
        %v9755 = vpack.c.b16 %v9567, %v9566
        %v9756 = vpack.c.b16 %v9569, %v9568
        %v9757 = vpack.c.b16 %v9571, %v9570
        %v9758 = vpack.c.b16 %v9573, %v9572
        %v9759 = vpack.c.b16 %v9575, %v9574
        %v9760 = vpack.c.b16 %v9577, %v9576
        %v9761 = vpack.c.b16 %v9579, %v9578
        %v9762 = vpack.c.b16 %v9581, %v9580
        %v9763 = vpack.c.b16 %v9583, %v9582
        %v9764 = vpack.c.b16 %v9585, %v9584
        %v9765 = vpack.c.b16 %v9587, %v9586
        %v9766 = vpack.c.b16 %v9589, %v9588
        %v9767 = vpack.c.b16 %v9591, %v9590
        %v9768 = vpack.c.b16 %v9593, %v9592
        %v9769 = vpack.c.b16 %v9595, %v9594
        %v9770 = vpack.c.b16 %v9597, %v9596
        %v9771 = vpack.c.b16 %v9599, %v9598
        %v9772 = vpack.c.b16 %v9601, %v9600
        %v9773 = vpack.c.b16 %v9603, %v9602
        %v9774 = vpack.c.b16 %v9605, %v9604
        %v9775 = vpack.c.b16 %v9607, %v9606
        %v9776 = vpack.c.b16 %v9609, %v9608
        %v9777 = vpack.c.b16 %v9611, %v9610
        %v9778 = vpack.c.b16 %v9613, %v9612
        %v9779 = vpack.c.b16 %v9615, %v9614
        %v9780 = vpack.c.b16 %v9617, %v9616
        %v9781 = vpack.c.b16 %v9619, %v9618
        %v9782 = vpack.c.b16 %v9621, %v9620
        %v9783 = vpack.c.b16 %v9623, %v9622
        %v9784 = vpack.c.b16 %v9625, %v9624
        %v9785 = vpack.c.b16 %v9627, %v9626
        %v9786 = vpack.c.b16 %v9629, %v9628
        %v9787 = vpack.c.b16 %v9631, %v9630
        %v9788 = vpack.c.b16 %v9633, %v9632
        %v9789 = vpack.c.b16 %v9635, %v9634
        %v9790 = vpack.c.b16 %v9637, %v9636
        %v9791 = vpack.c.b16 %v9639, %v9638
        %v9792 = vpack.c.b16 %v9641, %v9640
        %v9793 = vpack.c.b16 %v9643, %v9642
        %v9794 = vpack.c.b16 %v9645, %v9644
        %v9795 = vpack.c.b16 %v9647, %v9646
        %v9796 = vpack.c.b16 %v9649, %v9648
        %v9797 = vpack.c.b16 %v9651, %v9650
        %v9798 = vpack.c.b16 %v9653, %v9652
        %v9799 = vpack.c.b16 %v9655, %v9654
        %v9800 = vpack.c.b16 %v9657, %v9656
        %v9801 = vpack.c.b16 %v9659, %v9658
        %v9802 = vpack.c.b16 %v9661, %v9660
        %v9803 = vpack.c.b16 %v9663, %v9662
        %v9804 = vpack.c.b16 %v9665, %v9664
        %v9805 = vpack.c.b16 %v9667, %v9666
        %v9806 = vpack.c.b16 %v9669, %v9668
        %v9807 = vpack.c.b16 %v9671, %v9670
        %v9808 = vpack.c.b16 %v9673, %v9672
        %v9809 = vpack.c.b16 %v9675, %v9674
        %v9810 = vpack.c.b16 %v9677, %v9676
        %v9811 = vpack.c.b16 %v9679, %v9678
        %v9812 = vpack.c.b16 %v9681, %v9680
        %v9813 = vpack.c.b16 %v9683, %v9682
        %v9814 = vpack.c.b16 %v9685, %v9684
        %v9815 = vpack.c.b16 %v9687, %v9686
        %9944 = vmatprep.subr.bf16.mxu0 0
        %9945 = vmatpush1.bf16.msra.mxu0 %v9688
        %9946 = vmatprep.subr.bf16.mxu0 0
        %9947 = vmatpush1.bf16.msra.mxu0 %v9689
        %9948 = vmatprep.subr.bf16.mxu0 0
        %9949 = vmatpush1.bf16.msra.mxu0 %v9690
        %9950 = vmatprep.subr.bf16.mxu0 0
        %9951 = vmatpush1.bf16.msra.mxu0 %v9691
        %9952 = vmatprep.subr.bf16.mxu0 0
        %9953 = vmatpush1.bf16.msra.mxu0 %v9692
        %9954 = vmatprep.subr.bf16.mxu0 0
        %9955 = vmatpush1.bf16.msra.mxu0 %v9693
        %9956 = vmatprep.subr.bf16.mxu0 0
        %9957 = vmatpush1.bf16.msra.mxu0 %v9694
        %9958 = vmatprep.subr.bf16.mxu0 0
        %9959 = vmatpush1.bf16.msra.mxu0 %v9695
        %9960 = vmatprep.subr.bf16.mxu0 0
        %9961 = vmatpush1.bf16.msra.mxu0 %v9696
        %9962 = vmatprep.subr.bf16.mxu0 0
        %9963 = vmatpush1.bf16.msra.mxu0 %v9697
        %9964 = vmatprep.subr.bf16.mxu0 0
        %9965 = vmatpush1.bf16.msra.mxu0 %v9698
        %9966 = vmatprep.subr.bf16.mxu0 0
        %9967 = vmatpush1.bf16.msra.mxu0 %v9699
        %9968 = vmatprep.subr.bf16.mxu0 0
        %9969 = vmatpush1.bf16.msra.mxu0 %v9700
        %9970 = vmatprep.subr.bf16.mxu0 0
        %9971 = vmatpush1.bf16.msra.mxu0 %v9701
        %9972 = vmatprep.subr.bf16.mxu0 0
        %9973 = vmatpush1.bf16.msra.mxu0 %v9702
        %9974 = vmatprep.subr.bf16.mxu0 0
        %9975 = vmatpush1.bf16.msra.mxu0 %v9703
        %9976 = vmatprep.mubr.bf16.mxu0 %v8898
        %9977 = vmatmul.mubr.bf16.gmra.mrb[0].mxu0 %v8897
        %v9978 = vpop.f32.mrb[0].mxu0
        %v9979 = vadd.f32 %v9174, %v9978
        %v9980 = vpop.f32.mrb[0].mxu0
        %v9981 = vpop.f32.mrb[0].mxu0
        %v9982 = vadd.f32 %v9174, %v9981
        %v9983 = vpop.f32.mrb[0].mxu0
        %9984 = vdwg.mxu0
        %9985 = vmatprep.subr.bf16.mxu0 0
        %9986 = vmatpush1.bf16.msra.mxu0 %v9704
        %9987 = vmatprep.subr.bf16.mxu0 0
        %9988 = vmatpush1.bf16.msra.mxu0 %v9705
        %9989 = vmatprep.subr.bf16.mxu0 0
        %9990 = vmatpush1.bf16.msra.mxu0 %v9706
        %9991 = vmatprep.subr.bf16.mxu0 0
        %9992 = vmatpush1.bf16.msra.mxu0 %v9707
        %9993 = vmatprep.subr.bf16.mxu0 0
        %9994 = vmatpush1.bf16.msra.mxu0 %v9708
        %9995 = vmatprep.subr.bf16.mxu0 0
        %9996 = vmatpush1.bf16.msra.mxu0 %v9709
        %9997 = vmatprep.subr.bf16.mxu0 0
        %9998 = vmatpush1.bf16.msra.mxu0 %v9710
        %9999 = vmatprep.subr.bf16.mxu0 0
        %10000 = vmatpush1.bf16.msra.mxu0 %v9711
        %10001 = vmatprep.subr.bf16.mxu0 0
        %10002 = vmatpush1.bf16.msra.mxu0 %v9712
        %10003 = vmatprep.subr.bf16.mxu0 0
        %10004 = vmatpush1.bf16.msra.mxu0 %v9713
        %10005 = vmatprep.subr.bf16.mxu0 0
        %10006 = vmatpush1.bf16.msra.mxu0 %v9714
        %10007 = vmatprep.subr.bf16.mxu0 0
        %10008 = vmatpush1.bf16.msra.mxu0 %v9715
        %10009 = vmatprep.subr.bf16.mxu0 0
        %10010 = vmatpush1.bf16.msra.mxu0 %v9716
        %10011 = vmatprep.subr.bf16.mxu0 0
        %10012 = vmatpush1.bf16.msra.mxu0 %v9717
        %10013 = vmatprep.subr.bf16.mxu0 0
        %10014 = vmatpush1.bf16.msra.mxu0 %v9718
        %10015 = vmatprep.subr.bf16.mxu0 0
        %10016 = vmatpush1.bf16.msra.mxu0 %v9719
        %10017 = vmatprep.mubr.bf16.mxu0 %v8900
        %10018 = vmatmul.mubr.bf16.gmra.mrb[0].mxu0 %v8899
        %v10019 = vpop.f32.mrb[0].mxu0
        %v10020 = vadd.f32 %v9979, %v10019
        %v10021 = vpop.f32.mrb[0].mxu0
        %v10022 = vpop.f32.mrb[0].mxu0
        %v10023 = vadd.f32 %v9982, %v10022
        %v10024 = vpop.f32.mrb[0].mxu0
        %10025 = vdwg.mxu0
        %10026 = vmatprep.subr.bf16.mxu0 0
        %10027 = vmatpush1.bf16.msra.mxu0 %v9720
        %10028 = vmatprep.subr.bf16.mxu0 0
        %10029 = vmatpush1.bf16.msra.mxu0 %v9721
        %10030 = vmatprep.subr.bf16.mxu0 0
        %10031 = vmatpush1.bf16.msra.mxu0 %v9722
        %10032 = vmatprep.subr.bf16.mxu0 0
        %10033 = vmatpush1.bf16.msra.mxu0 %v9723
        %10034 = vmatprep.subr.bf16.mxu0 0
        %10035 = vmatpush1.bf16.msra.mxu0 %v9724
        %10036 = vmatprep.subr.bf16.mxu0 0
        %10037 = vmatpush1.bf16.msra.mxu0 %v9725
        %10038 = vmatprep.subr.bf16.mxu0 0
        %10039 = vmatpush1.bf16.msra.mxu0 %v9726
        %10040 = vmatprep.subr.bf16.mxu0 0
        %10041 = vmatpush1.bf16.msra.mxu0 %v9727
        %10042 = vmatprep.subr.bf16.mxu0 0
        %10043 = vmatpush1.bf16.msra.mxu0 %v9728
        %10044 = vmatprep.subr.bf16.mxu0 0
        %10045 = vmatpush1.bf16.msra.mxu0 %v9729
        %10046 = vmatprep.subr.bf16.mxu0 0
        %10047 = vmatpush1.bf16.msra.mxu0 %v9730
        %10048 = vmatprep.subr.bf16.mxu0 0
        %10049 = vmatpush1.bf16.msra.mxu0 %v9731
        %10050 = vmatprep.subr.bf16.mxu0 0
        %10051 = vmatpush1.bf16.msra.mxu0 %v9732
        %10052 = vmatprep.subr.bf16.mxu0 0
        %10053 = vmatpush1.bf16.msra.mxu0 %v9733
        %10054 = vmatprep.subr.bf16.mxu0 0
        %10055 = vmatpush1.bf16.msra.mxu0 %v9734
        %10056 = vmatprep.subr.bf16.mxu0 0
        %10057 = vmatpush1.bf16.msra.mxu0 %v9735
        %10058 = vmatprep.mubr.bf16.mxu0 %v8902
        %10059 = vmatmul.mubr.bf16.gmra.mrb[0].mxu0 %v8901
        %v10060 = vpop.f32.mrb[0].mxu0
        %v10061 = vadd.f32 %v10020, %v10060
        %v10062 = vpop.f32.mrb[0].mxu0
        %v10063 = vpop.f32.mrb[0].mxu0
        %v10064 = vadd.f32 %v10023, %v10063
        %v10065 = vpop.f32.mrb[0].mxu0
        %10066 = vdwg.mxu0
        %10067 = vmatprep.subr.bf16.mxu0 0
        %10068 = vmatpush1.bf16.msra.mxu0 %v9736
        %10069 = vmatprep.subr.bf16.mxu0 0
        %10070 = vmatpush1.bf16.msra.mxu0 %v9737
        %10071 = vmatprep.subr.bf16.mxu0 0
        %10072 = vmatpush1.bf16.msra.mxu0 %v9738
        %10073 = vmatprep.subr.bf16.mxu0 0
        %10074 = vmatpush1.bf16.msra.mxu0 %v9739
        %10075 = vmatprep.subr.bf16.mxu0 0
        %10076 = vmatpush1.bf16.msra.mxu0 %v9740
        %10077 = vmatprep.subr.bf16.mxu0 0
        %10078 = vmatpush1.bf16.msra.mxu0 %v9741
        %10079 = vmatprep.subr.bf16.mxu0 0
        %10080 = vmatpush1.bf16.msra.mxu0 %v9742
        %10081 = vmatprep.subr.bf16.mxu0 0
        %10082 = vmatpush1.bf16.msra.mxu0 %v9743
        %10083 = vmatprep.subr.bf16.mxu0 0
        %10084 = vmatpush1.bf16.msra.mxu0 %v9744
        %10085 = vmatprep.subr.bf16.mxu0 0
        %10086 = vmatpush1.bf16.msra.mxu0 %v9745
        %10087 = vmatprep.subr.bf16.mxu0 0
        %10088 = vmatpush1.bf16.msra.mxu0 %v9746
        %10089 = vmatprep.subr.bf16.mxu0 0
        %10090 = vmatpush1.bf16.msra.mxu0 %v9747
        %10091 = vmatprep.subr.bf16.mxu0 0
        %10092 = vmatpush1.bf16.msra.mxu0 %v9748
        %10093 = vmatprep.subr.bf16.mxu0 0
        %10094 = vmatpush1.bf16.msra.mxu0 %v9749
        %10095 = vmatprep.subr.bf16.mxu0 0
        %10096 = vmatpush1.bf16.msra.mxu0 %v9750
        %10097 = vmatprep.subr.bf16.mxu0 0
        %10098 = vmatpush1.bf16.msra.mxu0 %v9751
        %10099 = vmatprep.mubr.bf16.mxu0 %v8904
        %10100 = vmatmul.mubr.bf16.gmra.mrb[0].mxu0 %v8903
        %v10101 = vpop.f32.mrb[0].mxu0
        %v10102 = vadd.f32 %v10061, %v10101
        %v10103 = vpop.f32.mrb[0].mxu0
        %v10104 = vpop.f32.mrb[0].mxu0
        %v10105 = vadd.f32 %v10064, %v10104
        %v10106 = vpop.f32.mrb[0].mxu0
        %10107 = vdwg.mxu0
        %10108 = vmatprep.subr.bf16.mxu0 0
        %10109 = vmatpush1.bf16.msra.mxu0 %v9752
        %10110 = vmatprep.subr.bf16.mxu0 0
        %10111 = vmatpush1.bf16.msra.mxu0 %v9753
        %10112 = vmatprep.subr.bf16.mxu0 0
        %10113 = vmatpush1.bf16.msra.mxu0 %v9754
        %10114 = vmatprep.subr.bf16.mxu0 0
        %10115 = vmatpush1.bf16.msra.mxu0 %v9755
        %10116 = vmatprep.subr.bf16.mxu0 0
        %10117 = vmatpush1.bf16.msra.mxu0 %v9756
        %10118 = vmatprep.subr.bf16.mxu0 0
        %10119 = vmatpush1.bf16.msra.mxu0 %v9757
        %10120 = vmatprep.subr.bf16.mxu0 0
        %10121 = vmatpush1.bf16.msra.mxu0 %v9758
        %10122 = vmatprep.subr.bf16.mxu0 0
        %10123 = vmatpush1.bf16.msra.mxu0 %v9759
        %10124 = vmatprep.subr.bf16.mxu0 0
        %10125 = vmatpush1.bf16.msra.mxu0 %v9760
        %10126 = vmatprep.subr.bf16.mxu0 0
        %10127 = vmatpush1.bf16.msra.mxu0 %v9761
        %10128 = vmatprep.subr.bf16.mxu0 0
        %10129 = vmatpush1.bf16.msra.mxu0 %v9762
        %10130 = vmatprep.subr.bf16.mxu0 0
        %10131 = vmatpush1.bf16.msra.mxu0 %v9763
        %10132 = vmatprep.subr.bf16.mxu0 0
        %10133 = vmatpush1.bf16.msra.mxu0 %v9764
        %10134 = vmatprep.subr.bf16.mxu0 0
        %10135 = vmatpush1.bf16.msra.mxu0 %v9765
        %10136 = vmatprep.subr.bf16.mxu0 0
        %10137 = vmatpush1.bf16.msra.mxu0 %v9766
        %10138 = vmatprep.subr.bf16.mxu0 0
        %10139 = vmatpush1.bf16.msra.mxu0 %v9767
        %10140 = vmatprep.mubr.bf16.mxu0 %v8906
        %10141 = vmatmul.mubr.bf16.gmra.mrb[0].mxu0 %v8905
        %v10142 = vpop.f32.mrb[0].mxu0
        %v10143 = vadd.f32 %v10102, %v10142
        %v10144 = vpop.f32.mrb[0].mxu0
        %v10145 = vpop.f32.mrb[0].mxu0
        %v10146 = vadd.f32 %v10105, %v10145
        %v10147 = vpop.f32.mrb[0].mxu0
        %10148 = vdwg.mxu0
        %10149 = vmatprep.subr.bf16.mxu0 0
        %10150 = vmatpush1.bf16.msra.mxu0 %v9768
        %10151 = vmatprep.subr.bf16.mxu0 0
        %10152 = vmatpush1.bf16.msra.mxu0 %v9769
        %10153 = vmatprep.subr.bf16.mxu0 0
        %10154 = vmatpush1.bf16.msra.mxu0 %v9770
        %10155 = vmatprep.subr.bf16.mxu0 0
        %10156 = vmatpush1.bf16.msra.mxu0 %v9771
        %10157 = vmatprep.subr.bf16.mxu0 0
        %10158 = vmatpush1.bf16.msra.mxu0 %v9772
        %10159 = vmatprep.subr.bf16.mxu0 0
        %10160 = vmatpush1.bf16.msra.mxu0 %v9773
        %10161 = vmatprep.subr.bf16.mxu0 0
        %10162 = vmatpush1.bf16.msra.mxu0 %v9774
        %10163 = vmatprep.subr.bf16.mxu0 0
        %10164 = vmatpush1.bf16.msra.mxu0 %v9775
        %10165 = vmatprep.subr.bf16.mxu0 0
        %10166 = vmatpush1.bf16.msra.mxu0 %v9776
        %10167 = vmatprep.subr.bf16.mxu0 0
        %10168 = vmatpush1.bf16.msra.mxu0 %v9777
        %10169 = vmatprep.subr.bf16.mxu0 0
        %10170 = vmatpush1.bf16.msra.mxu0 %v9778
        %10171 = vmatprep.subr.bf16.mxu0 0
        %10172 = vmatpush1.bf16.msra.mxu0 %v9779
        %10173 = vmatprep.subr.bf16.mxu0 0
        %10174 = vmatpush1.bf16.msra.mxu0 %v9780
        %10175 = vmatprep.subr.bf16.mxu0 0
        %10176 = vmatpush1.bf16.msra.mxu0 %v9781
        %10177 = vmatprep.subr.bf16.mxu0 0
        %10178 = vmatpush1.bf16.msra.mxu0 %v9782
        %10179 = vmatprep.subr.bf16.mxu0 0
        %10180 = vmatpush1.bf16.msra.mxu0 %v9783
        %10181 = vmatprep.mubr.bf16.mxu0 %v8908
        %10182 = vmatmul.mubr.bf16.gmra.mrb[0].mxu0 %v8907
        %v10183 = vpop.f32.mrb[0].mxu0
        %v10184 = vadd.f32 %v10143, %v10183
        %v10185 = vpop.f32.mrb[0].mxu0
        %v10186 = vpop.f32.mrb[0].mxu0
        %v10187 = vadd.f32 %v10146, %v10186
        %v10188 = vpop.f32.mrb[0].mxu0
        %10189 = vdwg.mxu0
        %10190 = vmatprep.subr.bf16.mxu0 0
        %10191 = vmatpush1.bf16.msra.mxu0 %v9784
        %10192 = vmatprep.subr.bf16.mxu0 0
        %10193 = vmatpush1.bf16.msra.mxu0 %v9785
        %10194 = vmatprep.subr.bf16.mxu0 0
        %10195 = vmatpush1.bf16.msra.mxu0 %v9786
        %10196 = vmatprep.subr.bf16.mxu0 0
        %10197 = vmatpush1.bf16.msra.mxu0 %v9787
        %10198 = vmatprep.subr.bf16.mxu0 0
        %10199 = vmatpush1.bf16.msra.mxu0 %v9788
        %10200 = vmatprep.subr.bf16.mxu0 0
        %10201 = vmatpush1.bf16.msra.mxu0 %v9789
        %10202 = vmatprep.subr.bf16.mxu0 0
        %10203 = vmatpush1.bf16.msra.mxu0 %v9790
        %10204 = vmatprep.subr.bf16.mxu0 0
        %10205 = vmatpush1.bf16.msra.mxu0 %v9791
        %10206 = vmatprep.subr.bf16.mxu0 0
        %10207 = vmatpush1.bf16.msra.mxu0 %v9792
        %10208 = vmatprep.subr.bf16.mxu0 0
        %10209 = vmatpush1.bf16.msra.mxu0 %v9793
        %10210 = vmatprep.subr.bf16.mxu0 0
        %10211 = vmatpush1.bf16.msra.mxu0 %v9794
        %10212 = vmatprep.subr.bf16.mxu0 0
        %10213 = vmatpush1.bf16.msra.mxu0 %v9795
        %10214 = vmatprep.subr.bf16.mxu0 0
        %10215 = vmatpush1.bf16.msra.mxu0 %v9796
        %10216 = vmatprep.subr.bf16.mxu0 0
        %10217 = vmatpush1.bf16.msra.mxu0 %v9797
        %10218 = vmatprep.subr.bf16.mxu0 0
        %10219 = vmatpush1.bf16.msra.mxu0 %v9798
        %10220 = vmatprep.subr.bf16.mxu0 0
        %10221 = vmatpush1.bf16.msra.mxu0 %v9799
        %10222 = vmatprep.mubr.bf16.mxu0 %v8910
        %10223 = vmatmul.mubr.bf16.gmra.mrb[0].mxu0 %v8909
        %v10224 = vpop.f32.mrb[0].mxu0
        %v10225 = vadd.f32 %v10184, %v10224
        %v10226 = vpop.f32.mrb[0].mxu0
        %v10227 = vpop.f32.mrb[0].mxu0
        %v10228 = vadd.f32 %v10187, %v10227
        %v10229 = vpop.f32.mrb[0].mxu0
        %10230 = vdwg.mxu0
        %10231 = vmatprep.subr.bf16.mxu0 0
        %10232 = vmatpush1.bf16.msra.mxu0 %v9800
        %10233 = vmatprep.subr.bf16.mxu0 0
        %10234 = vmatpush1.bf16.msra.mxu0 %v9801
        %10235 = vmatprep.subr.bf16.mxu0 0
        %10236 = vmatpush1.bf16.msra.mxu0 %v9802
        %10237 = vmatprep.subr.bf16.mxu0 0
        %10238 = vmatpush1.bf16.msra.mxu0 %v9803
        %10239 = vmatprep.subr.bf16.mxu0 0
        %10240 = vmatpush1.bf16.msra.mxu0 %v9804
        %10241 = vmatprep.subr.bf16.mxu0 0
        %10242 = vmatpush1.bf16.msra.mxu0 %v9805
        %10243 = vmatprep.subr.bf16.mxu0 0
        %10244 = vmatpush1.bf16.msra.mxu0 %v9806
        %10245 = vmatprep.subr.bf16.mxu0 0
        %10246 = vmatpush1.bf16.msra.mxu0 %v9807
        %10247 = vmatprep.subr.bf16.mxu0 0
        %10248 = vmatpush1.bf16.msra.mxu0 %v9808
        %10249 = vmatprep.subr.bf16.mxu0 0
        %10250 = vmatpush1.bf16.msra.mxu0 %v9809
        %10251 = vmatprep.subr.bf16.mxu0 0
        %10252 = vmatpush1.bf16.msra.mxu0 %v9810
        %10253 = vmatprep.subr.bf16.mxu0 0
        %10254 = vmatpush1.bf16.msra.mxu0 %v9811
        %10255 = vmatprep.subr.bf16.mxu0 0
        %10256 = vmatpush1.bf16.msra.mxu0 %v9812
        %10257 = vmatprep.subr.bf16.mxu0 0
        %10258 = vmatpush1.bf16.msra.mxu0 %v9813
        %10259 = vmatprep.subr.bf16.mxu0 0
        %10260 = vmatpush1.bf16.msra.mxu0 %v9814
        %10261 = vmatprep.subr.bf16.mxu0 0
        %10262 = vmatpush1.bf16.msra.mxu0 %v9815
        %10263 = vmatprep.mubr.bf16.mxu0 %v8912
        %10264 = vmatmul.mubr.bf16.gmra.mrb[0].mxu0 %v8911
        %v10265 = vpop.f32.mrb[0].mxu0
        %v10266 = vadd.f32 %v10225, %v10265
        %v10267 = vpop.f32.mrb[0].mxu0
        %v10268 = vpop.f32.mrb[0].mxu0
        %v10269 = vadd.f32 %v10228, %v10268
        %v10270 = vpop.f32.mrb[0].mxu0
        %10271 = vdwg.mxu0
        %v10272 = vadd.f32 %v8239, %v10266
        %v10273 = vadd.f32 %v8240, %v10269
        %v10274 = vld [vmem:[%s652] sm:$0x1]
        %v10275 = vld [vmem:[%s655] sm:$0x1]
        %v10276 = vsel %vm692, %v10272, 0.0
        %10277 = vadd.xlane.f32.xlu0 %v10276
        %v10278 = vpop.xlane.xlu0 %10277
        %v10279 = vsel %vm692, %v10273, 0.0
        %10280 = vadd.xlane.f32.xlu0 %v10279
        %v10281 = vpop.xlane.xlu0 %10280
        %v10282 = vmul.f32 %v10278, %v8204
        %v10283 = vmul.f32 %v10281, %v8204
        %v10284 = vsub.f32 %v10272, %v10282
        %v10285 = vsub.f32 %v10273, %v10283
        %v10286 = vmul.f32 %v10284, %v10284
        %v10287 = vmul.f32 %v10285, %v10285
        %v10288 = vsel %vm692, %v10286, 0.0
        %10289 = vadd.xlane.f32.xlu0 %v10288
        %v10290 = vpop.xlane.xlu0 %10289
        %v10291 = vsel %vm692, %v10287, 0.0
        %10292 = vadd.xlane.f32.xlu0 %v10291
        %v10293 = vpop.xlane.xlu0 %10292
        %v10294 = vmul.f32 %v10290, %v8204
        %v10295 = vmul.f32 %v10293, %v8204
        %v10296 = vadd.f32 %v10294, 1e-05
        %v10297 = vadd.f32 %v10295, 1e-05
        %v10298 = vrsqrt.pop %v10296
        %v10299 = vrsqrt.pop %v10297
        %v10300 = vmul.f32 %v10284, %v10298
        %v10301 = vmul.f32 %v10285, %v10299
        %v10303 = vlaneseq
        %v10304 = vshrl.u32 %v10303, 7
        %v10305 = vsub.s32 0, %v10304
        %v10306 = vrot.slane %v10274, %v10305
        %v10308 = vmul.f32 %v10300, %v10306
        %v10309 = vmul.f32 %v10301, %v10306
        %v10311 = vlaneseq
        %v10312 = vshrl.u32 %v10311, 7
        %v10313 = vsub.s32 0, %v10312
        %v10314 = vrot.slane %v10275, %v10313
        %v10316 = vadd.f32 %v10308, %v10314
        %v10317 = vadd.f32 %v10309, %v10314
        %10318 = vst.msk [vmem:[#allocation2] sm:$0xff] %vm692, %v10316
        %10319 = vst.msk [vmem:[#allocation2 + $0x8] sm:$0xff] %vm692, %v10317
        %p10320 = scmp.eq.s32.totalorder %s27, 1
        // Predicated region
        $region85: #{transformer_model.1} parent=79 // pred_check
          %p10321 = pneg %p10320
        $region86: #{transformer_model.1} parent=79 // pred_check_branch
          %10323 = sbr.rel (%p10321) target = $region88
        $region87: #{transformer_model.1} parent=79 // pred_region
          %v10324 = vpack.c.bf16 %v10316, %v10316
          %v10325 = vpack.c.bf16 %v10317, %v10317
          %v10326 = vld [vmem:[%s13] sm:$0xf]
          %v10327 = vld [vmem:[%s13 + $0x4] sm:$0xf]
          %v10328 = vld [vmem:[%s13 + $0x8] sm:$0xf]
          %v10329 = vld [vmem:[%s13 + $0xc] sm:$0xf]
          %v10330 = vld [vmem:[%s14] sm:$0x1]
          %v10332 = vlaneseq
          %v10333 = vshrl.u32 %v10332, 7
          %v10334 = vsub.s32 0, %v10333
          %v10335 = vrot.slane %v10330, %v10334
          %v10339 = vunpack.c.l.b16 %v10324
          %v10340 = vunpack.c.l.b16 %v10325
          %v10341 = vrot.slane %v10339, 7
          %v10342 = vrot.slane %v10340, 6
          %vm10343 = vcmask 1041409
          %v10344 = vsel %vm10343, %v10342, %v10341
          %v10345 = vpack.c.b16 %v10344, %v10344
          %v10350 = vunpack.c.l.b16 %v10326
          %v10351 = vunpack.c.l.b16 %v10327
          %v10352 = vunpack.c.l.b16 %v10328
          %v10353 = vunpack.c.l.b16 %v10329
          %v10354 = vpack.c.b16 %v10351, %v10350
          %v10355 = vpack.c.b16 %v10353, %v10352
          %v10359 = vsel %vm692, %v10345, 0
          %10361 = vmatprep.subr.bf16.mxu0 0
          %10362 = vmatpush1.bf16.msra.mxu0 %v10354
          %10363 = vmatprep.subr.bf16.mxu0 0
          %10364 = vmatpush1.bf16.msra.mxu0 %v10355
          %10365 = vmatprep.subr.bf16.mxu0 0
          %10366 = vmatpush1.bf16.msra.mxu0 0
          %10367 = vmatprep.subr.bf16.mxu0 0
          %10368 = vmatpush1.bf16.msra.mxu0 0
          %10369 = vmatprep.subr.bf16.mxu0 0
          %10370 = vmatpush1.bf16.msra.mxu0 0
          %10371 = vmatprep.subr.bf16.mxu0 0
          %10372 = vmatpush1.bf16.msra.mxu0 0
          %10373 = vmatprep.subr.bf16.mxu0 0
          %10374 = vmatpush1.bf16.msra.mxu0 0
          %10375 = vmatprep.subr.bf16.mxu0 0
          %10376 = vmatpush1.bf16.msra.mxu0 0
          %10377 = vmatprep.subr.bf16.mxu0 0
          %10378 = vmatpush1.bf16.msra.mxu0 0
          %10379 = vmatprep.subr.bf16.mxu0 0
          %10380 = vmatpush1.bf16.msra.mxu0 0
          %10381 = vmatprep.subr.bf16.mxu0 0
          %10382 = vmatpush1.bf16.msra.mxu0 0
          %10383 = vmatprep.subr.bf16.mxu0 0
          %10384 = vmatpush1.bf16.msra.mxu0 0
          %10385 = vmatprep.subr.bf16.mxu0 0
          %10386 = vmatpush1.bf16.msra.mxu0 0
          %10387 = vmatprep.subr.bf16.mxu0 0
          %10388 = vmatpush1.bf16.msra.mxu0 0
          %10389 = vmatprep.subr.bf16.mxu0 0
          %10390 = vmatpush1.bf16.msra.mxu0 0
          %10391 = vmatprep.subr.bf16.mxu0 0
          %10392 = vmatpush1.bf16.msra.mxu0 0
          %10393 = vmatprep.mubr.bf16.mxu0 0
          %10394 = vmatmul.mubr.bf16.gmra.mrb[0].mxu0 %v10359
          %v10395 = vpop.f32.mrb[0].mxu0
          %v10396 = vadd.f32 %v10335, %v10395
          %v10397 = vpop.f32.mrb[0].mxu0
          %v10398 = vpop.f32.mrb[0].mxu0
          %v10399 = vpop.f32.mrb[0].mxu0
          %10400 = vdwg.mxu0
          %vm10401 = vcmask 123904
          %10402 = vst.msk [vmem:[#allocation3] sm:$0x3] %vm10401, %v10396
        $region88: #{transformer_model.1} parent=79 // pred_fallthru
          _
        // Predicated region
        $region89: #{transformer_model.1} parent=79 // pred_check
          %p10403 = pneg %p415
        $region90: #{transformer_model.1} parent=79 // pred_check_branch
          %10405 = sbr.rel (%p10403) target = $region92
        $region91: #{transformer_model.1} parent=79 // pred_region
          %s10407 = ssub.s32 32, 32
          %10408 = vsyncadd [#allocation4], %s10407
          %s10410 = sshll.u32 [#allocation3], 4
          %s10411 = int_to_ptr.vmem [resolvable:$true] %s10410
          %10413 = dma.vmem_to_hbm [thread:$0]  %s10411, 32, %s15, [#allocation4]
        $region92: #{transformer_model.1} parent=79 // pred_fallthru
          _
        // Predicated region
        $region93: #{transformer_model.1} parent=79 // pred_check
          %p10414 = pneg %p415
        $region94: #{transformer_model.1} parent=79 // pred_check_branch
          %10416 = sbr.rel (%p10414) target = $region96
        $region95: #{transformer_model.1} parent=79 // pred_region
          %10417 = dma.done [#allocation4], 32
        $region96: #{transformer_model.1} parent=79 // pred_fallthru
          _
      $region80: #{transformer_model.1} parent=5 // pred_fallthru
        _
      %p10418 = scmp.le.s32.totalorder 2, %s22
      // Predicated region
      $region97: #{transformer_model.1} parent=5 // pred_check
        %p10419 = pneg %p10418
      $region98: #{transformer_model.1} parent=5 // pred_check_branch
        %10421 = sbr.rel (%p10419) target = $region100
      $region99: #{transformer_model.1} parent=5 // pred_region
        %s10422 = ssub.s32 %s22, 2
      $region100: #{transformer_model.1} parent=5 // pred_fallthru
        _
    $region6: #{transformer_model.1} parent=1 // loop_footer
      %s26 = sadd.s32 1, %s22
    $region7: #{transformer_model.1} parent=1 // loop_footer_branch
      %21 = sbr.rel target = $region3
    $region8: #{transformer_model.1} parent=1 // loop_exit
      _
    %10423 = vsyncpa [#allocation4], 1
    %s10424 = scalar_lea.sflag [#allocation4], 1
    %10425 = vsyncpa %s10424, 1

</llo_original>
